<compile_context>
chip_gen: v7x
topology: tpu7x:2x2x1
jax: 0.10.0
libtpu: 0.0.40
codegen_flags: <defaults>
</compile_context>

<pallas_src>
import math

import numpy as np
import jax
import jax.numpy as jnp
from jax.experimental import pallas as pl
from jax.experimental.pallas import tpu as pltpu

_CONV_SPECS = ((8, 4), (4, 2), (3, 1))  # (kernel, stride) for conv1..conv3


def _conv_out(n, k, s):
    return (n - k) // s + 1


def _make_selectors(ih, iw, kh, kw, s):
    """Constant 0/1 row-selection matrices turning a conv into per-tap GEMMs.

    g[t= i*kw+j, y*ow+x, (s*y+i)*iw + (s*x+j)] = 1, so for activations h of shape
    [ih*iw, C] (rows = positions, row-major), g[t] @ h is the [oh*ow, C] slab of
    inputs seen by tap t.
    """
    oh, ow = _conv_out(ih, kh, s), _conv_out(iw, kw, s)
    g = np.zeros((kh * kw, oh * ow, ih * iw), np.float32)
    for i in range(kh):
        for j in range(kw):
            t = i * kw + j
            for y in range(oh):
                for x in range(ow):
                    g[t, y * ow + x, (s * y + i) * iw + (s * x + j)] = 1.0
    return jnp.asarray(g, jnp.bfloat16)


# ---------------------------------------------------------------------------
# Fused Pallas kernel: conv1 -> conv2 -> conv3 -> fc1 -> fc2
# (one sample per grid step; everything stays in VMEM / vregs).
# ---------------------------------------------------------------------------
def _conv2dnet_kernel(xs_ref,
                      g1_ref, w1_ref, b1_ref,
                      g2_ref, w2_ref, b2_ref,
                      g3_ref, w3_ref, b3_ref,
                      gf_ref, wf1_ref, bf1_ref,
                      wf2_ref, bf2_ref,
                      out_ref):
    def tap_layer(h, g_ref, w_ref, b_ref):
        # h: [in_positions, Cin] bf16.  Per tap: 0/1 row-selection GEMM, then that
        # tap's weight GEMM; accumulate f32, f32 bias + ReLU, emit bf16.
        m_out = g_ref.shape[1]
        cout = w_ref.shape[2]
        acc = jnp.zeros((m_out, cout), jnp.float32)
        for t in range(g_ref.shape[0]):          # static unroll (<= 16 taps)
            sel = jnp.dot(g_ref[t], h, preferred_element_type=jnp.float32)
            acc = acc + jnp.dot(sel.astype(jnp.bfloat16), w_ref[t],
                                preferred_element_type=jnp.float32)
        return jnp.maximum(acc + b_ref[...], 0.0).astype(jnp.bfloat16)

    h = xs_ref[0]                                  # [169, 64] stride-folded input
    h = tap_layer(h, g1_ref, w1_ref, b1_ref)       # conv1 -> [144, 32]
    h = tap_layer(h, g2_ref, w2_ref, b2_ref)       # conv2 -> [25, 64]
    h = tap_layer(h, g3_ref, w3_ref, b3_ref)       # conv3 -> [9, 64]
    h = tap_layer(h, gf_ref, wf1_ref, bf1_ref)     # fc1   -> [1, 512]
    logits = jnp.dot(h, wf2_ref[...], preferred_element_type=jnp.float32) + bf2_ref[...]
    # lane-dense (128 cols) and sublane-dense (8 rows) store of the padded logits.
    out_ref[...] = jnp.broadcast_to(logits, out_ref.shape)


def _resident_spec(a):
    nd = a.ndim
    return pl.BlockSpec(a.shape, lambda b: (0,) * nd)


def conv2dnet_forward(x_nchw, kparams, n_actions):
    """Forward matching PyTorch Conv2Dnet.forward; x: [B, C, H, W] float32."""
    (g1, w1, b1, g2, w2, b2, g3, w3, b3, gf, wf1, bf1, wf2, bf2) = kparams
    bsz, cin, hgt, wid = x_nchw.shape
    k1, s1 = _CONV_SPECS[0]
    oh1, ow1 = _conv_out(hgt, k1, s1), _conv_out(wid, k1, s1)
    span_h, span_w = (oh1 - 1) * s1 + k1, (ow1 - 1) * s1 + k1
    hb, wb = span_h // s1, span_w // s1

    # NCHW -> NHWC, crop to what the VALID conv reads, then stride-fold
    # (space-to-depth by conv1's stride): pure relayout, no duplication.
    # TODO(synk): this input relayout (+ the final [:, :n_actions] slice) is the
    # only data movement left outside the Pallas kernel.
    x = jnp.transpose(x_nchw.astype(jnp.float32), (0, 2, 3, 1))[:, :span_h, :span_w, :]
    xs = (x.reshape(bsz, hb, s1, wb, s1, cin)
           .transpose(0, 1, 3, 2, 4, 5)
           .reshape(bsz, hb * wb, s1 * s1 * cin)
           .astype(jnp.bfloat16))

    assert g1.shape == ((k1 // s1) ** 2, oh1 * ow1, hb * wb), (
        "kernel params were prepared for a different state_shape")

    n_pad = wf2.shape[1]
    flops = 0
    for g, wt in ((g1, w1), (g2, w2), (g3, w3), (gf, wf1)):
        taps, m, kin = g.shape
        flops += 2 * taps * m * (kin * wt.shape[1] + wt.shape[1] * wt.shape[2])
    flops = bsz * (flops + 2 * wf2.shape[0] * wf2.shape[1])
    bytes_accessed = (int(xs.size) * 2 + bsz * 8 * n_pad * 4
                      + sum(int(a.size) * a.dtype.itemsize for a in kparams))

    out = pl.pallas_call(
        _conv2dnet_kernel,
        out_shape=jax.ShapeDtypeStruct((bsz, 8, n_pad), jnp.float32),
        grid=(bsz,),
        in_specs=[pl.BlockSpec((1,) + xs.shape[1:], lambda b: (b, 0, 0))]
                 + [_resident_spec(a) for a in kparams],
        out_specs=pl.BlockSpec((1, 8, n_pad), lambda b: (b, 0, 0)),
        compiler_params=pltpu.CompilerParams(dimension_semantics=("parallel",)),
        cost_estimate=pl.CostEstimate(flops=flops, transcendentals=0,
                                      bytes_accessed=bytes_accessed),
    )(xs, *kparams)
    return out[:, 0, :n_actions]


# ---------------------------------------------------------------------------
# Params: canonical (PyTorch-layout-compatible) init + fused-kernel repacking.
# ---------------------------------------------------------------------------
def init_conv2dnet_params(key, state_shape=(4, 52, 52), n_actions=6,
                          start_filters=32, fc_filters=512):
    """Canonical params: conv weights HWIO (PyTorch OIHW -> transpose(2,3,1,0)),
    fc1 rows in PyTorch NCHW-flatten order, U(-1/sqrt(fan_in)) init."""
    cin, hgt, wid = state_shape
    chans = (cin, start_filters, 2 * start_filters, 2 * start_filters)
    keys = jax.random.split(key, 10)

    def uni(k, shape, bound):
        return jax.random.uniform(k, shape, jnp.float32, -bound, bound)

    params = {}
    h, w = hgt, wid
    for li, (ksz, st) in enumerate(_CONV_SPECS):
        ci, co = chans[li], chans[li + 1]
        bound = 1.0 / math.sqrt(ci * ksz * ksz)
        params[f"conv{li + 1}"] = (uni(keys[2 * li], (ksz, ksz, ci, co), bound),
                                   uni(keys[2 * li + 1], (co,), bound))
        h, w = _conv_out(h, ksz, st), _conv_out(w, ksz, st)

    conv_out = h * w * chans[-1]
    bound = 1.0 / math.sqrt(conv_out)
    params["fc1"] = (uni(keys[6], (conv_out, fc_filters), bound),
                     uni(keys[7], (fc_filters,), bound))
    bound = 1.0 / math.sqrt(fc_filters)
    params["fc2"] = (uni(keys[8], (fc_filters, n_actions), bound),
                     uni(keys[9], (n_actions,), bound))
    return params


def prepare_kernel_params(params, state_shape):
    """Repack canonical params into the fused-kernel layout: per-tap bf16 weights,
    constant 0/1 selection matrices, f32 [1,C] biases, 128-lane-padded final layer."""
    cin, hgt, wid = state_shape
    (k1, s1), (k2, s2), (k3, s3) = _CONV_SPECS
    assert k1 % s1 == 0, "conv1 stride must divide its kernel for the stride fold"
    oh1, ow1 = _conv_out(hgt, k1, s1), _conv_out(wid, k1, s1)
    oh2, ow2 = _conv_out(oh1, k2, s2), _conv_out(ow1, k2, s2)
    oh3, ow3 = _conv_out(oh2, k3, s3), _conv_out(ow2, k3, s3)
    hb, wb = ((oh1 - 1) * s1 + k1) // s1, ((ow1 - 1) * s1 + k1) // s1
    kk = k1 // s1

    w1, b1 = params["conv1"]
    w2, b2 = params["conv2"]
    w3, b3 = params["conv3"]
    wf1, bf1 = params["fc1"]
    wf2, bf2 = params["fc2"]
    c1, c2, c3 = w1.shape[-1], w2.shape[-1], w3.shape[-1]
    fdim = wf1.shape[-1]

    # conv1: fold the stride into channels -> equivalent kk x kk stride-1 conv.
    w1k = (w1.reshape(kk, s1, kk, s1, cin, c1)
             .transpose(0, 2, 1, 3, 4, 5)
             .reshape(kk * kk, s1 * s1 * cin, c1)).astype(jnp.bfloat16)
    g1 = _make_selectors(hb, wb, kk, kk, 1)
    w2k = w2.reshape(k2 * k2, w2.shape[2], c2).astype(jnp.bfloat16)
    g2 = _make_selectors(oh1, ow1, k2, k2, s2)
    w3k = w3.reshape(k3 * k3, w3.shape[2], c3).astype(jnp.bfloat16)
    g3 = _make_selectors(oh2, ow2, k3, k3, s3)
    # fc1 == a (oh3 x ow3) VALID "conv" with a single output position;
    # canonical rows are in PyTorch NCHW-flatten order (c*oh3*ow3 + y*ow3 + x).
    wf1k = wf1.reshape(c3, oh3 * ow3, fdim).transpose(1, 0, 2).astype(jnp.bfloat16)
    gf = _make_selectors(oh3, ow3, oh3, ow3, 1)

    n_act = wf2.shape[1]
    n_pad = ((n_act + 127) // 128) * 128
    wf2k = jnp.zeros((fdim, n_pad), jnp.float32).at[:, :n_act].set(wf2).astype(jnp.bfloat16)
    bf2k = jnp.zeros((1, n_pad), jnp.float32).at[:, :n_act].set(bf2.reshape(1, -1))

    as_bias = lambda b: jnp.asarray(b, jnp.float32).reshape(1, -1)
    return (g1, w1k, as_bias(b1),
            g2, w2k, as_bias(b2),
            g3, w3k, as_bias(b3),
            gf, wf1k, as_bias(bf1),
            wf2k, bf2k)


def conv2dnet_reference(x_nchw, params, n_actions):
    """Pure-JAX reference (lax.conv) with the same bf16-weight / f32-accumulate
    recipe and PyTorch's NCHW flatten before fc1."""
    x = jnp.transpose(x_nchw.astype(jnp.float32), (0, 2, 3, 1))

    def conv(h, w_hwio, b, stride):
        y = jax.lax.conv_general_dilated(
            h.astype(jnp.bfloat16), w_hwio.astype(jnp.bfloat16),
            (stride, stride), "VALID",
            dimension_numbers=("NHWC", "HWIO", "NHWC"),
            preferred_element_type=jnp.float32)
        return jnp.maximum(y + b, 0.0)

    h = conv(x, *params["conv1"], _CONV_SPECS[0][1])
    h = conv(h, *params["conv2"], _CONV_SPECS[1][1])
    h = conv(h, *params["conv3"], _CONV_SPECS[2][1])
    flat = jnp.transpose(h, (0, 3, 1, 2)).reshape(x.shape[0], -1)   # NCHW flatten
    wf1, bf1 = params["fc1"]
    wf2, bf2 = params["fc2"]
    h = jnp.maximum(jnp.dot(flat.astype(jnp.bfloat16), wf1.astype(jnp.bfloat16),
                            preferred_element_type=jnp.float32) + bf1, 0.0)
    out = jnp.dot(h.astype(jnp.bfloat16), wf2.astype(jnp.bfloat16),
                  preferred_element_type=jnp.float32) + bf2
    return out[:, :n_actions]


if __name__ == "__main__":
    key = jax.random.PRNGKey(0)
    k_params, k_x = jax.random.split(key)

    state_shape = (4, 52, 52)   # (C, H, W); this conv stack requires H, W >= 36
    n_actions = 6
    batch = 2

    params = init_conv2dnet_params(k_params, state_shape=state_shape,
                                   n_actions=n_actions)
    kparams = prepare_kernel_params(params, state_shape)
    x = jax.random.normal(k_x, (batch,) + state_shape, dtype=jnp.float32)

    fwd = jax.jit(conv2dnet_forward, static_argnums=(2,))
    out = jax.block_until_ready(fwd(x, kparams, n_actions))

    ref = conv2dnet_reference(x, params, n_actions)
    assert out.shape == (batch, n_actions)
    max_err = float(jnp.max(jnp.abs(out - ref)))
    assert jnp.allclose(out, ref, atol=1e-2, rtol=1e-2), (
        f"mismatch vs JAX reference: max |diff| = {max_err}")
    print("KERNEL_OK")
</pallas_src>

<mosaic_0001>
module attributes {stable_mosaic.version = 11 : i64} {
  func.func @_conv2dnet_kernel(%arg0: i32, %arg1: memref<1x169x64xbf16, #tpu.memory_space<vmem>>, %arg2: memref<4x144x169xbf16, #tpu.memory_space<vmem>>, %arg3: memref<4x64x32xbf16, #tpu.memory_space<vmem>>, %arg4: memref<1x32xf32, #tpu.memory_space<vmem>>, %arg5: memref<16x25x144xbf16, #tpu.memory_space<vmem>>, %arg6: memref<16x32x64xbf16, #tpu.memory_space<vmem>>, %arg7: memref<1x64xf32, #tpu.memory_space<vmem>>, %arg8: memref<9x9x25xbf16, #tpu.memory_space<vmem>>, %arg9: memref<9x64x64xbf16, #tpu.memory_space<vmem>>, %arg10: memref<1x64xf32, #tpu.memory_space<vmem>>, %arg11: memref<9x1x9xbf16, #tpu.memory_space<vmem>>, %arg12: memref<9x64x512xbf16, #tpu.memory_space<vmem>>, %arg13: memref<1x512xf32, #tpu.memory_space<vmem>>, %arg14: memref<512x128xbf16, #tpu.memory_space<vmem>>, %arg15: memref<1x128xf32, #tpu.memory_space<vmem>>, %arg16: memref<1x8x128xf32, #tpu.memory_space<vmem>>) attributes {dimension_semantics = [#tpu.dimension_semantics<parallel>], iteration_bounds = array<i64: 2>, scalar_prefetch = 0 : i64, scratch_operands = 0 : i64, tpu.core_type = #tpu.core_type<tc>, window_params = [{transform_indices = @transform_0, window_bounds = array<i64: 1, 169, 64>}, {pipeline_mode = #tpu.pipeline_mode<synchronous>, transform_indices = @transform_1, window_bounds = array<i64: 4, 144, 169>}, {pipeline_mode = #tpu.pipeline_mode<synchronous>, transform_indices = @transform_2, window_bounds = array<i64: 4, 64, 32>}, {pipeline_mode = #tpu.pipeline_mode<synchronous>, transform_indices = @transform_3, window_bounds = array<i64: 1, 32>}, {pipeline_mode = #tpu.pipeline_mode<synchronous>, transform_indices = @transform_4, window_bounds = array<i64: 16, 25, 144>}, {pipeline_mode = #tpu.pipeline_mode<synchronous>, transform_indices = @transform_5, window_bounds = array<i64: 16, 32, 64>}, {pipeline_mode = #tpu.pipeline_mode<synchronous>, transform_indices = @transform_6, window_bounds = array<i64: 1, 64>}, {pipeline_mode = #tpu.pipeline_mode<synchronous>, transform_indices = @transform_7, window_bounds = array<i64: 9, 9, 25>}, {pipeline_mode = #tpu.pipeline_mode<synchronous>, transform_indices = @transform_8, window_bounds = array<i64: 9, 64, 64>}, {pipeline_mode = #tpu.pipeline_mode<synchronous>, transform_indices = @transform_9, window_bounds = array<i64: 1, 64>}, {pipeline_mode = #tpu.pipeline_mode<synchronous>, transform_indices = @transform_10, window_bounds = array<i64: 9, 1, 9>}, {pipeline_mode = #tpu.pipeline_mode<synchronous>, transform_indices = @transform_11, window_bounds = array<i64: 9, 64, 512>}, {pipeline_mode = #tpu.pipeline_mode<synchronous>, transform_indices = @transform_12, window_bounds = array<i64: 1, 512>}, {pipeline_mode = #tpu.pipeline_mode<synchronous>, transform_indices = @transform_13, window_bounds = array<i64: 512, 128>}, {pipeline_mode = #tpu.pipeline_mode<synchronous>, transform_indices = @transform_14, window_bounds = array<i64: 1, 128>}, {transform_indices = @transform_15, window_bounds = array<i64: 1, 8, 128>}]} {
    %c0 = arith.constant 0 : index
    %c0_0 = arith.constant 0 : index
    %c0_1 = arith.constant 0 : index
    %0 = vector.load %arg1[%c0, %c0_0, %c0_1] : memref<1x169x64xbf16, #tpu.memory_space<vmem>>, vector<1x169x64xbf16>
    %1 = vector.shape_cast %0 : vector<1x169x64xbf16> to vector<169x64xbf16>
    %cst = arith.constant 0.000000e+00 : f32
    %2 = vector.broadcast %cst : f32 to vector<144x32xf32>
    %c0_2 = arith.constant 0 : index
    %c0_3 = arith.constant 0 : index
    %c0_4 = arith.constant 0 : index
    %3 = vector.load %arg2[%c0_2, %c0_3, %c0_4] : memref<4x144x169xbf16, #tpu.memory_space<vmem>>, vector<1x144x169xbf16>
    %4 = vector.shape_cast %3 : vector<1x144x169xbf16> to vector<144x169xbf16>
    %cst_5 = arith.constant dense<0.000000e+00> : vector<144x64xf32>
    %5 = tpu.matmul %4, %1, %cst_5 {dimension_numbers = #tpu.dot_dimension_numbers<[1], [0], [0], [1], [0, 0, 1, 1], [], []>} : vector<144x169xbf16>, vector<169x64xbf16>, vector<144x64xf32> -> vector<144x64xf32>
    %6 = arith.truncf %5 : vector<144x64xf32> to vector<144x64xbf16>
    %c0_6 = arith.constant 0 : index
    %c0_7 = arith.constant 0 : index
    %c0_8 = arith.constant 0 : index
    %7 = vector.load %arg3[%c0_6, %c0_7, %c0_8] : memref<4x64x32xbf16, #tpu.memory_space<vmem>>, vector<1x64x32xbf16>
    %8 = vector.shape_cast %7 : vector<1x64x32xbf16> to vector<64x32xbf16>
    %cst_9 = arith.constant dense<0.000000e+00> : vector<144x32xf32>
    %9 = tpu.matmul %6, %8, %cst_9 {dimension_numbers = #tpu.dot_dimension_numbers<[1], [0], [0], [1], [0, 0, 1, 1], [], []>} : vector<144x64xbf16>, vector<64x32xbf16>, vector<144x32xf32> -> vector<144x32xf32>
    %10 = arith.addf %2, %9 : vector<144x32xf32>
    %c1 = arith.constant 1 : index
    %c0_10 = arith.constant 0 : index
    %c0_11 = arith.constant 0 : index
    %11 = vector.load %arg2[%c1, %c0_10, %c0_11] : memref<4x144x169xbf16, #tpu.memory_space<vmem>>, vector<1x144x169xbf16>
    %12 = vector.shape_cast %11 : vector<1x144x169xbf16> to vector<144x169xbf16>
    %cst_12 = arith.constant dense<0.000000e+00> : vector<144x64xf32>
    %13 = tpu.matmul %12, %1, %cst_12 {dimension_numbers = #tpu.dot_dimension_numbers<[1], [0], [0], [1], [0, 0, 1, 1], [], []>} : vector<144x169xbf16>, vector<169x64xbf16>, vector<144x64xf32> -> vector<144x64xf32>
    %14 = arith.truncf %13 : vector<144x64xf32> to vector<144x64xbf16>
    %c1_13 = arith.constant 1 : index
    %c0_14 = arith.constant 0 : index
    %c0_15 = arith.constant 0 : index
    %15 = vector.load %arg3[%c1_13, %c0_14, %c0_15] : memref<4x64x32xbf16, #tpu.memory_space<vmem>>, vector<1x64x32xbf16>
    %16 = vector.shape_cast %15 : vector<1x64x32xbf16> to vector<64x32xbf16>
    %cst_16 = arith.constant dense<0.000000e+00> : vector<144x32xf32>
    %17 = tpu.matmul %14, %16, %cst_16 {dimension_numbers = #tpu.dot_dimension_numbers<[1], [0], [0], [1], [0, 0, 1, 1], [], []>} : vector<144x64xbf16>, vector<64x32xbf16>, vector<144x32xf32> -> vector<144x32xf32>
    %18 = arith.addf %10, %17 : vector<144x32xf32>
    %c2 = arith.constant 2 : index
    %c0_17 = arith.constant 0 : index
    %c0_18 = arith.constant 0 : index
    %19 = vector.load %arg2[%c2, %c0_17, %c0_18] : memref<4x144x169xbf16, #tpu.memory_space<vmem>>, vector<1x144x169xbf16>
    %20 = vector.shape_cast %19 : vector<1x144x169xbf16> to vector<144x169xbf16>
    %cst_19 = arith.constant dense<0.000000e+00> : vector<144x64xf32>
    %21 = tpu.matmul %20, %1, %cst_19 {dimension_numbers = #tpu.dot_dimension_numbers<[1], [0], [0], [1], [0, 0, 1, 1], [], []>} : vector<144x169xbf16>, vector<169x64xbf16>, vector<144x64xf32> -> vector<144x64xf32>
    %22 = arith.truncf %21 : vector<144x64xf32> to vector<144x64xbf16>
    %c2_20 = arith.constant 2 : index
    %c0_21 = arith.constant 0 : index
    %c0_22 = arith.constant 0 : index
    %23 = vector.load %arg3[%c2_20, %c0_21, %c0_22] : memref<4x64x32xbf16, #tpu.memory_space<vmem>>, vector<1x64x32xbf16>
    %24 = vector.shape_cast %23 : vector<1x64x32xbf16> to vector<64x32xbf16>
    %cst_23 = arith.constant dense<0.000000e+00> : vector<144x32xf32>
    %25 = tpu.matmul %22, %24, %cst_23 {dimension_numbers = #tpu.dot_dimension_numbers<[1], [0], [0], [1], [0, 0, 1, 1], [], []>} : vector<144x64xbf16>, vector<64x32xbf16>, vector<144x32xf32> -> vector<144x32xf32>
    %26 = arith.addf %18, %25 : vector<144x32xf32>
    %c3 = arith.constant 3 : index
    %c0_24 = arith.constant 0 : index
    %c0_25 = arith.constant 0 : index
    %27 = vector.load %arg2[%c3, %c0_24, %c0_25] : memref<4x144x169xbf16, #tpu.memory_space<vmem>>, vector<1x144x169xbf16>
    %28 = vector.shape_cast %27 : vector<1x144x169xbf16> to vector<144x169xbf16>
    %cst_26 = arith.constant dense<0.000000e+00> : vector<144x64xf32>
    %29 = tpu.matmul %28, %1, %cst_26 {dimension_numbers = #tpu.dot_dimension_numbers<[1], [0], [0], [1], [0, 0, 1, 1], [], []>} : vector<144x169xbf16>, vector<169x64xbf16>, vector<144x64xf32> -> vector<144x64xf32>
    %30 = arith.truncf %29 : vector<144x64xf32> to vector<144x64xbf16>
    %c3_27 = arith.constant 3 : index
    %c0_28 = arith.constant 0 : index
    %c0_29 = arith.constant 0 : index
    %31 = vector.load %arg3[%c3_27, %c0_28, %c0_29] : memref<4x64x32xbf16, #tpu.memory_space<vmem>>, vector<1x64x32xbf16>
    %32 = vector.shape_cast %31 : vector<1x64x32xbf16> to vector<64x32xbf16>
    %cst_30 = arith.constant dense<0.000000e+00> : vector<144x32xf32>
    %33 = tpu.matmul %30, %32, %cst_30 {dimension_numbers = #tpu.dot_dimension_numbers<[1], [0], [0], [1], [0, 0, 1, 1], [], []>} : vector<144x64xbf16>, vector<64x32xbf16>, vector<144x32xf32> -> vector<144x32xf32>
    %34 = arith.addf %26, %33 : vector<144x32xf32>
    %c0_31 = arith.constant 0 : index
    %c0_32 = arith.constant 0 : index
    %35 = vector.load %arg4[%c0_31, %c0_32] : memref<1x32xf32, #tpu.memory_space<vmem>>, vector<1x32xf32>
    %36 = vector.broadcast %35 : vector<1x32xf32> to vector<144x32xf32>
    %37 = arith.addf %34, %36 : vector<144x32xf32>
    %cst_33 = arith.constant 0.000000e+00 : f32
    %38 = vector.broadcast %cst_33 : f32 to vector<144x32xf32>
    %39 = arith.maximumf %37, %38 : vector<144x32xf32>
    %40 = arith.truncf %39 : vector<144x32xf32> to vector<144x32xbf16>
    %cst_34 = arith.constant 0.000000e+00 : f32
    %41 = vector.broadcast %cst_34 : f32 to vector<25x64xf32>
    %c0_35 = arith.constant 0 : index
    %c0_36 = arith.constant 0 : index
    %c0_37 = arith.constant 0 : index
    %42 = vector.load %arg5[%c0_35, %c0_36, %c0_37] : memref<16x25x144xbf16, #tpu.memory_space<vmem>>, vector<1x25x144xbf16>
    %43 = vector.shape_cast %42 : vector<1x25x144xbf16> to vector<25x144xbf16>
    %cst_38 = arith.constant dense<0.000000e+00> : vector<25x32xf32>
    %44 = tpu.matmul %43, %40, %cst_38 {dimension_numbers = #tpu.dot_dimension_numbers<[1], [0], [0], [1], [0, 0, 1, 1], [], []>} : vector<25x144xbf16>, vector<144x32xbf16>, vector<25x32xf32> -> vector<25x32xf32>
    %45 = arith.truncf %44 : vector<25x32xf32> to vector<25x32xbf16>
    %c0_39 = arith.constant 0 : index
    %c0_40 = arith.constant 0 : index
    %c0_41 = arith.constant 0 : index
    %46 = vector.load %arg6[%c0_39, %c0_40, %c0_41] : memref<16x32x64xbf16, #tpu.memory_space<vmem>>, vector<1x32x64xbf16>
    %47 = vector.shape_cast %46 : vector<1x32x64xbf16> to vector<32x64xbf16>
    %cst_42 = arith.constant dense<0.000000e+00> : vector<25x64xf32>
    %48 = tpu.matmul %45, %47, %cst_42 {dimension_numbers = #tpu.dot_dimension_numbers<[1], [0], [0], [1], [0, 0, 1, 1], [], []>} : vector<25x32xbf16>, vector<32x64xbf16>, vector<25x64xf32> -> vector<25x64xf32>
    %49 = arith.addf %41, %48 : vector<25x64xf32>
    %c1_43 = arith.constant 1 : index
    %c0_44 = arith.constant 0 : index
    %c0_45 = arith.constant 0 : index
    %50 = vector.load %arg5[%c1_43, %c0_44, %c0_45] : memref<16x25x144xbf16, #tpu.memory_space<vmem>>, vector<1x25x144xbf16>
    %51 = vector.shape_cast %50 : vector<1x25x144xbf16> to vector<25x144xbf16>
    %cst_46 = arith.constant dense<0.000000e+00> : vector<25x32xf32>
    %52 = tpu.matmul %51, %40, %cst_46 {dimension_numbers = #tpu.dot_dimension_numbers<[1], [0], [0], [1], [0, 0, 1, 1], [], []>} : vector<25x144xbf16>, vector<144x32xbf16>, vector<25x32xf32> -> vector<25x32xf32>
    %53 = arith.truncf %52 : vector<25x32xf32> to vector<25x32xbf16>
    %c1_47 = arith.constant 1 : index
    %c0_48 = arith.constant 0 : index
    %c0_49 = arith.constant 0 : index
    %54 = vector.load %arg6[%c1_47, %c0_48, %c0_49] : memref<16x32x64xbf16, #tpu.memory_space<vmem>>, vector<1x32x64xbf16>
    %55 = vector.shape_cast %54 : vector<1x32x64xbf16> to vector<32x64xbf16>
    %cst_50 = arith.constant dense<0.000000e+00> : vector<25x64xf32>
    %56 = tpu.matmul %53, %55, %cst_50 {dimension_numbers = #tpu.dot_dimension_numbers<[1], [0], [0], [1], [0, 0, 1, 1], [], []>} : vector<25x32xbf16>, vector<32x64xbf16>, vector<25x64xf32> -> vector<25x64xf32>
    %57 = arith.addf %49, %56 : vector<25x64xf32>
    %c2_51 = arith.constant 2 : index
    %c0_52 = arith.constant 0 : index
    %c0_53 = arith.constant 0 : index
    %58 = vector.load %arg5[%c2_51, %c0_52, %c0_53] : memref<16x25x144xbf16, #tpu.memory_space<vmem>>, vector<1x25x144xbf16>
    %59 = vector.shape_cast %58 : vector<1x25x144xbf16> to vector<25x144xbf16>
    %cst_54 = arith.constant dense<0.000000e+00> : vector<25x32xf32>
    %60 = tpu.matmul %59, %40, %cst_54 {dimension_numbers = #tpu.dot_dimension_numbers<[1], [0], [0], [1], [0, 0, 1, 1], [], []>} : vector<25x144xbf16>, vector<144x32xbf16>, vector<25x32xf32> -> vector<25x32xf32>
    %61 = arith.truncf %60 : vector<25x32xf32> to vector<25x32xbf16>
    %c2_55 = arith.constant 2 : index
    %c0_56 = arith.constant 0 : index
    %c0_57 = arith.constant 0 : index
    %62 = vector.load %arg6[%c2_55, %c0_56, %c0_57] : memref<16x32x64xbf16, #tpu.memory_space<vmem>>, vector<1x32x64xbf16>
    %63 = vector.shape_cast %62 : vector<1x32x64xbf16> to vector<32x64xbf16>
    %cst_58 = arith.constant dense<0.000000e+00> : vector<25x64xf32>
    %64 = tpu.matmul %61, %63, %cst_58 {dimension_numbers = #tpu.dot_dimension_numbers<[1], [0], [0], [1], [0, 0, 1, 1], [], []>} : vector<25x32xbf16>, vector<32x64xbf16>, vector<25x64xf32> -> vector<25x64xf32>
    %65 = arith.addf %57, %64 : vector<25x64xf32>
    %c3_59 = arith.constant 3 : index
    %c0_60 = arith.constant 0 : index
    %c0_61 = arith.constant 0 : index
    %66 = vector.load %arg5[%c3_59, %c0_60, %c0_61] : memref<16x25x144xbf16, #tpu.memory_space<vmem>>, vector<1x25x144xbf16>
    %67 = vector.shape_cast %66 : vector<1x25x144xbf16> to vector<25x144xbf16>
    %cst_62 = arith.constant dense<0.000000e+00> : vector<25x32xf32>
    %68 = tpu.matmul %67, %40, %cst_62 {dimension_numbers = #tpu.dot_dimension_numbers<[1], [0], [0], [1], [0, 0, 1, 1], [], []>} : vector<25x144xbf16>, vector<144x32xbf16>, vector<25x32xf32> -> vector<25x32xf32>
    %69 = arith.truncf %68 : vector<25x32xf32> to vector<25x32xbf16>
    %c3_63 = arith.constant 3 : index
    %c0_64 = arith.constant 0 : index
    %c0_65 = arith.constant 0 : index
    %70 = vector.load %arg6[%c3_63, %c0_64, %c0_65] : memref<16x32x64xbf16, #tpu.memory_space<vmem>>, vector<1x32x64xbf16>
    %71 = vector.shape_cast %70 : vector<1x32x64xbf16> to vector<32x64xbf16>
    %cst_66 = arith.constant dense<0.000000e+00> : vector<25x64xf32>
    %72 = tpu.matmul %69, %71, %cst_66 {dimension_numbers = #tpu.dot_dimension_numbers<[1], [0], [0], [1], [0, 0, 1, 1], [], []>} : vector<25x32xbf16>, vector<32x64xbf16>, vector<25x64xf32> -> vector<25x64xf32>
    %73 = arith.addf %65, %72 : vector<25x64xf32>
    %c4 = arith.constant 4 : index
    %c0_67 = arith.constant 0 : index
    %c0_68 = arith.constant 0 : index
    %74 = vector.load %arg5[%c4, %c0_67, %c0_68] : memref<16x25x144xbf16, #tpu.memory_space<vmem>>, vector<1x25x144xbf16>
    %75 = vector.shape_cast %74 : vector<1x25x144xbf16> to vector<25x144xbf16>
    %cst_69 = arith.constant dense<0.000000e+00> : vector<25x32xf32>
    %76 = tpu.matmul %75, %40, %cst_69 {dimension_numbers = #tpu.dot_dimension_numbers<[1], [0], [0], [1], [0, 0, 1, 1], [], []>} : vector<25x144xbf16>, vector<144x32xbf16>, vector<25x32xf32> -> vector<25x32xf32>
    %77 = arith.truncf %76 : vector<25x32xf32> to vector<25x32xbf16>
    %c4_70 = arith.constant 4 : index
    %c0_71 = arith.constant 0 : index
    %c0_72 = arith.constant 0 : index
    %78 = vector.load %arg6[%c4_70, %c0_71, %c0_72] : memref<16x32x64xbf16, #tpu.memory_space<vmem>>, vector<1x32x64xbf16>
    %79 = vector.shape_cast %78 : vector<1x32x64xbf16> to vector<32x64xbf16>
    %cst_73 = arith.constant dense<0.000000e+00> : vector<25x64xf32>
    %80 = tpu.matmul %77, %79, %cst_73 {dimension_numbers = #tpu.dot_dimension_numbers<[1], [0], [0], [1], [0, 0, 1, 1], [], []>} : vector<25x32xbf16>, vector<32x64xbf16>, vector<25x64xf32> -> vector<25x64xf32>
    %81 = arith.addf %73, %80 : vector<25x64xf32>
    %c5 = arith.constant 5 : index
    %c0_74 = arith.constant 0 : index
    %c0_75 = arith.constant 0 : index
    %82 = vector.load %arg5[%c5, %c0_74, %c0_75] : memref<16x25x144xbf16, #tpu.memory_space<vmem>>, vector<1x25x144xbf16>
    %83 = vector.shape_cast %82 : vector<1x25x144xbf16> to vector<25x144xbf16>
    %cst_76 = arith.constant dense<0.000000e+00> : vector<25x32xf32>
    %84 = tpu.matmul %83, %40, %cst_76 {dimension_numbers = #tpu.dot_dimension_numbers<[1], [0], [0], [1], [0, 0, 1, 1], [], []>} : vector<25x144xbf16>, vector<144x32xbf16>, vector<25x32xf32> -> vector<25x32xf32>
    %85 = arith.truncf %84 : vector<25x32xf32> to vector<25x32xbf16>
    %c5_77 = arith.constant 5 : index
    %c0_78 = arith.constant 0 : index
    %c0_79 = arith.constant 0 : index
    %86 = vector.load %arg6[%c5_77, %c0_78, %c0_79] : memref<16x32x64xbf16, #tpu.memory_space<vmem>>, vector<1x32x64xbf16>
    %87 = vector.shape_cast %86 : vector<1x32x64xbf16> to vector<32x64xbf16>
    %cst_80 = arith.constant dense<0.000000e+00> : vector<25x64xf32>
    %88 = tpu.matmul %85, %87, %cst_80 {dimension_numbers = #tpu.dot_dimension_numbers<[1], [0], [0], [1], [0, 0, 1, 1], [], []>} : vector<25x32xbf16>, vector<32x64xbf16>, vector<25x64xf32> -> vector<25x64xf32>
    %89 = arith.addf %81, %88 : vector<25x64xf32>
    %c6 = arith.constant 6 : index
    %c0_81 = arith.constant 0 : index
    %c0_82 = arith.constant 0 : index
    %90 = vector.load %arg5[%c6, %c0_81, %c0_82] : memref<16x25x144xbf16, #tpu.memory_space<vmem>>, vector<1x25x144xbf16>
    %91 = vector.shape_cast %90 : vector<1x25x144xbf16> to vector<25x144xbf16>
    %cst_83 = arith.constant dense<0.000000e+00> : vector<25x32xf32>
    %92 = tpu.matmul %91, %40, %cst_83 {dimension_numbers = #tpu.dot_dimension_numbers<[1], [0], [0], [1], [0, 0, 1, 1], [], []>} : vector<25x144xbf16>, vector<144x32xbf16>, vector<25x32xf32> -> vector<25x32xf32>
    %93 = arith.truncf %92 : vector<25x32xf32> to vector<25x32xbf16>
    %c6_84 = arith.constant 6 : index
    %c0_85 = arith.constant 0 : index
    %c0_86 = arith.constant 0 : index
    %94 = vector.load %arg6[%c6_84, %c0_85, %c0_86] : memref<16x32x64xbf16, #tpu.memory_space<vmem>>, vector<1x32x64xbf16>
    %95 = vector.shape_cast %94 : vector<1x32x64xbf16> to vector<32x64xbf16>
    %cst_87 = arith.constant dense<0.000000e+00> : vector<25x64xf32>
    %96 = tpu.matmul %93, %95, %cst_87 {dimension_numbers = #tpu.dot_dimension_numbers<[1], [0], [0], [1], [0, 0, 1, 1], [], []>} : vector<25x32xbf16>, vector<32x64xbf16>, vector<25x64xf32> -> vector<25x64xf32>
    %97 = arith.addf %89, %96 : vector<25x64xf32>
    %c7 = arith.constant 7 : index
    %c0_88 = arith.constant 0 : index
    %c0_89 = arith.constant 0 : index
    %98 = vector.load %arg5[%c7, %c0_88, %c0_89] : memref<16x25x144xbf16, #tpu.memory_space<vmem>>, vector<1x25x144xbf16>
    %99 = vector.shape_cast %98 : vector<1x25x144xbf16> to vector<25x144xbf16>
    %cst_90 = arith.constant dense<0.000000e+00> : vector<25x32xf32>
    %100 = tpu.matmul %99, %40, %cst_90 {dimension_numbers = #tpu.dot_dimension_numbers<[1], [0], [0], [1], [0, 0, 1, 1], [], []>} : vector<25x144xbf16>, vector<144x32xbf16>, vector<25x32xf32> -> vector<25x32xf32>
    %101 = arith.truncf %100 : vector<25x32xf32> to vector<25x32xbf16>
    %c7_91 = arith.constant 7 : index
    %c0_92 = arith.constant 0 : index
    %c0_93 = arith.constant 0 : index
    %102 = vector.load %arg6[%c7_91, %c0_92, %c0_93] : memref<16x32x64xbf16, #tpu.memory_space<vmem>>, vector<1x32x64xbf16>
    %103 = vector.shape_cast %102 : vector<1x32x64xbf16> to vector<32x64xbf16>
    %cst_94 = arith.constant dense<0.000000e+00> : vector<25x64xf32>
    %104 = tpu.matmul %101, %103, %cst_94 {dimension_numbers = #tpu.dot_dimension_numbers<[1], [0], [0], [1], [0, 0, 1, 1], [], []>} : vector<25x32xbf16>, vector<32x64xbf16>, vector<25x64xf32> -> vector<25x64xf32>
    %105 = arith.addf %97, %104 : vector<25x64xf32>
    %c8 = arith.constant 8 : index
    %c0_95 = arith.constant 0 : index
    %c0_96 = arith.constant 0 : index
    %106 = vector.load %arg5[%c8, %c0_95, %c0_96] : memref<16x25x144xbf16, #tpu.memory_space<vmem>>, vector<1x25x144xbf16>
    %107 = vector.shape_cast %106 : vector<1x25x144xbf16> to vector<25x144xbf16>
    %cst_97 = arith.constant dense<0.000000e+00> : vector<25x32xf32>
    %108 = tpu.matmul %107, %40, %cst_97 {dimension_numbers = #tpu.dot_dimension_numbers<[1], [0], [0], [1], [0, 0, 1, 1], [], []>} : vector<25x144xbf16>, vector<144x32xbf16>, vector<25x32xf32> -> vector<25x32xf32>
    %109 = arith.truncf %108 : vector<25x32xf32> to vector<25x32xbf16>
    %c8_98 = arith.constant 8 : index
    %c0_99 = arith.constant 0 : index
    %c0_100 = arith.constant 0 : index
    %110 = vector.load %arg6[%c8_98, %c0_99, %c0_100] : memref<16x32x64xbf16, #tpu.memory_space<vmem>>, vector<1x32x64xbf16>
    %111 = vector.shape_cast %110 : vector<1x32x64xbf16> to vector<32x64xbf16>
    %cst_101 = arith.constant dense<0.000000e+00> : vector<25x64xf32>
    %112 = tpu.matmul %109, %111, %cst_101 {dimension_numbers = #tpu.dot_dimension_numbers<[1], [0], [0], [1], [0, 0, 1, 1], [], []>} : vector<25x32xbf16>, vector<32x64xbf16>, vector<25x64xf32> -> vector<25x64xf32>
    %113 = arith.addf %105, %112 : vector<25x64xf32>
    %c9 = arith.constant 9 : index
    %c0_102 = arith.constant 0 : index
    %c0_103 = arith.constant 0 : index
    %114 = vector.load %arg5[%c9, %c0_102, %c0_103] : memref<16x25x144xbf16, #tpu.memory_space<vmem>>, vector<1x25x144xbf16>
    %115 = vector.shape_cast %114 : vector<1x25x144xbf16> to vector<25x144xbf16>
    %cst_104 = arith.constant dense<0.000000e+00> : vector<25x32xf32>
    %116 = tpu.matmul %115, %40, %cst_104 {dimension_numbers = #tpu.dot_dimension_numbers<[1], [0], [0], [1], [0, 0, 1, 1], [], []>} : vector<25x144xbf16>, vector<144x32xbf16>, vector<25x32xf32> -> vector<25x32xf32>
    %117 = arith.truncf %116 : vector<25x32xf32> to vector<25x32xbf16>
    %c9_105 = arith.constant 9 : index
    %c0_106 = arith.constant 0 : index
    %c0_107 = arith.constant 0 : index
    %118 = vector.load %arg6[%c9_105, %c0_106, %c0_107] : memref<16x32x64xbf16, #tpu.memory_space<vmem>>, vector<1x32x64xbf16>
    %119 = vector.shape_cast %118 : vector<1x32x64xbf16> to vector<32x64xbf16>
    %cst_108 = arith.constant dense<0.000000e+00> : vector<25x64xf32>
    %120 = tpu.matmul %117, %119, %cst_108 {dimension_numbers = #tpu.dot_dimension_numbers<[1], [0], [0], [1], [0, 0, 1, 1], [], []>} : vector<25x32xbf16>, vector<32x64xbf16>, vector<25x64xf32> -> vector<25x64xf32>
    %121 = arith.addf %113, %120 : vector<25x64xf32>
    %c10 = arith.constant 10 : index
    %c0_109 = arith.constant 0 : index
    %c0_110 = arith.constant 0 : index
    %122 = vector.load %arg5[%c10, %c0_109, %c0_110] : memref<16x25x144xbf16, #tpu.memory_space<vmem>>, vector<1x25x144xbf16>
    %123 = vector.shape_cast %122 : vector<1x25x144xbf16> to vector<25x144xbf16>
    %cst_111 = arith.constant dense<0.000000e+00> : vector<25x32xf32>
    %124 = tpu.matmul %123, %40, %cst_111 {dimension_numbers = #tpu.dot_dimension_numbers<[1], [0], [0], [1], [0, 0, 1, 1], [], []>} : vector<25x144xbf16>, vector<144x32xbf16>, vector<25x32xf32> -> vector<25x32xf32>
    %125 = arith.truncf %124 : vector<25x32xf32> to vector<25x32xbf16>
    %c10_112 = arith.constant 10 : index
    %c0_113 = arith.constant 0 : index
    %c0_114 = arith.constant 0 : index
    %126 = vector.load %arg6[%c10_112, %c0_113, %c0_114] : memref<16x32x64xbf16, #tpu.memory_space<vmem>>, vector<1x32x64xbf16>
    %127 = vector.shape_cast %126 : vector<1x32x64xbf16> to vector<32x64xbf16>
    %cst_115 = arith.constant dense<0.000000e+00> : vector<25x64xf32>
    %128 = tpu.matmul %125, %127, %cst_115 {dimension_numbers = #tpu.dot_dimension_numbers<[1], [0], [0], [1], [0, 0, 1, 1], [], []>} : vector<25x32xbf16>, vector<32x64xbf16>, vector<25x64xf32> -> vector<25x64xf32>
    %129 = arith.addf %121, %128 : vector<25x64xf32>
    %c11 = arith.constant 11 : index
    %c0_116 = arith.constant 0 : index
    %c0_117 = arith.constant 0 : index
    %130 = vector.load %arg5[%c11, %c0_116, %c0_117] : memref<16x25x144xbf16, #tpu.memory_space<vmem>>, vector<1x25x144xbf16>
    %131 = vector.shape_cast %130 : vector<1x25x144xbf16> to vector<25x144xbf16>
    %cst_118 = arith.constant dense<0.000000e+00> : vector<25x32xf32>
    %132 = tpu.matmul %131, %40, %cst_118 {dimension_numbers = #tpu.dot_dimension_numbers<[1], [0], [0], [1], [0, 0, 1, 1], [], []>} : vector<25x144xbf16>, vector<144x32xbf16>, vector<25x32xf32> -> vector<25x32xf32>
    %133 = arith.truncf %132 : vector<25x32xf32> to vector<25x32xbf16>
    %c11_119 = arith.constant 11 : index
    %c0_120 = arith.constant 0 : index
    %c0_121 = arith.constant 0 : index
    %134 = vector.load %arg6[%c11_119, %c0_120, %c0_121] : memref<16x32x64xbf16, #tpu.memory_space<vmem>>, vector<1x32x64xbf16>
    %135 = vector.shape_cast %134 : vector<1x32x64xbf16> to vector<32x64xbf16>
    %cst_122 = arith.constant dense<0.000000e+00> : vector<25x64xf32>
    %136 = tpu.matmul %133, %135, %cst_122 {dimension_numbers = #tpu.dot_dimension_numbers<[1], [0], [0], [1], [0, 0, 1, 1], [], []>} : vector<25x32xbf16>, vector<32x64xbf16>, vector<25x64xf32> -> vector<25x64xf32>
    %137 = arith.addf %129, %136 : vector<25x64xf32>
    %c12 = arith.constant 12 : index
    %c0_123 = arith.constant 0 : index
    %c0_124 = arith.constant 0 : index
    %138 = vector.load %arg5[%c12, %c0_123, %c0_124] : memref<16x25x144xbf16, #tpu.memory_space<vmem>>, vector<1x25x144xbf16>
    %139 = vector.shape_cast %138 : vector<1x25x144xbf16> to vector<25x144xbf16>
    %cst_125 = arith.constant dense<0.000000e+00> : vector<25x32xf32>
    %140 = tpu.matmul %139, %40, %cst_125 {dimension_numbers = #tpu.dot_dimension_numbers<[1], [0], [0], [1], [0, 0, 1, 1], [], []>} : vector<25x144xbf16>, vector<144x32xbf16>, vector<25x32xf32> -> vector<25x32xf32>
    %141 = arith.truncf %140 : vector<25x32xf32> to vector<25x32xbf16>
    %c12_126 = arith.constant 12 : index
    %c0_127 = arith.constant 0 : index
    %c0_128 = arith.constant 0 : index
    %142 = vector.load %arg6[%c12_126, %c0_127, %c0_128] : memref<16x32x64xbf16, #tpu.memory_space<vmem>>, vector<1x32x64xbf16>
    %143 = vector.shape_cast %142 : vector<1x32x64xbf16> to vector<32x64xbf16>
    %cst_129 = arith.constant dense<0.000000e+00> : vector<25x64xf32>
    %144 = tpu.matmul %141, %143, %cst_129 {dimension_numbers = #tpu.dot_dimension_numbers<[1], [0], [0], [1], [0, 0, 1, 1], [], []>} : vector<25x32xbf16>, vector<32x64xbf16>, vector<25x64xf32> -> vector<25x64xf32>
    %145 = arith.addf %137, %144 : vector<25x64xf32>
    %c13 = arith.constant 13 : index
    %c0_130 = arith.constant 0 : index
    %c0_131 = arith.constant 0 : index
    %146 = vector.load %arg5[%c13, %c0_130, %c0_131] : memref<16x25x144xbf16, #tpu.memory_space<vmem>>, vector<1x25x144xbf16>
    %147 = vector.shape_cast %146 : vector<1x25x144xbf16> to vector<25x144xbf16>
    %cst_132 = arith.constant dense<0.000000e+00> : vector<25x32xf32>
    %148 = tpu.matmul %147, %40, %cst_132 {dimension_numbers = #tpu.dot_dimension_numbers<[1], [0], [0], [1], [0, 0, 1, 1], [], []>} : vector<25x144xbf16>, vector<144x32xbf16>, vector<25x32xf32> -> vector<25x32xf32>
    %149 = arith.truncf %148 : vector<25x32xf32> to vector<25x32xbf16>
    %c13_133 = arith.constant 13 : index
    %c0_134 = arith.constant 0 : index
    %c0_135 = arith.constant 0 : index
    %150 = vector.load %arg6[%c13_133, %c0_134, %c0_135] : memref<16x32x64xbf16, #tpu.memory_space<vmem>>, vector<1x32x64xbf16>
    %151 = vector.shape_cast %150 : vector<1x32x64xbf16> to vector<32x64xbf16>
    %cst_136 = arith.constant dense<0.000000e+00> : vector<25x64xf32>
    %152 = tpu.matmul %149, %151, %cst_136 {dimension_numbers = #tpu.dot_dimension_numbers<[1], [0], [0], [1], [0, 0, 1, 1], [], []>} : vector<25x32xbf16>, vector<32x64xbf16>, vector<25x64xf32> -> vector<25x64xf32>
    %153 = arith.addf %145, %152 : vector<25x64xf32>
    %c14 = arith.constant 14 : index
    %c0_137 = arith.constant 0 : index
    %c0_138 = arith.constant 0 : index
    %154 = vector.load %arg5[%c14, %c0_137, %c0_138] : memref<16x25x144xbf16, #tpu.memory_space<vmem>>, vector<1x25x144xbf16>
    %155 = vector.shape_cast %154 : vector<1x25x144xbf16> to vector<25x144xbf16>
    %cst_139 = arith.constant dense<0.000000e+00> : vector<25x32xf32>
    %156 = tpu.matmul %155, %40, %cst_139 {dimension_numbers = #tpu.dot_dimension_numbers<[1], [0], [0], [1], [0, 0, 1, 1], [], []>} : vector<25x144xbf16>, vector<144x32xbf16>, vector<25x32xf32> -> vector<25x32xf32>
    %157 = arith.truncf %156 : vector<25x32xf32> to vector<25x32xbf16>
    %c14_140 = arith.constant 14 : index
    %c0_141 = arith.constant 0 : index
    %c0_142 = arith.constant 0 : index
    %158 = vector.load %arg6[%c14_140, %c0_141, %c0_142] : memref<16x32x64xbf16, #tpu.memory_space<vmem>>, vector<1x32x64xbf16>
    %159 = vector.shape_cast %158 : vector<1x32x64xbf16> to vector<32x64xbf16>
    %cst_143 = arith.constant dense<0.000000e+00> : vector<25x64xf32>
    %160 = tpu.matmul %157, %159, %cst_143 {dimension_numbers = #tpu.dot_dimension_numbers<[1], [0], [0], [1], [0, 0, 1, 1], [], []>} : vector<25x32xbf16>, vector<32x64xbf16>, vector<25x64xf32> -> vector<25x64xf32>
    %161 = arith.addf %153, %160 : vector<25x64xf32>
    %c15 = arith.constant 15 : index
    %c0_144 = arith.constant 0 : index
    %c0_145 = arith.constant 0 : index
    %162 = vector.load %arg5[%c15, %c0_144, %c0_145] : memref<16x25x144xbf16, #tpu.memory_space<vmem>>, vector<1x25x144xbf16>
    %163 = vector.shape_cast %162 : vector<1x25x144xbf16> to vector<25x144xbf16>
    %cst_146 = arith.constant dense<0.000000e+00> : vector<25x32xf32>
    %164 = tpu.matmul %163, %40, %cst_146 {dimension_numbers = #tpu.dot_dimension_numbers<[1], [0], [0], [1], [0, 0, 1, 1], [], []>} : vector<25x144xbf16>, vector<144x32xbf16>, vector<25x32xf32> -> vector<25x32xf32>
    %165 = arith.truncf %164 : vector<25x32xf32> to vector<25x32xbf16>
    %c15_147 = arith.constant 15 : index
    %c0_148 = arith.constant 0 : index
    %c0_149 = arith.constant 0 : index
    %166 = vector.load %arg6[%c15_147, %c0_148, %c0_149] : memref<16x32x64xbf16, #tpu.memory_space<vmem>>, vector<1x32x64xbf16>
    %167 = vector.shape_cast %166 : vector<1x32x64xbf16> to vector<32x64xbf16>
    %cst_150 = arith.constant dense<0.000000e+00> : vector<25x64xf32>
    %168 = tpu.matmul %165, %167, %cst_150 {dimension_numbers = #tpu.dot_dimension_numbers<[1], [0], [0], [1], [0, 0, 1, 1], [], []>} : vector<25x32xbf16>, vector<32x64xbf16>, vector<25x64xf32> -> vector<25x64xf32>
    %169 = arith.addf %161, %168 : vector<25x64xf32>
    %c0_151 = arith.constant 0 : index
    %c0_152 = arith.constant 0 : index
    %170 = vector.load %arg7[%c0_151, %c0_152] : memref<1x64xf32, #tpu.memory_space<vmem>>, vector<1x64xf32>
    %171 = vector.broadcast %170 : vector<1x64xf32> to vector<25x64xf32>
    %172 = arith.addf %169, %171 : vector<25x64xf32>
    %cst_153 = arith.constant 0.000000e+00 : f32
    %173 = vector.broadcast %cst_153 : f32 to vector<25x64xf32>
    %174 = arith.maximumf %172, %173 : vector<25x64xf32>
    %175 = arith.truncf %174 : vector<25x64xf32> to vector<25x64xbf16>
    %cst_154 = arith.constant 0.000000e+00 : f32
    %176 = vector.broadcast %cst_154 : f32 to vector<9x64xf32>
    %c0_155 = arith.constant 0 : index
    %c0_156 = arith.constant 0 : index
    %c0_157 = arith.constant 0 : index
    %177 = vector.load %arg8[%c0_155, %c0_156, %c0_157] : memref<9x9x25xbf16, #tpu.memory_space<vmem>>, vector<1x9x25xbf16>
    %178 = vector.shape_cast %177 : vector<1x9x25xbf16> to vector<9x25xbf16>
    %cst_158 = arith.constant dense<0.000000e+00> : vector<9x64xf32>
    %179 = tpu.matmul %178, %175, %cst_158 {dimension_numbers = #tpu.dot_dimension_numbers<[1], [0], [0], [1], [0, 0, 1, 1], [], []>} : vector<9x25xbf16>, vector<25x64xbf16>, vector<9x64xf32> -> vector<9x64xf32>
    %180 = arith.truncf %179 : vector<9x64xf32> to vector<9x64xbf16>
    %c0_159 = arith.constant 0 : index
    %c0_160 = arith.constant 0 : index
    %c0_161 = arith.constant 0 : index
    %181 = vector.load %arg9[%c0_159, %c0_160, %c0_161] : memref<9x64x64xbf16, #tpu.memory_space<vmem>>, vector<1x64x64xbf16>
    %182 = vector.shape_cast %181 : vector<1x64x64xbf16> to vector<64x64xbf16>
    %cst_162 = arith.constant dense<0.000000e+00> : vector<9x64xf32>
    %183 = tpu.matmul %180, %182, %cst_162 {dimension_numbers = #tpu.dot_dimension_numbers<[1], [0], [0], [1], [0, 0, 1, 1], [], []>} : vector<9x64xbf16>, vector<64x64xbf16>, vector<9x64xf32> -> vector<9x64xf32>
    %184 = arith.addf %176, %183 : vector<9x64xf32>
    %c1_163 = arith.constant 1 : index
    %c0_164 = arith.constant 0 : index
    %c0_165 = arith.constant 0 : index
    %185 = vector.load %arg8[%c1_163, %c0_164, %c0_165] : memref<9x9x25xbf16, #tpu.memory_space<vmem>>, vector<1x9x25xbf16>
    %186 = vector.shape_cast %185 : vector<1x9x25xbf16> to vector<9x25xbf16>
    %cst_166 = arith.constant dense<0.000000e+00> : vector<9x64xf32>
    %187 = tpu.matmul %186, %175, %cst_166 {dimension_numbers = #tpu.dot_dimension_numbers<[1], [0], [0], [1], [0, 0, 1, 1], [], []>} : vector<9x25xbf16>, vector<25x64xbf16>, vector<9x64xf32> -> vector<9x64xf32>
    %188 = arith.truncf %187 : vector<9x64xf32> to vector<9x64xbf16>
    %c1_167 = arith.constant 1 : index
    %c0_168 = arith.constant 0 : index
    %c0_169 = arith.constant 0 : index
    %189 = vector.load %arg9[%c1_167, %c0_168, %c0_169] : memref<9x64x64xbf16, #tpu.memory_space<vmem>>, vector<1x64x64xbf16>
    %190 = vector.shape_cast %189 : vector<1x64x64xbf16> to vector<64x64xbf16>
    %cst_170 = arith.constant dense<0.000000e+00> : vector<9x64xf32>
    %191 = tpu.matmul %188, %190, %cst_170 {dimension_numbers = #tpu.dot_dimension_numbers<[1], [0], [0], [1], [0, 0, 1, 1], [], []>} : vector<9x64xbf16>, vector<64x64xbf16>, vector<9x64xf32> -> vector<9x64xf32>
    %192 = arith.addf %184, %191 : vector<9x64xf32>
    %c2_171 = arith.constant 2 : index
    %c0_172 = arith.constant 0 : index
    %c0_173 = arith.constant 0 : index
    %193 = vector.load %arg8[%c2_171, %c0_172, %c0_173] : memref<9x9x25xbf16, #tpu.memory_space<vmem>>, vector<1x9x25xbf16>
    %194 = vector.shape_cast %193 : vector<1x9x25xbf16> to vector<9x25xbf16>
    %cst_174 = arith.constant dense<0.000000e+00> : vector<9x64xf32>
    %195 = tpu.matmul %194, %175, %cst_174 {dimension_numbers = #tpu.dot_dimension_numbers<[1], [0], [0], [1], [0, 0, 1, 1], [], []>} : vector<9x25xbf16>, vector<25x64xbf16>, vector<9x64xf32> -> vector<9x64xf32>
    %196 = arith.truncf %195 : vector<9x64xf32> to vector<9x64xbf16>
    %c2_175 = arith.constant 2 : index
    %c0_176 = arith.constant 0 : index
    %c0_177 = arith.constant 0 : index
    %197 = vector.load %arg9[%c2_175, %c0_176, %c0_177] : memref<9x64x64xbf16, #tpu.memory_space<vmem>>, vector<1x64x64xbf16>
    %198 = vector.shape_cast %197 : vector<1x64x64xbf16> to vector<64x64xbf16>
    %cst_178 = arith.constant dense<0.000000e+00> : vector<9x64xf32>
    %199 = tpu.matmul %196, %198, %cst_178 {dimension_numbers = #tpu.dot_dimension_numbers<[1], [0], [0], [1], [0, 0, 1, 1], [], []>} : vector<9x64xbf16>, vector<64x64xbf16>, vector<9x64xf32> -> vector<9x64xf32>
    %200 = arith.addf %192, %199 : vector<9x64xf32>
    %c3_179 = arith.constant 3 : index
    %c0_180 = arith.constant 0 : index
    %c0_181 = arith.constant 0 : index
    %201 = vector.load %arg8[%c3_179, %c0_180, %c0_181] : memref<9x9x25xbf16, #tpu.memory_space<vmem>>, vector<1x9x25xbf16>
    %202 = vector.shape_cast %201 : vector<1x9x25xbf16> to vector<9x25xbf16>
    %cst_182 = arith.constant dense<0.000000e+00> : vector<9x64xf32>
    %203 = tpu.matmul %202, %175, %cst_182 {dimension_numbers = #tpu.dot_dimension_numbers<[1], [0], [0], [1], [0, 0, 1, 1], [], []>} : vector<9x25xbf16>, vector<25x64xbf16>, vector<9x64xf32> -> vector<9x64xf32>
    %204 = arith.truncf %203 : vector<9x64xf32> to vector<9x64xbf16>
    %c3_183 = arith.constant 3 : index
    %c0_184 = arith.constant 0 : index
    %c0_185 = arith.constant 0 : index
    %205 = vector.load %arg9[%c3_183, %c0_184, %c0_185] : memref<9x64x64xbf16, #tpu.memory_space<vmem>>, vector<1x64x64xbf16>
    %206 = vector.shape_cast %205 : vector<1x64x64xbf16> to vector<64x64xbf16>
    %cst_186 = arith.constant dense<0.000000e+00> : vector<9x64xf32>
    %207 = tpu.matmul %204, %206, %cst_186 {dimension_numbers = #tpu.dot_dimension_numbers<[1], [0], [0], [1], [0, 0, 1, 1], [], []>} : vector<9x64xbf16>, vector<64x64xbf16>, vector<9x64xf32> -> vector<9x64xf32>
    %208 = arith.addf %200, %207 : vector<9x64xf32>
    %c4_187 = arith.constant 4 : index
    %c0_188 = arith.constant 0 : index
    %c0_189 = arith.constant 0 : index
    %209 = vector.load %arg8[%c4_187, %c0_188, %c0_189] : memref<9x9x25xbf16, #tpu.memory_space<vmem>>, vector<1x9x25xbf16>
    %210 = vector.shape_cast %209 : vector<1x9x25xbf16> to vector<9x25xbf16>
    %cst_190 = arith.constant dense<0.000000e+00> : vector<9x64xf32>
    %211 = tpu.matmul %210, %175, %cst_190 {dimension_numbers = #tpu.dot_dimension_numbers<[1], [0], [0], [1], [0, 0, 1, 1], [], []>} : vector<9x25xbf16>, vector<25x64xbf16>, vector<9x64xf32> -> vector<9x64xf32>
    %212 = arith.truncf %211 : vector<9x64xf32> to vector<9x64xbf16>
    %c4_191 = arith.constant 4 : index
    %c0_192 = arith.constant 0 : index
    %c0_193 = arith.constant 0 : index
    %213 = vector.load %arg9[%c4_191, %c0_192, %c0_193] : memref<9x64x64xbf16, #tpu.memory_space<vmem>>, vector<1x64x64xbf16>
    %214 = vector.shape_cast %213 : vector<1x64x64xbf16> to vector<64x64xbf16>
    %cst_194 = arith.constant dense<0.000000e+00> : vector<9x64xf32>
    %215 = tpu.matmul %212, %214, %cst_194 {dimension_numbers = #tpu.dot_dimension_numbers<[1], [0], [0], [1], [0, 0, 1, 1], [], []>} : vector<9x64xbf16>, vector<64x64xbf16>, vector<9x64xf32> -> vector<9x64xf32>
    %216 = arith.addf %208, %215 : vector<9x64xf32>
    %c5_195 = arith.constant 5 : index
    %c0_196 = arith.constant 0 : index
    %c0_197 = arith.constant 0 : index
    %217 = vector.load %arg8[%c5_195, %c0_196, %c0_197] : memref<9x9x25xbf16, #tpu.memory_space<vmem>>, vector<1x9x25xbf16>
    %218 = vector.shape_cast %217 : vector<1x9x25xbf16> to vector<9x25xbf16>
    %cst_198 = arith.constant dense<0.000000e+00> : vector<9x64xf32>
    %219 = tpu.matmul %218, %175, %cst_198 {dimension_numbers = #tpu.dot_dimension_numbers<[1], [0], [0], [1], [0, 0, 1, 1], [], []>} : vector<9x25xbf16>, vector<25x64xbf16>, vector<9x64xf32> -> vector<9x64xf32>
    %220 = arith.truncf %219 : vector<9x64xf32> to vector<9x64xbf16>
    %c5_199 = arith.constant 5 : index
    %c0_200 = arith.constant 0 : index
    %c0_201 = arith.constant 0 : index
    %221 = vector.load %arg9[%c5_199, %c0_200, %c0_201] : memref<9x64x64xbf16, #tpu.memory_space<vmem>>, vector<1x64x64xbf16>
    %222 = vector.shape_cast %221 : vector<1x64x64xbf16> to vector<64x64xbf16>
    %cst_202 = arith.constant dense<0.000000e+00> : vector<9x64xf32>
    %223 = tpu.matmul %220, %222, %cst_202 {dimension_numbers = #tpu.dot_dimension_numbers<[1], [0], [0], [1], [0, 0, 1, 1], [], []>} : vector<9x64xbf16>, vector<64x64xbf16>, vector<9x64xf32> -> vector<9x64xf32>
    %224 = arith.addf %216, %223 : vector<9x64xf32>
    %c6_203 = arith.constant 6 : index
    %c0_204 = arith.constant 0 : index
    %c0_205 = arith.constant 0 : index
    %225 = vector.load %arg8[%c6_203, %c0_204, %c0_205] : memref<9x9x25xbf16, #tpu.memory_space<vmem>>, vector<1x9x25xbf16>
    %226 = vector.shape_cast %225 : vector<1x9x25xbf16> to vector<9x25xbf16>
    %cst_206 = arith.constant dense<0.000000e+00> : vector<9x64xf32>
    %227 = tpu.matmul %226, %175, %cst_206 {dimension_numbers = #tpu.dot_dimension_numbers<[1], [0], [0], [1], [0, 0, 1, 1], [], []>} : vector<9x25xbf16>, vector<25x64xbf16>, vector<9x64xf32> -> vector<9x64xf32>
    %228 = arith.truncf %227 : vector<9x64xf32> to vector<9x64xbf16>
    %c6_207 = arith.constant 6 : index
    %c0_208 = arith.constant 0 : index
    %c0_209 = arith.constant 0 : index
    %229 = vector.load %arg9[%c6_207, %c0_208, %c0_209] : memref<9x64x64xbf16, #tpu.memory_space<vmem>>, vector<1x64x64xbf16>
    %230 = vector.shape_cast %229 : vector<1x64x64xbf16> to vector<64x64xbf16>
    %cst_210 = arith.constant dense<0.000000e+00> : vector<9x64xf32>
    %231 = tpu.matmul %228, %230, %cst_210 {dimension_numbers = #tpu.dot_dimension_numbers<[1], [0], [0], [1], [0, 0, 1, 1], [], []>} : vector<9x64xbf16>, vector<64x64xbf16>, vector<9x64xf32> -> vector<9x64xf32>
    %232 = arith.addf %224, %231 : vector<9x64xf32>
    %c7_211 = arith.constant 7 : index
    %c0_212 = arith.constant 0 : index
    %c0_213 = arith.constant 0 : index
    %233 = vector.load %arg8[%c7_211, %c0_212, %c0_213] : memref<9x9x25xbf16, #tpu.memory_space<vmem>>, vector<1x9x25xbf16>
    %234 = vector.shape_cast %233 : vector<1x9x25xbf16> to vector<9x25xbf16>
    %cst_214 = arith.constant dense<0.000000e+00> : vector<9x64xf32>
    %235 = tpu.matmul %234, %175, %cst_214 {dimension_numbers = #tpu.dot_dimension_numbers<[1], [0], [0], [1], [0, 0, 1, 1], [], []>} : vector<9x25xbf16>, vector<25x64xbf16>, vector<9x64xf32> -> vector<9x64xf32>
    %236 = arith.truncf %235 : vector<9x64xf32> to vector<9x64xbf16>
    %c7_215 = arith.constant 7 : index
    %c0_216 = arith.constant 0 : index
    %c0_217 = arith.constant 0 : index
    %237 = vector.load %arg9[%c7_215, %c0_216, %c0_217] : memref<9x64x64xbf16, #tpu.memory_space<vmem>>, vector<1x64x64xbf16>
    %238 = vector.shape_cast %237 : vector<1x64x64xbf16> to vector<64x64xbf16>
    %cst_218 = arith.constant dense<0.000000e+00> : vector<9x64xf32>
    %239 = tpu.matmul %236, %238, %cst_218 {dimension_numbers = #tpu.dot_dimension_numbers<[1], [0], [0], [1], [0, 0, 1, 1], [], []>} : vector<9x64xbf16>, vector<64x64xbf16>, vector<9x64xf32> -> vector<9x64xf32>
    %240 = arith.addf %232, %239 : vector<9x64xf32>
    %c8_219 = arith.constant 8 : index
    %c0_220 = arith.constant 0 : index
    %c0_221 = arith.constant 0 : index
    %241 = vector.load %arg8[%c8_219, %c0_220, %c0_221] : memref<9x9x25xbf16, #tpu.memory_space<vmem>>, vector<1x9x25xbf16>
    %242 = vector.shape_cast %241 : vector<1x9x25xbf16> to vector<9x25xbf16>
    %cst_222 = arith.constant dense<0.000000e+00> : vector<9x64xf32>
    %243 = tpu.matmul %242, %175, %cst_222 {dimension_numbers = #tpu.dot_dimension_numbers<[1], [0], [0], [1], [0, 0, 1, 1], [], []>} : vector<9x25xbf16>, vector<25x64xbf16>, vector<9x64xf32> -> vector<9x64xf32>
    %244 = arith.truncf %243 : vector<9x64xf32> to vector<9x64xbf16>
    %c8_223 = arith.constant 8 : index
    %c0_224 = arith.constant 0 : index
    %c0_225 = arith.constant 0 : index
    %245 = vector.load %arg9[%c8_223, %c0_224, %c0_225] : memref<9x64x64xbf16, #tpu.memory_space<vmem>>, vector<1x64x64xbf16>
    %246 = vector.shape_cast %245 : vector<1x64x64xbf16> to vector<64x64xbf16>
    %cst_226 = arith.constant dense<0.000000e+00> : vector<9x64xf32>
    %247 = tpu.matmul %244, %246, %cst_226 {dimension_numbers = #tpu.dot_dimension_numbers<[1], [0], [0], [1], [0, 0, 1, 1], [], []>} : vector<9x64xbf16>, vector<64x64xbf16>, vector<9x64xf32> -> vector<9x64xf32>
    %248 = arith.addf %240, %247 : vector<9x64xf32>
    %c0_227 = arith.constant 0 : index
    %c0_228 = arith.constant 0 : index
    %249 = vector.load %arg10[%c0_227, %c0_228] : memref<1x64xf32, #tpu.memory_space<vmem>>, vector<1x64xf32>
    %250 = vector.broadcast %249 : vector<1x64xf32> to vector<9x64xf32>
    %251 = arith.addf %248, %250 : vector<9x64xf32>
    %cst_229 = arith.constant 0.000000e+00 : f32
    %252 = vector.broadcast %cst_229 : f32 to vector<9x64xf32>
    %253 = arith.maximumf %251, %252 : vector<9x64xf32>
    %254 = arith.truncf %253 : vector<9x64xf32> to vector<9x64xbf16>
    %cst_230 = arith.constant 0.000000e+00 : f32
    %255 = vector.broadcast %cst_230 : f32 to vector<1x512xf32>
    %c0_231 = arith.constant 0 : index
    %c0_232 = arith.constant 0 : index
    %c0_233 = arith.constant 0 : index
    %256 = vector.load %arg11[%c0_231, %c0_232, %c0_233] : memref<9x1x9xbf16, #tpu.memory_space<vmem>>, vector<1x1x9xbf16>
    %257 = vector.shape_cast %256 : vector<1x1x9xbf16> to vector<1x9xbf16>
    %cst_234 = arith.constant dense<0.000000e+00> : vector<1x64xf32>
    %258 = tpu.matmul %257, %254, %cst_234 {dimension_numbers = #tpu.dot_dimension_numbers<[1], [0], [0], [1], [0, 0, 1, 1], [], []>} : vector<1x9xbf16>, vector<9x64xbf16>, vector<1x64xf32> -> vector<1x64xf32>
    %259 = arith.truncf %258 : vector<1x64xf32> to vector<1x64xbf16>
    %c0_235 = arith.constant 0 : index
    %c0_236 = arith.constant 0 : index
    %c0_237 = arith.constant 0 : index
    %260 = vector.load %arg12[%c0_235, %c0_236, %c0_237] : memref<9x64x512xbf16, #tpu.memory_space<vmem>>, vector<1x64x512xbf16>
    %261 = vector.shape_cast %260 : vector<1x64x512xbf16> to vector<64x512xbf16>
    %cst_238 = arith.constant dense<0.000000e+00> : vector<1x512xf32>
    %262 = tpu.matmul %259, %261, %cst_238 {dimension_numbers = #tpu.dot_dimension_numbers<[1], [0], [0], [1], [0, 0, 1, 1], [], []>} : vector<1x64xbf16>, vector<64x512xbf16>, vector<1x512xf32> -> vector<1x512xf32>
    %263 = arith.addf %255, %262 : vector<1x512xf32>
    %c1_239 = arith.constant 1 : index
    %c0_240 = arith.constant 0 : index
    %c0_241 = arith.constant 0 : index
    %264 = vector.load %arg11[%c1_239, %c0_240, %c0_241] : memref<9x1x9xbf16, #tpu.memory_space<vmem>>, vector<1x1x9xbf16>
    %265 = vector.shape_cast %264 : vector<1x1x9xbf16> to vector<1x9xbf16>
    %cst_242 = arith.constant dense<0.000000e+00> : vector<1x64xf32>
    %266 = tpu.matmul %265, %254, %cst_242 {dimension_numbers = #tpu.dot_dimension_numbers<[1], [0], [0], [1], [0, 0, 1, 1], [], []>} : vector<1x9xbf16>, vector<9x64xbf16>, vector<1x64xf32> -> vector<1x64xf32>
    %267 = arith.truncf %266 : vector<1x64xf32> to vector<1x64xbf16>
    %c1_243 = arith.constant 1 : index
    %c0_244 = arith.constant 0 : index
    %c0_245 = arith.constant 0 : index
    %268 = vector.load %arg12[%c1_243, %c0_244, %c0_245] : memref<9x64x512xbf16, #tpu.memory_space<vmem>>, vector<1x64x512xbf16>
    %269 = vector.shape_cast %268 : vector<1x64x512xbf16> to vector<64x512xbf16>
    %cst_246 = arith.constant dense<0.000000e+00> : vector<1x512xf32>
    %270 = tpu.matmul %267, %269, %cst_246 {dimension_numbers = #tpu.dot_dimension_numbers<[1], [0], [0], [1], [0, 0, 1, 1], [], []>} : vector<1x64xbf16>, vector<64x512xbf16>, vector<1x512xf32> -> vector<1x512xf32>
    %271 = arith.addf %263, %270 : vector<1x512xf32>
    %c2_247 = arith.constant 2 : index
    %c0_248 = arith.constant 0 : index
    %c0_249 = arith.constant 0 : index
    %272 = vector.load %arg11[%c2_247, %c0_248, %c0_249] : memref<9x1x9xbf16, #tpu.memory_space<vmem>>, vector<1x1x9xbf16>
    %273 = vector.shape_cast %272 : vector<1x1x9xbf16> to vector<1x9xbf16>
    %cst_250 = arith.constant dense<0.000000e+00> : vector<1x64xf32>
    %274 = tpu.matmul %273, %254, %cst_250 {dimension_numbers = #tpu.dot_dimension_numbers<[1], [0], [0], [1], [0, 0, 1, 1], [], []>} : vector<1x9xbf16>, vector<9x64xbf16>, vector<1x64xf32> -> vector<1x64xf32>
    %275 = arith.truncf %274 : vector<1x64xf32> to vector<1x64xbf16>
    %c2_251 = arith.constant 2 : index
    %c0_252 = arith.constant 0 : index
    %c0_253 = arith.constant 0 : index
    %276 = vector.load %arg12[%c2_251, %c0_252, %c0_253] : memref<9x64x512xbf16, #tpu.memory_space<vmem>>, vector<1x64x512xbf16>
    %277 = vector.shape_cast %276 : vector<1x64x512xbf16> to vector<64x512xbf16>
    %cst_254 = arith.constant dense<0.000000e+00> : vector<1x512xf32>
    %278 = tpu.matmul %275, %277, %cst_254 {dimension_numbers = #tpu.dot_dimension_numbers<[1], [0], [0], [1], [0, 0, 1, 1], [], []>} : vector<1x64xbf16>, vector<64x512xbf16>, vector<1x512xf32> -> vector<1x512xf32>
    %279 = arith.addf %271, %278 : vector<1x512xf32>
    %c3_255 = arith.constant 3 : index
    %c0_256 = arith.constant 0 : index
    %c0_257 = arith.constant 0 : index
    %280 = vector.load %arg11[%c3_255, %c0_256, %c0_257] : memref<9x1x9xbf16, #tpu.memory_space<vmem>>, vector<1x1x9xbf16>
    %281 = vector.shape_cast %280 : vector<1x1x9xbf16> to vector<1x9xbf16>
    %cst_258 = arith.constant dense<0.000000e+00> : vector<1x64xf32>
    %282 = tpu.matmul %281, %254, %cst_258 {dimension_numbers = #tpu.dot_dimension_numbers<[1], [0], [0], [1], [0, 0, 1, 1], [], []>} : vector<1x9xbf16>, vector<9x64xbf16>, vector<1x64xf32> -> vector<1x64xf32>
    %283 = arith.truncf %282 : vector<1x64xf32> to vector<1x64xbf16>
    %c3_259 = arith.constant 3 : index
    %c0_260 = arith.constant 0 : index
    %c0_261 = arith.constant 0 : index
    %284 = vector.load %arg12[%c3_259, %c0_260, %c0_261] : memref<9x64x512xbf16, #tpu.memory_space<vmem>>, vector<1x64x512xbf16>
    %285 = vector.shape_cast %284 : vector<1x64x512xbf16> to vector<64x512xbf16>
    %cst_262 = arith.constant dense<0.000000e+00> : vector<1x512xf32>
    %286 = tpu.matmul %283, %285, %cst_262 {dimension_numbers = #tpu.dot_dimension_numbers<[1], [0], [0], [1], [0, 0, 1, 1], [], []>} : vector<1x64xbf16>, vector<64x512xbf16>, vector<1x512xf32> -> vector<1x512xf32>
    %287 = arith.addf %279, %286 : vector<1x512xf32>
    %c4_263 = arith.constant 4 : index
    %c0_264 = arith.constant 0 : index
    %c0_265 = arith.constant 0 : index
    %288 = vector.load %arg11[%c4_263, %c0_264, %c0_265] : memref<9x1x9xbf16, #tpu.memory_space<vmem>>, vector<1x1x9xbf16>
    %289 = vector.shape_cast %288 : vector<1x1x9xbf16> to vector<1x9xbf16>
    %cst_266 = arith.constant dense<0.000000e+00> : vector<1x64xf32>
    %290 = tpu.matmul %289, %254, %cst_266 {dimension_numbers = #tpu.dot_dimension_numbers<[1], [0], [0], [1], [0, 0, 1, 1], [], []>} : vector<1x9xbf16>, vector<9x64xbf16>, vector<1x64xf32> -> vector<1x64xf32>
    %291 = arith.truncf %290 : vector<1x64xf32> to vector<1x64xbf16>
    %c4_267 = arith.constant 4 : index
    %c0_268 = arith.constant 0 : index
    %c0_269 = arith.constant 0 : index
    %292 = vector.load %arg12[%c4_267, %c0_268, %c0_269] : memref<9x64x512xbf16, #tpu.memory_space<vmem>>, vector<1x64x512xbf16>
    %293 = vector.shape_cast %292 : vector<1x64x512xbf16> to vector<64x512xbf16>
    %cst_270 = arith.constant dense<0.000000e+00> : vector<1x512xf32>
    %294 = tpu.matmul %291, %293, %cst_270 {dimension_numbers = #tpu.dot_dimension_numbers<[1], [0], [0], [1], [0, 0, 1, 1], [], []>} : vector<1x64xbf16>, vector<64x512xbf16>, vector<1x512xf32> -> vector<1x512xf32>
    %295 = arith.addf %287, %294 : vector<1x512xf32>
    %c5_271 = arith.constant 5 : index
    %c0_272 = arith.constant 0 : index
    %c0_273 = arith.constant 0 : index
    %296 = vector.load %arg11[%c5_271, %c0_272, %c0_273] : memref<9x1x9xbf16, #tpu.memory_space<vmem>>, vector<1x1x9xbf16>
    %297 = vector.shape_cast %296 : vector<1x1x9xbf16> to vector<1x9xbf16>
    %cst_274 = arith.constant dense<0.000000e+00> : vector<1x64xf32>
    %298 = tpu.matmul %297, %254, %cst_274 {dimension_numbers = #tpu.dot_dimension_numbers<[1], [0], [0], [1], [0, 0, 1, 1], [], []>} : vector<1x9xbf16>, vector<9x64xbf16>, vector<1x64xf32> -> vector<1x64xf32>
    %299 = arith.truncf %298 : vector<1x64xf32> to vector<1x64xbf16>
    %c5_275 = arith.constant 5 : index
    %c0_276 = arith.constant 0 : index
    %c0_277 = arith.constant 0 : index
    %300 = vector.load %arg12[%c5_275, %c0_276, %c0_277] : memref<9x64x512xbf16, #tpu.memory_space<vmem>>, vector<1x64x512xbf16>
    %301 = vector.shape_cast %300 : vector<1x64x512xbf16> to vector<64x512xbf16>
    %cst_278 = arith.constant dense<0.000000e+00> : vector<1x512xf32>
    %302 = tpu.matmul %299, %301, %cst_278 {dimension_numbers = #tpu.dot_dimension_numbers<[1], [0], [0], [1], [0, 0, 1, 1], [], []>} : vector<1x64xbf16>, vector<64x512xbf16>, vector<1x512xf32> -> vector<1x512xf32>
    %303 = arith.addf %295, %302 : vector<1x512xf32>
    %c6_279 = arith.constant 6 : index
    %c0_280 = arith.constant 0 : index
    %c0_281 = arith.constant 0 : index
    %304 = vector.load %arg11[%c6_279, %c0_280, %c0_281] : memref<9x1x9xbf16, #tpu.memory_space<vmem>>, vector<1x1x9xbf16>
    %305 = vector.shape_cast %304 : vector<1x1x9xbf16> to vector<1x9xbf16>
    %cst_282 = arith.constant dense<0.000000e+00> : vector<1x64xf32>
    %306 = tpu.matmul %305, %254, %cst_282 {dimension_numbers = #tpu.dot_dimension_numbers<[1], [0], [0], [1], [0, 0, 1, 1], [], []>} : vector<1x9xbf16>, vector<9x64xbf16>, vector<1x64xf32> -> vector<1x64xf32>
    %307 = arith.truncf %306 : vector<1x64xf32> to vector<1x64xbf16>
    %c6_283 = arith.constant 6 : index
    %c0_284 = arith.constant 0 : index
    %c0_285 = arith.constant 0 : index
    %308 = vector.load %arg12[%c6_283, %c0_284, %c0_285] : memref<9x64x512xbf16, #tpu.memory_space<vmem>>, vector<1x64x512xbf16>
    %309 = vector.shape_cast %308 : vector<1x64x512xbf16> to vector<64x512xbf16>
    %cst_286 = arith.constant dense<0.000000e+00> : vector<1x512xf32>
    %310 = tpu.matmul %307, %309, %cst_286 {dimension_numbers = #tpu.dot_dimension_numbers<[1], [0], [0], [1], [0, 0, 1, 1], [], []>} : vector<1x64xbf16>, vector<64x512xbf16>, vector<1x512xf32> -> vector<1x512xf32>
    %311 = arith.addf %303, %310 : vector<1x512xf32>
    %c7_287 = arith.constant 7 : index
    %c0_288 = arith.constant 0 : index
    %c0_289 = arith.constant 0 : index
    %312 = vector.load %arg11[%c7_287, %c0_288, %c0_289] : memref<9x1x9xbf16, #tpu.memory_space<vmem>>, vector<1x1x9xbf16>
    %313 = vector.shape_cast %312 : vector<1x1x9xbf16> to vector<1x9xbf16>
    %cst_290 = arith.constant dense<0.000000e+00> : vector<1x64xf32>
    %314 = tpu.matmul %313, %254, %cst_290 {dimension_numbers = #tpu.dot_dimension_numbers<[1], [0], [0], [1], [0, 0, 1, 1], [], []>} : vector<1x9xbf16>, vector<9x64xbf16>, vector<1x64xf32> -> vector<1x64xf32>
    %315 = arith.truncf %314 : vector<1x64xf32> to vector<1x64xbf16>
    %c7_291 = arith.constant 7 : index
    %c0_292 = arith.constant 0 : index
    %c0_293 = arith.constant 0 : index
    %316 = vector.load %arg12[%c7_291, %c0_292, %c0_293] : memref<9x64x512xbf16, #tpu.memory_space<vmem>>, vector<1x64x512xbf16>
    %317 = vector.shape_cast %316 : vector<1x64x512xbf16> to vector<64x512xbf16>
    %cst_294 = arith.constant dense<0.000000e+00> : vector<1x512xf32>
    %318 = tpu.matmul %315, %317, %cst_294 {dimension_numbers = #tpu.dot_dimension_numbers<[1], [0], [0], [1], [0, 0, 1, 1], [], []>} : vector<1x64xbf16>, vector<64x512xbf16>, vector<1x512xf32> -> vector<1x512xf32>
    %319 = arith.addf %311, %318 : vector<1x512xf32>
    %c8_295 = arith.constant 8 : index
    %c0_296 = arith.constant 0 : index
    %c0_297 = arith.constant 0 : index
    %320 = vector.load %arg11[%c8_295, %c0_296, %c0_297] : memref<9x1x9xbf16, #tpu.memory_space<vmem>>, vector<1x1x9xbf16>
    %321 = vector.shape_cast %320 : vector<1x1x9xbf16> to vector<1x9xbf16>
    %cst_298 = arith.constant dense<0.000000e+00> : vector<1x64xf32>
    %322 = tpu.matmul %321, %254, %cst_298 {dimension_numbers = #tpu.dot_dimension_numbers<[1], [0], [0], [1], [0, 0, 1, 1], [], []>} : vector<1x9xbf16>, vector<9x64xbf16>, vector<1x64xf32> -> vector<1x64xf32>
    %323 = arith.truncf %322 : vector<1x64xf32> to vector<1x64xbf16>
    %c8_299 = arith.constant 8 : index
    %c0_300 = arith.constant 0 : index
    %c0_301 = arith.constant 0 : index
    %324 = vector.load %arg12[%c8_299, %c0_300, %c0_301] : memref<9x64x512xbf16, #tpu.memory_space<vmem>>, vector<1x64x512xbf16>
    %325 = vector.shape_cast %324 : vector<1x64x512xbf16> to vector<64x512xbf16>
    %cst_302 = arith.constant dense<0.000000e+00> : vector<1x512xf32>
    %326 = tpu.matmul %323, %325, %cst_302 {dimension_numbers = #tpu.dot_dimension_numbers<[1], [0], [0], [1], [0, 0, 1, 1], [], []>} : vector<1x64xbf16>, vector<64x512xbf16>, vector<1x512xf32> -> vector<1x512xf32>
    %327 = arith.addf %319, %326 : vector<1x512xf32>
    %c0_303 = arith.constant 0 : index
    %c0_304 = arith.constant 0 : index
    %328 = vector.load %arg13[%c0_303, %c0_304] : memref<1x512xf32, #tpu.memory_space<vmem>>, vector<1x512xf32>
    %329 = arith.addf %327, %328 : vector<1x512xf32>
    %cst_305 = arith.constant 0.000000e+00 : f32
    %330 = vector.broadcast %cst_305 : f32 to vector<1x512xf32>
    %331 = arith.maximumf %329, %330 : vector<1x512xf32>
    %332 = arith.truncf %331 : vector<1x512xf32> to vector<1x512xbf16>
    %c0_306 = arith.constant 0 : index
    %c0_307 = arith.constant 0 : index
    %333 = vector.load %arg14[%c0_306, %c0_307] : memref<512x128xbf16, #tpu.memory_space<vmem>>, vector<512x128xbf16>
    %cst_308 = arith.constant dense<0.000000e+00> : vector<1x128xf32>
    %334 = tpu.matmul %332, %333, %cst_308 {dimension_numbers = #tpu.dot_dimension_numbers<[1], [0], [0], [1], [0, 0, 1, 1], [], []>} : vector<1x512xbf16>, vector<512x128xbf16>, vector<1x128xf32> -> vector<1x128xf32>
    %c0_309 = arith.constant 0 : index
    %c0_310 = arith.constant 0 : index
    %335 = vector.load %arg15[%c0_309, %c0_310] : memref<1x128xf32, #tpu.memory_space<vmem>>, vector<1x128xf32>
    %336 = arith.addf %334, %335 : vector<1x128xf32>
    %337 = vector.shape_cast %336 : vector<1x128xf32> to vector<1x1x128xf32>
    %338 = vector.broadcast %337 : vector<1x1x128xf32> to vector<1x8x128xf32>
    %c0_311 = arith.constant 0 : index
    %c0_312 = arith.constant 0 : index
    %c0_313 = arith.constant 0 : index
    %339 = vector.load %arg16[%c0_311, %c0_312, %c0_313] : memref<1x8x128xf32, #tpu.memory_space<vmem>>, vector<1x8x128xf32>
    tpu.vector_store %arg16[%c0_311, %c0_312, %c0_313], %338 {strides = array<i32>} : memref<1x8x128xf32, #tpu.memory_space<vmem>>, vector<1x8x128xf32>,
    return
  }
  func.func @transform_0(%arg0: i32) -> (i32, i32, i32) {
    %c0_i32 = arith.constant 0 : i32
    %c0_i32_0 = arith.constant 0 : i32
    %c0_i32_1 = arith.constant 0 : i32
    return %arg0, %c0_i32, %c0_i32_0 : i32, i32, i32
  }
  func.func @transform_1(%arg0: i32) -> (i32, i32, i32) {
    %c0_i32 = arith.constant 0 : i32
    %c0_i32_0 = arith.constant 0 : i32
    %c0_i32_1 = arith.constant 0 : i32
    %c0_i32_2 = arith.constant 0 : i32
    return %c0_i32, %c0_i32_0, %c0_i32_1 : i32, i32, i32
  }
  func.func @transform_2(%arg0: i32) -> (i32, i32, i32) {
    %c0_i32 = arith.constant 0 : i32
    %c0_i32_0 = arith.constant 0 : i32
    %c0_i32_1 = arith.constant 0 : i32
    %c0_i32_2 = arith.constant 0 : i32
    return %c0_i32, %c0_i32_0, %c0_i32_1 : i32, i32, i32
  }
  func.func @transform_3(%arg0: i32) -> (i32, i32) {
    %c0_i32 = arith.constant 0 : i32
    %c0_i32_0 = arith.constant 0 : i32
    %c0_i32_1 = arith.constant 0 : i32
    return %c0_i32, %c0_i32_0 : i32, i32
  }
  func.func @transform_4(%arg0: i32) -> (i32, i32, i32) {
    %c0_i32 = arith.constant 0 : i32
    %c0_i32_0 = arith.constant 0 : i32
    %c0_i32_1 = arith.constant 0 : i32
    %c0_i32_2 = arith.constant 0 : i32
    return %c0_i32, %c0_i32_0, %c0_i32_1 : i32, i32, i32
  }
  func.func @transform_5(%arg0: i32) -> (i32, i32, i32) {
    %c0_i32 = arith.constant 0 : i32
    %c0_i32_0 = arith.constant 0 : i32
    %c0_i32_1 = arith.constant 0 : i32
    %c0_i32_2 = arith.constant 0 : i32
    return %c0_i32, %c0_i32_0, %c0_i32_1 : i32, i32, i32
  }
  func.func @transform_6(%arg0: i32) -> (i32, i32) {
    %c0_i32 = arith.constant 0 : i32
    %c0_i32_0 = arith.constant 0 : i32
    %c0_i32_1 = arith.constant 0 : i32
    return %c0_i32, %c0_i32_0 : i32, i32
  }
  func.func @transform_7(%arg0: i32) -> (i32, i32, i32) {
    %c0_i32 = arith.constant 0 : i32
    %c0_i32_0 = arith.constant 0 : i32
    %c0_i32_1 = arith.constant 0 : i32
    %c0_i32_2 = arith.constant 0 : i32
    return %c0_i32, %c0_i32_0, %c0_i32_1 : i32, i32, i32
  }
  func.func @transform_8(%arg0: i32) -> (i32, i32, i32) {
    %c0_i32 = arith.constant 0 : i32
    %c0_i32_0 = arith.constant 0 : i32
    %c0_i32_1 = arith.constant 0 : i32
    %c0_i32_2 = arith.constant 0 : i32
    return %c0_i32, %c0_i32_0, %c0_i32_1 : i32, i32, i32
  }
  func.func @transform_9(%arg0: i32) -> (i32, i32) {
    %c0_i32 = arith.constant 0 : i32
    %c0_i32_0 = arith.constant 0 : i32
    %c0_i32_1 = arith.constant 0 : i32
    return %c0_i32, %c0_i32_0 : i32, i32
  }
  func.func @transform_10(%arg0: i32) -> (i32, i32, i32) {
    %c0_i32 = arith.constant 0 : i32
    %c0_i32_0 = arith.constant 0 : i32
    %c0_i32_1 = arith.constant 0 : i32
    %c0_i32_2 = arith.constant 0 : i32
    return %c0_i32, %c0_i32_0, %c0_i32_1 : i32, i32, i32
  }
  func.func @transform_11(%arg0: i32) -> (i32, i32, i32) {
    %c0_i32 = arith.constant 0 : i32
    %c0_i32_0 = arith.constant 0 : i32
    %c0_i32_1 = arith.constant 0 : i32
    %c0_i32_2 = arith.constant 0 : i32
    return %c0_i32, %c0_i32_0, %c0_i32_1 : i32, i32, i32
  }
  func.func @transform_12(%arg0: i32) -> (i32, i32) {
    %c0_i32 = arith.constant 0 : i32
    %c0_i32_0 = arith.constant 0 : i32
    %c0_i32_1 = arith.constant 0 : i32
    return %c0_i32, %c0_i32_0 : i32, i32
  }
  func.func @transform_13(%arg0: i32) -> (i32, i32) {
    %c0_i32 = arith.constant 0 : i32
    %c0_i32_0 = arith.constant 0 : i32
    %c0_i32_1 = arith.constant 0 : i32
    return %c0_i32, %c0_i32_0 : i32, i32
  }
  func.func @transform_14(%arg0: i32) -> (i32, i32) {
    %c0_i32 = arith.constant 0 : i32
    %c0_i32_0 = arith.constant 0 : i32
    %c0_i32_1 = arith.constant 0 : i32
    return %c0_i32, %c0_i32_0 : i32, i32
  }
  func.func @transform_15(%arg0: i32) -> (i32, i32, i32) {
    %c0_i32 = arith.constant 0 : i32
    %c0_i32_0 = arith.constant 0 : i32
    %c0_i32_1 = arith.constant 0 : i32
    return %arg0, %c0_i32, %c0_i32_0 : i32, i32, i32
  }
}

</mosaic_0001>

<llo_original>
// kernel: conv2dnet_forward.1
$region0: #{conv2dnet_forward.1}
  #allocation0 [shape = 'u32[]', space=smem, size = 0x4, offset = 0x4, fixed_abs, tag = 'smem constant byte address 0x4 - core index']
  #allocation1 [shape = 'u32[144,128]{1,0:T(1,128)}', space=vmem, size = 0x12000, scoped, tag = 'internal scratch']
  %s0 = inlined_call_operand.vmem [shape: bf16[2,169,64], index: 0, kind: input, shape index: {}]
  %s1 = inlined_call_operand.vmem [shape: bf16[4,144,169], index: 1, kind: input, shape index: {}]
  %s2 = inlined_call_operand.vmem [shape: bf16[4,64,32], index: 2, kind: input, shape index: {}]
  %s3 = inlined_call_operand.vmem [shape: f32[1,32], index: 3, kind: input, shape index: {}]
  %s4 = inlined_call_operand.vmem [shape: bf16[16,25,144], index: 4, kind: input, shape index: {}]
  %s5 = inlined_call_operand.vmem [shape: bf16[16,32,64], index: 5, kind: input, shape index: {}]
  %s6 = inlined_call_operand.vmem [shape: f32[1,64], index: 6, kind: input, shape index: {}]
  %s7 = inlined_call_operand.vmem [shape: bf16[9,9,25], index: 7, kind: input, shape index: {}]
  %s8 = inlined_call_operand.vmem [shape: bf16[9,64,64], index: 8, kind: input, shape index: {}]
  %s9 = inlined_call_operand.vmem [shape: f32[1,64], index: 9, kind: input, shape index: {}]
  %s10 = inlined_call_operand.vmem [shape: bf16[9,1,9], index: 10, kind: input, shape index: {}]
  %s11 = inlined_call_operand.vmem [shape: bf16[9,64,512], index: 11, kind: input, shape index: {}]
  %s12 = inlined_call_operand.vmem [shape: f32[1,512], index: 12, kind: input, shape index: {}]
  %s13 = inlined_call_operand.vmem [shape: bf16[512,128], index: 13, kind: input, shape index: {}]
  %s14 = inlined_call_operand.vmem [shape: f32[1,128], index: 14, kind: input, shape index: {}]
  %s15 = inlined_call_operand.vmem [shape: f32[2,8,128], index: 15, kind: output, shape index: {}]
  %s16 = sld [smem:[#allocation0]]
  $region93: #{conv2dnet_forward.1} parent=0
    _
  %s18 = ssub.s32 1, %s16
  %s19 = scalar_select 0, %s18, %s16
  loop: start=0, step=1, limit=4
  $region2: #{conv2dnet_forward.1} parent=0 // loop_pre_header
    _
  $region3: #{conv2dnet_forward.1} parent=0 // loop_header
    %s21 = sphi 0, %s25
    %p22 = scmp.ge.s32.totalorder %s21, 4
    %s31 = sphi 0, %s33
    %s34 = sphi 0, %s31
    %s35 = sphi 0, %s34
    %s51 = sphi 0, %s35
    %s55 = sphi 0, %s55
    %s57 = sphi 0, %s55
    %s58 = sphi 0, %s57
    %s72 = sphi 0, %s58
    %s76 = sphi 0, %s76
    %s78 = sphi 0, %s76
    %s79 = sphi 0, %s78
    %s93 = sphi 0, %s79
    %s97 = sphi 0, %s97
    %s99 = sphi 0, %s97
    %s100 = sphi 0, %s99
    %s114 = sphi 0, %s100
    %s118 = sphi 0, %s118
    %s120 = sphi 0, %s118
    %s121 = sphi 0, %s120
    %s135 = sphi 0, %s121
    %s139 = sphi 0, %s139
    %s141 = sphi 0, %s139
    %s142 = sphi 0, %s141
    %s156 = sphi 0, %s142
    %s160 = sphi 0, %s160
    %s162 = sphi 0, %s160
    %s163 = sphi 0, %s162
    %s177 = sphi 0, %s163
    %s181 = sphi 0, %s181
    %s183 = sphi 0, %s181
    %s184 = sphi 0, %s183
    %s198 = sphi 0, %s184
    %s202 = sphi 0, %s202
    %s204 = sphi 0, %s202
    %s205 = sphi 0, %s204
    %s219 = sphi 0, %s205
    %s223 = sphi 0, %s223
    %s225 = sphi 0, %s223
    %s226 = sphi 0, %s225
    %s240 = sphi 0, %s226
    %s244 = sphi 0, %s244
    %s246 = sphi 0, %s244
    %s247 = sphi 0, %s246
    %s261 = sphi 0, %s247
    %s265 = sphi 0, %s265
    %s267 = sphi 0, %s265
    %s268 = sphi 0, %s267
    %s282 = sphi 0, %s268
    %s286 = sphi 0, %s286
    %s288 = sphi 0, %s286
    %s289 = sphi 0, %s288
    %s303 = sphi 0, %s289
    %s307 = sphi 0, %s307
    %s309 = sphi 0, %s307
    %s310 = sphi 0, %s309
    %s324 = sphi 0, %s310
    %s328 = sphi 0, %s328
    %s330 = sphi 0, %s328
    %s331 = sphi 0, %s330
    %s345 = sphi 0, %s331
    %s351 = sphi 0, %s353
    %s354 = sphi 0, %s351
    %s355 = sphi 0, %s354
    %s371 = sphi 0, %s355
  $region4: #{conv2dnet_forward.1} parent=0 // loop_header_branch
    %24 = sbr.rel (%p22) target = $region8
  $region5: #{conv2dnet_forward.1} parent=0 // loop_body
    %s26 = ssub.s32 %s21, 1
    %s27 = ssub.s32 %s21, 2
    %s28 = sadd.s32 %s21, 1
    %s29 = ssub.s32 %s21, %s28
    %p30 = scmp.eq.s32.totalorder %s29, 0
    %s32 = sadd.s32 %s31, 1
    %s33 = scalar_select %p30, %s31, %s32
    %p36 = pneg %p30
    %p37 = scmp.eq.s32.totalorder %s21, 1
    %p38 = por %p36, %p37
    %p39 = scmp.ne.s32.totalorder %s31, %s34
    %p40 = scmp.eq.s32.totalorder %s21, 0
    %p41 = por %p39, %p40
    %p42 = scmp.ne.s32.totalorder %s31, %s34
    %p43 = scmp.eq.s32.totalorder %s26, 1
    %p44 = por %p42, %p43
    %p45 = scmp.ne.s32.totalorder %s34, %s35
    %p46 = scmp.eq.s32.totalorder %s26, 0
    %p47 = por %p45, %p46
    %p48 = scmp.ne.s32.totalorder %s34, %s35
    %p49 = scmp.eq.s32.totalorder %s27, 1
    %p50 = por %p48, %p49
    %p52 = scmp.ne.s32.totalorder %s35, %s51
    %p53 = scmp.eq.s32.totalorder %s27, 0
    %p54 = por %p52, %p53
    %s56 = sadd.s32 %s55, 1
    %p59 = scmp.eq.s32.totalorder %s21, 1
    %p60 = scmp.ne.s32.totalorder %s55, %s57
    %p61 = scmp.eq.s32.totalorder %s21, 0
    %p62 = por %p60, %p61
    %p63 = scmp.ne.s32.totalorder %s55, %s57
    %p64 = scmp.eq.s32.totalorder %s26, 1
    %p65 = por %p63, %p64
    %p66 = scmp.ne.s32.totalorder %s57, %s58
    %p67 = scmp.eq.s32.totalorder %s26, 0
    %p68 = por %p66, %p67
    %p69 = scmp.ne.s32.totalorder %s57, %s58
    %p70 = scmp.eq.s32.totalorder %s27, 1
    %p71 = por %p69, %p70
    %p73 = scmp.ne.s32.totalorder %s58, %s72
    %p74 = scmp.eq.s32.totalorder %s27, 0
    %p75 = por %p73, %p74
    %s77 = sadd.s32 %s76, 1
    %p80 = scmp.eq.s32.totalorder %s21, 1
    %p81 = scmp.ne.s32.totalorder %s76, %s78
    %p82 = scmp.eq.s32.totalorder %s21, 0
    %p83 = por %p81, %p82
    %p84 = scmp.ne.s32.totalorder %s76, %s78
    %p85 = scmp.eq.s32.totalorder %s26, 1
    %p86 = por %p84, %p85
    %p87 = scmp.ne.s32.totalorder %s78, %s79
    %p88 = scmp.eq.s32.totalorder %s26, 0
    %p89 = por %p87, %p88
    %p90 = scmp.ne.s32.totalorder %s78, %s79
    %p91 = scmp.eq.s32.totalorder %s27, 1
    %p92 = por %p90, %p91
    %p94 = scmp.ne.s32.totalorder %s79, %s93
    %p95 = scmp.eq.s32.totalorder %s27, 0
    %p96 = por %p94, %p95
    %s98 = sadd.s32 %s97, 1
    %p101 = scmp.eq.s32.totalorder %s21, 1
    %p102 = scmp.ne.s32.totalorder %s97, %s99
    %p103 = scmp.eq.s32.totalorder %s21, 0
    %p104 = por %p102, %p103
    %p105 = scmp.ne.s32.totalorder %s97, %s99
    %p106 = scmp.eq.s32.totalorder %s26, 1
    %p107 = por %p105, %p106
    %p108 = scmp.ne.s32.totalorder %s99, %s100
    %p109 = scmp.eq.s32.totalorder %s26, 0
    %p110 = por %p108, %p109
    %p111 = scmp.ne.s32.totalorder %s99, %s100
    %p112 = scmp.eq.s32.totalorder %s27, 1
    %p113 = por %p111, %p112
    %p115 = scmp.ne.s32.totalorder %s100, %s114
    %p116 = scmp.eq.s32.totalorder %s27, 0
    %p117 = por %p115, %p116
    %s119 = sadd.s32 %s118, 1
    %p122 = scmp.eq.s32.totalorder %s21, 1
    %p123 = scmp.ne.s32.totalorder %s118, %s120
    %p124 = scmp.eq.s32.totalorder %s21, 0
    %p125 = por %p123, %p124
    %p126 = scmp.ne.s32.totalorder %s118, %s120
    %p127 = scmp.eq.s32.totalorder %s26, 1
    %p128 = por %p126, %p127
    %p129 = scmp.ne.s32.totalorder %s120, %s121
    %p130 = scmp.eq.s32.totalorder %s26, 0
    %p131 = por %p129, %p130
    %p132 = scmp.ne.s32.totalorder %s120, %s121
    %p133 = scmp.eq.s32.totalorder %s27, 1
    %p134 = por %p132, %p133
    %p136 = scmp.ne.s32.totalorder %s121, %s135
    %p137 = scmp.eq.s32.totalorder %s27, 0
    %p138 = por %p136, %p137
    %s140 = sadd.s32 %s139, 1
    %p143 = scmp.eq.s32.totalorder %s21, 1
    %p144 = scmp.ne.s32.totalorder %s139, %s141
    %p145 = scmp.eq.s32.totalorder %s21, 0
    %p146 = por %p144, %p145
    %p147 = scmp.ne.s32.totalorder %s139, %s141
    %p148 = scmp.eq.s32.totalorder %s26, 1
    %p149 = por %p147, %p148
    %p150 = scmp.ne.s32.totalorder %s141, %s142
    %p151 = scmp.eq.s32.totalorder %s26, 0
    %p152 = por %p150, %p151
    %p153 = scmp.ne.s32.totalorder %s141, %s142
    %p154 = scmp.eq.s32.totalorder %s27, 1
    %p155 = por %p153, %p154
    %p157 = scmp.ne.s32.totalorder %s142, %s156
    %p158 = scmp.eq.s32.totalorder %s27, 0
    %p159 = por %p157, %p158
    %s161 = sadd.s32 %s160, 1
    %p164 = scmp.eq.s32.totalorder %s21, 1
    %p165 = scmp.ne.s32.totalorder %s160, %s162
    %p166 = scmp.eq.s32.totalorder %s21, 0
    %p167 = por %p165, %p166
    %p168 = scmp.ne.s32.totalorder %s160, %s162
    %p169 = scmp.eq.s32.totalorder %s26, 1
    %p170 = por %p168, %p169
    %p171 = scmp.ne.s32.totalorder %s162, %s163
    %p172 = scmp.eq.s32.totalorder %s26, 0
    %p173 = por %p171, %p172
    %p174 = scmp.ne.s32.totalorder %s162, %s163
    %p175 = scmp.eq.s32.totalorder %s27, 1
    %p176 = por %p174, %p175
    %p178 = scmp.ne.s32.totalorder %s163, %s177
    %p179 = scmp.eq.s32.totalorder %s27, 0
    %p180 = por %p178, %p179
    %s182 = sadd.s32 %s181, 1
    %p185 = scmp.eq.s32.totalorder %s21, 1
    %p186 = scmp.ne.s32.totalorder %s181, %s183
    %p187 = scmp.eq.s32.totalorder %s21, 0
    %p188 = por %p186, %p187
    %p189 = scmp.ne.s32.totalorder %s181, %s183
    %p190 = scmp.eq.s32.totalorder %s26, 1
    %p191 = por %p189, %p190
    %p192 = scmp.ne.s32.totalorder %s183, %s184
    %p193 = scmp.eq.s32.totalorder %s26, 0
    %p194 = por %p192, %p193
    %p195 = scmp.ne.s32.totalorder %s183, %s184
    %p196 = scmp.eq.s32.totalorder %s27, 1
    %p197 = por %p195, %p196
    %p199 = scmp.ne.s32.totalorder %s184, %s198
    %p200 = scmp.eq.s32.totalorder %s27, 0
    %p201 = por %p199, %p200
    %s203 = sadd.s32 %s202, 1
    %p206 = scmp.eq.s32.totalorder %s21, 1
    %p207 = scmp.ne.s32.totalorder %s202, %s204
    %p208 = scmp.eq.s32.totalorder %s21, 0
    %p209 = por %p207, %p208
    %p210 = scmp.ne.s32.totalorder %s202, %s204
    %p211 = scmp.eq.s32.totalorder %s26, 1
    %p212 = por %p210, %p211
    %p213 = scmp.ne.s32.totalorder %s204, %s205
    %p214 = scmp.eq.s32.totalorder %s26, 0
    %p215 = por %p213, %p214
    %p216 = scmp.ne.s32.totalorder %s204, %s205
    %p217 = scmp.eq.s32.totalorder %s27, 1
    %p218 = por %p216, %p217
    %p220 = scmp.ne.s32.totalorder %s205, %s219
    %p221 = scmp.eq.s32.totalorder %s27, 0
    %p222 = por %p220, %p221
    %s224 = sadd.s32 %s223, 1
    %p227 = scmp.eq.s32.totalorder %s21, 1
    %p228 = scmp.ne.s32.totalorder %s223, %s225
    %p229 = scmp.eq.s32.totalorder %s21, 0
    %p230 = por %p228, %p229
    %p231 = scmp.ne.s32.totalorder %s223, %s225
    %p232 = scmp.eq.s32.totalorder %s26, 1
    %p233 = por %p231, %p232
    %p234 = scmp.ne.s32.totalorder %s225, %s226
    %p235 = scmp.eq.s32.totalorder %s26, 0
    %p236 = por %p234, %p235
    %p237 = scmp.ne.s32.totalorder %s225, %s226
    %p238 = scmp.eq.s32.totalorder %s27, 1
    %p239 = por %p237, %p238
    %p241 = scmp.ne.s32.totalorder %s226, %s240
    %p242 = scmp.eq.s32.totalorder %s27, 0
    %p243 = por %p241, %p242
    %s245 = sadd.s32 %s244, 1
    %p248 = scmp.eq.s32.totalorder %s21, 1
    %p249 = scmp.ne.s32.totalorder %s244, %s246
    %p250 = scmp.eq.s32.totalorder %s21, 0
    %p251 = por %p249, %p250
    %p252 = scmp.ne.s32.totalorder %s244, %s246
    %p253 = scmp.eq.s32.totalorder %s26, 1
    %p254 = por %p252, %p253
    %p255 = scmp.ne.s32.totalorder %s246, %s247
    %p256 = scmp.eq.s32.totalorder %s26, 0
    %p257 = por %p255, %p256
    %p258 = scmp.ne.s32.totalorder %s246, %s247
    %p259 = scmp.eq.s32.totalorder %s27, 1
    %p260 = por %p258, %p259
    %p262 = scmp.ne.s32.totalorder %s247, %s261
    %p263 = scmp.eq.s32.totalorder %s27, 0
    %p264 = por %p262, %p263
    %s266 = sadd.s32 %s265, 1
    %p269 = scmp.eq.s32.totalorder %s21, 1
    %p270 = scmp.ne.s32.totalorder %s265, %s267
    %p271 = scmp.eq.s32.totalorder %s21, 0
    %p272 = por %p270, %p271
    %p273 = scmp.ne.s32.totalorder %s265, %s267
    %p274 = scmp.eq.s32.totalorder %s26, 1
    %p275 = por %p273, %p274
    %p276 = scmp.ne.s32.totalorder %s267, %s268
    %p277 = scmp.eq.s32.totalorder %s26, 0
    %p278 = por %p276, %p277
    %p279 = scmp.ne.s32.totalorder %s267, %s268
    %p280 = scmp.eq.s32.totalorder %s27, 1
    %p281 = por %p279, %p280
    %p283 = scmp.ne.s32.totalorder %s268, %s282
    %p284 = scmp.eq.s32.totalorder %s27, 0
    %p285 = por %p283, %p284
    %s287 = sadd.s32 %s286, 1
    %p290 = scmp.eq.s32.totalorder %s21, 1
    %p291 = scmp.ne.s32.totalorder %s286, %s288
    %p292 = scmp.eq.s32.totalorder %s21, 0
    %p293 = por %p291, %p292
    %p294 = scmp.ne.s32.totalorder %s286, %s288
    %p295 = scmp.eq.s32.totalorder %s26, 1
    %p296 = por %p294, %p295
    %p297 = scmp.ne.s32.totalorder %s288, %s289
    %p298 = scmp.eq.s32.totalorder %s26, 0
    %p299 = por %p297, %p298
    %p300 = scmp.ne.s32.totalorder %s288, %s289
    %p301 = scmp.eq.s32.totalorder %s27, 1
    %p302 = por %p300, %p301
    %p304 = scmp.ne.s32.totalorder %s289, %s303
    %p305 = scmp.eq.s32.totalorder %s27, 0
    %p306 = por %p304, %p305
    %s308 = sadd.s32 %s307, 1
    %p311 = scmp.eq.s32.totalorder %s21, 1
    %p312 = scmp.ne.s32.totalorder %s307, %s309
    %p313 = scmp.eq.s32.totalorder %s21, 0
    %p314 = por %p312, %p313
    %p315 = scmp.ne.s32.totalorder %s307, %s309
    %p316 = scmp.eq.s32.totalorder %s26, 1
    %p317 = por %p315, %p316
    %p318 = scmp.ne.s32.totalorder %s309, %s310
    %p319 = scmp.eq.s32.totalorder %s26, 0
    %p320 = por %p318, %p319
    %p321 = scmp.ne.s32.totalorder %s309, %s310
    %p322 = scmp.eq.s32.totalorder %s27, 1
    %p323 = por %p321, %p322
    %p325 = scmp.ne.s32.totalorder %s310, %s324
    %p326 = scmp.eq.s32.totalorder %s27, 0
    %p327 = por %p325, %p326
    %s329 = sadd.s32 %s328, 1
    %p332 = scmp.eq.s32.totalorder %s21, 1
    %p333 = scmp.ne.s32.totalorder %s328, %s330
    %p334 = scmp.eq.s32.totalorder %s21, 0
    %p335 = por %p333, %p334
    %p336 = scmp.ne.s32.totalorder %s328, %s330
    %p337 = scmp.eq.s32.totalorder %s26, 1
    %p338 = por %p336, %p337
    %p339 = scmp.ne.s32.totalorder %s330, %s331
    %p340 = scmp.eq.s32.totalorder %s26, 0
    %p341 = por %p339, %p340
    %p342 = scmp.ne.s32.totalorder %s330, %s331
    %p343 = scmp.eq.s32.totalorder %s27, 1
    %p344 = por %p342, %p343
    %p346 = scmp.ne.s32.totalorder %s331, %s345
    %p347 = scmp.eq.s32.totalorder %s27, 0
    %p348 = por %p346, %p347
    %s349 = ssub.s32 %s21, %s28
    %p350 = scmp.eq.s32.totalorder %s349, 0
    %s352 = sadd.s32 %s351, 1
    %s353 = scalar_select %p350, %s351, %s352
    %p356 = pneg %p350
    %p357 = scmp.eq.s32.totalorder %s21, 1
    %p358 = por %p356, %p357
    %p359 = scmp.ne.s32.totalorder %s351, %s354
    %p360 = scmp.eq.s32.totalorder %s21, 0
    %p361 = por %p359, %p360
    %p362 = scmp.ne.s32.totalorder %s351, %s354
    %p363 = scmp.eq.s32.totalorder %s26, 1
    %p364 = por %p362, %p363
    %p365 = scmp.ne.s32.totalorder %s354, %s355
    %p366 = scmp.eq.s32.totalorder %s26, 0
    %p367 = por %p365, %p366
    %p368 = scmp.ne.s32.totalorder %s354, %s355
    %p369 = scmp.eq.s32.totalorder %s27, 1
    %p370 = por %p368, %p369
    %p372 = scmp.ne.s32.totalorder %s355, %s371
    %p373 = scmp.eq.s32.totalorder %s27, 0
    %p374 = por %p372, %p373
    %p375 = scmp.le.s32.totalorder 1, %s21
    %p376 = scmp.lt.s32.totalorder %s21, 3
    %p377 = pnand %p375, %p376
    %p378 = pneg %p377
    // Predicated region
    $region9: #{conv2dnet_forward.1} parent=5 // pred_check
      _
    $region10: #{conv2dnet_forward.1} parent=5 // pred_check_branch
      %380 = sbr.rel (%p377) target = $region12
    $region11: #{conv2dnet_forward.1} parent=5 // pred_region
      %s381 = ssub.s32 %s21, 1
      // Predicated region
      $region13: #{conv2dnet_forward.1} parent=11 // pred_check
        %p382 = pneg %p68
      $region14: #{conv2dnet_forward.1} parent=11 // pred_check_branch
        %384 = sbr.rel (%p382) target = $region16
      $region15: #{conv2dnet_forward.1} parent=11 // pred_region
        _
      $region16: #{conv2dnet_forward.1} parent=11 // pred_fallthru
        _
      // Predicated region
      $region17: #{conv2dnet_forward.1} parent=11 // pred_check
        %p385 = pneg %p89
      $region18: #{conv2dnet_forward.1} parent=11 // pred_check_branch
        %387 = sbr.rel (%p385) target = $region20
      $region19: #{conv2dnet_forward.1} parent=11 // pred_region
        _
      $region20: #{conv2dnet_forward.1} parent=11 // pred_fallthru
        _
      // Predicated region
      $region21: #{conv2dnet_forward.1} parent=11 // pred_check
        %p388 = pneg %p110
      $region22: #{conv2dnet_forward.1} parent=11 // pred_check_branch
        %390 = sbr.rel (%p388) target = $region24
      $region23: #{conv2dnet_forward.1} parent=11 // pred_region
        _
      $region24: #{conv2dnet_forward.1} parent=11 // pred_fallthru
        _
      // Predicated region
      $region25: #{conv2dnet_forward.1} parent=11 // pred_check
        %p391 = pneg %p131
      $region26: #{conv2dnet_forward.1} parent=11 // pred_check_branch
        %393 = sbr.rel (%p391) target = $region28
      $region27: #{conv2dnet_forward.1} parent=11 // pred_region
        _
      $region28: #{conv2dnet_forward.1} parent=11 // pred_fallthru
        _
      // Predicated region
      $region29: #{conv2dnet_forward.1} parent=11 // pred_check
        %p394 = pneg %p152
      $region30: #{conv2dnet_forward.1} parent=11 // pred_check_branch
        %396 = sbr.rel (%p394) target = $region32
      $region31: #{conv2dnet_forward.1} parent=11 // pred_region
        _
      $region32: #{conv2dnet_forward.1} parent=11 // pred_fallthru
        _
      // Predicated region
      $region33: #{conv2dnet_forward.1} parent=11 // pred_check
        %p397 = pneg %p173
      $region34: #{conv2dnet_forward.1} parent=11 // pred_check_branch
        %399 = sbr.rel (%p397) target = $region36
      $region35: #{conv2dnet_forward.1} parent=11 // pred_region
        _
      $region36: #{conv2dnet_forward.1} parent=11 // pred_fallthru
        _
      // Predicated region
      $region37: #{conv2dnet_forward.1} parent=11 // pred_check
        %p400 = pneg %p194
      $region38: #{conv2dnet_forward.1} parent=11 // pred_check_branch
        %402 = sbr.rel (%p400) target = $region40
      $region39: #{conv2dnet_forward.1} parent=11 // pred_region
        _
      $region40: #{conv2dnet_forward.1} parent=11 // pred_fallthru
        _
      // Predicated region
      $region41: #{conv2dnet_forward.1} parent=11 // pred_check
        %p403 = pneg %p215
      $region42: #{conv2dnet_forward.1} parent=11 // pred_check_branch
        %405 = sbr.rel (%p403) target = $region44
      $region43: #{conv2dnet_forward.1} parent=11 // pred_region
        _
      $region44: #{conv2dnet_forward.1} parent=11 // pred_fallthru
        _
      // Predicated region
      $region45: #{conv2dnet_forward.1} parent=11 // pred_check
        %p406 = pneg %p236
      $region46: #{conv2dnet_forward.1} parent=11 // pred_check_branch
        %408 = sbr.rel (%p406) target = $region48
      $region47: #{conv2dnet_forward.1} parent=11 // pred_region
        _
      $region48: #{conv2dnet_forward.1} parent=11 // pred_fallthru
        _
      // Predicated region
      $region49: #{conv2dnet_forward.1} parent=11 // pred_check
        %p409 = pneg %p257
      $region50: #{conv2dnet_forward.1} parent=11 // pred_check_branch
        %411 = sbr.rel (%p409) target = $region52
      $region51: #{conv2dnet_forward.1} parent=11 // pred_region
        _
      $region52: #{conv2dnet_forward.1} parent=11 // pred_fallthru
        _
      // Predicated region
      $region53: #{conv2dnet_forward.1} parent=11 // pred_check
        %p412 = pneg %p278
      $region54: #{conv2dnet_forward.1} parent=11 // pred_check_branch
        %414 = sbr.rel (%p412) target = $region56
      $region55: #{conv2dnet_forward.1} parent=11 // pred_region
        _
      $region56: #{conv2dnet_forward.1} parent=11 // pred_fallthru
        _
      // Predicated region
      $region57: #{conv2dnet_forward.1} parent=11 // pred_check
        %p415 = pneg %p299
      $region58: #{conv2dnet_forward.1} parent=11 // pred_check_branch
        %417 = sbr.rel (%p415) target = $region60
      $region59: #{conv2dnet_forward.1} parent=11 // pred_region
        _
      $region60: #{conv2dnet_forward.1} parent=11 // pred_fallthru
        _
      // Predicated region
      $region61: #{conv2dnet_forward.1} parent=11 // pred_check
        %p418 = pneg %p320
      $region62: #{conv2dnet_forward.1} parent=11 // pred_check_branch
        %420 = sbr.rel (%p418) target = $region64
      $region63: #{conv2dnet_forward.1} parent=11 // pred_region
        _
      $region64: #{conv2dnet_forward.1} parent=11 // pred_fallthru
        _
      // Predicated region
      $region65: #{conv2dnet_forward.1} parent=11 // pred_check
        %p421 = pneg %p341
      $region66: #{conv2dnet_forward.1} parent=11 // pred_check_branch
        %423 = sbr.rel (%p421) target = $region68
      $region67: #{conv2dnet_forward.1} parent=11 // pred_region
        _
      $region68: #{conv2dnet_forward.1} parent=11 // pred_fallthru
        _
    $region12: #{conv2dnet_forward.1} parent=5 // pred_fallthru
      _
    %p424 = scmp.lt.s32.totalorder %s21, 2
    // Predicated region
    $region69: #{conv2dnet_forward.1} parent=5 // pred_check
      %p425 = pneg %p424
    $region70: #{conv2dnet_forward.1} parent=5 // pred_check_branch
      %427 = sbr.rel (%p425) target = $region72
    $region71: #{conv2dnet_forward.1} parent=5 // pred_region
      // Predicated region
      $region73: #{conv2dnet_forward.1} parent=71 // pred_check
        %p428 = pneg %p41
      $region74: #{conv2dnet_forward.1} parent=71 // pred_check_branch
        %430 = sbr.rel (%p428) target = $region76
      $region75: #{conv2dnet_forward.1} parent=71 // pred_region
        %p431 = scmp.lt.s32.totalorder %s21, 1
        %s432 = scalar_select %p431, %s21, 1
        %s433 = smul.addr %s432, 22
        %s434 = smul.addr %s433, 4
        %s435 = scalar_lea.vmem %s0, %s434
      $region76: #{conv2dnet_forward.1} parent=71 // pred_fallthru
        _
    $region72: #{conv2dnet_forward.1} parent=5 // pred_fallthru
      _
    %p436 = scmp.le.s32.totalorder 1, %s21
    %p437 = scmp.lt.s32.totalorder %s21, 3
    %p438 = pnand %p436, %p437
    %p439 = pneg %p438
    // Predicated region
    $region77: #{conv2dnet_forward.1} parent=5 // pred_check
      _
    $region78: #{conv2dnet_forward.1} parent=5 // pred_check_branch
      %441 = sbr.rel (%p438) target = $region80
    $region79: #{conv2dnet_forward.1} parent=5 // pred_region
      %s442 = ssub.s32 %s21, 1
      %p443 = scmp.lt.s32.totalorder %s26, 1
      %s444 = scalar_select %p443, %s26, 1
      %s445 = smul.addr %s444, 22
      %s446 = smul.addr %s445, 4
      %s447 = scalar_lea.vmem %s0, %s446
      %p448 = pneg %p47
      %p449 = pneg %p44
      %p450 = pneg %p68
      %p451 = pneg %p65
      %p452 = pneg %p89
      %p453 = pneg %p86
      %p454 = pneg %p110
      %p455 = pneg %p107
      %p456 = pneg %p131
      %p457 = pneg %p128
      %p458 = pneg %p152
      %p459 = pneg %p149
      %p460 = pneg %p173
      %p461 = pneg %p170
      %p462 = pneg %p194
      %p463 = pneg %p191
      %p464 = pneg %p215
      %p465 = pneg %p212
      %p466 = pneg %p236
      %p467 = pneg %p233
      %p468 = pneg %p257
      %p469 = pneg %p254
      %p470 = pneg %p278
      %p471 = pneg %p275
      %p472 = pneg %p299
      %p473 = pneg %p296
      %p474 = pneg %p320
      %p475 = pneg %p317
      %p476 = pneg %p341
      %p477 = pneg %p338
      %p478 = pneg %p367
      %p479 = pneg %p364
      %p480 = scmp.lt.s32.totalorder %s26, 1
      %s481 = scalar_select %p480, %s26, 1
      %s482 = smul.addr %s481, 8
      %s483 = scalar_lea.vmem %s15, %s482
      %p484 = scmp.lt.s32.totalorder %s26, 1
      %s485 = scalar_select %p484, %s26, 1
      %s486 = smul.addr %s485, 22
      %s487 = smul.addr %s486, 4
      %s488 = scalar_lea.vmem %s0, %s487
      %p489 = scmp.lt.s32.totalorder %s26, 1
      %s490 = scalar_select %p489, %s26, 1
      %s491 = smul.addr %s490, 8
      %s492 = scalar_lea.vmem %s15, %s491
      %v494 = vld [vmem:[%s488] sm:$0xf]
      %v495 = vld [vmem:[%s488 + $0x4] sm:$0xf]
      %v496 = vld [vmem:[%s488 + $0x8] sm:$0xf]
      %v497 = vld [vmem:[%s488 + $0xc] sm:$0xf]
      %v498 = vld [vmem:[%s488 + $0x10] sm:$0xf]
      %v499 = vld [vmem:[%s488 + $0x14] sm:$0xf]
      %v500 = vld [vmem:[%s488 + $0x18] sm:$0xf]
      %v501 = vld [vmem:[%s488 + $0x1c] sm:$0xf]
      %v502 = vld [vmem:[%s488 + $0x20] sm:$0xf]
      %v503 = vld [vmem:[%s488 + $0x24] sm:$0xf]
      %v504 = vld [vmem:[%s488 + $0x28] sm:$0xf]
      %v505 = vld [vmem:[%s488 + $0x2c] sm:$0xf]
      %v506 = vld [vmem:[%s488 + $0x30] sm:$0xf]
      %v507 = vld [vmem:[%s488 + $0x34] sm:$0xf]
      %v508 = vld [vmem:[%s488 + $0x38] sm:$0xf]
      %v509 = vld [vmem:[%s488 + $0x3c] sm:$0xf]
      %v510 = vld [vmem:[%s488 + $0x40] sm:$0xf]
      %v511 = vld [vmem:[%s488 + $0x44] sm:$0xf]
      %v512 = vld [vmem:[%s488 + $0x48] sm:$0xf]
      %v513 = vld [vmem:[%s488 + $0x4c] sm:$0xf]
      %v514 = vld [vmem:[%s488 + $0x50] sm:$0xf]
      %v515 = vld [vmem:[%s488 + $0x54] sm:$0x1]
      %v516 = vld [vmem:[%s1] sm:$0xff]
      %v517 = vld [vmem:[%s1 + $0x8] sm:$0xff]
      %v518 = vld [vmem:[%s1 + $0x10] sm:$0xff]
      %v519 = vld [vmem:[%s1 + $0x18] sm:$0xff]
      %v520 = vld [vmem:[%s1 + $0x20] sm:$0xff]
      %v521 = vld [vmem:[%s1 + $0x28] sm:$0xff]
      %v522 = vld [vmem:[%s1 + $0x30] sm:$0xff]
      %v523 = vld [vmem:[%s1 + $0x38] sm:$0xff]
      %v524 = vld [vmem:[%s1 + $0x40] sm:$0xff]
      %v525 = vld [vmem:[%s1 + $0x48] sm:$0xff]
      %v526 = vld [vmem:[%s1 + $0x50] sm:$0xff]
      %v527 = vld [vmem:[%s1 + $0x58] sm:$0xff]
      %v528 = vld [vmem:[%s1 + $0x60] sm:$0xff]
      %v529 = vld [vmem:[%s1 + $0x68] sm:$0xff]
      %v530 = vld [vmem:[%s1 + $0x70] sm:$0xff]
      %v531 = vld [vmem:[%s1 + $0x78] sm:$0xff]
      %v532 = vld [vmem:[%s1 + $0x80] sm:$0xff]
      %v533 = vld [vmem:[%s1 + $0x88] sm:$0xff]
      %v552 = vunpack.c.l.b16 %v516
      %v553 = vunpack.c.h.b16 %v516
      %v554 = vunpack.c.l.b16 %v517
      %v555 = vunpack.c.h.b16 %v517
      %v556 = vunpack.c.l.b16 %v518
      %v557 = vunpack.c.h.b16 %v518
      %v558 = vunpack.c.l.b16 %v519
      %v559 = vunpack.c.h.b16 %v519
      %v560 = vunpack.c.l.b16 %v520
      %v561 = vunpack.c.h.b16 %v520
      %v562 = vunpack.c.l.b16 %v521
      %v563 = vunpack.c.h.b16 %v521
      %v564 = vunpack.c.l.b16 %v522
      %v565 = vunpack.c.h.b16 %v522
      %v566 = vunpack.c.l.b16 %v523
      %v567 = vunpack.c.h.b16 %v523
      %v568 = vunpack.c.l.b16 %v524
      %v569 = vunpack.c.h.b16 %v524
      %v570 = vunpack.c.l.b16 %v525
      %v571 = vunpack.c.h.b16 %v525
      %v572 = vunpack.c.l.b16 %v526
      %v573 = vunpack.c.h.b16 %v526
      %v574 = vunpack.c.l.b16 %v527
      %v575 = vunpack.c.h.b16 %v527
      %v576 = vunpack.c.l.b16 %v528
      %v577 = vunpack.c.h.b16 %v528
      %v578 = vunpack.c.l.b16 %v529
      %v579 = vunpack.c.h.b16 %v529
      %v580 = vunpack.c.l.b16 %v530
      %v581 = vunpack.c.h.b16 %v530
      %v582 = vunpack.c.l.b16 %v531
      %v583 = vunpack.c.h.b16 %v531
      %v584 = vunpack.c.l.b16 %v532
      %v585 = vunpack.c.h.b16 %v532
      %v586 = vunpack.c.l.b16 %v533
      %v587 = vunpack.c.h.b16 %v533
      %v588 = vpack.c.b16 %v554, %v552
      %v589 = vpack.c.b16 %v555, %v553
      %v590 = vpack.c.b16 %v558, %v556
      %v591 = vpack.c.b16 %v559, %v557
      %v592 = vpack.c.b16 %v562, %v560
      %v593 = vpack.c.b16 %v563, %v561
      %v594 = vpack.c.b16 %v566, %v564
      %v595 = vpack.c.b16 %v567, %v565
      %v596 = vpack.c.b16 %v570, %v568
      %v597 = vpack.c.b16 %v571, %v569
      %v598 = vpack.c.b16 %v574, %v572
      %v599 = vpack.c.b16 %v575, %v573
      %v600 = vpack.c.b16 %v578, %v576
      %v601 = vpack.c.b16 %v579, %v577
      %v602 = vpack.c.b16 %v582, %v580
      %v603 = vpack.c.b16 %v583, %v581
      %v604 = vpack.c.b16 %v586, %v584
      %v605 = vpack.c.b16 %v587, %v585
      %v637 = vunpack.c.l.b16 %v494
      %v638 = vunpack.c.l.b16 %v495
      %v639 = vunpack.c.l.b16 %v496
      %v640 = vunpack.c.l.b16 %v497
      %v641 = vunpack.c.l.b16 %v498
      %v642 = vunpack.c.l.b16 %v499
      %v643 = vunpack.c.l.b16 %v500
      %v644 = vunpack.c.l.b16 %v501
      %v645 = vunpack.c.l.b16 %v502
      %v646 = vunpack.c.l.b16 %v503
      %v647 = vunpack.c.l.b16 %v504
      %v648 = vunpack.c.l.b16 %v505
      %v649 = vunpack.c.l.b16 %v506
      %v650 = vunpack.c.l.b16 %v507
      %v651 = vunpack.c.l.b16 %v508
      %v652 = vunpack.c.l.b16 %v509
      %v653 = vunpack.c.l.b16 %v510
      %v654 = vunpack.c.l.b16 %v511
      %v655 = vunpack.c.l.b16 %v512
      %v656 = vunpack.c.l.b16 %v513
      %v657 = vunpack.c.l.b16 %v514
      %v658 = vunpack.c.l.b16 %v515
      %v659 = vpack.c.b16 %v638, %v637
      %v660 = vpack.c.b16 %v640, %v639
      %v661 = vpack.c.b16 %v642, %v641
      %v662 = vpack.c.b16 %v644, %v643
      %v663 = vpack.c.b16 %v646, %v645
      %v664 = vpack.c.b16 %v648, %v647
      %v665 = vpack.c.b16 %v650, %v649
      %v666 = vpack.c.b16 %v652, %v651
      %v667 = vpack.c.b16 %v654, %v653
      %v668 = vpack.c.b16 %v656, %v655
      %v669 = vpack.c.b16 %v658, %v657
      %vm680 = vcmask 334848
      %v682 = vsel %vm680, %v589, 0
      %v685 = vsel %vm680, %v591, 0
      %v688 = vsel %vm680, %v593, 0
      %v691 = vsel %vm680, %v595, 0
      %v694 = vsel %vm680, %v597, 0
      %v697 = vsel %vm680, %v599, 0
      %v700 = vsel %vm680, %v601, 0
      %v703 = vsel %vm680, %v603, 0
      %v706 = vsel %vm680, %v605, 0
      %vm708 = vcmask 1043456
      %vm709 = vcmask 1044480
      %v710 = vsel %vm708, 4294967295, 65535
      %v711 = vsel %vm709, %v710, 0
      %v713 = vand.u32 %v669, %v711
      %715 = vmatprep.subr.bf16.mxu0 0
      %716 = vmatpush1.bf16.msra.mxu0 %v659
      %717 = vmatprep.subr.bf16.mxu0 0
      %718 = vmatpush1.bf16.msra.mxu0 %v660
      %719 = vmatprep.subr.bf16.mxu0 0
      %720 = vmatpush1.bf16.msra.mxu0 %v661
      %721 = vmatprep.subr.bf16.mxu0 0
      %722 = vmatpush1.bf16.msra.mxu0 %v662
      %723 = vmatprep.subr.bf16.mxu0 0
      %724 = vmatpush1.bf16.msra.mxu0 %v663
      %725 = vmatprep.subr.bf16.mxu0 0
      %726 = vmatpush1.bf16.msra.mxu0 %v664
      %727 = vmatprep.subr.bf16.mxu0 0
      %728 = vmatpush1.bf16.msra.mxu0 %v665
      %729 = vmatprep.subr.bf16.mxu0 0
      %730 = vmatpush1.bf16.msra.mxu0 %v666
      %731 = vmatprep.subr.bf16.mxu0 0
      %732 = vmatpush1.bf16.msra.mxu0 %v667
      %733 = vmatprep.subr.bf16.mxu0 0
      %734 = vmatpush1.bf16.msra.mxu0 %v668
      %735 = vmatprep.subr.bf16.mxu0 0
      %736 = vmatpush1.bf16.msra.mxu0 %v713
      %737 = vmatprep.subr.bf16.mxu0 0
      %738 = vmatpush1.bf16.msra.mxu0 0
      %739 = vmatprep.subr.bf16.mxu0 0
      %740 = vmatpush1.bf16.msra.mxu0 0
      %741 = vmatprep.subr.bf16.mxu0 0
      %742 = vmatpush1.bf16.msra.mxu0 0
      %743 = vmatprep.subr.bf16.mxu0 0
      %744 = vmatpush1.bf16.msra.mxu0 0
      %745 = vmatprep.subr.bf16.mxu0 0
      %746 = vmatpush1.bf16.msra.mxu0 0
      %747 = vmatprep.mubr.bf16.mxu0 %v682
      %748 = vmatmul.mubr.bf16.gmra.mrb[0].mxu0 %v588
      %v749 = vpop.f32.mrb[0].mxu0
      %v750 = vadd.f32 0.0, %v749
      %v751 = vpop.f32.mrb[0].mxu0
      %v752 = vpop.f32.mrb[0].mxu0
      %v753 = vadd.f32 0.0, %v752
      %v754 = vpop.f32.mrb[0].mxu0
      %755 = vmatprep.mubr.bf16.mxu0 %v685
      %756 = vmatmul.mubr.bf16.gmra.mrb[0].mxu0 %v590
      %v757 = vpop.f32.mrb[0].mxu0
      %v758 = vadd.f32 0.0, %v757
      %v759 = vpop.f32.mrb[0].mxu0
      %v760 = vpop.f32.mrb[0].mxu0
      %v761 = vadd.f32 0.0, %v760
      %v762 = vpop.f32.mrb[0].mxu0
      %763 = vmatprep.mubr.bf16.mxu0 %v688
      %764 = vmatmul.mubr.bf16.gmra.mrb[0].mxu0 %v592
      %v765 = vpop.f32.mrb[0].mxu0
      %v766 = vadd.f32 0.0, %v765
      %v767 = vpop.f32.mrb[0].mxu0
      %v768 = vpop.f32.mrb[0].mxu0
      %v769 = vadd.f32 0.0, %v768
      %v770 = vpop.f32.mrb[0].mxu0
      %771 = vmatprep.mubr.bf16.mxu0 %v691
      %772 = vmatmul.mubr.bf16.gmra.mrb[0].mxu0 %v594
      %v773 = vpop.f32.mrb[0].mxu0
      %v774 = vadd.f32 0.0, %v773
      %v775 = vpop.f32.mrb[0].mxu0
      %v776 = vpop.f32.mrb[0].mxu0
      %v777 = vadd.f32 0.0, %v776
      %v778 = vpop.f32.mrb[0].mxu0
      %779 = vmatprep.mubr.bf16.mxu0 %v694
      %780 = vmatmul.mubr.bf16.gmra.mrb[0].mxu0 %v596
      %v781 = vpop.f32.mrb[0].mxu0
      %v782 = vadd.f32 0.0, %v781
      %v783 = vpop.f32.mrb[0].mxu0
      %v784 = vpop.f32.mrb[0].mxu0
      %v785 = vadd.f32 0.0, %v784
      %v786 = vpop.f32.mrb[0].mxu0
      %787 = vmatprep.mubr.bf16.mxu0 %v697
      %788 = vmatmul.mubr.bf16.gmra.mrb[0].mxu0 %v598
      %v789 = vpop.f32.mrb[0].mxu0
      %v790 = vadd.f32 0.0, %v789
      %v791 = vpop.f32.mrb[0].mxu0
      %v792 = vpop.f32.mrb[0].mxu0
      %v793 = vadd.f32 0.0, %v792
      %v794 = vpop.f32.mrb[0].mxu0
      %795 = vmatprep.mubr.bf16.mxu0 %v700
      %796 = vmatmul.mubr.bf16.gmra.mrb[0].mxu0 %v600
      %v797 = vpop.f32.mrb[0].mxu0
      %v798 = vadd.f32 0.0, %v797
      %v799 = vpop.f32.mrb[0].mxu0
      %v800 = vpop.f32.mrb[0].mxu0
      %v801 = vadd.f32 0.0, %v800
      %v802 = vpop.f32.mrb[0].mxu0
      %803 = vmatprep.mubr.bf16.mxu0 %v703
      %804 = vmatmul.mubr.bf16.gmra.mrb[0].mxu0 %v602
      %v805 = vpop.f32.mrb[0].mxu0
      %v806 = vadd.f32 0.0, %v805
      %v807 = vpop.f32.mrb[0].mxu0
      %v808 = vpop.f32.mrb[0].mxu0
      %v809 = vadd.f32 0.0, %v808
      %v810 = vpop.f32.mrb[0].mxu0
      %811 = vmatprep.mubr.bf16.mxu0 %v706
      %812 = vmatmul.mubr.bf16.gmra.mrb[0].mxu0 %v604
      %v813 = vpop.f32.mrb[0].mxu0
      %v814 = vadd.f32 0.0, %v813
      %v815 = vpop.f32.mrb[0].mxu0
      %v816 = vpop.f32.mrb[0].mxu0
      %v817 = vadd.f32 0.0, %v816
      %v818 = vpop.f32.mrb[0].mxu0
      %819 = vdwg.mxu0
      %v820 = vpack.c.bf16 %v753, %v750
      %v821 = vpack.c.bf16 %v761, %v758
      %v822 = vpack.c.bf16 %v769, %v766
      %v823 = vpack.c.bf16 %v777, %v774
      %v824 = vpack.c.bf16 %v785, %v782
      %v825 = vpack.c.bf16 %v793, %v790
      %v826 = vpack.c.bf16 %v801, %v798
      %v827 = vpack.c.bf16 %v809, %v806
      %v828 = vpack.c.bf16 %v817, %v814
      %v829 = vld [vmem:[%s2] sm:$0xf]
      %v830 = vld [vmem:[%s2 + $0x4] sm:$0xf]
      %v831 = vld [vmem:[%s2 + $0x8] sm:$0xf]
      %v832 = vld [vmem:[%s2 + $0xc] sm:$0xf]
      %v833 = vld [vmem:[%s2 + $0x10] sm:$0xf]
      %v834 = vld [vmem:[%s2 + $0x14] sm:$0xf]
      %v835 = vld [vmem:[%s2 + $0x18] sm:$0xf]
      %v836 = vld [vmem:[%s2 + $0x1c] sm:$0xf]
      %s837 = scalar_lea.vmem %s1, 144
      %v838 = vld [vmem:[%s837] sm:$0xff]
      %v839 = vld [vmem:[%s837 + $0x8] sm:$0xff]
      %v840 = vld [vmem:[%s837 + $0x10] sm:$0xff]
      %v841 = vld [vmem:[%s837 + $0x18] sm:$0xff]
      %v842 = vld [vmem:[%s837 + $0x20] sm:$0xff]
      %v843 = vld [vmem:[%s837 + $0x28] sm:$0xff]
      %v844 = vld [vmem:[%s837 + $0x30] sm:$0xff]
      %v845 = vld [vmem:[%s837 + $0x38] sm:$0xff]
      %v846 = vld [vmem:[%s837 + $0x40] sm:$0xff]
      %v847 = vld [vmem:[%s837 + $0x48] sm:$0xff]
      %v848 = vld [vmem:[%s837 + $0x50] sm:$0xff]
      %v849 = vld [vmem:[%s837 + $0x58] sm:$0xff]
      %v850 = vld [vmem:[%s837 + $0x60] sm:$0xff]
      %v851 = vld [vmem:[%s837 + $0x68] sm:$0xff]
      %v852 = vld [vmem:[%s837 + $0x70] sm:$0xff]
      %v853 = vld [vmem:[%s837 + $0x78] sm:$0xff]
      %v854 = vld [vmem:[%s837 + $0x80] sm:$0xff]
      %v855 = vld [vmem:[%s837 + $0x88] sm:$0xff]
      %v874 = vunpack.c.l.b16 %v838
      %v875 = vunpack.c.h.b16 %v838
      %v876 = vunpack.c.l.b16 %v839
      %v877 = vunpack.c.h.b16 %v839
      %v878 = vunpack.c.l.b16 %v840
      %v879 = vunpack.c.h.b16 %v840
      %v880 = vunpack.c.l.b16 %v841
      %v881 = vunpack.c.h.b16 %v841
      %v882 = vunpack.c.l.b16 %v842
      %v883 = vunpack.c.h.b16 %v842
      %v884 = vunpack.c.l.b16 %v843
      %v885 = vunpack.c.h.b16 %v843
      %v886 = vunpack.c.l.b16 %v844
      %v887 = vunpack.c.h.b16 %v844
      %v888 = vunpack.c.l.b16 %v845
      %v889 = vunpack.c.h.b16 %v845
      %v890 = vunpack.c.l.b16 %v846
      %v891 = vunpack.c.h.b16 %v846
      %v892 = vunpack.c.l.b16 %v847
      %v893 = vunpack.c.h.b16 %v847
      %v894 = vunpack.c.l.b16 %v848
      %v895 = vunpack.c.h.b16 %v848
      %v896 = vunpack.c.l.b16 %v849
      %v897 = vunpack.c.h.b16 %v849
      %v898 = vunpack.c.l.b16 %v850
      %v899 = vunpack.c.h.b16 %v850
      %v900 = vunpack.c.l.b16 %v851
      %v901 = vunpack.c.h.b16 %v851
      %v902 = vunpack.c.l.b16 %v852
      %v903 = vunpack.c.h.b16 %v852
      %v904 = vunpack.c.l.b16 %v853
      %v905 = vunpack.c.h.b16 %v853
      %v906 = vunpack.c.l.b16 %v854
      %v907 = vunpack.c.h.b16 %v854
      %v908 = vunpack.c.l.b16 %v855
      %v909 = vunpack.c.h.b16 %v855
      %v910 = vpack.c.b16 %v876, %v874
      %v911 = vpack.c.b16 %v877, %v875
      %v912 = vpack.c.b16 %v880, %v878
      %v913 = vpack.c.b16 %v881, %v879
      %v914 = vpack.c.b16 %v884, %v882
      %v915 = vpack.c.b16 %v885, %v883
      %v916 = vpack.c.b16 %v888, %v886
      %v917 = vpack.c.b16 %v889, %v887
      %v918 = vpack.c.b16 %v892, %v890
      %v919 = vpack.c.b16 %v893, %v891
      %v920 = vpack.c.b16 %v896, %v894
      %v921 = vpack.c.b16 %v897, %v895
      %v922 = vpack.c.b16 %v900, %v898
      %v923 = vpack.c.b16 %v901, %v899
      %v924 = vpack.c.b16 %v904, %v902
      %v925 = vpack.c.b16 %v905, %v903
      %v926 = vpack.c.b16 %v908, %v906
      %v927 = vpack.c.b16 %v909, %v907
      %v938 = vsel %vm680, %v911, 0
      %v941 = vsel %vm680, %v913, 0
      %v944 = vsel %vm680, %v915, 0
      %v947 = vsel %vm680, %v917, 0
      %v950 = vsel %vm680, %v919, 0
      %v953 = vsel %vm680, %v921, 0
      %v956 = vsel %vm680, %v923, 0
      %v959 = vsel %vm680, %v925, 0
      %v962 = vsel %vm680, %v927, 0
      %964 = vmatprep.subr.bf16.mxu0 0
      %965 = vmatpush1.bf16.msra.mxu0 %v659
      %966 = vmatprep.subr.bf16.mxu0 0
      %967 = vmatpush1.bf16.msra.mxu0 %v660
      %968 = vmatprep.subr.bf16.mxu0 0
      %969 = vmatpush1.bf16.msra.mxu0 %v661
      %970 = vmatprep.subr.bf16.mxu0 0
      %971 = vmatpush1.bf16.msra.mxu0 %v662
      %972 = vmatprep.subr.bf16.mxu0 0
      %973 = vmatpush1.bf16.msra.mxu0 %v663
      %974 = vmatprep.subr.bf16.mxu0 0
      %975 = vmatpush1.bf16.msra.mxu0 %v664
      %976 = vmatprep.subr.bf16.mxu0 0
      %977 = vmatpush1.bf16.msra.mxu0 %v665
      %978 = vmatprep.subr.bf16.mxu0 0
      %979 = vmatpush1.bf16.msra.mxu0 %v666
      %980 = vmatprep.subr.bf16.mxu0 0
      %981 = vmatpush1.bf16.msra.mxu0 %v667
      %982 = vmatprep.subr.bf16.mxu0 0
      %983 = vmatpush1.bf16.msra.mxu0 %v668
      %984 = vmatprep.subr.bf16.mxu0 0
      %985 = vmatpush1.bf16.msra.mxu0 %v713
      %986 = vmatprep.subr.bf16.mxu0 0
      %987 = vmatpush1.bf16.msra.mxu0 0
      %988 = vmatprep.subr.bf16.mxu0 0
      %989 = vmatpush1.bf16.msra.mxu0 0
      %990 = vmatprep.subr.bf16.mxu0 0
      %991 = vmatpush1.bf16.msra.mxu0 0
      %992 = vmatprep.subr.bf16.mxu0 0
      %993 = vmatpush1.bf16.msra.mxu0 0
      %994 = vmatprep.subr.bf16.mxu0 0
      %995 = vmatpush1.bf16.msra.mxu0 0
      %996 = vmatprep.mubr.bf16.mxu0 %v938
      %997 = vmatmul.mubr.bf16.gmra.mrb[0].mxu0 %v910
      %v998 = vpop.f32.mrb[0].mxu0
      %v999 = vadd.f32 0.0, %v998
      %v1000 = vpop.f32.mrb[0].mxu0
      %v1001 = vpop.f32.mrb[0].mxu0
      %v1002 = vadd.f32 0.0, %v1001
      %v1003 = vpop.f32.mrb[0].mxu0
      %1004 = vmatprep.mubr.bf16.mxu0 %v941
      %1005 = vmatmul.mubr.bf16.gmra.mrb[0].mxu0 %v912
      %v1006 = vpop.f32.mrb[0].mxu0
      %v1007 = vadd.f32 0.0, %v1006
      %v1008 = vpop.f32.mrb[0].mxu0
      %v1009 = vpop.f32.mrb[0].mxu0
      %v1010 = vadd.f32 0.0, %v1009
      %v1011 = vpop.f32.mrb[0].mxu0
      %1012 = vmatprep.mubr.bf16.mxu0 %v944
      %1013 = vmatmul.mubr.bf16.gmra.mrb[0].mxu0 %v914
      %v1014 = vpop.f32.mrb[0].mxu0
      %v1015 = vadd.f32 0.0, %v1014
      %v1016 = vpop.f32.mrb[0].mxu0
      %v1017 = vpop.f32.mrb[0].mxu0
      %v1018 = vadd.f32 0.0, %v1017
      %v1019 = vpop.f32.mrb[0].mxu0
      %1020 = vmatprep.mubr.bf16.mxu0 %v947
      %1021 = vmatmul.mubr.bf16.gmra.mrb[0].mxu0 %v916
      %v1022 = vpop.f32.mrb[0].mxu0
      %v1023 = vadd.f32 0.0, %v1022
      %v1024 = vpop.f32.mrb[0].mxu0
      %v1025 = vpop.f32.mrb[0].mxu0
      %v1026 = vadd.f32 0.0, %v1025
      %v1027 = vpop.f32.mrb[0].mxu0
      %1028 = vmatprep.mubr.bf16.mxu0 %v950
      %1029 = vmatmul.mubr.bf16.gmra.mrb[0].mxu0 %v918
      %v1030 = vpop.f32.mrb[0].mxu0
      %v1031 = vadd.f32 0.0, %v1030
      %v1032 = vpop.f32.mrb[0].mxu0
      %v1033 = vpop.f32.mrb[0].mxu0
      %v1034 = vadd.f32 0.0, %v1033
      %v1035 = vpop.f32.mrb[0].mxu0
      %1036 = vmatprep.mubr.bf16.mxu0 %v953
      %1037 = vmatmul.mubr.bf16.gmra.mrb[0].mxu0 %v920
      %v1038 = vpop.f32.mrb[0].mxu0
      %v1039 = vadd.f32 0.0, %v1038
      %v1040 = vpop.f32.mrb[0].mxu0
      %v1041 = vpop.f32.mrb[0].mxu0
      %v1042 = vadd.f32 0.0, %v1041
      %v1043 = vpop.f32.mrb[0].mxu0
      %1044 = vmatprep.mubr.bf16.mxu0 %v956
      %1045 = vmatmul.mubr.bf16.gmra.mrb[0].mxu0 %v922
      %v1046 = vpop.f32.mrb[0].mxu0
      %v1047 = vadd.f32 0.0, %v1046
      %v1048 = vpop.f32.mrb[0].mxu0
      %v1049 = vpop.f32.mrb[0].mxu0
      %v1050 = vadd.f32 0.0, %v1049
      %v1051 = vpop.f32.mrb[0].mxu0
      %1052 = vmatprep.mubr.bf16.mxu0 %v959
      %1053 = vmatmul.mubr.bf16.gmra.mrb[0].mxu0 %v924
      %v1054 = vpop.f32.mrb[0].mxu0
      %v1055 = vadd.f32 0.0, %v1054
      %v1056 = vpop.f32.mrb[0].mxu0
      %v1057 = vpop.f32.mrb[0].mxu0
      %v1058 = vadd.f32 0.0, %v1057
      %v1059 = vpop.f32.mrb[0].mxu0
      %1060 = vmatprep.mubr.bf16.mxu0 %v962
      %1061 = vmatmul.mubr.bf16.gmra.mrb[0].mxu0 %v926
      %v1062 = vpop.f32.mrb[0].mxu0
      %v1063 = vadd.f32 0.0, %v1062
      %v1064 = vpop.f32.mrb[0].mxu0
      %v1065 = vpop.f32.mrb[0].mxu0
      %v1066 = vadd.f32 0.0, %v1065
      %v1067 = vpop.f32.mrb[0].mxu0
      %1068 = vdwg.mxu0
      %v1069 = vpack.c.bf16 %v1002, %v999
      %v1070 = vpack.c.bf16 %v1010, %v1007
      %v1071 = vpack.c.bf16 %v1018, %v1015
      %v1072 = vpack.c.bf16 %v1026, %v1023
      %v1073 = vpack.c.bf16 %v1034, %v1031
      %v1074 = vpack.c.bf16 %v1042, %v1039
      %v1075 = vpack.c.bf16 %v1050, %v1047
      %v1076 = vpack.c.bf16 %v1058, %v1055
      %v1077 = vpack.c.bf16 %v1066, %v1063
      %s1078 = scalar_lea.vmem %s2, 32
      %v1079 = vld [vmem:[%s1078] sm:$0xf]
      %v1080 = vld [vmem:[%s1078 + $0x4] sm:$0xf]
      %v1081 = vld [vmem:[%s1078 + $0x8] sm:$0xf]
      %v1082 = vld [vmem:[%s1078 + $0xc] sm:$0xf]
      %v1083 = vld [vmem:[%s1078 + $0x10] sm:$0xf]
      %v1084 = vld [vmem:[%s1078 + $0x14] sm:$0xf]
      %v1085 = vld [vmem:[%s1078 + $0x18] sm:$0xf]
      %v1086 = vld [vmem:[%s1078 + $0x1c] sm:$0xf]
      %v1095 = vunpack.c.l.b16 %v1079
      %v1096 = vunpack.c.l.b16 %v1080
      %v1097 = vunpack.c.l.b16 %v1081
      %v1098 = vunpack.c.l.b16 %v1082
      %v1099 = vunpack.c.l.b16 %v1083
      %v1100 = vunpack.c.l.b16 %v1084
      %v1101 = vunpack.c.l.b16 %v1085
      %v1102 = vunpack.c.l.b16 %v1086
      %v1103 = vpack.c.b16 %v1096, %v1095
      %v1104 = vpack.c.b16 %v1098, %v1097
      %v1105 = vpack.c.b16 %v1100, %v1099
      %v1106 = vpack.c.b16 %v1102, %v1101
      %vm1111 = vcmask 523264
      %v1113 = vsel %vm1111, %v1069, 0
      %v1116 = vsel %vm1111, %v1070, 0
      %v1119 = vsel %vm1111, %v1071, 0
      %v1122 = vsel %vm1111, %v1072, 0
      %v1125 = vsel %vm1111, %v1073, 0
      %v1128 = vsel %vm1111, %v1074, 0
      %v1131 = vsel %vm1111, %v1075, 0
      %v1134 = vsel %vm1111, %v1076, 0
      %v1137 = vsel %vm1111, %v1077, 0
      %1139 = vmatprep.subr.bf16.mxu0 0
      %1140 = vmatpush1.bf16.msra.mxu0 %v1103
      %1141 = vmatprep.subr.bf16.mxu0 0
      %1142 = vmatpush1.bf16.msra.mxu0 %v1104
      %1143 = vmatprep.subr.bf16.mxu0 0
      %1144 = vmatpush1.bf16.msra.mxu0 %v1105
      %1145 = vmatprep.subr.bf16.mxu0 0
      %1146 = vmatpush1.bf16.msra.mxu0 %v1106
      %1147 = vmatprep.subr.bf16.mxu0 0
      %1148 = vmatpush1.bf16.msra.mxu0 0
      %1149 = vmatprep.subr.bf16.mxu0 0
      %1150 = vmatpush1.bf16.msra.mxu0 0
      %1151 = vmatprep.subr.bf16.mxu0 0
      %1152 = vmatpush1.bf16.msra.mxu0 0
      %1153 = vmatprep.subr.bf16.mxu0 0
      %1154 = vmatpush1.bf16.msra.mxu0 0
      %1155 = vmatprep.subr.bf16.mxu0 0
      %1156 = vmatpush1.bf16.msra.mxu0 0
      %1157 = vmatprep.subr.bf16.mxu0 0
      %1158 = vmatpush1.bf16.msra.mxu0 0
      %1159 = vmatprep.subr.bf16.mxu0 0
      %1160 = vmatpush1.bf16.msra.mxu0 0
      %1161 = vmatprep.subr.bf16.mxu0 0
      %1162 = vmatpush1.bf16.msra.mxu0 0
      %1163 = vmatprep.subr.bf16.mxu0 0
      %1164 = vmatpush1.bf16.msra.mxu0 0
      %1165 = vmatprep.subr.bf16.mxu0 0
      %1166 = vmatpush1.bf16.msra.mxu0 0
      %1167 = vmatprep.subr.bf16.mxu0 0
      %1168 = vmatpush1.bf16.msra.mxu0 0
      %1169 = vmatprep.subr.bf16.mxu0 0
      %1170 = vmatpush1.bf16.msra.mxu0 0
      %1171 = vmatprep.mubr.bf16.mxu0 0
      %1172 = vmatmul.mubr.bf16.gmra.mrb[0].mxu0 %v1113
      %v1173 = vpop.f32.mrb[0].mxu0
      %v1174 = vadd.f32 0.0, %v1173
      %v1175 = vpop.f32.mrb[0].mxu0
      %v1176 = vpop.f32.mrb[0].mxu0
      %v1177 = vadd.f32 0.0, %v1176
      %v1178 = vpop.f32.mrb[0].mxu0
      %1179 = vmatprep.mubr.bf16.mxu0 0
      %1180 = vmatmul.mubr.bf16.gmra.mrb[0].mxu0 %v1116
      %v1181 = vpop.f32.mrb[0].mxu0
      %v1182 = vadd.f32 0.0, %v1181
      %v1183 = vpop.f32.mrb[0].mxu0
      %v1184 = vpop.f32.mrb[0].mxu0
      %v1185 = vadd.f32 0.0, %v1184
      %v1186 = vpop.f32.mrb[0].mxu0
      %1187 = vmatprep.mubr.bf16.mxu0 0
      %1188 = vmatmul.mubr.bf16.gmra.mrb[0].mxu0 %v1119
      %v1189 = vpop.f32.mrb[0].mxu0
      %v1190 = vadd.f32 0.0, %v1189
      %v1191 = vpop.f32.mrb[0].mxu0
      %v1192 = vpop.f32.mrb[0].mxu0
      %v1193 = vadd.f32 0.0, %v1192
      %v1194 = vpop.f32.mrb[0].mxu0
      %1195 = vmatprep.mubr.bf16.mxu0 0
      %1196 = vmatmul.mubr.bf16.gmra.mrb[0].mxu0 %v1122
      %v1197 = vpop.f32.mrb[0].mxu0
      %v1198 = vadd.f32 0.0, %v1197
      %v1199 = vpop.f32.mrb[0].mxu0
      %v1200 = vpop.f32.mrb[0].mxu0
      %v1201 = vadd.f32 0.0, %v1200
      %v1202 = vpop.f32.mrb[0].mxu0
      %1203 = vmatprep.mubr.bf16.mxu0 0
      %1204 = vmatmul.mubr.bf16.gmra.mrb[0].mxu0 %v1125
      %v1205 = vpop.f32.mrb[0].mxu0
      %v1206 = vadd.f32 0.0, %v1205
      %v1207 = vpop.f32.mrb[0].mxu0
      %v1208 = vpop.f32.mrb[0].mxu0
      %v1209 = vadd.f32 0.0, %v1208
      %v1210 = vpop.f32.mrb[0].mxu0
      %1211 = vmatprep.mubr.bf16.mxu0 0
      %1212 = vmatmul.mubr.bf16.gmra.mrb[0].mxu0 %v1128
      %v1213 = vpop.f32.mrb[0].mxu0
      %v1214 = vadd.f32 0.0, %v1213
      %v1215 = vpop.f32.mrb[0].mxu0
      %v1216 = vpop.f32.mrb[0].mxu0
      %v1217 = vadd.f32 0.0, %v1216
      %v1218 = vpop.f32.mrb[0].mxu0
      %1219 = vmatprep.mubr.bf16.mxu0 0
      %1220 = vmatmul.mubr.bf16.gmra.mrb[0].mxu0 %v1131
      %v1221 = vpop.f32.mrb[0].mxu0
      %v1222 = vadd.f32 0.0, %v1221
      %v1223 = vpop.f32.mrb[0].mxu0
      %v1224 = vpop.f32.mrb[0].mxu0
      %v1225 = vadd.f32 0.0, %v1224
      %v1226 = vpop.f32.mrb[0].mxu0
      %1227 = vmatprep.mubr.bf16.mxu0 0
      %1228 = vmatmul.mubr.bf16.gmra.mrb[0].mxu0 %v1134
      %v1229 = vpop.f32.mrb[0].mxu0
      %v1230 = vadd.f32 0.0, %v1229
      %v1231 = vpop.f32.mrb[0].mxu0
      %v1232 = vpop.f32.mrb[0].mxu0
      %v1233 = vadd.f32 0.0, %v1232
      %v1234 = vpop.f32.mrb[0].mxu0
      %1235 = vmatprep.mubr.bf16.mxu0 0
      %1236 = vmatmul.mubr.bf16.gmra.mrb[0].mxu0 %v1137
      %v1237 = vpop.f32.mrb[0].mxu0
      %v1238 = vadd.f32 0.0, %v1237
      %v1239 = vpop.f32.mrb[0].mxu0
      %v1240 = vpop.f32.mrb[0].mxu0
      %v1241 = vadd.f32 0.0, %v1240
      %v1242 = vpop.f32.mrb[0].mxu0
      %1243 = vdwg.mxu0
      %v1252 = vunpack.c.l.b16 %v829
      %v1253 = vunpack.c.l.b16 %v830
      %v1254 = vunpack.c.l.b16 %v831
      %v1255 = vunpack.c.l.b16 %v832
      %v1256 = vunpack.c.l.b16 %v833
      %v1257 = vunpack.c.l.b16 %v834
      %v1258 = vunpack.c.l.b16 %v835
      %v1259 = vunpack.c.l.b16 %v836
      %v1260 = vpack.c.b16 %v1253, %v1252
      %v1261 = vpack.c.b16 %v1255, %v1254
      %v1262 = vpack.c.b16 %v1257, %v1256
      %v1263 = vpack.c.b16 %v1259, %v1258
      %v1269 = vsel %vm1111, %v820, 0
      %v1272 = vsel %vm1111, %v821, 0
      %v1275 = vsel %vm1111, %v822, 0
      %v1278 = vsel %vm1111, %v823, 0
      %v1281 = vsel %vm1111, %v824, 0
      %v1284 = vsel %vm1111, %v825, 0
      %v1287 = vsel %vm1111, %v826, 0
      %v1290 = vsel %vm1111, %v827, 0
      %v1293 = vsel %vm1111, %v828, 0
      %1295 = vmatprep.subr.bf16.mxu0 0
      %1296 = vmatpush1.bf16.msra.mxu0 %v1260
      %1297 = vmatprep.subr.bf16.mxu0 0
      %1298 = vmatpush1.bf16.msra.mxu0 %v1261
      %1299 = vmatprep.subr.bf16.mxu0 0
      %1300 = vmatpush1.bf16.msra.mxu0 %v1262
      %1301 = vmatprep.subr.bf16.mxu0 0
      %1302 = vmatpush1.bf16.msra.mxu0 %v1263
      %1303 = vmatprep.subr.bf16.mxu0 0
      %1304 = vmatpush1.bf16.msra.mxu0 0
      %1305 = vmatprep.subr.bf16.mxu0 0
      %1306 = vmatpush1.bf16.msra.mxu0 0
      %1307 = vmatprep.subr.bf16.mxu0 0
      %1308 = vmatpush1.bf16.msra.mxu0 0
      %1309 = vmatprep.subr.bf16.mxu0 0
      %1310 = vmatpush1.bf16.msra.mxu0 0
      %1311 = vmatprep.subr.bf16.mxu0 0
      %1312 = vmatpush1.bf16.msra.mxu0 0
      %1313 = vmatprep.subr.bf16.mxu0 0
      %1314 = vmatpush1.bf16.msra.mxu0 0
      %1315 = vmatprep.subr.bf16.mxu0 0
      %1316 = vmatpush1.bf16.msra.mxu0 0
      %1317 = vmatprep.subr.bf16.mxu0 0
      %1318 = vmatpush1.bf16.msra.mxu0 0
      %1319 = vmatprep.subr.bf16.mxu0 0
      %1320 = vmatpush1.bf16.msra.mxu0 0
      %1321 = vmatprep.subr.bf16.mxu0 0
      %1322 = vmatpush1.bf16.msra.mxu0 0
      %1323 = vmatprep.subr.bf16.mxu0 0
      %1324 = vmatpush1.bf16.msra.mxu0 0
      %1325 = vmatprep.subr.bf16.mxu0 0
      %1326 = vmatpush1.bf16.msra.mxu0 0
      %1327 = vmatprep.mubr.bf16.mxu0 0
      %1328 = vmatmul.mubr.bf16.gmra.mrb[0].mxu0 %v1269
      %v1329 = vpop.f32.mrb[0].mxu0
      %v1330 = vadd.f32 %v1174, %v1329
      %v1331 = vpop.f32.mrb[0].mxu0
      %v1332 = vpop.f32.mrb[0].mxu0
      %v1333 = vadd.f32 %v1177, %v1332
      %v1334 = vpop.f32.mrb[0].mxu0
      %1335 = vmatprep.mubr.bf16.mxu0 0
      %1336 = vmatmul.mubr.bf16.gmra.mrb[0].mxu0 %v1272
      %v1337 = vpop.f32.mrb[0].mxu0
      %v1338 = vadd.f32 %v1182, %v1337
      %v1339 = vpop.f32.mrb[0].mxu0
      %v1340 = vpop.f32.mrb[0].mxu0
      %v1341 = vadd.f32 %v1185, %v1340
      %v1342 = vpop.f32.mrb[0].mxu0
      %1343 = vmatprep.mubr.bf16.mxu0 0
      %1344 = vmatmul.mubr.bf16.gmra.mrb[0].mxu0 %v1275
      %v1345 = vpop.f32.mrb[0].mxu0
      %v1346 = vadd.f32 %v1190, %v1345
      %v1347 = vpop.f32.mrb[0].mxu0
      %v1348 = vpop.f32.mrb[0].mxu0
      %v1349 = vadd.f32 %v1193, %v1348
      %v1350 = vpop.f32.mrb[0].mxu0
      %1351 = vmatprep.mubr.bf16.mxu0 0
      %1352 = vmatmul.mubr.bf16.gmra.mrb[0].mxu0 %v1278
      %v1353 = vpop.f32.mrb[0].mxu0
      %v1354 = vadd.f32 %v1198, %v1353
      %v1355 = vpop.f32.mrb[0].mxu0
      %v1356 = vpop.f32.mrb[0].mxu0
      %v1357 = vadd.f32 %v1201, %v1356
      %v1358 = vpop.f32.mrb[0].mxu0
      %1359 = vmatprep.mubr.bf16.mxu0 0
      %1360 = vmatmul.mubr.bf16.gmra.mrb[0].mxu0 %v1281
      %v1361 = vpop.f32.mrb[0].mxu0
      %v1362 = vadd.f32 %v1206, %v1361
      %v1363 = vpop.f32.mrb[0].mxu0
      %v1364 = vpop.f32.mrb[0].mxu0
      %v1365 = vadd.f32 %v1209, %v1364
      %v1366 = vpop.f32.mrb[0].mxu0
      %1367 = vmatprep.mubr.bf16.mxu0 0
      %1368 = vmatmul.mubr.bf16.gmra.mrb[0].mxu0 %v1284
      %v1369 = vpop.f32.mrb[0].mxu0
      %v1370 = vadd.f32 %v1214, %v1369
      %v1371 = vpop.f32.mrb[0].mxu0
      %v1372 = vpop.f32.mrb[0].mxu0
      %v1373 = vadd.f32 %v1217, %v1372
      %v1374 = vpop.f32.mrb[0].mxu0
      %1375 = vmatprep.mubr.bf16.mxu0 0
      %1376 = vmatmul.mubr.bf16.gmra.mrb[0].mxu0 %v1287
      %v1377 = vpop.f32.mrb[0].mxu0
      %v1378 = vadd.f32 %v1222, %v1377
      %v1379 = vpop.f32.mrb[0].mxu0
      %v1380 = vpop.f32.mrb[0].mxu0
      %v1381 = vadd.f32 %v1225, %v1380
      %v1382 = vpop.f32.mrb[0].mxu0
      %1383 = vmatprep.mubr.bf16.mxu0 0
      %1384 = vmatmul.mubr.bf16.gmra.mrb[0].mxu0 %v1290
      %v1385 = vpop.f32.mrb[0].mxu0
      %v1386 = vadd.f32 %v1230, %v1385
      %v1387 = vpop.f32.mrb[0].mxu0
      %v1388 = vpop.f32.mrb[0].mxu0
      %v1389 = vadd.f32 %v1233, %v1388
      %v1390 = vpop.f32.mrb[0].mxu0
      %1391 = vmatprep.mubr.bf16.mxu0 0
      %1392 = vmatmul.mubr.bf16.gmra.mrb[0].mxu0 %v1293
      %v1393 = vpop.f32.mrb[0].mxu0
      %v1394 = vadd.f32 %v1238, %v1393
      %v1395 = vpop.f32.mrb[0].mxu0
      %v1396 = vpop.f32.mrb[0].mxu0
      %v1397 = vadd.f32 %v1241, %v1396
      %v1398 = vpop.f32.mrb[0].mxu0
      %1399 = vdwg.mxu0
      %s1400 = scalar_lea.vmem %s1, 288
      %v1401 = vld [vmem:[%s1400] sm:$0xff]
      %v1402 = vld [vmem:[%s1400 + $0x8] sm:$0xff]
      %v1403 = vld [vmem:[%s1400 + $0x10] sm:$0xff]
      %v1404 = vld [vmem:[%s1400 + $0x18] sm:$0xff]
      %v1405 = vld [vmem:[%s1400 + $0x20] sm:$0xff]
      %v1406 = vld [vmem:[%s1400 + $0x28] sm:$0xff]
      %v1407 = vld [vmem:[%s1400 + $0x30] sm:$0xff]
      %v1408 = vld [vmem:[%s1400 + $0x38] sm:$0xff]
      %v1409 = vld [vmem:[%s1400 + $0x40] sm:$0xff]
      %v1410 = vld [vmem:[%s1400 + $0x48] sm:$0xff]
      %v1411 = vld [vmem:[%s1400 + $0x50] sm:$0xff]
      %v1412 = vld [vmem:[%s1400 + $0x58] sm:$0xff]
      %v1413 = vld [vmem:[%s1400 + $0x60] sm:$0xff]
      %v1414 = vld [vmem:[%s1400 + $0x68] sm:$0xff]
      %v1415 = vld [vmem:[%s1400 + $0x70] sm:$0xff]
      %v1416 = vld [vmem:[%s1400 + $0x78] sm:$0xff]
      %v1417 = vld [vmem:[%s1400 + $0x80] sm:$0xff]
      %v1418 = vld [vmem:[%s1400 + $0x88] sm:$0xff]
      %v1437 = vunpack.c.l.b16 %v1401
      %v1438 = vunpack.c.h.b16 %v1401
      %v1439 = vunpack.c.l.b16 %v1402
      %v1440 = vunpack.c.h.b16 %v1402
      %v1441 = vunpack.c.l.b16 %v1403
      %v1442 = vunpack.c.h.b16 %v1403
      %v1443 = vunpack.c.l.b16 %v1404
      %v1444 = vunpack.c.h.b16 %v1404
      %v1445 = vunpack.c.l.b16 %v1405
      %v1446 = vunpack.c.h.b16 %v1405
      %v1447 = vunpack.c.l.b16 %v1406
      %v1448 = vunpack.c.h.b16 %v1406
      %v1449 = vunpack.c.l.b16 %v1407
      %v1450 = vunpack.c.h.b16 %v1407
      %v1451 = vunpack.c.l.b16 %v1408
      %v1452 = vunpack.c.h.b16 %v1408
      %v1453 = vunpack.c.l.b16 %v1409
      %v1454 = vunpack.c.h.b16 %v1409
      %v1455 = vunpack.c.l.b16 %v1410
      %v1456 = vunpack.c.h.b16 %v1410
      %v1457 = vunpack.c.l.b16 %v1411
      %v1458 = vunpack.c.h.b16 %v1411
      %v1459 = vunpack.c.l.b16 %v1412
      %v1460 = vunpack.c.h.b16 %v1412
      %v1461 = vunpack.c.l.b16 %v1413
      %v1462 = vunpack.c.h.b16 %v1413
      %v1463 = vunpack.c.l.b16 %v1414
      %v1464 = vunpack.c.h.b16 %v1414
      %v1465 = vunpack.c.l.b16 %v1415
      %v1466 = vunpack.c.h.b16 %v1415
      %v1467 = vunpack.c.l.b16 %v1416
      %v1468 = vunpack.c.h.b16 %v1416
      %v1469 = vunpack.c.l.b16 %v1417
      %v1470 = vunpack.c.h.b16 %v1417
      %v1471 = vunpack.c.l.b16 %v1418
      %v1472 = vunpack.c.h.b16 %v1418
      %v1473 = vpack.c.b16 %v1439, %v1437
      %v1474 = vpack.c.b16 %v1440, %v1438
      %v1475 = vpack.c.b16 %v1443, %v1441
      %v1476 = vpack.c.b16 %v1444, %v1442
      %v1477 = vpack.c.b16 %v1447, %v1445
      %v1478 = vpack.c.b16 %v1448, %v1446
      %v1479 = vpack.c.b16 %v1451, %v1449
      %v1480 = vpack.c.b16 %v1452, %v1450
      %v1481 = vpack.c.b16 %v1455, %v1453
      %v1482 = vpack.c.b16 %v1456, %v1454
      %v1483 = vpack.c.b16 %v1459, %v1457
      %v1484 = vpack.c.b16 %v1460, %v1458
      %v1485 = vpack.c.b16 %v1463, %v1461
      %v1486 = vpack.c.b16 %v1464, %v1462
      %v1487 = vpack.c.b16 %v1467, %v1465
      %v1488 = vpack.c.b16 %v1468, %v1466
      %v1489 = vpack.c.b16 %v1471, %v1469
      %v1490 = vpack.c.b16 %v1472, %v1470
      %v1501 = vsel %vm680, %v1474, 0
      %v1504 = vsel %vm680, %v1476, 0
      %v1507 = vsel %vm680, %v1478, 0
      %v1510 = vsel %vm680, %v1480, 0
      %v1513 = vsel %vm680, %v1482, 0
      %v1516 = vsel %vm680, %v1484, 0
      %v1519 = vsel %vm680, %v1486, 0
      %v1522 = vsel %vm680, %v1488, 0
      %v1525 = vsel %vm680, %v1490, 0
      %1527 = vmatprep.subr.bf16.mxu0 0
      %1528 = vmatpush1.bf16.msra.mxu0 %v659
      %1529 = vmatprep.subr.bf16.mxu0 0
      %1530 = vmatpush1.bf16.msra.mxu0 %v660
      %1531 = vmatprep.subr.bf16.mxu0 0
      %1532 = vmatpush1.bf16.msra.mxu0 %v661
      %1533 = vmatprep.subr.bf16.mxu0 0
      %1534 = vmatpush1.bf16.msra.mxu0 %v662
      %1535 = vmatprep.subr.bf16.mxu0 0
      %1536 = vmatpush1.bf16.msra.mxu0 %v663
      %1537 = vmatprep.subr.bf16.mxu0 0
      %1538 = vmatpush1.bf16.msra.mxu0 %v664
      %1539 = vmatprep.subr.bf16.mxu0 0
      %1540 = vmatpush1.bf16.msra.mxu0 %v665
      %1541 = vmatprep.subr.bf16.mxu0 0
      %1542 = vmatpush1.bf16.msra.mxu0 %v666
      %1543 = vmatprep.subr.bf16.mxu0 0
      %1544 = vmatpush1.bf16.msra.mxu0 %v667
      %1545 = vmatprep.subr.bf16.mxu0 0
      %1546 = vmatpush1.bf16.msra.mxu0 %v668
      %1547 = vmatprep.subr.bf16.mxu0 0
      %1548 = vmatpush1.bf16.msra.mxu0 %v713
      %1549 = vmatprep.subr.bf16.mxu0 0
      %1550 = vmatpush1.bf16.msra.mxu0 0
      %1551 = vmatprep.subr.bf16.mxu0 0
      %1552 = vmatpush1.bf16.msra.mxu0 0
      %1553 = vmatprep.subr.bf16.mxu0 0
      %1554 = vmatpush1.bf16.msra.mxu0 0
      %1555 = vmatprep.subr.bf16.mxu0 0
      %1556 = vmatpush1.bf16.msra.mxu0 0
      %1557 = vmatprep.subr.bf16.mxu0 0
      %1558 = vmatpush1.bf16.msra.mxu0 0
      %1559 = vmatprep.mubr.bf16.mxu0 %v1501
      %1560 = vmatmul.mubr.bf16.gmra.mrb[0].mxu0 %v1473
      %v1561 = vpop.f32.mrb[0].mxu0
      %v1562 = vadd.f32 0.0, %v1561
      %v1563 = vpop.f32.mrb[0].mxu0
      %v1564 = vpop.f32.mrb[0].mxu0
      %v1565 = vadd.f32 0.0, %v1564
      %v1566 = vpop.f32.mrb[0].mxu0
      %1567 = vmatprep.mubr.bf16.mxu0 %v1504
      %1568 = vmatmul.mubr.bf16.gmra.mrb[0].mxu0 %v1475
      %v1569 = vpop.f32.mrb[0].mxu0
      %v1570 = vadd.f32 0.0, %v1569
      %v1571 = vpop.f32.mrb[0].mxu0
      %v1572 = vpop.f32.mrb[0].mxu0
      %v1573 = vadd.f32 0.0, %v1572
      %v1574 = vpop.f32.mrb[0].mxu0
      %1575 = vmatprep.mubr.bf16.mxu0 %v1507
      %1576 = vmatmul.mubr.bf16.gmra.mrb[0].mxu0 %v1477
      %v1577 = vpop.f32.mrb[0].mxu0
      %v1578 = vadd.f32 0.0, %v1577
      %v1579 = vpop.f32.mrb[0].mxu0
      %v1580 = vpop.f32.mrb[0].mxu0
      %v1581 = vadd.f32 0.0, %v1580
      %v1582 = vpop.f32.mrb[0].mxu0
      %1583 = vmatprep.mubr.bf16.mxu0 %v1510
      %1584 = vmatmul.mubr.bf16.gmra.mrb[0].mxu0 %v1479
      %v1585 = vpop.f32.mrb[0].mxu0
      %v1586 = vadd.f32 0.0, %v1585
      %v1587 = vpop.f32.mrb[0].mxu0
      %v1588 = vpop.f32.mrb[0].mxu0
      %v1589 = vadd.f32 0.0, %v1588
      %v1590 = vpop.f32.mrb[0].mxu0
      %1591 = vmatprep.mubr.bf16.mxu0 %v1513
      %1592 = vmatmul.mubr.bf16.gmra.mrb[0].mxu0 %v1481
      %v1593 = vpop.f32.mrb[0].mxu0
      %v1594 = vadd.f32 0.0, %v1593
      %v1595 = vpop.f32.mrb[0].mxu0
      %v1596 = vpop.f32.mrb[0].mxu0
      %v1597 = vadd.f32 0.0, %v1596
      %v1598 = vpop.f32.mrb[0].mxu0
      %1599 = vmatprep.mubr.bf16.mxu0 %v1516
      %1600 = vmatmul.mubr.bf16.gmra.mrb[0].mxu0 %v1483
      %v1601 = vpop.f32.mrb[0].mxu0
      %v1602 = vadd.f32 0.0, %v1601
      %v1603 = vpop.f32.mrb[0].mxu0
      %v1604 = vpop.f32.mrb[0].mxu0
      %v1605 = vadd.f32 0.0, %v1604
      %v1606 = vpop.f32.mrb[0].mxu0
      %1607 = vmatprep.mubr.bf16.mxu0 %v1519
      %1608 = vmatmul.mubr.bf16.gmra.mrb[0].mxu0 %v1485
      %v1609 = vpop.f32.mrb[0].mxu0
      %v1610 = vadd.f32 0.0, %v1609
      %v1611 = vpop.f32.mrb[0].mxu0
      %v1612 = vpop.f32.mrb[0].mxu0
      %v1613 = vadd.f32 0.0, %v1612
      %v1614 = vpop.f32.mrb[0].mxu0
      %1615 = vmatprep.mubr.bf16.mxu0 %v1522
      %1616 = vmatmul.mubr.bf16.gmra.mrb[0].mxu0 %v1487
      %v1617 = vpop.f32.mrb[0].mxu0
      %v1618 = vadd.f32 0.0, %v1617
      %v1619 = vpop.f32.mrb[0].mxu0
      %v1620 = vpop.f32.mrb[0].mxu0
      %v1621 = vadd.f32 0.0, %v1620
      %v1622 = vpop.f32.mrb[0].mxu0
      %1623 = vmatprep.mubr.bf16.mxu0 %v1525
      %1624 = vmatmul.mubr.bf16.gmra.mrb[0].mxu0 %v1489
      %v1625 = vpop.f32.mrb[0].mxu0
      %v1626 = vadd.f32 0.0, %v1625
      %v1627 = vpop.f32.mrb[0].mxu0
      %v1628 = vpop.f32.mrb[0].mxu0
      %v1629 = vadd.f32 0.0, %v1628
      %v1630 = vpop.f32.mrb[0].mxu0
      %1631 = vdwg.mxu0
      %v1632 = vpack.c.bf16 %v1565, %v1562
      %v1633 = vpack.c.bf16 %v1573, %v1570
      %v1634 = vpack.c.bf16 %v1581, %v1578
      %v1635 = vpack.c.bf16 %v1589, %v1586
      %v1636 = vpack.c.bf16 %v1597, %v1594
      %v1637 = vpack.c.bf16 %v1605, %v1602
      %v1638 = vpack.c.bf16 %v1613, %v1610
      %v1639 = vpack.c.bf16 %v1621, %v1618
      %v1640 = vpack.c.bf16 %v1629, %v1626
      %s1641 = scalar_lea.vmem %s2, 64
      %v1642 = vld [vmem:[%s1641] sm:$0xf]
      %v1643 = vld [vmem:[%s1641 + $0x4] sm:$0xf]
      %v1644 = vld [vmem:[%s1641 + $0x8] sm:$0xf]
      %v1645 = vld [vmem:[%s1641 + $0xc] sm:$0xf]
      %v1646 = vld [vmem:[%s1641 + $0x10] sm:$0xf]
      %v1647 = vld [vmem:[%s1641 + $0x14] sm:$0xf]
      %v1648 = vld [vmem:[%s1641 + $0x18] sm:$0xf]
      %v1649 = vld [vmem:[%s1641 + $0x1c] sm:$0xf]
      %v1658 = vunpack.c.l.b16 %v1642
      %v1659 = vunpack.c.l.b16 %v1643
      %v1660 = vunpack.c.l.b16 %v1644
      %v1661 = vunpack.c.l.b16 %v1645
      %v1662 = vunpack.c.l.b16 %v1646
      %v1663 = vunpack.c.l.b16 %v1647
      %v1664 = vunpack.c.l.b16 %v1648
      %v1665 = vunpack.c.l.b16 %v1649
      %v1666 = vpack.c.b16 %v1659, %v1658
      %v1667 = vpack.c.b16 %v1661, %v1660
      %v1668 = vpack.c.b16 %v1663, %v1662
      %v1669 = vpack.c.b16 %v1665, %v1664
      %v1675 = vsel %vm1111, %v1632, 0
      %v1678 = vsel %vm1111, %v1633, 0
      %v1681 = vsel %vm1111, %v1634, 0
      %v1684 = vsel %vm1111, %v1635, 0
      %v1687 = vsel %vm1111, %v1636, 0
      %v1690 = vsel %vm1111, %v1637, 0
      %v1693 = vsel %vm1111, %v1638, 0
      %v1696 = vsel %vm1111, %v1639, 0
      %v1699 = vsel %vm1111, %v1640, 0
      %1701 = vmatprep.subr.bf16.mxu0 0
      %1702 = vmatpush1.bf16.msra.mxu0 %v1666
      %1703 = vmatprep.subr.bf16.mxu0 0
      %1704 = vmatpush1.bf16.msra.mxu0 %v1667
      %1705 = vmatprep.subr.bf16.mxu0 0
      %1706 = vmatpush1.bf16.msra.mxu0 %v1668
      %1707 = vmatprep.subr.bf16.mxu0 0
      %1708 = vmatpush1.bf16.msra.mxu0 %v1669
      %1709 = vmatprep.subr.bf16.mxu0 0
      %1710 = vmatpush1.bf16.msra.mxu0 0
      %1711 = vmatprep.subr.bf16.mxu0 0
      %1712 = vmatpush1.bf16.msra.mxu0 0
      %1713 = vmatprep.subr.bf16.mxu0 0
      %1714 = vmatpush1.bf16.msra.mxu0 0
      %1715 = vmatprep.subr.bf16.mxu0 0
      %1716 = vmatpush1.bf16.msra.mxu0 0
      %1717 = vmatprep.subr.bf16.mxu0 0
      %1718 = vmatpush1.bf16.msra.mxu0 0
      %1719 = vmatprep.subr.bf16.mxu0 0
      %1720 = vmatpush1.bf16.msra.mxu0 0
      %1721 = vmatprep.subr.bf16.mxu0 0
      %1722 = vmatpush1.bf16.msra.mxu0 0
      %1723 = vmatprep.subr.bf16.mxu0 0
      %1724 = vmatpush1.bf16.msra.mxu0 0
      %1725 = vmatprep.subr.bf16.mxu0 0
      %1726 = vmatpush1.bf16.msra.mxu0 0
      %1727 = vmatprep.subr.bf16.mxu0 0
      %1728 = vmatpush1.bf16.msra.mxu0 0
      %1729 = vmatprep.subr.bf16.mxu0 0
      %1730 = vmatpush1.bf16.msra.mxu0 0
      %1731 = vmatprep.subr.bf16.mxu0 0
      %1732 = vmatpush1.bf16.msra.mxu0 0
      %1733 = vmatprep.mubr.bf16.mxu0 0
      %1734 = vmatmul.mubr.bf16.gmra.mrb[0].mxu0 %v1675
      %v1735 = vpop.f32.mrb[0].mxu0
      %v1736 = vadd.f32 0.0, %v1735
      %v1737 = vpop.f32.mrb[0].mxu0
      %v1738 = vpop.f32.mrb[0].mxu0
      %v1739 = vadd.f32 0.0, %v1738
      %v1740 = vpop.f32.mrb[0].mxu0
      %1741 = vmatprep.mubr.bf16.mxu0 0
      %1742 = vmatmul.mubr.bf16.gmra.mrb[0].mxu0 %v1678
      %v1743 = vpop.f32.mrb[0].mxu0
      %v1744 = vadd.f32 0.0, %v1743
      %v1745 = vpop.f32.mrb[0].mxu0
      %v1746 = vpop.f32.mrb[0].mxu0
      %v1747 = vadd.f32 0.0, %v1746
      %v1748 = vpop.f32.mrb[0].mxu0
      %1749 = vmatprep.mubr.bf16.mxu0 0
      %1750 = vmatmul.mubr.bf16.gmra.mrb[0].mxu0 %v1681
      %v1751 = vpop.f32.mrb[0].mxu0
      %v1752 = vadd.f32 0.0, %v1751
      %v1753 = vpop.f32.mrb[0].mxu0
      %v1754 = vpop.f32.mrb[0].mxu0
      %v1755 = vadd.f32 0.0, %v1754
      %v1756 = vpop.f32.mrb[0].mxu0
      %1757 = vmatprep.mubr.bf16.mxu0 0
      %1758 = vmatmul.mubr.bf16.gmra.mrb[0].mxu0 %v1684
      %v1759 = vpop.f32.mrb[0].mxu0
      %v1760 = vadd.f32 0.0, %v1759
      %v1761 = vpop.f32.mrb[0].mxu0
      %v1762 = vpop.f32.mrb[0].mxu0
      %v1763 = vadd.f32 0.0, %v1762
      %v1764 = vpop.f32.mrb[0].mxu0
      %1765 = vmatprep.mubr.bf16.mxu0 0
      %1766 = vmatmul.mubr.bf16.gmra.mrb[0].mxu0 %v1687
      %v1767 = vpop.f32.mrb[0].mxu0
      %v1768 = vadd.f32 0.0, %v1767
      %v1769 = vpop.f32.mrb[0].mxu0
      %v1770 = vpop.f32.mrb[0].mxu0
      %v1771 = vadd.f32 0.0, %v1770
      %v1772 = vpop.f32.mrb[0].mxu0
      %1773 = vmatprep.mubr.bf16.mxu0 0
      %1774 = vmatmul.mubr.bf16.gmra.mrb[0].mxu0 %v1690
      %v1775 = vpop.f32.mrb[0].mxu0
      %v1776 = vadd.f32 0.0, %v1775
      %v1777 = vpop.f32.mrb[0].mxu0
      %v1778 = vpop.f32.mrb[0].mxu0
      %v1779 = vadd.f32 0.0, %v1778
      %v1780 = vpop.f32.mrb[0].mxu0
      %1781 = vmatprep.mubr.bf16.mxu0 0
      %1782 = vmatmul.mubr.bf16.gmra.mrb[0].mxu0 %v1693
      %v1783 = vpop.f32.mrb[0].mxu0
      %v1784 = vadd.f32 0.0, %v1783
      %v1785 = vpop.f32.mrb[0].mxu0
      %v1786 = vpop.f32.mrb[0].mxu0
      %v1787 = vadd.f32 0.0, %v1786
      %v1788 = vpop.f32.mrb[0].mxu0
      %1789 = vmatprep.mubr.bf16.mxu0 0
      %1790 = vmatmul.mubr.bf16.gmra.mrb[0].mxu0 %v1696
      %v1791 = vpop.f32.mrb[0].mxu0
      %v1792 = vadd.f32 0.0, %v1791
      %v1793 = vpop.f32.mrb[0].mxu0
      %v1794 = vpop.f32.mrb[0].mxu0
      %v1795 = vadd.f32 0.0, %v1794
      %v1796 = vpop.f32.mrb[0].mxu0
      %1797 = vmatprep.mubr.bf16.mxu0 0
      %1798 = vmatmul.mubr.bf16.gmra.mrb[0].mxu0 %v1699
      %v1799 = vpop.f32.mrb[0].mxu0
      %v1800 = vadd.f32 0.0, %v1799
      %v1801 = vpop.f32.mrb[0].mxu0
      %v1802 = vpop.f32.mrb[0].mxu0
      %v1803 = vadd.f32 0.0, %v1802
      %v1804 = vpop.f32.mrb[0].mxu0
      %1805 = vdwg.mxu0
      %v1806 = vadd.f32 %v1330, %v1736
      %v1807 = vadd.f32 %v1333, %v1739
      %v1808 = vadd.f32 %v1338, %v1744
      %v1809 = vadd.f32 %v1341, %v1747
      %v1810 = vadd.f32 %v1346, %v1752
      %v1811 = vadd.f32 %v1349, %v1755
      %v1812 = vadd.f32 %v1354, %v1760
      %v1813 = vadd.f32 %v1357, %v1763
      %v1814 = vadd.f32 %v1362, %v1768
      %v1815 = vadd.f32 %v1365, %v1771
      %v1816 = vadd.f32 %v1370, %v1776
      %v1817 = vadd.f32 %v1373, %v1779
      %v1818 = vadd.f32 %v1378, %v1784
      %v1819 = vadd.f32 %v1381, %v1787
      %v1820 = vadd.f32 %v1386, %v1792
      %v1821 = vadd.f32 %v1389, %v1795
      %v1822 = vadd.f32 %v1394, %v1800
      %v1823 = vadd.f32 %v1397, %v1803
      %s1824 = scalar_lea.vmem %s1, 432
      %v1825 = vld [vmem:[%s1824] sm:$0xff]
      %v1826 = vld [vmem:[%s1824 + $0x8] sm:$0xff]
      %v1827 = vld [vmem:[%s1824 + $0x10] sm:$0xff]
      %v1828 = vld [vmem:[%s1824 + $0x18] sm:$0xff]
      %v1829 = vld [vmem:[%s1824 + $0x20] sm:$0xff]
      %v1830 = vld [vmem:[%s1824 + $0x28] sm:$0xff]
      %v1831 = vld [vmem:[%s1824 + $0x30] sm:$0xff]
      %v1832 = vld [vmem:[%s1824 + $0x38] sm:$0xff]
      %v1833 = vld [vmem:[%s1824 + $0x40] sm:$0xff]
      %v1834 = vld [vmem:[%s1824 + $0x48] sm:$0xff]
      %v1835 = vld [vmem:[%s1824 + $0x50] sm:$0xff]
      %v1836 = vld [vmem:[%s1824 + $0x58] sm:$0xff]
      %v1837 = vld [vmem:[%s1824 + $0x60] sm:$0xff]
      %v1838 = vld [vmem:[%s1824 + $0x68] sm:$0xff]
      %v1839 = vld [vmem:[%s1824 + $0x70] sm:$0xff]
      %v1840 = vld [vmem:[%s1824 + $0x78] sm:$0xff]
      %v1841 = vld [vmem:[%s1824 + $0x80] sm:$0xff]
      %v1842 = vld [vmem:[%s1824 + $0x88] sm:$0xff]
      %v1861 = vunpack.c.l.b16 %v1825
      %v1862 = vunpack.c.h.b16 %v1825
      %v1863 = vunpack.c.l.b16 %v1826
      %v1864 = vunpack.c.h.b16 %v1826
      %v1865 = vunpack.c.l.b16 %v1827
      %v1866 = vunpack.c.h.b16 %v1827
      %v1867 = vunpack.c.l.b16 %v1828
      %v1868 = vunpack.c.h.b16 %v1828
      %v1869 = vunpack.c.l.b16 %v1829
      %v1870 = vunpack.c.h.b16 %v1829
      %v1871 = vunpack.c.l.b16 %v1830
      %v1872 = vunpack.c.h.b16 %v1830
      %v1873 = vunpack.c.l.b16 %v1831
      %v1874 = vunpack.c.h.b16 %v1831
      %v1875 = vunpack.c.l.b16 %v1832
      %v1876 = vunpack.c.h.b16 %v1832
      %v1877 = vunpack.c.l.b16 %v1833
      %v1878 = vunpack.c.h.b16 %v1833
      %v1879 = vunpack.c.l.b16 %v1834
      %v1880 = vunpack.c.h.b16 %v1834
      %v1881 = vunpack.c.l.b16 %v1835
      %v1882 = vunpack.c.h.b16 %v1835
      %v1883 = vunpack.c.l.b16 %v1836
      %v1884 = vunpack.c.h.b16 %v1836
      %v1885 = vunpack.c.l.b16 %v1837
      %v1886 = vunpack.c.h.b16 %v1837
      %v1887 = vunpack.c.l.b16 %v1838
      %v1888 = vunpack.c.h.b16 %v1838
      %v1889 = vunpack.c.l.b16 %v1839
      %v1890 = vunpack.c.h.b16 %v1839
      %v1891 = vunpack.c.l.b16 %v1840
      %v1892 = vunpack.c.h.b16 %v1840
      %v1893 = vunpack.c.l.b16 %v1841
      %v1894 = vunpack.c.h.b16 %v1841
      %v1895 = vunpack.c.l.b16 %v1842
      %v1896 = vunpack.c.h.b16 %v1842
      %v1897 = vpack.c.b16 %v1863, %v1861
      %v1898 = vpack.c.b16 %v1864, %v1862
      %v1899 = vpack.c.b16 %v1867, %v1865
      %v1900 = vpack.c.b16 %v1868, %v1866
      %v1901 = vpack.c.b16 %v1871, %v1869
      %v1902 = vpack.c.b16 %v1872, %v1870
      %v1903 = vpack.c.b16 %v1875, %v1873
      %v1904 = vpack.c.b16 %v1876, %v1874
      %v1905 = vpack.c.b16 %v1879, %v1877
      %v1906 = vpack.c.b16 %v1880, %v1878
      %v1907 = vpack.c.b16 %v1883, %v1881
      %v1908 = vpack.c.b16 %v1884, %v1882
      %v1909 = vpack.c.b16 %v1887, %v1885
      %v1910 = vpack.c.b16 %v1888, %v1886
      %v1911 = vpack.c.b16 %v1891, %v1889
      %v1912 = vpack.c.b16 %v1892, %v1890
      %v1913 = vpack.c.b16 %v1895, %v1893
      %v1914 = vpack.c.b16 %v1896, %v1894
      %v1925 = vsel %vm680, %v1898, 0
      %v1928 = vsel %vm680, %v1900, 0
      %v1931 = vsel %vm680, %v1902, 0
      %v1934 = vsel %vm680, %v1904, 0
      %v1937 = vsel %vm680, %v1906, 0
      %v1940 = vsel %vm680, %v1908, 0
      %v1943 = vsel %vm680, %v1910, 0
      %v1946 = vsel %vm680, %v1912, 0
      %v1949 = vsel %vm680, %v1914, 0
      %1951 = vmatprep.subr.bf16.mxu0 0
      %1952 = vmatpush1.bf16.msra.mxu0 %v659
      %1953 = vmatprep.subr.bf16.mxu0 0
      %1954 = vmatpush1.bf16.msra.mxu0 %v660
      %1955 = vmatprep.subr.bf16.mxu0 0
      %1956 = vmatpush1.bf16.msra.mxu0 %v661
      %1957 = vmatprep.subr.bf16.mxu0 0
      %1958 = vmatpush1.bf16.msra.mxu0 %v662
      %1959 = vmatprep.subr.bf16.mxu0 0
      %1960 = vmatpush1.bf16.msra.mxu0 %v663
      %1961 = vmatprep.subr.bf16.mxu0 0
      %1962 = vmatpush1.bf16.msra.mxu0 %v664
      %1963 = vmatprep.subr.bf16.mxu0 0
      %1964 = vmatpush1.bf16.msra.mxu0 %v665
      %1965 = vmatprep.subr.bf16.mxu0 0
      %1966 = vmatpush1.bf16.msra.mxu0 %v666
      %1967 = vmatprep.subr.bf16.mxu0 0
      %1968 = vmatpush1.bf16.msra.mxu0 %v667
      %1969 = vmatprep.subr.bf16.mxu0 0
      %1970 = vmatpush1.bf16.msra.mxu0 %v668
      %1971 = vmatprep.subr.bf16.mxu0 0
      %1972 = vmatpush1.bf16.msra.mxu0 %v713
      %1973 = vmatprep.subr.bf16.mxu0 0
      %1974 = vmatpush1.bf16.msra.mxu0 0
      %1975 = vmatprep.subr.bf16.mxu0 0
      %1976 = vmatpush1.bf16.msra.mxu0 0
      %1977 = vmatprep.subr.bf16.mxu0 0
      %1978 = vmatpush1.bf16.msra.mxu0 0
      %1979 = vmatprep.subr.bf16.mxu0 0
      %1980 = vmatpush1.bf16.msra.mxu0 0
      %1981 = vmatprep.subr.bf16.mxu0 0
      %1982 = vmatpush1.bf16.msra.mxu0 0
      %1983 = vmatprep.mubr.bf16.mxu0 %v1925
      %1984 = vmatmul.mubr.bf16.gmra.mrb[0].mxu0 %v1897
      %v1985 = vpop.f32.mrb[0].mxu0
      %v1986 = vadd.f32 0.0, %v1985
      %v1987 = vpop.f32.mrb[0].mxu0
      %v1988 = vpop.f32.mrb[0].mxu0
      %v1989 = vadd.f32 0.0, %v1988
      %v1990 = vpop.f32.mrb[0].mxu0
      %1991 = vmatprep.mubr.bf16.mxu0 %v1928
      %1992 = vmatmul.mubr.bf16.gmra.mrb[0].mxu0 %v1899
      %v1993 = vpop.f32.mrb[0].mxu0
      %v1994 = vadd.f32 0.0, %v1993
      %v1995 = vpop.f32.mrb[0].mxu0
      %v1996 = vpop.f32.mrb[0].mxu0
      %v1997 = vadd.f32 0.0, %v1996
      %v1998 = vpop.f32.mrb[0].mxu0
      %1999 = vmatprep.mubr.bf16.mxu0 %v1931
      %2000 = vmatmul.mubr.bf16.gmra.mrb[0].mxu0 %v1901
      %v2001 = vpop.f32.mrb[0].mxu0
      %v2002 = vadd.f32 0.0, %v2001
      %v2003 = vpop.f32.mrb[0].mxu0
      %v2004 = vpop.f32.mrb[0].mxu0
      %v2005 = vadd.f32 0.0, %v2004
      %v2006 = vpop.f32.mrb[0].mxu0
      %2007 = vmatprep.mubr.bf16.mxu0 %v1934
      %2008 = vmatmul.mubr.bf16.gmra.mrb[0].mxu0 %v1903
      %v2009 = vpop.f32.mrb[0].mxu0
      %v2010 = vadd.f32 0.0, %v2009
      %v2011 = vpop.f32.mrb[0].mxu0
      %v2012 = vpop.f32.mrb[0].mxu0
      %v2013 = vadd.f32 0.0, %v2012
      %v2014 = vpop.f32.mrb[0].mxu0
      %2015 = vmatprep.mubr.bf16.mxu0 %v1937
      %2016 = vmatmul.mubr.bf16.gmra.mrb[0].mxu0 %v1905
      %v2017 = vpop.f32.mrb[0].mxu0
      %v2018 = vadd.f32 0.0, %v2017
      %v2019 = vpop.f32.mrb[0].mxu0
      %v2020 = vpop.f32.mrb[0].mxu0
      %v2021 = vadd.f32 0.0, %v2020
      %v2022 = vpop.f32.mrb[0].mxu0
      %2023 = vmatprep.mubr.bf16.mxu0 %v1940
      %2024 = vmatmul.mubr.bf16.gmra.mrb[0].mxu0 %v1907
      %v2025 = vpop.f32.mrb[0].mxu0
      %v2026 = vadd.f32 0.0, %v2025
      %v2027 = vpop.f32.mrb[0].mxu0
      %v2028 = vpop.f32.mrb[0].mxu0
      %v2029 = vadd.f32 0.0, %v2028
      %v2030 = vpop.f32.mrb[0].mxu0
      %2031 = vmatprep.mubr.bf16.mxu0 %v1943
      %2032 = vmatmul.mubr.bf16.gmra.mrb[0].mxu0 %v1909
      %v2033 = vpop.f32.mrb[0].mxu0
      %v2034 = vadd.f32 0.0, %v2033
      %v2035 = vpop.f32.mrb[0].mxu0
      %v2036 = vpop.f32.mrb[0].mxu0
      %v2037 = vadd.f32 0.0, %v2036
      %v2038 = vpop.f32.mrb[0].mxu0
      %2039 = vmatprep.mubr.bf16.mxu0 %v1946
      %2040 = vmatmul.mubr.bf16.gmra.mrb[0].mxu0 %v1911
      %v2041 = vpop.f32.mrb[0].mxu0
      %v2042 = vadd.f32 0.0, %v2041
      %v2043 = vpop.f32.mrb[0].mxu0
      %v2044 = vpop.f32.mrb[0].mxu0
      %v2045 = vadd.f32 0.0, %v2044
      %v2046 = vpop.f32.mrb[0].mxu0
      %2047 = vmatprep.mubr.bf16.mxu0 %v1949
      %2048 = vmatmul.mubr.bf16.gmra.mrb[0].mxu0 %v1913
      %v2049 = vpop.f32.mrb[0].mxu0
      %v2050 = vadd.f32 0.0, %v2049
      %v2051 = vpop.f32.mrb[0].mxu0
      %v2052 = vpop.f32.mrb[0].mxu0
      %v2053 = vadd.f32 0.0, %v2052
      %v2054 = vpop.f32.mrb[0].mxu0
      %2055 = vdwg.mxu0
      %v2056 = vpack.c.bf16 %v1989, %v1986
      %v2057 = vpack.c.bf16 %v1997, %v1994
      %v2058 = vpack.c.bf16 %v2005, %v2002
      %v2059 = vpack.c.bf16 %v2013, %v2010
      %v2060 = vpack.c.bf16 %v2021, %v2018
      %v2061 = vpack.c.bf16 %v2029, %v2026
      %v2062 = vpack.c.bf16 %v2037, %v2034
      %v2063 = vpack.c.bf16 %v2045, %v2042
      %v2064 = vpack.c.bf16 %v2053, %v2050
      %s2065 = scalar_lea.vmem %s2, 96
      %v2066 = vld [vmem:[%s2065] sm:$0xf]
      %v2067 = vld [vmem:[%s2065 + $0x4] sm:$0xf]
      %v2068 = vld [vmem:[%s2065 + $0x8] sm:$0xf]
      %v2069 = vld [vmem:[%s2065 + $0xc] sm:$0xf]
      %v2070 = vld [vmem:[%s2065 + $0x10] sm:$0xf]
      %v2071 = vld [vmem:[%s2065 + $0x14] sm:$0xf]
      %v2072 = vld [vmem:[%s2065 + $0x18] sm:$0xf]
      %v2073 = vld [vmem:[%s2065 + $0x1c] sm:$0xf]
      %v2082 = vunpack.c.l.b16 %v2066
      %v2083 = vunpack.c.l.b16 %v2067
      %v2084 = vunpack.c.l.b16 %v2068
      %v2085 = vunpack.c.l.b16 %v2069
      %v2086 = vunpack.c.l.b16 %v2070
      %v2087 = vunpack.c.l.b16 %v2071
      %v2088 = vunpack.c.l.b16 %v2072
      %v2089 = vunpack.c.l.b16 %v2073
      %v2090 = vpack.c.b16 %v2083, %v2082
      %v2091 = vpack.c.b16 %v2085, %v2084
      %v2092 = vpack.c.b16 %v2087, %v2086
      %v2093 = vpack.c.b16 %v2089, %v2088
      %v2099 = vsel %vm1111, %v2056, 0
      %v2102 = vsel %vm1111, %v2057, 0
      %v2105 = vsel %vm1111, %v2058, 0
      %v2108 = vsel %vm1111, %v2059, 0
      %v2111 = vsel %vm1111, %v2060, 0
      %v2114 = vsel %vm1111, %v2061, 0
      %v2117 = vsel %vm1111, %v2062, 0
      %v2120 = vsel %vm1111, %v2063, 0
      %v2123 = vsel %vm1111, %v2064, 0
      %2125 = vmatprep.subr.bf16.mxu0 0
      %2126 = vmatpush1.bf16.msra.mxu0 %v2090
      %2127 = vmatprep.subr.bf16.mxu0 0
      %2128 = vmatpush1.bf16.msra.mxu0 %v2091
      %2129 = vmatprep.subr.bf16.mxu0 0
      %2130 = vmatpush1.bf16.msra.mxu0 %v2092
      %2131 = vmatprep.subr.bf16.mxu0 0
      %2132 = vmatpush1.bf16.msra.mxu0 %v2093
      %2133 = vmatprep.subr.bf16.mxu0 0
      %2134 = vmatpush1.bf16.msra.mxu0 0
      %2135 = vmatprep.subr.bf16.mxu0 0
      %2136 = vmatpush1.bf16.msra.mxu0 0
      %2137 = vmatprep.subr.bf16.mxu0 0
      %2138 = vmatpush1.bf16.msra.mxu0 0
      %2139 = vmatprep.subr.bf16.mxu0 0
      %2140 = vmatpush1.bf16.msra.mxu0 0
      %2141 = vmatprep.subr.bf16.mxu0 0
      %2142 = vmatpush1.bf16.msra.mxu0 0
      %2143 = vmatprep.subr.bf16.mxu0 0
      %2144 = vmatpush1.bf16.msra.mxu0 0
      %2145 = vmatprep.subr.bf16.mxu0 0
      %2146 = vmatpush1.bf16.msra.mxu0 0
      %2147 = vmatprep.subr.bf16.mxu0 0
      %2148 = vmatpush1.bf16.msra.mxu0 0
      %2149 = vmatprep.subr.bf16.mxu0 0
      %2150 = vmatpush1.bf16.msra.mxu0 0
      %2151 = vmatprep.subr.bf16.mxu0 0
      %2152 = vmatpush1.bf16.msra.mxu0 0
      %2153 = vmatprep.subr.bf16.mxu0 0
      %2154 = vmatpush1.bf16.msra.mxu0 0
      %2155 = vmatprep.subr.bf16.mxu0 0
      %2156 = vmatpush1.bf16.msra.mxu0 0
      %2157 = vmatprep.mubr.bf16.mxu0 0
      %2158 = vmatmul.mubr.bf16.gmra.mrb[0].mxu0 %v2099
      %v2159 = vpop.f32.mrb[0].mxu0
      %v2160 = vadd.f32 0.0, %v2159
      %v2161 = vpop.f32.mrb[0].mxu0
      %v2162 = vpop.f32.mrb[0].mxu0
      %v2163 = vadd.f32 0.0, %v2162
      %v2164 = vpop.f32.mrb[0].mxu0
      %2165 = vmatprep.mubr.bf16.mxu0 0
      %2166 = vmatmul.mubr.bf16.gmra.mrb[0].mxu0 %v2102
      %v2167 = vpop.f32.mrb[0].mxu0
      %v2168 = vadd.f32 0.0, %v2167
      %v2169 = vpop.f32.mrb[0].mxu0
      %v2170 = vpop.f32.mrb[0].mxu0
      %v2171 = vadd.f32 0.0, %v2170
      %v2172 = vpop.f32.mrb[0].mxu0
      %2173 = vmatprep.mubr.bf16.mxu0 0
      %2174 = vmatmul.mubr.bf16.gmra.mrb[0].mxu0 %v2105
      %v2175 = vpop.f32.mrb[0].mxu0
      %v2176 = vadd.f32 0.0, %v2175
      %v2177 = vpop.f32.mrb[0].mxu0
      %v2178 = vpop.f32.mrb[0].mxu0
      %v2179 = vadd.f32 0.0, %v2178
      %v2180 = vpop.f32.mrb[0].mxu0
      %2181 = vmatprep.mubr.bf16.mxu0 0
      %2182 = vmatmul.mubr.bf16.gmra.mrb[0].mxu0 %v2108
      %v2183 = vpop.f32.mrb[0].mxu0
      %v2184 = vadd.f32 0.0, %v2183
      %v2185 = vpop.f32.mrb[0].mxu0
      %v2186 = vpop.f32.mrb[0].mxu0
      %v2187 = vadd.f32 0.0, %v2186
      %v2188 = vpop.f32.mrb[0].mxu0
      %2189 = vmatprep.mubr.bf16.mxu0 0
      %2190 = vmatmul.mubr.bf16.gmra.mrb[0].mxu0 %v2111
      %v2191 = vpop.f32.mrb[0].mxu0
      %v2192 = vadd.f32 0.0, %v2191
      %v2193 = vpop.f32.mrb[0].mxu0
      %v2194 = vpop.f32.mrb[0].mxu0
      %v2195 = vadd.f32 0.0, %v2194
      %v2196 = vpop.f32.mrb[0].mxu0
      %2197 = vmatprep.mubr.bf16.mxu0 0
      %2198 = vmatmul.mubr.bf16.gmra.mrb[0].mxu0 %v2114
      %v2199 = vpop.f32.mrb[0].mxu0
      %v2200 = vadd.f32 0.0, %v2199
      %v2201 = vpop.f32.mrb[0].mxu0
      %v2202 = vpop.f32.mrb[0].mxu0
      %v2203 = vadd.f32 0.0, %v2202
      %v2204 = vpop.f32.mrb[0].mxu0
      %2205 = vmatprep.mubr.bf16.mxu0 0
      %2206 = vmatmul.mubr.bf16.gmra.mrb[0].mxu0 %v2117
      %v2207 = vpop.f32.mrb[0].mxu0
      %v2208 = vadd.f32 0.0, %v2207
      %v2209 = vpop.f32.mrb[0].mxu0
      %v2210 = vpop.f32.mrb[0].mxu0
      %v2211 = vadd.f32 0.0, %v2210
      %v2212 = vpop.f32.mrb[0].mxu0
      %2213 = vmatprep.mubr.bf16.mxu0 0
      %2214 = vmatmul.mubr.bf16.gmra.mrb[0].mxu0 %v2120
      %v2215 = vpop.f32.mrb[0].mxu0
      %v2216 = vadd.f32 0.0, %v2215
      %v2217 = vpop.f32.mrb[0].mxu0
      %v2218 = vpop.f32.mrb[0].mxu0
      %v2219 = vadd.f32 0.0, %v2218
      %v2220 = vpop.f32.mrb[0].mxu0
      %2221 = vmatprep.mubr.bf16.mxu0 0
      %2222 = vmatmul.mubr.bf16.gmra.mrb[0].mxu0 %v2123
      %v2223 = vpop.f32.mrb[0].mxu0
      %v2224 = vadd.f32 0.0, %v2223
      %v2225 = vpop.f32.mrb[0].mxu0
      %v2226 = vpop.f32.mrb[0].mxu0
      %v2227 = vadd.f32 0.0, %v2226
      %v2228 = vpop.f32.mrb[0].mxu0
      %2229 = vdwg.mxu0
      %v2230 = vadd.f32 %v1806, %v2160
      %v2231 = vadd.f32 %v1807, %v2163
      %v2232 = vadd.f32 %v1808, %v2168
      %v2233 = vadd.f32 %v1809, %v2171
      %v2234 = vadd.f32 %v1810, %v2176
      %v2235 = vadd.f32 %v1811, %v2179
      %v2236 = vadd.f32 %v1812, %v2184
      %v2237 = vadd.f32 %v1813, %v2187
      %v2238 = vadd.f32 %v1814, %v2192
      %v2239 = vadd.f32 %v1815, %v2195
      %v2240 = vadd.f32 %v1816, %v2200
      %v2241 = vadd.f32 %v1817, %v2203
      %v2242 = vadd.f32 %v1818, %v2208
      %v2243 = vadd.f32 %v1819, %v2211
      %v2244 = vadd.f32 %v1820, %v2216
      %v2245 = vadd.f32 %v1821, %v2219
      %v2246 = vadd.f32 %v1822, %v2224
      %v2247 = vadd.f32 %v1823, %v2227
      %v2248 = vld [vmem:[%s3] sm:$0x1]
      %v2250 = vlaneseq
      %v2251 = vshrl.u32 %v2250, 7
      %v2252 = vsub.s32 0, %v2251
      %v2253 = vrot.slane %v2248, %v2252
      %v2255 = vadd.f32 %v2230, %v2253
      %v2256 = vadd.f32 %v2231, %v2253
      %v2257 = vadd.f32 %v2232, %v2253
      %v2258 = vadd.f32 %v2233, %v2253
      %v2259 = vadd.f32 %v2234, %v2253
      %v2260 = vadd.f32 %v2235, %v2253
      %v2261 = vadd.f32 %v2236, %v2253
      %v2262 = vadd.f32 %v2237, %v2253
      %v2263 = vadd.f32 %v2238, %v2253
      %v2264 = vadd.f32 %v2239, %v2253
      %v2265 = vadd.f32 %v2240, %v2253
      %v2266 = vadd.f32 %v2241, %v2253
      %v2267 = vadd.f32 %v2242, %v2253
      %v2268 = vadd.f32 %v2243, %v2253
      %v2269 = vadd.f32 %v2244, %v2253
      %v2270 = vadd.f32 %v2245, %v2253
      %v2271 = vadd.f32 %v2246, %v2253
      %v2272 = vadd.f32 %v2247, %v2253
      %v2273 = vmax.f32 %v2255, 0.0
      %v2274 = vmax.f32 %v2256, 0.0
      %v2275 = vmax.f32 %v2257, 0.0
      %v2276 = vmax.f32 %v2258, 0.0
      %v2277 = vmax.f32 %v2259, 0.0
      %v2278 = vmax.f32 %v2260, 0.0
      %v2279 = vmax.f32 %v2261, 0.0
      %v2280 = vmax.f32 %v2262, 0.0
      %v2281 = vmax.f32 %v2263, 0.0
      %v2282 = vmax.f32 %v2264, 0.0
      %v2283 = vmax.f32 %v2265, 0.0
      %v2284 = vmax.f32 %v2266, 0.0
      %v2285 = vmax.f32 %v2267, 0.0
      %v2286 = vmax.f32 %v2268, 0.0
      %v2287 = vmax.f32 %v2269, 0.0
      %v2288 = vmax.f32 %v2270, 0.0
      %v2289 = vmax.f32 %v2271, 0.0
      %v2290 = vmax.f32 %v2272, 0.0
      %v2291 = vpack.c.bf16 %v2274, %v2273
      %v2292 = vpack.c.bf16 %v2276, %v2275
      %v2293 = vpack.c.bf16 %v2278, %v2277
      %v2294 = vpack.c.bf16 %v2280, %v2279
      %v2295 = vpack.c.bf16 %v2282, %v2281
      %v2296 = vpack.c.bf16 %v2284, %v2283
      %v2297 = vpack.c.bf16 %v2286, %v2285
      %v2298 = vpack.c.bf16 %v2288, %v2287
      %v2299 = vpack.c.bf16 %v2290, %v2289
      %v2300 = vld [vmem:[%s4] sm:$0xff]
      %v2301 = vld [vmem:[%s4 + $0x8] sm:$0xff]
      %v2302 = vld [vmem:[%s4 + $0x10] sm:$0xff]
      %v2303 = vld [vmem:[%s4 + $0x18] sm:$0x11]
      %v2308 = vunpack.c.l.b16 %v2300
      %v2309 = vunpack.c.h.b16 %v2300
      %v2310 = vunpack.c.l.b16 %v2301
      %v2311 = vunpack.c.h.b16 %v2301
      %v2312 = vunpack.c.l.b16 %v2302
      %v2313 = vunpack.c.h.b16 %v2302
      %v2314 = vunpack.c.l.b16 %v2303
      %v2315 = vunpack.c.h.b16 %v2303
      %v2316 = vpack.c.b16 %v2310, %v2308
      %v2317 = vpack.c.b16 %v2311, %v2309
      %v2318 = vpack.c.b16 %v2314, %v2312
      %v2319 = vpack.c.b16 %v2315, %v2313
      %vm2322 = vcmask 130048
      %v2324 = vsel %vm2322, %v2317, 0
      %v2327 = vsel %vm2322, %v2319, 0
      %2329 = vmatprep.subr.bf16.mxu0 0
      %2330 = vmatpush1.bf16.msra.mxu0 %v2291
      %2331 = vmatprep.subr.bf16.mxu0 0
      %2332 = vmatpush1.bf16.msra.mxu0 %v2292
      %2333 = vmatprep.subr.bf16.mxu0 0
      %2334 = vmatpush1.bf16.msra.mxu0 %v2293
      %2335 = vmatprep.subr.bf16.mxu0 0
      %2336 = vmatpush1.bf16.msra.mxu0 %v2294
      %2337 = vmatprep.subr.bf16.mxu0 0
      %2338 = vmatpush1.bf16.msra.mxu0 %v2295
      %2339 = vmatprep.subr.bf16.mxu0 0
      %2340 = vmatpush1.bf16.msra.mxu0 %v2296
      %2341 = vmatprep.subr.bf16.mxu0 0
      %2342 = vmatpush1.bf16.msra.mxu0 %v2297
      %2343 = vmatprep.subr.bf16.mxu0 0
      %2344 = vmatpush1.bf16.msra.mxu0 %v2298
      %2345 = vmatprep.subr.bf16.mxu0 0
      %2346 = vmatpush1.bf16.msra.mxu0 %v2299
      %2347 = vmatprep.subr.bf16.mxu0 0
      %2348 = vmatpush1.bf16.msra.mxu0 0
      %2349 = vmatprep.subr.bf16.mxu0 0
      %2350 = vmatpush1.bf16.msra.mxu0 0
      %2351 = vmatprep.subr.bf16.mxu0 0
      %2352 = vmatpush1.bf16.msra.mxu0 0
      %2353 = vmatprep.subr.bf16.mxu0 0
      %2354 = vmatpush1.bf16.msra.mxu0 0
      %2355 = vmatprep.subr.bf16.mxu0 0
      %2356 = vmatpush1.bf16.msra.mxu0 0
      %2357 = vmatprep.subr.bf16.mxu0 0
      %2358 = vmatpush1.bf16.msra.mxu0 0
      %2359 = vmatprep.subr.bf16.mxu0 0
      %2360 = vmatpush1.bf16.msra.mxu0 0
      %2361 = vmatprep.mubr.bf16.mxu0 %v2324
      %2362 = vmatmul.mubr.bf16.gmra.mrb[0].mxu0 %v2316
      %v2363 = vpop.f32.mrb[0].mxu0
      %v2364 = vadd.f32 0.0, %v2363
      %v2365 = vpop.f32.mrb[0].mxu0
      %v2366 = vpop.f32.mrb[0].mxu0
      %v2367 = vadd.f32 0.0, %v2366
      %v2368 = vpop.f32.mrb[0].mxu0
      %2369 = vmatprep.mubr.bf16.mxu0 %v2327
      %2370 = vmatmul.mubr.bf16.gmra.mrb[0].mxu0 %v2318
      %v2371 = vpop.f32.mrb[0].mxu0
      %v2372 = vadd.f32 0.0, %v2371
      %v2373 = vpop.f32.mrb[0].mxu0
      %v2374 = vpop.f32.mrb[0].mxu0
      %v2375 = vadd.f32 0.0, %v2374
      %v2376 = vpop.f32.mrb[0].mxu0
      %2377 = vdwg.mxu0
      %v2378 = vpack.c.bf16 %v2367, %v2364
      %v2379 = vpack.c.bf16 %v2375, %v2372
      %v2380 = vld [vmem:[%s5] sm:$0xf]
      %v2381 = vld [vmem:[%s5 + $0x4] sm:$0xf]
      %v2382 = vld [vmem:[%s5 + $0x8] sm:$0xf]
      %v2383 = vld [vmem:[%s5 + $0xc] sm:$0xf]
      %s2384 = scalar_lea.vmem %s4, 32
      %v2385 = vld [vmem:[%s2384] sm:$0xff]
      %v2386 = vld [vmem:[%s2384 + $0x8] sm:$0xff]
      %v2387 = vld [vmem:[%s2384 + $0x10] sm:$0xff]
      %v2388 = vld [vmem:[%s2384 + $0x18] sm:$0x11]
      %v2393 = vunpack.c.l.b16 %v2385
      %v2394 = vunpack.c.h.b16 %v2385
      %v2395 = vunpack.c.l.b16 %v2386
      %v2396 = vunpack.c.h.b16 %v2386
      %v2397 = vunpack.c.l.b16 %v2387
      %v2398 = vunpack.c.h.b16 %v2387
      %v2399 = vunpack.c.l.b16 %v2388
      %v2400 = vunpack.c.h.b16 %v2388
      %v2401 = vpack.c.b16 %v2395, %v2393
      %v2402 = vpack.c.b16 %v2396, %v2394
      %v2403 = vpack.c.b16 %v2399, %v2397
      %v2404 = vpack.c.b16 %v2400, %v2398
      %v2408 = vsel %vm2322, %v2402, 0
      %v2411 = vsel %vm2322, %v2404, 0
      %2413 = vmatprep.subr.bf16.mxu0 0
      %2414 = vmatpush1.bf16.msra.mxu0 %v2291
      %2415 = vmatprep.subr.bf16.mxu0 0
      %2416 = vmatpush1.bf16.msra.mxu0 %v2292
      %2417 = vmatprep.subr.bf16.mxu0 0
      %2418 = vmatpush1.bf16.msra.mxu0 %v2293
      %2419 = vmatprep.subr.bf16.mxu0 0
      %2420 = vmatpush1.bf16.msra.mxu0 %v2294
      %2421 = vmatprep.subr.bf16.mxu0 0
      %2422 = vmatpush1.bf16.msra.mxu0 %v2295
      %2423 = vmatprep.subr.bf16.mxu0 0
      %2424 = vmatpush1.bf16.msra.mxu0 %v2296
      %2425 = vmatprep.subr.bf16.mxu0 0
      %2426 = vmatpush1.bf16.msra.mxu0 %v2297
      %2427 = vmatprep.subr.bf16.mxu0 0
      %2428 = vmatpush1.bf16.msra.mxu0 %v2298
      %2429 = vmatprep.subr.bf16.mxu0 0
      %2430 = vmatpush1.bf16.msra.mxu0 %v2299
      %2431 = vmatprep.subr.bf16.mxu0 0
      %2432 = vmatpush1.bf16.msra.mxu0 0
      %2433 = vmatprep.subr.bf16.mxu0 0
      %2434 = vmatpush1.bf16.msra.mxu0 0
      %2435 = vmatprep.subr.bf16.mxu0 0
      %2436 = vmatpush1.bf16.msra.mxu0 0
      %2437 = vmatprep.subr.bf16.mxu0 0
      %2438 = vmatpush1.bf16.msra.mxu0 0
      %2439 = vmatprep.subr.bf16.mxu0 0
      %2440 = vmatpush1.bf16.msra.mxu0 0
      %2441 = vmatprep.subr.bf16.mxu0 0
      %2442 = vmatpush1.bf16.msra.mxu0 0
      %2443 = vmatprep.subr.bf16.mxu0 0
      %2444 = vmatpush1.bf16.msra.mxu0 0
      %2445 = vmatprep.mubr.bf16.mxu0 %v2408
      %2446 = vmatmul.mubr.bf16.gmra.mrb[0].mxu0 %v2401
      %v2447 = vpop.f32.mrb[0].mxu0
      %v2448 = vadd.f32 0.0, %v2447
      %v2449 = vpop.f32.mrb[0].mxu0
      %v2450 = vpop.f32.mrb[0].mxu0
      %v2451 = vadd.f32 0.0, %v2450
      %v2452 = vpop.f32.mrb[0].mxu0
      %2453 = vmatprep.mubr.bf16.mxu0 %v2411
      %2454 = vmatmul.mubr.bf16.gmra.mrb[0].mxu0 %v2403
      %v2455 = vpop.f32.mrb[0].mxu0
      %v2456 = vadd.f32 0.0, %v2455
      %v2457 = vpop.f32.mrb[0].mxu0
      %v2458 = vpop.f32.mrb[0].mxu0
      %v2459 = vadd.f32 0.0, %v2458
      %v2460 = vpop.f32.mrb[0].mxu0
      %2461 = vdwg.mxu0
      %v2462 = vpack.c.bf16 %v2451, %v2448
      %v2463 = vpack.c.bf16 %v2459, %v2456
      %s2464 = scalar_lea.vmem %s5, 16
      %v2465 = vld [vmem:[%s2464] sm:$0xf]
      %v2466 = vld [vmem:[%s2464 + $0x4] sm:$0xf]
      %v2467 = vld [vmem:[%s2464 + $0x8] sm:$0xf]
      %v2468 = vld [vmem:[%s2464 + $0xc] sm:$0xf]
      %v2473 = vunpack.c.l.b16 %v2465
      %v2474 = vunpack.c.l.b16 %v2466
      %v2475 = vunpack.c.l.b16 %v2467
      %v2476 = vunpack.c.l.b16 %v2468
      %v2477 = vpack.c.b16 %v2474, %v2473
      %v2478 = vpack.c.b16 %v2476, %v2475
      %vm2481 = vcmask 261120
      %v2483 = vsel %vm2481, %v2462, 0
      %v2486 = vsel %vm2481, %v2463, 0
      %2488 = vmatprep.subr.bf16.mxu0 0
      %2489 = vmatpush1.bf16.msra.mxu0 %v2477
      %2490 = vmatprep.subr.bf16.mxu0 0
      %2491 = vmatpush1.bf16.msra.mxu0 %v2478
      %2492 = vmatprep.subr.bf16.mxu0 0
      %2493 = vmatpush1.bf16.msra.mxu0 0
      %2494 = vmatprep.subr.bf16.mxu0 0
      %2495 = vmatpush1.bf16.msra.mxu0 0
      %2496 = vmatprep.subr.bf16.mxu0 0
      %2497 = vmatpush1.bf16.msra.mxu0 0
      %2498 = vmatprep.subr.bf16.mxu0 0
      %2499 = vmatpush1.bf16.msra.mxu0 0
      %2500 = vmatprep.subr.bf16.mxu0 0
      %2501 = vmatpush1.bf16.msra.mxu0 0
      %2502 = vmatprep.subr.bf16.mxu0 0
      %2503 = vmatpush1.bf16.msra.mxu0 0
      %2504 = vmatprep.subr.bf16.mxu0 0
      %2505 = vmatpush1.bf16.msra.mxu0 0
      %2506 = vmatprep.subr.bf16.mxu0 0
      %2507 = vmatpush1.bf16.msra.mxu0 0
      %2508 = vmatprep.subr.bf16.mxu0 0
      %2509 = vmatpush1.bf16.msra.mxu0 0
      %2510 = vmatprep.subr.bf16.mxu0 0
      %2511 = vmatpush1.bf16.msra.mxu0 0
      %2512 = vmatprep.subr.bf16.mxu0 0
      %2513 = vmatpush1.bf16.msra.mxu0 0
      %2514 = vmatprep.subr.bf16.mxu0 0
      %2515 = vmatpush1.bf16.msra.mxu0 0
      %2516 = vmatprep.subr.bf16.mxu0 0
      %2517 = vmatpush1.bf16.msra.mxu0 0
      %2518 = vmatprep.subr.bf16.mxu0 0
      %2519 = vmatpush1.bf16.msra.mxu0 0
      %2520 = vmatprep.mubr.bf16.mxu0 0
      %2521 = vmatmul.mubr.bf16.gmra.mrb[0].mxu0 %v2483
      %v2522 = vpop.f32.mrb[0].mxu0
      %v2523 = vadd.f32 0.0, %v2522
      %v2524 = vpop.f32.mrb[0].mxu0
      %v2525 = vpop.f32.mrb[0].mxu0
      %v2526 = vadd.f32 0.0, %v2525
      %v2527 = vpop.f32.mrb[0].mxu0
      %2528 = vmatprep.mubr.bf16.mxu0 0
      %2529 = vmatmul.mubr.bf16.gmra.mrb[0].mxu0 %v2486
      %v2530 = vpop.f32.mrb[0].mxu0
      %v2531 = vadd.f32 0.0, %v2530
      %v2532 = vpop.f32.mrb[0].mxu0
      %v2533 = vpop.f32.mrb[0].mxu0
      %v2534 = vadd.f32 0.0, %v2533
      %v2535 = vpop.f32.mrb[0].mxu0
      %2536 = vdwg.mxu0
      %v2541 = vunpack.c.l.b16 %v2380
      %v2542 = vunpack.c.l.b16 %v2381
      %v2543 = vunpack.c.l.b16 %v2382
      %v2544 = vunpack.c.l.b16 %v2383
      %v2545 = vpack.c.b16 %v2542, %v2541
      %v2546 = vpack.c.b16 %v2544, %v2543
      %v2550 = vsel %vm2481, %v2378, 0
      %v2553 = vsel %vm2481, %v2379, 0
      %2555 = vmatprep.subr.bf16.mxu0 0
      %2556 = vmatpush1.bf16.msra.mxu0 %v2545
      %2557 = vmatprep.subr.bf16.mxu0 0
      %2558 = vmatpush1.bf16.msra.mxu0 %v2546
      %2559 = vmatprep.subr.bf16.mxu0 0
      %2560 = vmatpush1.bf16.msra.mxu0 0
      %2561 = vmatprep.subr.bf16.mxu0 0
      %2562 = vmatpush1.bf16.msra.mxu0 0
      %2563 = vmatprep.subr.bf16.mxu0 0
      %2564 = vmatpush1.bf16.msra.mxu0 0
      %2565 = vmatprep.subr.bf16.mxu0 0
      %2566 = vmatpush1.bf16.msra.mxu0 0
      %2567 = vmatprep.subr.bf16.mxu0 0
      %2568 = vmatpush1.bf16.msra.mxu0 0
      %2569 = vmatprep.subr.bf16.mxu0 0
      %2570 = vmatpush1.bf16.msra.mxu0 0
      %2571 = vmatprep.subr.bf16.mxu0 0
      %2572 = vmatpush1.bf16.msra.mxu0 0
      %2573 = vmatprep.subr.bf16.mxu0 0
      %2574 = vmatpush1.bf16.msra.mxu0 0
      %2575 = vmatprep.subr.bf16.mxu0 0
      %2576 = vmatpush1.bf16.msra.mxu0 0
      %2577 = vmatprep.subr.bf16.mxu0 0
      %2578 = vmatpush1.bf16.msra.mxu0 0
      %2579 = vmatprep.subr.bf16.mxu0 0
      %2580 = vmatpush1.bf16.msra.mxu0 0
      %2581 = vmatprep.subr.bf16.mxu0 0
      %2582 = vmatpush1.bf16.msra.mxu0 0
      %2583 = vmatprep.subr.bf16.mxu0 0
      %2584 = vmatpush1.bf16.msra.mxu0 0
      %2585 = vmatprep.subr.bf16.mxu0 0
      %2586 = vmatpush1.bf16.msra.mxu0 0
      %2587 = vmatprep.mubr.bf16.mxu0 0
      %2588 = vmatmul.mubr.bf16.gmra.mrb[0].mxu0 %v2550
      %v2589 = vpop.f32.mrb[0].mxu0
      %v2590 = vadd.f32 %v2523, %v2589
      %v2591 = vpop.f32.mrb[0].mxu0
      %v2592 = vpop.f32.mrb[0].mxu0
      %v2593 = vadd.f32 %v2526, %v2592
      %v2594 = vpop.f32.mrb[0].mxu0
      %2595 = vmatprep.mubr.bf16.mxu0 0
      %2596 = vmatmul.mubr.bf16.gmra.mrb[0].mxu0 %v2553
      %v2597 = vpop.f32.mrb[0].mxu0
      %v2598 = vadd.f32 %v2531, %v2597
      %v2599 = vpop.f32.mrb[0].mxu0
      %v2600 = vpop.f32.mrb[0].mxu0
      %v2601 = vadd.f32 %v2534, %v2600
      %v2602 = vpop.f32.mrb[0].mxu0
      %2603 = vdwg.mxu0
      %s2604 = scalar_lea.vmem %s4, 64
      %v2605 = vld [vmem:[%s2604] sm:$0xff]
      %v2606 = vld [vmem:[%s2604 + $0x8] sm:$0xff]
      %v2607 = vld [vmem:[%s2604 + $0x10] sm:$0xff]
      %v2608 = vld [vmem:[%s2604 + $0x18] sm:$0x11]
      %v2613 = vunpack.c.l.b16 %v2605
      %v2614 = vunpack.c.h.b16 %v2605
      %v2615 = vunpack.c.l.b16 %v2606
      %v2616 = vunpack.c.h.b16 %v2606
      %v2617 = vunpack.c.l.b16 %v2607
      %v2618 = vunpack.c.h.b16 %v2607
      %v2619 = vunpack.c.l.b16 %v2608
      %v2620 = vunpack.c.h.b16 %v2608
      %v2621 = vpack.c.b16 %v2615, %v2613
      %v2622 = vpack.c.b16 %v2616, %v2614
      %v2623 = vpack.c.b16 %v2619, %v2617
      %v2624 = vpack.c.b16 %v2620, %v2618
      %v2628 = vsel %vm2322, %v2622, 0
      %v2631 = vsel %vm2322, %v2624, 0
      %2633 = vmatprep.subr.bf16.mxu0 0
      %2634 = vmatpush1.bf16.msra.mxu0 %v2291
      %2635 = vmatprep.subr.bf16.mxu0 0
      %2636 = vmatpush1.bf16.msra.mxu0 %v2292
      %2637 = vmatprep.subr.bf16.mxu0 0
      %2638 = vmatpush1.bf16.msra.mxu0 %v2293
      %2639 = vmatprep.subr.bf16.mxu0 0
      %2640 = vmatpush1.bf16.msra.mxu0 %v2294
      %2641 = vmatprep.subr.bf16.mxu0 0
      %2642 = vmatpush1.bf16.msra.mxu0 %v2295
      %2643 = vmatprep.subr.bf16.mxu0 0
      %2644 = vmatpush1.bf16.msra.mxu0 %v2296
      %2645 = vmatprep.subr.bf16.mxu0 0
      %2646 = vmatpush1.bf16.msra.mxu0 %v2297
      %2647 = vmatprep.subr.bf16.mxu0 0
      %2648 = vmatpush1.bf16.msra.mxu0 %v2298
      %2649 = vmatprep.subr.bf16.mxu0 0
      %2650 = vmatpush1.bf16.msra.mxu0 %v2299
      %2651 = vmatprep.subr.bf16.mxu0 0
      %2652 = vmatpush1.bf16.msra.mxu0 0
      %2653 = vmatprep.subr.bf16.mxu0 0
      %2654 = vmatpush1.bf16.msra.mxu0 0
      %2655 = vmatprep.subr.bf16.mxu0 0
      %2656 = vmatpush1.bf16.msra.mxu0 0
      %2657 = vmatprep.subr.bf16.mxu0 0
      %2658 = vmatpush1.bf16.msra.mxu0 0
      %2659 = vmatprep.subr.bf16.mxu0 0
      %2660 = vmatpush1.bf16.msra.mxu0 0
      %2661 = vmatprep.subr.bf16.mxu0 0
      %2662 = vmatpush1.bf16.msra.mxu0 0
      %2663 = vmatprep.subr.bf16.mxu0 0
      %2664 = vmatpush1.bf16.msra.mxu0 0
      %2665 = vmatprep.mubr.bf16.mxu0 %v2628
      %2666 = vmatmul.mubr.bf16.gmra.mrb[0].mxu0 %v2621
      %v2667 = vpop.f32.mrb[0].mxu0
      %v2668 = vadd.f32 0.0, %v2667
      %v2669 = vpop.f32.mrb[0].mxu0
      %v2670 = vpop.f32.mrb[0].mxu0
      %v2671 = vadd.f32 0.0, %v2670
      %v2672 = vpop.f32.mrb[0].mxu0
      %2673 = vmatprep.mubr.bf16.mxu0 %v2631
      %2674 = vmatmul.mubr.bf16.gmra.mrb[0].mxu0 %v2623
      %v2675 = vpop.f32.mrb[0].mxu0
      %v2676 = vadd.f32 0.0, %v2675
      %v2677 = vpop.f32.mrb[0].mxu0
      %v2678 = vpop.f32.mrb[0].mxu0
      %v2679 = vadd.f32 0.0, %v2678
      %v2680 = vpop.f32.mrb[0].mxu0
      %2681 = vdwg.mxu0
      %v2682 = vpack.c.bf16 %v2671, %v2668
      %v2683 = vpack.c.bf16 %v2679, %v2676
      %s2684 = scalar_lea.vmem %s5, 32
      %v2685 = vld [vmem:[%s2684] sm:$0xf]
      %v2686 = vld [vmem:[%s2684 + $0x4] sm:$0xf]
      %v2687 = vld [vmem:[%s2684 + $0x8] sm:$0xf]
      %v2688 = vld [vmem:[%s2684 + $0xc] sm:$0xf]
      %v2693 = vunpack.c.l.b16 %v2685
      %v2694 = vunpack.c.l.b16 %v2686
      %v2695 = vunpack.c.l.b16 %v2687
      %v2696 = vunpack.c.l.b16 %v2688
      %v2697 = vpack.c.b16 %v2694, %v2693
      %v2698 = vpack.c.b16 %v2696, %v2695
      %v2702 = vsel %vm2481, %v2682, 0
      %v2705 = vsel %vm2481, %v2683, 0
      %2707 = vmatprep.subr.bf16.mxu0 0
      %2708 = vmatpush1.bf16.msra.mxu0 %v2697
      %2709 = vmatprep.subr.bf16.mxu0 0
      %2710 = vmatpush1.bf16.msra.mxu0 %v2698
      %2711 = vmatprep.subr.bf16.mxu0 0
      %2712 = vmatpush1.bf16.msra.mxu0 0
      %2713 = vmatprep.subr.bf16.mxu0 0
      %2714 = vmatpush1.bf16.msra.mxu0 0
      %2715 = vmatprep.subr.bf16.mxu0 0
      %2716 = vmatpush1.bf16.msra.mxu0 0
      %2717 = vmatprep.subr.bf16.mxu0 0
      %2718 = vmatpush1.bf16.msra.mxu0 0
      %2719 = vmatprep.subr.bf16.mxu0 0
      %2720 = vmatpush1.bf16.msra.mxu0 0
      %2721 = vmatprep.subr.bf16.mxu0 0
      %2722 = vmatpush1.bf16.msra.mxu0 0
      %2723 = vmatprep.subr.bf16.mxu0 0
      %2724 = vmatpush1.bf16.msra.mxu0 0
      %2725 = vmatprep.subr.bf16.mxu0 0
      %2726 = vmatpush1.bf16.msra.mxu0 0
      %2727 = vmatprep.subr.bf16.mxu0 0
      %2728 = vmatpush1.bf16.msra.mxu0 0
      %2729 = vmatprep.subr.bf16.mxu0 0
      %2730 = vmatpush1.bf16.msra.mxu0 0
      %2731 = vmatprep.subr.bf16.mxu0 0
      %2732 = vmatpush1.bf16.msra.mxu0 0
      %2733 = vmatprep.subr.bf16.mxu0 0
      %2734 = vmatpush1.bf16.msra.mxu0 0
      %2735 = vmatprep.subr.bf16.mxu0 0
      %2736 = vmatpush1.bf16.msra.mxu0 0
      %2737 = vmatprep.subr.bf16.mxu0 0
      %2738 = vmatpush1.bf16.msra.mxu0 0
      %2739 = vmatprep.mubr.bf16.mxu0 0
      %2740 = vmatmul.mubr.bf16.gmra.mrb[0].mxu0 %v2702
      %v2741 = vpop.f32.mrb[0].mxu0
      %v2742 = vadd.f32 0.0, %v2741
      %v2743 = vpop.f32.mrb[0].mxu0
      %v2744 = vpop.f32.mrb[0].mxu0
      %v2745 = vadd.f32 0.0, %v2744
      %v2746 = vpop.f32.mrb[0].mxu0
      %2747 = vmatprep.mubr.bf16.mxu0 0
      %2748 = vmatmul.mubr.bf16.gmra.mrb[0].mxu0 %v2705
      %v2749 = vpop.f32.mrb[0].mxu0
      %v2750 = vadd.f32 0.0, %v2749
      %v2751 = vpop.f32.mrb[0].mxu0
      %v2752 = vpop.f32.mrb[0].mxu0
      %v2753 = vadd.f32 0.0, %v2752
      %v2754 = vpop.f32.mrb[0].mxu0
      %2755 = vdwg.mxu0
      %v2756 = vadd.f32 %v2590, %v2742
      %v2757 = vadd.f32 %v2593, %v2745
      %v2758 = vadd.f32 %v2598, %v2750
      %v2759 = vadd.f32 %v2601, %v2753
      %s2760 = scalar_lea.vmem %s4, 96
      %v2761 = vld [vmem:[%s2760] sm:$0xff]
      %v2762 = vld [vmem:[%s2760 + $0x8] sm:$0xff]
      %v2763 = vld [vmem:[%s2760 + $0x10] sm:$0xff]
      %v2764 = vld [vmem:[%s2760 + $0x18] sm:$0x11]
      %v2769 = vunpack.c.l.b16 %v2761
      %v2770 = vunpack.c.h.b16 %v2761
      %v2771 = vunpack.c.l.b16 %v2762
      %v2772 = vunpack.c.h.b16 %v2762
      %v2773 = vunpack.c.l.b16 %v2763
      %v2774 = vunpack.c.h.b16 %v2763
      %v2775 = vunpack.c.l.b16 %v2764
      %v2776 = vunpack.c.h.b16 %v2764
      %v2777 = vpack.c.b16 %v2771, %v2769
      %v2778 = vpack.c.b16 %v2772, %v2770
      %v2779 = vpack.c.b16 %v2775, %v2773
      %v2780 = vpack.c.b16 %v2776, %v2774
      %v2784 = vsel %vm2322, %v2778, 0
      %v2787 = vsel %vm2322, %v2780, 0
      %2789 = vmatprep.subr.bf16.mxu0 0
      %2790 = vmatpush1.bf16.msra.mxu0 %v2291
      %2791 = vmatprep.subr.bf16.mxu0 0
      %2792 = vmatpush1.bf16.msra.mxu0 %v2292
      %2793 = vmatprep.subr.bf16.mxu0 0
      %2794 = vmatpush1.bf16.msra.mxu0 %v2293
      %2795 = vmatprep.subr.bf16.mxu0 0
      %2796 = vmatpush1.bf16.msra.mxu0 %v2294
      %2797 = vmatprep.subr.bf16.mxu0 0
      %2798 = vmatpush1.bf16.msra.mxu0 %v2295
      %2799 = vmatprep.subr.bf16.mxu0 0
      %2800 = vmatpush1.bf16.msra.mxu0 %v2296
      %2801 = vmatprep.subr.bf16.mxu0 0
      %2802 = vmatpush1.bf16.msra.mxu0 %v2297
      %2803 = vmatprep.subr.bf16.mxu0 0
      %2804 = vmatpush1.bf16.msra.mxu0 %v2298
      %2805 = vmatprep.subr.bf16.mxu0 0
      %2806 = vmatpush1.bf16.msra.mxu0 %v2299
      %2807 = vmatprep.subr.bf16.mxu0 0
      %2808 = vmatpush1.bf16.msra.mxu0 0
      %2809 = vmatprep.subr.bf16.mxu0 0
      %2810 = vmatpush1.bf16.msra.mxu0 0
      %2811 = vmatprep.subr.bf16.mxu0 0
      %2812 = vmatpush1.bf16.msra.mxu0 0
      %2813 = vmatprep.subr.bf16.mxu0 0
      %2814 = vmatpush1.bf16.msra.mxu0 0
      %2815 = vmatprep.subr.bf16.mxu0 0
      %2816 = vmatpush1.bf16.msra.mxu0 0
      %2817 = vmatprep.subr.bf16.mxu0 0
      %2818 = vmatpush1.bf16.msra.mxu0 0
      %2819 = vmatprep.subr.bf16.mxu0 0
      %2820 = vmatpush1.bf16.msra.mxu0 0
      %2821 = vmatprep.mubr.bf16.mxu0 %v2784
      %2822 = vmatmul.mubr.bf16.gmra.mrb[0].mxu0 %v2777
      %v2823 = vpop.f32.mrb[0].mxu0
      %v2824 = vadd.f32 0.0, %v2823
      %v2825 = vpop.f32.mrb[0].mxu0
      %v2826 = vpop.f32.mrb[0].mxu0
      %v2827 = vadd.f32 0.0, %v2826
      %v2828 = vpop.f32.mrb[0].mxu0
      %2829 = vmatprep.mubr.bf16.mxu0 %v2787
      %2830 = vmatmul.mubr.bf16.gmra.mrb[0].mxu0 %v2779
      %v2831 = vpop.f32.mrb[0].mxu0
      %v2832 = vadd.f32 0.0, %v2831
      %v2833 = vpop.f32.mrb[0].mxu0
      %v2834 = vpop.f32.mrb[0].mxu0
      %v2835 = vadd.f32 0.0, %v2834
      %v2836 = vpop.f32.mrb[0].mxu0
      %2837 = vdwg.mxu0
      %v2838 = vpack.c.bf16 %v2827, %v2824
      %v2839 = vpack.c.bf16 %v2835, %v2832
      %s2840 = scalar_lea.vmem %s5, 48
      %v2841 = vld [vmem:[%s2840] sm:$0xf]
      %v2842 = vld [vmem:[%s2840 + $0x4] sm:$0xf]
      %v2843 = vld [vmem:[%s2840 + $0x8] sm:$0xf]
      %v2844 = vld [vmem:[%s2840 + $0xc] sm:$0xf]
      %v2849 = vunpack.c.l.b16 %v2841
      %v2850 = vunpack.c.l.b16 %v2842
      %v2851 = vunpack.c.l.b16 %v2843
      %v2852 = vunpack.c.l.b16 %v2844
      %v2853 = vpack.c.b16 %v2850, %v2849
      %v2854 = vpack.c.b16 %v2852, %v2851
      %v2858 = vsel %vm2481, %v2838, 0
      %v2861 = vsel %vm2481, %v2839, 0
      %2863 = vmatprep.subr.bf16.mxu0 0
      %2864 = vmatpush1.bf16.msra.mxu0 %v2853
      %2865 = vmatprep.subr.bf16.mxu0 0
      %2866 = vmatpush1.bf16.msra.mxu0 %v2854
      %2867 = vmatprep.subr.bf16.mxu0 0
      %2868 = vmatpush1.bf16.msra.mxu0 0
      %2869 = vmatprep.subr.bf16.mxu0 0
      %2870 = vmatpush1.bf16.msra.mxu0 0
      %2871 = vmatprep.subr.bf16.mxu0 0
      %2872 = vmatpush1.bf16.msra.mxu0 0
      %2873 = vmatprep.subr.bf16.mxu0 0
      %2874 = vmatpush1.bf16.msra.mxu0 0
      %2875 = vmatprep.subr.bf16.mxu0 0
      %2876 = vmatpush1.bf16.msra.mxu0 0
      %2877 = vmatprep.subr.bf16.mxu0 0
      %2878 = vmatpush1.bf16.msra.mxu0 0
      %2879 = vmatprep.subr.bf16.mxu0 0
      %2880 = vmatpush1.bf16.msra.mxu0 0
      %2881 = vmatprep.subr.bf16.mxu0 0
      %2882 = vmatpush1.bf16.msra.mxu0 0
      %2883 = vmatprep.subr.bf16.mxu0 0
      %2884 = vmatpush1.bf16.msra.mxu0 0
      %2885 = vmatprep.subr.bf16.mxu0 0
      %2886 = vmatpush1.bf16.msra.mxu0 0
      %2887 = vmatprep.subr.bf16.mxu0 0
      %2888 = vmatpush1.bf16.msra.mxu0 0
      %2889 = vmatprep.subr.bf16.mxu0 0
      %2890 = vmatpush1.bf16.msra.mxu0 0
      %2891 = vmatprep.subr.bf16.mxu0 0
      %2892 = vmatpush1.bf16.msra.mxu0 0
      %2893 = vmatprep.subr.bf16.mxu0 0
      %2894 = vmatpush1.bf16.msra.mxu0 0
      %2895 = vmatprep.mubr.bf16.mxu0 0
      %2896 = vmatmul.mubr.bf16.gmra.mrb[0].mxu0 %v2858
      %v2897 = vpop.f32.mrb[0].mxu0
      %v2898 = vadd.f32 0.0, %v2897
      %v2899 = vpop.f32.mrb[0].mxu0
      %v2900 = vpop.f32.mrb[0].mxu0
      %v2901 = vadd.f32 0.0, %v2900
      %v2902 = vpop.f32.mrb[0].mxu0
      %2903 = vmatprep.mubr.bf16.mxu0 0
      %2904 = vmatmul.mubr.bf16.gmra.mrb[0].mxu0 %v2861
      %v2905 = vpop.f32.mrb[0].mxu0
      %v2906 = vadd.f32 0.0, %v2905
      %v2907 = vpop.f32.mrb[0].mxu0
      %v2908 = vpop.f32.mrb[0].mxu0
      %v2909 = vadd.f32 0.0, %v2908
      %v2910 = vpop.f32.mrb[0].mxu0
      %2911 = vdwg.mxu0
      %v2912 = vadd.f32 %v2756, %v2898
      %v2913 = vadd.f32 %v2757, %v2901
      %v2914 = vadd.f32 %v2758, %v2906
      %v2915 = vadd.f32 %v2759, %v2909
      %s2916 = scalar_lea.vmem %s4, 128
      %v2917 = vld [vmem:[%s2916] sm:$0xff]
      %v2918 = vld [vmem:[%s2916 + $0x8] sm:$0xff]
      %v2919 = vld [vmem:[%s2916 + $0x10] sm:$0xff]
      %v2920 = vld [vmem:[%s2916 + $0x18] sm:$0x11]
      %v2925 = vunpack.c.l.b16 %v2917
      %v2926 = vunpack.c.h.b16 %v2917
      %v2927 = vunpack.c.l.b16 %v2918
      %v2928 = vunpack.c.h.b16 %v2918
      %v2929 = vunpack.c.l.b16 %v2919
      %v2930 = vunpack.c.h.b16 %v2919
      %v2931 = vunpack.c.l.b16 %v2920
      %v2932 = vunpack.c.h.b16 %v2920
      %v2933 = vpack.c.b16 %v2927, %v2925
      %v2934 = vpack.c.b16 %v2928, %v2926
      %v2935 = vpack.c.b16 %v2931, %v2929
      %v2936 = vpack.c.b16 %v2932, %v2930
      %v2940 = vsel %vm2322, %v2934, 0
      %v2943 = vsel %vm2322, %v2936, 0
      %2945 = vmatprep.subr.bf16.mxu0 0
      %2946 = vmatpush1.bf16.msra.mxu0 %v2291
      %2947 = vmatprep.subr.bf16.mxu0 0
      %2948 = vmatpush1.bf16.msra.mxu0 %v2292
      %2949 = vmatprep.subr.bf16.mxu0 0
      %2950 = vmatpush1.bf16.msra.mxu0 %v2293
      %2951 = vmatprep.subr.bf16.mxu0 0
      %2952 = vmatpush1.bf16.msra.mxu0 %v2294
      %2953 = vmatprep.subr.bf16.mxu0 0
      %2954 = vmatpush1.bf16.msra.mxu0 %v2295
      %2955 = vmatprep.subr.bf16.mxu0 0
      %2956 = vmatpush1.bf16.msra.mxu0 %v2296
      %2957 = vmatprep.subr.bf16.mxu0 0
      %2958 = vmatpush1.bf16.msra.mxu0 %v2297
      %2959 = vmatprep.subr.bf16.mxu0 0
      %2960 = vmatpush1.bf16.msra.mxu0 %v2298
      %2961 = vmatprep.subr.bf16.mxu0 0
      %2962 = vmatpush1.bf16.msra.mxu0 %v2299
      %2963 = vmatprep.subr.bf16.mxu0 0
      %2964 = vmatpush1.bf16.msra.mxu0 0
      %2965 = vmatprep.subr.bf16.mxu0 0
      %2966 = vmatpush1.bf16.msra.mxu0 0
      %2967 = vmatprep.subr.bf16.mxu0 0
      %2968 = vmatpush1.bf16.msra.mxu0 0
      %2969 = vmatprep.subr.bf16.mxu0 0
      %2970 = vmatpush1.bf16.msra.mxu0 0
      %2971 = vmatprep.subr.bf16.mxu0 0
      %2972 = vmatpush1.bf16.msra.mxu0 0
      %2973 = vmatprep.subr.bf16.mxu0 0
      %2974 = vmatpush1.bf16.msra.mxu0 0
      %2975 = vmatprep.subr.bf16.mxu0 0
      %2976 = vmatpush1.bf16.msra.mxu0 0
      %2977 = vmatprep.mubr.bf16.mxu0 %v2940
      %2978 = vmatmul.mubr.bf16.gmra.mrb[0].mxu0 %v2933
      %v2979 = vpop.f32.mrb[0].mxu0
      %v2980 = vadd.f32 0.0, %v2979
      %v2981 = vpop.f32.mrb[0].mxu0
      %v2982 = vpop.f32.mrb[0].mxu0
      %v2983 = vadd.f32 0.0, %v2982
      %v2984 = vpop.f32.mrb[0].mxu0
      %2985 = vmatprep.mubr.bf16.mxu0 %v2943
      %2986 = vmatmul.mubr.bf16.gmra.mrb[0].mxu0 %v2935
      %v2987 = vpop.f32.mrb[0].mxu0
      %v2988 = vadd.f32 0.0, %v2987
      %v2989 = vpop.f32.mrb[0].mxu0
      %v2990 = vpop.f32.mrb[0].mxu0
      %v2991 = vadd.f32 0.0, %v2990
      %v2992 = vpop.f32.mrb[0].mxu0
      %2993 = vdwg.mxu0
      %v2994 = vpack.c.bf16 %v2983, %v2980
      %v2995 = vpack.c.bf16 %v2991, %v2988
      %s2996 = scalar_lea.vmem %s5, 64
      %v2997 = vld [vmem:[%s2996] sm:$0xf]
      %v2998 = vld [vmem:[%s2996 + $0x4] sm:$0xf]
      %v2999 = vld [vmem:[%s2996 + $0x8] sm:$0xf]
      %v3000 = vld [vmem:[%s2996 + $0xc] sm:$0xf]
      %v3005 = vunpack.c.l.b16 %v2997
      %v3006 = vunpack.c.l.b16 %v2998
      %v3007 = vunpack.c.l.b16 %v2999
      %v3008 = vunpack.c.l.b16 %v3000
      %v3009 = vpack.c.b16 %v3006, %v3005
      %v3010 = vpack.c.b16 %v3008, %v3007
      %v3014 = vsel %vm2481, %v2994, 0
      %v3017 = vsel %vm2481, %v2995, 0
      %3019 = vmatprep.subr.bf16.mxu0 0
      %3020 = vmatpush1.bf16.msra.mxu0 %v3009
      %3021 = vmatprep.subr.bf16.mxu0 0
      %3022 = vmatpush1.bf16.msra.mxu0 %v3010
      %3023 = vmatprep.subr.bf16.mxu0 0
      %3024 = vmatpush1.bf16.msra.mxu0 0
      %3025 = vmatprep.subr.bf16.mxu0 0
      %3026 = vmatpush1.bf16.msra.mxu0 0
      %3027 = vmatprep.subr.bf16.mxu0 0
      %3028 = vmatpush1.bf16.msra.mxu0 0
      %3029 = vmatprep.subr.bf16.mxu0 0
      %3030 = vmatpush1.bf16.msra.mxu0 0
      %3031 = vmatprep.subr.bf16.mxu0 0
      %3032 = vmatpush1.bf16.msra.mxu0 0
      %3033 = vmatprep.subr.bf16.mxu0 0
      %3034 = vmatpush1.bf16.msra.mxu0 0
      %3035 = vmatprep.subr.bf16.mxu0 0
      %3036 = vmatpush1.bf16.msra.mxu0 0
      %3037 = vmatprep.subr.bf16.mxu0 0
      %3038 = vmatpush1.bf16.msra.mxu0 0
      %3039 = vmatprep.subr.bf16.mxu0 0
      %3040 = vmatpush1.bf16.msra.mxu0 0
      %3041 = vmatprep.subr.bf16.mxu0 0
      %3042 = vmatpush1.bf16.msra.mxu0 0
      %3043 = vmatprep.subr.bf16.mxu0 0
      %3044 = vmatpush1.bf16.msra.mxu0 0
      %3045 = vmatprep.subr.bf16.mxu0 0
      %3046 = vmatpush1.bf16.msra.mxu0 0
      %3047 = vmatprep.subr.bf16.mxu0 0
      %3048 = vmatpush1.bf16.msra.mxu0 0
      %3049 = vmatprep.subr.bf16.mxu0 0
      %3050 = vmatpush1.bf16.msra.mxu0 0
      %3051 = vmatprep.mubr.bf16.mxu0 0
      %3052 = vmatmul.mubr.bf16.gmra.mrb[0].mxu0 %v3014
      %v3053 = vpop.f32.mrb[0].mxu0
      %v3054 = vadd.f32 0.0, %v3053
      %v3055 = vpop.f32.mrb[0].mxu0
      %v3056 = vpop.f32.mrb[0].mxu0
      %v3057 = vadd.f32 0.0, %v3056
      %v3058 = vpop.f32.mrb[0].mxu0
      %3059 = vmatprep.mubr.bf16.mxu0 0
      %3060 = vmatmul.mubr.bf16.gmra.mrb[0].mxu0 %v3017
      %v3061 = vpop.f32.mrb[0].mxu0
      %v3062 = vadd.f32 0.0, %v3061
      %v3063 = vpop.f32.mrb[0].mxu0
      %v3064 = vpop.f32.mrb[0].mxu0
      %v3065 = vadd.f32 0.0, %v3064
      %v3066 = vpop.f32.mrb[0].mxu0
      %3067 = vdwg.mxu0
      %v3068 = vadd.f32 %v2912, %v3054
      %v3069 = vadd.f32 %v2913, %v3057
      %v3070 = vadd.f32 %v2914, %v3062
      %v3071 = vadd.f32 %v2915, %v3065
      %s3072 = scalar_lea.vmem %s4, 160
      %v3073 = vld [vmem:[%s3072] sm:$0xff]
      %v3074 = vld [vmem:[%s3072 + $0x8] sm:$0xff]
      %v3075 = vld [vmem:[%s3072 + $0x10] sm:$0xff]
      %v3076 = vld [vmem:[%s3072 + $0x18] sm:$0x11]
      %v3081 = vunpack.c.l.b16 %v3073
      %v3082 = vunpack.c.h.b16 %v3073
      %v3083 = vunpack.c.l.b16 %v3074
      %v3084 = vunpack.c.h.b16 %v3074
      %v3085 = vunpack.c.l.b16 %v3075
      %v3086 = vunpack.c.h.b16 %v3075
      %v3087 = vunpack.c.l.b16 %v3076
      %v3088 = vunpack.c.h.b16 %v3076
      %v3089 = vpack.c.b16 %v3083, %v3081
      %v3090 = vpack.c.b16 %v3084, %v3082
      %v3091 = vpack.c.b16 %v3087, %v3085
      %v3092 = vpack.c.b16 %v3088, %v3086
      %v3096 = vsel %vm2322, %v3090, 0
      %v3099 = vsel %vm2322, %v3092, 0
      %3101 = vmatprep.subr.bf16.mxu0 0
      %3102 = vmatpush1.bf16.msra.mxu0 %v2291
      %3103 = vmatprep.subr.bf16.mxu0 0
      %3104 = vmatpush1.bf16.msra.mxu0 %v2292
      %3105 = vmatprep.subr.bf16.mxu0 0
      %3106 = vmatpush1.bf16.msra.mxu0 %v2293
      %3107 = vmatprep.subr.bf16.mxu0 0
      %3108 = vmatpush1.bf16.msra.mxu0 %v2294
      %3109 = vmatprep.subr.bf16.mxu0 0
      %3110 = vmatpush1.bf16.msra.mxu0 %v2295
      %3111 = vmatprep.subr.bf16.mxu0 0
      %3112 = vmatpush1.bf16.msra.mxu0 %v2296
      %3113 = vmatprep.subr.bf16.mxu0 0
      %3114 = vmatpush1.bf16.msra.mxu0 %v2297
      %3115 = vmatprep.subr.bf16.mxu0 0
      %3116 = vmatpush1.bf16.msra.mxu0 %v2298
      %3117 = vmatprep.subr.bf16.mxu0 0
      %3118 = vmatpush1.bf16.msra.mxu0 %v2299
      %3119 = vmatprep.subr.bf16.mxu0 0
      %3120 = vmatpush1.bf16.msra.mxu0 0
      %3121 = vmatprep.subr.bf16.mxu0 0
      %3122 = vmatpush1.bf16.msra.mxu0 0
      %3123 = vmatprep.subr.bf16.mxu0 0
      %3124 = vmatpush1.bf16.msra.mxu0 0
      %3125 = vmatprep.subr.bf16.mxu0 0
      %3126 = vmatpush1.bf16.msra.mxu0 0
      %3127 = vmatprep.subr.bf16.mxu0 0
      %3128 = vmatpush1.bf16.msra.mxu0 0
      %3129 = vmatprep.subr.bf16.mxu0 0
      %3130 = vmatpush1.bf16.msra.mxu0 0
      %3131 = vmatprep.subr.bf16.mxu0 0
      %3132 = vmatpush1.bf16.msra.mxu0 0
      %3133 = vmatprep.mubr.bf16.mxu0 %v3096
      %3134 = vmatmul.mubr.bf16.gmra.mrb[0].mxu0 %v3089
      %v3135 = vpop.f32.mrb[0].mxu0
      %v3136 = vadd.f32 0.0, %v3135
      %v3137 = vpop.f32.mrb[0].mxu0
      %v3138 = vpop.f32.mrb[0].mxu0
      %v3139 = vadd.f32 0.0, %v3138
      %v3140 = vpop.f32.mrb[0].mxu0
      %3141 = vmatprep.mubr.bf16.mxu0 %v3099
      %3142 = vmatmul.mubr.bf16.gmra.mrb[0].mxu0 %v3091
      %v3143 = vpop.f32.mrb[0].mxu0
      %v3144 = vadd.f32 0.0, %v3143
      %v3145 = vpop.f32.mrb[0].mxu0
      %v3146 = vpop.f32.mrb[0].mxu0
      %v3147 = vadd.f32 0.0, %v3146
      %v3148 = vpop.f32.mrb[0].mxu0
      %3149 = vdwg.mxu0
      %v3150 = vpack.c.bf16 %v3139, %v3136
      %v3151 = vpack.c.bf16 %v3147, %v3144
      %s3152 = scalar_lea.vmem %s5, 80
      %v3153 = vld [vmem:[%s3152] sm:$0xf]
      %v3154 = vld [vmem:[%s3152 + $0x4] sm:$0xf]
      %v3155 = vld [vmem:[%s3152 + $0x8] sm:$0xf]
      %v3156 = vld [vmem:[%s3152 + $0xc] sm:$0xf]
      %v3161 = vunpack.c.l.b16 %v3153
      %v3162 = vunpack.c.l.b16 %v3154
      %v3163 = vunpack.c.l.b16 %v3155
      %v3164 = vunpack.c.l.b16 %v3156
      %v3165 = vpack.c.b16 %v3162, %v3161
      %v3166 = vpack.c.b16 %v3164, %v3163
      %v3170 = vsel %vm2481, %v3150, 0
      %v3173 = vsel %vm2481, %v3151, 0
      %3175 = vmatprep.subr.bf16.mxu0 0
      %3176 = vmatpush1.bf16.msra.mxu0 %v3165
      %3177 = vmatprep.subr.bf16.mxu0 0
      %3178 = vmatpush1.bf16.msra.mxu0 %v3166
      %3179 = vmatprep.subr.bf16.mxu0 0
      %3180 = vmatpush1.bf16.msra.mxu0 0
      %3181 = vmatprep.subr.bf16.mxu0 0
      %3182 = vmatpush1.bf16.msra.mxu0 0
      %3183 = vmatprep.subr.bf16.mxu0 0
      %3184 = vmatpush1.bf16.msra.mxu0 0
      %3185 = vmatprep.subr.bf16.mxu0 0
      %3186 = vmatpush1.bf16.msra.mxu0 0
      %3187 = vmatprep.subr.bf16.mxu0 0
      %3188 = vmatpush1.bf16.msra.mxu0 0
      %3189 = vmatprep.subr.bf16.mxu0 0
      %3190 = vmatpush1.bf16.msra.mxu0 0
      %3191 = vmatprep.subr.bf16.mxu0 0
      %3192 = vmatpush1.bf16.msra.mxu0 0
      %3193 = vmatprep.subr.bf16.mxu0 0
      %3194 = vmatpush1.bf16.msra.mxu0 0
      %3195 = vmatprep.subr.bf16.mxu0 0
      %3196 = vmatpush1.bf16.msra.mxu0 0
      %3197 = vmatprep.subr.bf16.mxu0 0
      %3198 = vmatpush1.bf16.msra.mxu0 0
      %3199 = vmatprep.subr.bf16.mxu0 0
      %3200 = vmatpush1.bf16.msra.mxu0 0
      %3201 = vmatprep.subr.bf16.mxu0 0
      %3202 = vmatpush1.bf16.msra.mxu0 0
      %3203 = vmatprep.subr.bf16.mxu0 0
      %3204 = vmatpush1.bf16.msra.mxu0 0
      %3205 = vmatprep.subr.bf16.mxu0 0
      %3206 = vmatpush1.bf16.msra.mxu0 0
      %3207 = vmatprep.mubr.bf16.mxu0 0
      %3208 = vmatmul.mubr.bf16.gmra.mrb[0].mxu0 %v3170
      %v3209 = vpop.f32.mrb[0].mxu0
      %v3210 = vadd.f32 0.0, %v3209
      %v3211 = vpop.f32.mrb[0].mxu0
      %v3212 = vpop.f32.mrb[0].mxu0
      %v3213 = vadd.f32 0.0, %v3212
      %v3214 = vpop.f32.mrb[0].mxu0
      %3215 = vmatprep.mubr.bf16.mxu0 0
      %3216 = vmatmul.mubr.bf16.gmra.mrb[0].mxu0 %v3173
      %v3217 = vpop.f32.mrb[0].mxu0
      %v3218 = vadd.f32 0.0, %v3217
      %v3219 = vpop.f32.mrb[0].mxu0
      %v3220 = vpop.f32.mrb[0].mxu0
      %v3221 = vadd.f32 0.0, %v3220
      %v3222 = vpop.f32.mrb[0].mxu0
      %3223 = vdwg.mxu0
      %v3224 = vadd.f32 %v3068, %v3210
      %v3225 = vadd.f32 %v3069, %v3213
      %v3226 = vadd.f32 %v3070, %v3218
      %v3227 = vadd.f32 %v3071, %v3221
      %s3228 = scalar_lea.vmem %s4, 192
      %v3229 = vld [vmem:[%s3228] sm:$0xff]
      %v3230 = vld [vmem:[%s3228 + $0x8] sm:$0xff]
      %v3231 = vld [vmem:[%s3228 + $0x10] sm:$0xff]
      %v3232 = vld [vmem:[%s3228 + $0x18] sm:$0x11]
      %v3237 = vunpack.c.l.b16 %v3229
      %v3238 = vunpack.c.h.b16 %v3229
      %v3239 = vunpack.c.l.b16 %v3230
      %v3240 = vunpack.c.h.b16 %v3230
      %v3241 = vunpack.c.l.b16 %v3231
      %v3242 = vunpack.c.h.b16 %v3231
      %v3243 = vunpack.c.l.b16 %v3232
      %v3244 = vunpack.c.h.b16 %v3232
      %v3245 = vpack.c.b16 %v3239, %v3237
      %v3246 = vpack.c.b16 %v3240, %v3238
      %v3247 = vpack.c.b16 %v3243, %v3241
      %v3248 = vpack.c.b16 %v3244, %v3242
      %v3252 = vsel %vm2322, %v3246, 0
      %v3255 = vsel %vm2322, %v3248, 0
      %3257 = vmatprep.subr.bf16.mxu0 0
      %3258 = vmatpush1.bf16.msra.mxu0 %v2291
      %3259 = vmatprep.subr.bf16.mxu0 0
      %3260 = vmatpush1.bf16.msra.mxu0 %v2292
      %3261 = vmatprep.subr.bf16.mxu0 0
      %3262 = vmatpush1.bf16.msra.mxu0 %v2293
      %3263 = vmatprep.subr.bf16.mxu0 0
      %3264 = vmatpush1.bf16.msra.mxu0 %v2294
      %3265 = vmatprep.subr.bf16.mxu0 0
      %3266 = vmatpush1.bf16.msra.mxu0 %v2295
      %3267 = vmatprep.subr.bf16.mxu0 0
      %3268 = vmatpush1.bf16.msra.mxu0 %v2296
      %3269 = vmatprep.subr.bf16.mxu0 0
      %3270 = vmatpush1.bf16.msra.mxu0 %v2297
      %3271 = vmatprep.subr.bf16.mxu0 0
      %3272 = vmatpush1.bf16.msra.mxu0 %v2298
      %3273 = vmatprep.subr.bf16.mxu0 0
      %3274 = vmatpush1.bf16.msra.mxu0 %v2299
      %3275 = vmatprep.subr.bf16.mxu0 0
      %3276 = vmatpush1.bf16.msra.mxu0 0
      %3277 = vmatprep.subr.bf16.mxu0 0
      %3278 = vmatpush1.bf16.msra.mxu0 0
      %3279 = vmatprep.subr.bf16.mxu0 0
      %3280 = vmatpush1.bf16.msra.mxu0 0
      %3281 = vmatprep.subr.bf16.mxu0 0
      %3282 = vmatpush1.bf16.msra.mxu0 0
      %3283 = vmatprep.subr.bf16.mxu0 0
      %3284 = vmatpush1.bf16.msra.mxu0 0
      %3285 = vmatprep.subr.bf16.mxu0 0
      %3286 = vmatpush1.bf16.msra.mxu0 0
      %3287 = vmatprep.subr.bf16.mxu0 0
      %3288 = vmatpush1.bf16.msra.mxu0 0
      %3289 = vmatprep.mubr.bf16.mxu0 %v3252
      %3290 = vmatmul.mubr.bf16.gmra.mrb[0].mxu0 %v3245
      %v3291 = vpop.f32.mrb[0].mxu0
      %v3292 = vadd.f32 0.0, %v3291
      %v3293 = vpop.f32.mrb[0].mxu0
      %v3294 = vpop.f32.mrb[0].mxu0
      %v3295 = vadd.f32 0.0, %v3294
      %v3296 = vpop.f32.mrb[0].mxu0
      %3297 = vmatprep.mubr.bf16.mxu0 %v3255
      %3298 = vmatmul.mubr.bf16.gmra.mrb[0].mxu0 %v3247
      %v3299 = vpop.f32.mrb[0].mxu0
      %v3300 = vadd.f32 0.0, %v3299
      %v3301 = vpop.f32.mrb[0].mxu0
      %v3302 = vpop.f32.mrb[0].mxu0
      %v3303 = vadd.f32 0.0, %v3302
      %v3304 = vpop.f32.mrb[0].mxu0
      %3305 = vdwg.mxu0
      %v3306 = vpack.c.bf16 %v3295, %v3292
      %v3307 = vpack.c.bf16 %v3303, %v3300
      %s3308 = scalar_lea.vmem %s5, 96
      %v3309 = vld [vmem:[%s3308] sm:$0xf]
      %v3310 = vld [vmem:[%s3308 + $0x4] sm:$0xf]
      %v3311 = vld [vmem:[%s3308 + $0x8] sm:$0xf]
      %v3312 = vld [vmem:[%s3308 + $0xc] sm:$0xf]
      %v3317 = vunpack.c.l.b16 %v3309
      %v3318 = vunpack.c.l.b16 %v3310
      %v3319 = vunpack.c.l.b16 %v3311
      %v3320 = vunpack.c.l.b16 %v3312
      %v3321 = vpack.c.b16 %v3318, %v3317
      %v3322 = vpack.c.b16 %v3320, %v3319
      %v3326 = vsel %vm2481, %v3306, 0
      %v3329 = vsel %vm2481, %v3307, 0
      %3331 = vmatprep.subr.bf16.mxu0 0
      %3332 = vmatpush1.bf16.msra.mxu0 %v3321
      %3333 = vmatprep.subr.bf16.mxu0 0
      %3334 = vmatpush1.bf16.msra.mxu0 %v3322
      %3335 = vmatprep.subr.bf16.mxu0 0
      %3336 = vmatpush1.bf16.msra.mxu0 0
      %3337 = vmatprep.subr.bf16.mxu0 0
      %3338 = vmatpush1.bf16.msra.mxu0 0
      %3339 = vmatprep.subr.bf16.mxu0 0
      %3340 = vmatpush1.bf16.msra.mxu0 0
      %3341 = vmatprep.subr.bf16.mxu0 0
      %3342 = vmatpush1.bf16.msra.mxu0 0
      %3343 = vmatprep.subr.bf16.mxu0 0
      %3344 = vmatpush1.bf16.msra.mxu0 0
      %3345 = vmatprep.subr.bf16.mxu0 0
      %3346 = vmatpush1.bf16.msra.mxu0 0
      %3347 = vmatprep.subr.bf16.mxu0 0
      %3348 = vmatpush1.bf16.msra.mxu0 0
      %3349 = vmatprep.subr.bf16.mxu0 0
      %3350 = vmatpush1.bf16.msra.mxu0 0
      %3351 = vmatprep.subr.bf16.mxu0 0
      %3352 = vmatpush1.bf16.msra.mxu0 0
      %3353 = vmatprep.subr.bf16.mxu0 0
      %3354 = vmatpush1.bf16.msra.mxu0 0
      %3355 = vmatprep.subr.bf16.mxu0 0
      %3356 = vmatpush1.bf16.msra.mxu0 0
      %3357 = vmatprep.subr.bf16.mxu0 0
      %3358 = vmatpush1.bf16.msra.mxu0 0
      %3359 = vmatprep.subr.bf16.mxu0 0
      %3360 = vmatpush1.bf16.msra.mxu0 0
      %3361 = vmatprep.subr.bf16.mxu0 0
      %3362 = vmatpush1.bf16.msra.mxu0 0
      %3363 = vmatprep.mubr.bf16.mxu0 0
      %3364 = vmatmul.mubr.bf16.gmra.mrb[0].mxu0 %v3326
      %v3365 = vpop.f32.mrb[0].mxu0
      %v3366 = vadd.f32 0.0, %v3365
      %v3367 = vpop.f32.mrb[0].mxu0
      %v3368 = vpop.f32.mrb[0].mxu0
      %v3369 = vadd.f32 0.0, %v3368
      %v3370 = vpop.f32.mrb[0].mxu0
      %3371 = vmatprep.mubr.bf16.mxu0 0
      %3372 = vmatmul.mubr.bf16.gmra.mrb[0].mxu0 %v3329
      %v3373 = vpop.f32.mrb[0].mxu0
      %v3374 = vadd.f32 0.0, %v3373
      %v3375 = vpop.f32.mrb[0].mxu0
      %v3376 = vpop.f32.mrb[0].mxu0
      %v3377 = vadd.f32 0.0, %v3376
      %v3378 = vpop.f32.mrb[0].mxu0
      %3379 = vdwg.mxu0
      %v3380 = vadd.f32 %v3224, %v3366
      %v3381 = vadd.f32 %v3225, %v3369
      %v3382 = vadd.f32 %v3226, %v3374
      %v3383 = vadd.f32 %v3227, %v3377
      %s3384 = scalar_lea.vmem %s4, 224
      %v3385 = vld [vmem:[%s3384] sm:$0xff]
      %v3386 = vld [vmem:[%s3384 + $0x8] sm:$0xff]
      %v3387 = vld [vmem:[%s3384 + $0x10] sm:$0xff]
      %v3388 = vld [vmem:[%s3384 + $0x18] sm:$0x11]
      %v3393 = vunpack.c.l.b16 %v3385
      %v3394 = vunpack.c.h.b16 %v3385
      %v3395 = vunpack.c.l.b16 %v3386
      %v3396 = vunpack.c.h.b16 %v3386
      %v3397 = vunpack.c.l.b16 %v3387
      %v3398 = vunpack.c.h.b16 %v3387
      %v3399 = vunpack.c.l.b16 %v3388
      %v3400 = vunpack.c.h.b16 %v3388
      %v3401 = vpack.c.b16 %v3395, %v3393
      %v3402 = vpack.c.b16 %v3396, %v3394
      %v3403 = vpack.c.b16 %v3399, %v3397
      %v3404 = vpack.c.b16 %v3400, %v3398
      %v3408 = vsel %vm2322, %v3402, 0
      %v3411 = vsel %vm2322, %v3404, 0
      %3413 = vmatprep.subr.bf16.mxu0 0
      %3414 = vmatpush1.bf16.msra.mxu0 %v2291
      %3415 = vmatprep.subr.bf16.mxu0 0
      %3416 = vmatpush1.bf16.msra.mxu0 %v2292
      %3417 = vmatprep.subr.bf16.mxu0 0
      %3418 = vmatpush1.bf16.msra.mxu0 %v2293
      %3419 = vmatprep.subr.bf16.mxu0 0
      %3420 = vmatpush1.bf16.msra.mxu0 %v2294
      %3421 = vmatprep.subr.bf16.mxu0 0
      %3422 = vmatpush1.bf16.msra.mxu0 %v2295
      %3423 = vmatprep.subr.bf16.mxu0 0
      %3424 = vmatpush1.bf16.msra.mxu0 %v2296
      %3425 = vmatprep.subr.bf16.mxu0 0
      %3426 = vmatpush1.bf16.msra.mxu0 %v2297
      %3427 = vmatprep.subr.bf16.mxu0 0
      %3428 = vmatpush1.bf16.msra.mxu0 %v2298
      %3429 = vmatprep.subr.bf16.mxu0 0
      %3430 = vmatpush1.bf16.msra.mxu0 %v2299
      %3431 = vmatprep.subr.bf16.mxu0 0
      %3432 = vmatpush1.bf16.msra.mxu0 0
      %3433 = vmatprep.subr.bf16.mxu0 0
      %3434 = vmatpush1.bf16.msra.mxu0 0
      %3435 = vmatprep.subr.bf16.mxu0 0
      %3436 = vmatpush1.bf16.msra.mxu0 0
      %3437 = vmatprep.subr.bf16.mxu0 0
      %3438 = vmatpush1.bf16.msra.mxu0 0
      %3439 = vmatprep.subr.bf16.mxu0 0
      %3440 = vmatpush1.bf16.msra.mxu0 0
      %3441 = vmatprep.subr.bf16.mxu0 0
      %3442 = vmatpush1.bf16.msra.mxu0 0
      %3443 = vmatprep.subr.bf16.mxu0 0
      %3444 = vmatpush1.bf16.msra.mxu0 0
      %3445 = vmatprep.mubr.bf16.mxu0 %v3408
      %3446 = vmatmul.mubr.bf16.gmra.mrb[0].mxu0 %v3401
      %v3447 = vpop.f32.mrb[0].mxu0
      %v3448 = vadd.f32 0.0, %v3447
      %v3449 = vpop.f32.mrb[0].mxu0
      %v3450 = vpop.f32.mrb[0].mxu0
      %v3451 = vadd.f32 0.0, %v3450
      %v3452 = vpop.f32.mrb[0].mxu0
      %3453 = vmatprep.mubr.bf16.mxu0 %v3411
      %3454 = vmatmul.mubr.bf16.gmra.mrb[0].mxu0 %v3403
      %v3455 = vpop.f32.mrb[0].mxu0
      %v3456 = vadd.f32 0.0, %v3455
      %v3457 = vpop.f32.mrb[0].mxu0
      %v3458 = vpop.f32.mrb[0].mxu0
      %v3459 = vadd.f32 0.0, %v3458
      %v3460 = vpop.f32.mrb[0].mxu0
      %3461 = vdwg.mxu0
      %v3462 = vpack.c.bf16 %v3451, %v3448
      %v3463 = vpack.c.bf16 %v3459, %v3456
      %s3464 = scalar_lea.vmem %s5, 112
      %v3465 = vld [vmem:[%s3464] sm:$0xf]
      %v3466 = vld [vmem:[%s3464 + $0x4] sm:$0xf]
      %v3467 = vld [vmem:[%s3464 + $0x8] sm:$0xf]
      %v3468 = vld [vmem:[%s3464 + $0xc] sm:$0xf]
      %v3473 = vunpack.c.l.b16 %v3465
      %v3474 = vunpack.c.l.b16 %v3466
      %v3475 = vunpack.c.l.b16 %v3467
      %v3476 = vunpack.c.l.b16 %v3468
      %v3477 = vpack.c.b16 %v3474, %v3473
      %v3478 = vpack.c.b16 %v3476, %v3475
      %v3482 = vsel %vm2481, %v3462, 0
      %v3485 = vsel %vm2481, %v3463, 0
      %3487 = vmatprep.subr.bf16.mxu0 0
      %3488 = vmatpush1.bf16.msra.mxu0 %v3477
      %3489 = vmatprep.subr.bf16.mxu0 0
      %3490 = vmatpush1.bf16.msra.mxu0 %v3478
      %3491 = vmatprep.subr.bf16.mxu0 0
      %3492 = vmatpush1.bf16.msra.mxu0 0
      %3493 = vmatprep.subr.bf16.mxu0 0
      %3494 = vmatpush1.bf16.msra.mxu0 0
      %3495 = vmatprep.subr.bf16.mxu0 0
      %3496 = vmatpush1.bf16.msra.mxu0 0
      %3497 = vmatprep.subr.bf16.mxu0 0
      %3498 = vmatpush1.bf16.msra.mxu0 0
      %3499 = vmatprep.subr.bf16.mxu0 0
      %3500 = vmatpush1.bf16.msra.mxu0 0
      %3501 = vmatprep.subr.bf16.mxu0 0
      %3502 = vmatpush1.bf16.msra.mxu0 0
      %3503 = vmatprep.subr.bf16.mxu0 0
      %3504 = vmatpush1.bf16.msra.mxu0 0
      %3505 = vmatprep.subr.bf16.mxu0 0
      %3506 = vmatpush1.bf16.msra.mxu0 0
      %3507 = vmatprep.subr.bf16.mxu0 0
      %3508 = vmatpush1.bf16.msra.mxu0 0
      %3509 = vmatprep.subr.bf16.mxu0 0
      %3510 = vmatpush1.bf16.msra.mxu0 0
      %3511 = vmatprep.subr.bf16.mxu0 0
      %3512 = vmatpush1.bf16.msra.mxu0 0
      %3513 = vmatprep.subr.bf16.mxu0 0
      %3514 = vmatpush1.bf16.msra.mxu0 0
      %3515 = vmatprep.subr.bf16.mxu0 0
      %3516 = vmatpush1.bf16.msra.mxu0 0
      %3517 = vmatprep.subr.bf16.mxu0 0
      %3518 = vmatpush1.bf16.msra.mxu0 0
      %3519 = vmatprep.mubr.bf16.mxu0 0
      %3520 = vmatmul.mubr.bf16.gmra.mrb[0].mxu0 %v3482
      %v3521 = vpop.f32.mrb[0].mxu0
      %v3522 = vadd.f32 0.0, %v3521
      %v3523 = vpop.f32.mrb[0].mxu0
      %v3524 = vpop.f32.mrb[0].mxu0
      %v3525 = vadd.f32 0.0, %v3524
      %v3526 = vpop.f32.mrb[0].mxu0
      %3527 = vmatprep.mubr.bf16.mxu0 0
      %3528 = vmatmul.mubr.bf16.gmra.mrb[0].mxu0 %v3485
      %v3529 = vpop.f32.mrb[0].mxu0
      %v3530 = vadd.f32 0.0, %v3529
      %v3531 = vpop.f32.mrb[0].mxu0
      %v3532 = vpop.f32.mrb[0].mxu0
      %v3533 = vadd.f32 0.0, %v3532
      %v3534 = vpop.f32.mrb[0].mxu0
      %3535 = vdwg.mxu0
      %v3536 = vadd.f32 %v3380, %v3522
      %v3537 = vadd.f32 %v3381, %v3525
      %v3538 = vadd.f32 %v3382, %v3530
      %v3539 = vadd.f32 %v3383, %v3533
      %s3540 = scalar_lea.vmem %s4, 256
      %v3541 = vld [vmem:[%s3540] sm:$0xff]
      %v3542 = vld [vmem:[%s3540 + $0x8] sm:$0xff]
      %v3543 = vld [vmem:[%s3540 + $0x10] sm:$0xff]
      %v3544 = vld [vmem:[%s3540 + $0x18] sm:$0x11]
      %v3549 = vunpack.c.l.b16 %v3541
      %v3550 = vunpack.c.h.b16 %v3541
      %v3551 = vunpack.c.l.b16 %v3542
      %v3552 = vunpack.c.h.b16 %v3542
      %v3553 = vunpack.c.l.b16 %v3543
      %v3554 = vunpack.c.h.b16 %v3543
      %v3555 = vunpack.c.l.b16 %v3544
      %v3556 = vunpack.c.h.b16 %v3544
      %v3557 = vpack.c.b16 %v3551, %v3549
      %v3558 = vpack.c.b16 %v3552, %v3550
      %v3559 = vpack.c.b16 %v3555, %v3553
      %v3560 = vpack.c.b16 %v3556, %v3554
      %v3564 = vsel %vm2322, %v3558, 0
      %v3567 = vsel %vm2322, %v3560, 0
      %3569 = vmatprep.subr.bf16.mxu0 0
      %3570 = vmatpush1.bf16.msra.mxu0 %v2291
      %3571 = vmatprep.subr.bf16.mxu0 0
      %3572 = vmatpush1.bf16.msra.mxu0 %v2292
      %3573 = vmatprep.subr.bf16.mxu0 0
      %3574 = vmatpush1.bf16.msra.mxu0 %v2293
      %3575 = vmatprep.subr.bf16.mxu0 0
      %3576 = vmatpush1.bf16.msra.mxu0 %v2294
      %3577 = vmatprep.subr.bf16.mxu0 0
      %3578 = vmatpush1.bf16.msra.mxu0 %v2295
      %3579 = vmatprep.subr.bf16.mxu0 0
      %3580 = vmatpush1.bf16.msra.mxu0 %v2296
      %3581 = vmatprep.subr.bf16.mxu0 0
      %3582 = vmatpush1.bf16.msra.mxu0 %v2297
      %3583 = vmatprep.subr.bf16.mxu0 0
      %3584 = vmatpush1.bf16.msra.mxu0 %v2298
      %3585 = vmatprep.subr.bf16.mxu0 0
      %3586 = vmatpush1.bf16.msra.mxu0 %v2299
      %3587 = vmatprep.subr.bf16.mxu0 0
      %3588 = vmatpush1.bf16.msra.mxu0 0
      %3589 = vmatprep.subr.bf16.mxu0 0
      %3590 = vmatpush1.bf16.msra.mxu0 0
      %3591 = vmatprep.subr.bf16.mxu0 0
      %3592 = vmatpush1.bf16.msra.mxu0 0
      %3593 = vmatprep.subr.bf16.mxu0 0
      %3594 = vmatpush1.bf16.msra.mxu0 0
      %3595 = vmatprep.subr.bf16.mxu0 0
      %3596 = vmatpush1.bf16.msra.mxu0 0
      %3597 = vmatprep.subr.bf16.mxu0 0
      %3598 = vmatpush1.bf16.msra.mxu0 0
      %3599 = vmatprep.subr.bf16.mxu0 0
      %3600 = vmatpush1.bf16.msra.mxu0 0
      %3601 = vmatprep.mubr.bf16.mxu0 %v3564
      %3602 = vmatmul.mubr.bf16.gmra.mrb[0].mxu0 %v3557
      %v3603 = vpop.f32.mrb[0].mxu0
      %v3604 = vadd.f32 0.0, %v3603
      %v3605 = vpop.f32.mrb[0].mxu0
      %v3606 = vpop.f32.mrb[0].mxu0
      %v3607 = vadd.f32 0.0, %v3606
      %v3608 = vpop.f32.mrb[0].mxu0
      %3609 = vmatprep.mubr.bf16.mxu0 %v3567
      %3610 = vmatmul.mubr.bf16.gmra.mrb[0].mxu0 %v3559
      %v3611 = vpop.f32.mrb[0].mxu0
      %v3612 = vadd.f32 0.0, %v3611
      %v3613 = vpop.f32.mrb[0].mxu0
      %v3614 = vpop.f32.mrb[0].mxu0
      %v3615 = vadd.f32 0.0, %v3614
      %v3616 = vpop.f32.mrb[0].mxu0
      %3617 = vdwg.mxu0
      %v3618 = vpack.c.bf16 %v3607, %v3604
      %v3619 = vpack.c.bf16 %v3615, %v3612
      %s3620 = scalar_lea.vmem %s5, 128
      %v3621 = vld [vmem:[%s3620] sm:$0xf]
      %v3622 = vld [vmem:[%s3620 + $0x4] sm:$0xf]
      %v3623 = vld [vmem:[%s3620 + $0x8] sm:$0xf]
      %v3624 = vld [vmem:[%s3620 + $0xc] sm:$0xf]
      %v3629 = vunpack.c.l.b16 %v3621
      %v3630 = vunpack.c.l.b16 %v3622
      %v3631 = vunpack.c.l.b16 %v3623
      %v3632 = vunpack.c.l.b16 %v3624
      %v3633 = vpack.c.b16 %v3630, %v3629
      %v3634 = vpack.c.b16 %v3632, %v3631
      %v3638 = vsel %vm2481, %v3618, 0
      %v3641 = vsel %vm2481, %v3619, 0
      %3643 = vmatprep.subr.bf16.mxu0 0
      %3644 = vmatpush1.bf16.msra.mxu0 %v3633
      %3645 = vmatprep.subr.bf16.mxu0 0
      %3646 = vmatpush1.bf16.msra.mxu0 %v3634
      %3647 = vmatprep.subr.bf16.mxu0 0
      %3648 = vmatpush1.bf16.msra.mxu0 0
      %3649 = vmatprep.subr.bf16.mxu0 0
      %3650 = vmatpush1.bf16.msra.mxu0 0
      %3651 = vmatprep.subr.bf16.mxu0 0
      %3652 = vmatpush1.bf16.msra.mxu0 0
      %3653 = vmatprep.subr.bf16.mxu0 0
      %3654 = vmatpush1.bf16.msra.mxu0 0
      %3655 = vmatprep.subr.bf16.mxu0 0
      %3656 = vmatpush1.bf16.msra.mxu0 0
      %3657 = vmatprep.subr.bf16.mxu0 0
      %3658 = vmatpush1.bf16.msra.mxu0 0
      %3659 = vmatprep.subr.bf16.mxu0 0
      %3660 = vmatpush1.bf16.msra.mxu0 0
      %3661 = vmatprep.subr.bf16.mxu0 0
      %3662 = vmatpush1.bf16.msra.mxu0 0
      %3663 = vmatprep.subr.bf16.mxu0 0
      %3664 = vmatpush1.bf16.msra.mxu0 0
      %3665 = vmatprep.subr.bf16.mxu0 0
      %3666 = vmatpush1.bf16.msra.mxu0 0
      %3667 = vmatprep.subr.bf16.mxu0 0
      %3668 = vmatpush1.bf16.msra.mxu0 0
      %3669 = vmatprep.subr.bf16.mxu0 0
      %3670 = vmatpush1.bf16.msra.mxu0 0
      %3671 = vmatprep.subr.bf16.mxu0 0
      %3672 = vmatpush1.bf16.msra.mxu0 0
      %3673 = vmatprep.subr.bf16.mxu0 0
      %3674 = vmatpush1.bf16.msra.mxu0 0
      %3675 = vmatprep.mubr.bf16.mxu0 0
      %3676 = vmatmul.mubr.bf16.gmra.mrb[0].mxu0 %v3638
      %v3677 = vpop.f32.mrb[0].mxu0
      %v3678 = vadd.f32 0.0, %v3677
      %v3679 = vpop.f32.mrb[0].mxu0
      %v3680 = vpop.f32.mrb[0].mxu0
      %v3681 = vadd.f32 0.0, %v3680
      %v3682 = vpop.f32.mrb[0].mxu0
      %3683 = vmatprep.mubr.bf16.mxu0 0
      %3684 = vmatmul.mubr.bf16.gmra.mrb[0].mxu0 %v3641
      %v3685 = vpop.f32.mrb[0].mxu0
      %v3686 = vadd.f32 0.0, %v3685
      %v3687 = vpop.f32.mrb[0].mxu0
      %v3688 = vpop.f32.mrb[0].mxu0
      %v3689 = vadd.f32 0.0, %v3688
      %v3690 = vpop.f32.mrb[0].mxu0
      %3691 = vdwg.mxu0
      %v3692 = vadd.f32 %v3536, %v3678
      %v3693 = vadd.f32 %v3537, %v3681
      %v3694 = vadd.f32 %v3538, %v3686
      %v3695 = vadd.f32 %v3539, %v3689
      %s3696 = scalar_lea.vmem %s4, 288
      %v3697 = vld [vmem:[%s3696] sm:$0xff]
      %v3698 = vld [vmem:[%s3696 + $0x8] sm:$0xff]
      %v3699 = vld [vmem:[%s3696 + $0x10] sm:$0xff]
      %v3700 = vld [vmem:[%s3696 + $0x18] sm:$0x11]
      %v3705 = vunpack.c.l.b16 %v3697
      %v3706 = vunpack.c.h.b16 %v3697
      %v3707 = vunpack.c.l.b16 %v3698
      %v3708 = vunpack.c.h.b16 %v3698
      %v3709 = vunpack.c.l.b16 %v3699
      %v3710 = vunpack.c.h.b16 %v3699
      %v3711 = vunpack.c.l.b16 %v3700
      %v3712 = vunpack.c.h.b16 %v3700
      %v3713 = vpack.c.b16 %v3707, %v3705
      %v3714 = vpack.c.b16 %v3708, %v3706
      %v3715 = vpack.c.b16 %v3711, %v3709
      %v3716 = vpack.c.b16 %v3712, %v3710
      %v3720 = vsel %vm2322, %v3714, 0
      %v3723 = vsel %vm2322, %v3716, 0
      %3725 = vmatprep.subr.bf16.mxu0 0
      %3726 = vmatpush1.bf16.msra.mxu0 %v2291
      %3727 = vmatprep.subr.bf16.mxu0 0
      %3728 = vmatpush1.bf16.msra.mxu0 %v2292
      %3729 = vmatprep.subr.bf16.mxu0 0
      %3730 = vmatpush1.bf16.msra.mxu0 %v2293
      %3731 = vmatprep.subr.bf16.mxu0 0
      %3732 = vmatpush1.bf16.msra.mxu0 %v2294
      %3733 = vmatprep.subr.bf16.mxu0 0
      %3734 = vmatpush1.bf16.msra.mxu0 %v2295
      %3735 = vmatprep.subr.bf16.mxu0 0
      %3736 = vmatpush1.bf16.msra.mxu0 %v2296
      %3737 = vmatprep.subr.bf16.mxu0 0
      %3738 = vmatpush1.bf16.msra.mxu0 %v2297
      %3739 = vmatprep.subr.bf16.mxu0 0
      %3740 = vmatpush1.bf16.msra.mxu0 %v2298
      %3741 = vmatprep.subr.bf16.mxu0 0
      %3742 = vmatpush1.bf16.msra.mxu0 %v2299
      %3743 = vmatprep.subr.bf16.mxu0 0
      %3744 = vmatpush1.bf16.msra.mxu0 0
      %3745 = vmatprep.subr.bf16.mxu0 0
      %3746 = vmatpush1.bf16.msra.mxu0 0
      %3747 = vmatprep.subr.bf16.mxu0 0
      %3748 = vmatpush1.bf16.msra.mxu0 0
      %3749 = vmatprep.subr.bf16.mxu0 0
      %3750 = vmatpush1.bf16.msra.mxu0 0
      %3751 = vmatprep.subr.bf16.mxu0 0
      %3752 = vmatpush1.bf16.msra.mxu0 0
      %3753 = vmatprep.subr.bf16.mxu0 0
      %3754 = vmatpush1.bf16.msra.mxu0 0
      %3755 = vmatprep.subr.bf16.mxu0 0
      %3756 = vmatpush1.bf16.msra.mxu0 0
      %3757 = vmatprep.mubr.bf16.mxu0 %v3720
      %3758 = vmatmul.mubr.bf16.gmra.mrb[0].mxu0 %v3713
      %v3759 = vpop.f32.mrb[0].mxu0
      %v3760 = vadd.f32 0.0, %v3759
      %v3761 = vpop.f32.mrb[0].mxu0
      %v3762 = vpop.f32.mrb[0].mxu0
      %v3763 = vadd.f32 0.0, %v3762
      %v3764 = vpop.f32.mrb[0].mxu0
      %3765 = vmatprep.mubr.bf16.mxu0 %v3723
      %3766 = vmatmul.mubr.bf16.gmra.mrb[0].mxu0 %v3715
      %v3767 = vpop.f32.mrb[0].mxu0
      %v3768 = vadd.f32 0.0, %v3767
      %v3769 = vpop.f32.mrb[0].mxu0
      %v3770 = vpop.f32.mrb[0].mxu0
      %v3771 = vadd.f32 0.0, %v3770
      %v3772 = vpop.f32.mrb[0].mxu0
      %3773 = vdwg.mxu0
      %v3774 = vpack.c.bf16 %v3763, %v3760
      %v3775 = vpack.c.bf16 %v3771, %v3768
      %s3776 = scalar_lea.vmem %s5, 144
      %v3777 = vld [vmem:[%s3776] sm:$0xf]
      %v3778 = vld [vmem:[%s3776 + $0x4] sm:$0xf]
      %v3779 = vld [vmem:[%s3776 + $0x8] sm:$0xf]
      %v3780 = vld [vmem:[%s3776 + $0xc] sm:$0xf]
      %v3785 = vunpack.c.l.b16 %v3777
      %v3786 = vunpack.c.l.b16 %v3778
      %v3787 = vunpack.c.l.b16 %v3779
      %v3788 = vunpack.c.l.b16 %v3780
      %v3789 = vpack.c.b16 %v3786, %v3785
      %v3790 = vpack.c.b16 %v3788, %v3787
      %v3794 = vsel %vm2481, %v3774, 0
      %v3797 = vsel %vm2481, %v3775, 0
      %3799 = vmatprep.subr.bf16.mxu0 0
      %3800 = vmatpush1.bf16.msra.mxu0 %v3789
      %3801 = vmatprep.subr.bf16.mxu0 0
      %3802 = vmatpush1.bf16.msra.mxu0 %v3790
      %3803 = vmatprep.subr.bf16.mxu0 0
      %3804 = vmatpush1.bf16.msra.mxu0 0
      %3805 = vmatprep.subr.bf16.mxu0 0
      %3806 = vmatpush1.bf16.msra.mxu0 0
      %3807 = vmatprep.subr.bf16.mxu0 0
      %3808 = vmatpush1.bf16.msra.mxu0 0
      %3809 = vmatprep.subr.bf16.mxu0 0
      %3810 = vmatpush1.bf16.msra.mxu0 0
      %3811 = vmatprep.subr.bf16.mxu0 0
      %3812 = vmatpush1.bf16.msra.mxu0 0
      %3813 = vmatprep.subr.bf16.mxu0 0
      %3814 = vmatpush1.bf16.msra.mxu0 0
      %3815 = vmatprep.subr.bf16.mxu0 0
      %3816 = vmatpush1.bf16.msra.mxu0 0
      %3817 = vmatprep.subr.bf16.mxu0 0
      %3818 = vmatpush1.bf16.msra.mxu0 0
      %3819 = vmatprep.subr.bf16.mxu0 0
      %3820 = vmatpush1.bf16.msra.mxu0 0
      %3821 = vmatprep.subr.bf16.mxu0 0
      %3822 = vmatpush1.bf16.msra.mxu0 0
      %3823 = vmatprep.subr.bf16.mxu0 0
      %3824 = vmatpush1.bf16.msra.mxu0 0
      %3825 = vmatprep.subr.bf16.mxu0 0
      %3826 = vmatpush1.bf16.msra.mxu0 0
      %3827 = vmatprep.subr.bf16.mxu0 0
      %3828 = vmatpush1.bf16.msra.mxu0 0
      %3829 = vmatprep.subr.bf16.mxu0 0
      %3830 = vmatpush1.bf16.msra.mxu0 0
      %3831 = vmatprep.mubr.bf16.mxu0 0
      %3832 = vmatmul.mubr.bf16.gmra.mrb[0].mxu0 %v3794
      %v3833 = vpop.f32.mrb[0].mxu0
      %v3834 = vadd.f32 0.0, %v3833
      %v3835 = vpop.f32.mrb[0].mxu0
      %v3836 = vpop.f32.mrb[0].mxu0
      %v3837 = vadd.f32 0.0, %v3836
      %v3838 = vpop.f32.mrb[0].mxu0
      %3839 = vmatprep.mubr.bf16.mxu0 0
      %3840 = vmatmul.mubr.bf16.gmra.mrb[0].mxu0 %v3797
      %v3841 = vpop.f32.mrb[0].mxu0
      %v3842 = vadd.f32 0.0, %v3841
      %v3843 = vpop.f32.mrb[0].mxu0
      %v3844 = vpop.f32.mrb[0].mxu0
      %v3845 = vadd.f32 0.0, %v3844
      %v3846 = vpop.f32.mrb[0].mxu0
      %3847 = vdwg.mxu0
      %v3848 = vadd.f32 %v3692, %v3834
      %v3849 = vadd.f32 %v3693, %v3837
      %v3850 = vadd.f32 %v3694, %v3842
      %v3851 = vadd.f32 %v3695, %v3845
      %s3852 = scalar_lea.vmem %s4, 320
      %v3853 = vld [vmem:[%s3852] sm:$0xff]
      %v3854 = vld [vmem:[%s3852 + $0x8] sm:$0xff]
      %v3855 = vld [vmem:[%s3852 + $0x10] sm:$0xff]
      %v3856 = vld [vmem:[%s3852 + $0x18] sm:$0x11]
      %v3861 = vunpack.c.l.b16 %v3853
      %v3862 = vunpack.c.h.b16 %v3853
      %v3863 = vunpack.c.l.b16 %v3854
      %v3864 = vunpack.c.h.b16 %v3854
      %v3865 = vunpack.c.l.b16 %v3855
      %v3866 = vunpack.c.h.b16 %v3855
      %v3867 = vunpack.c.l.b16 %v3856
      %v3868 = vunpack.c.h.b16 %v3856
      %v3869 = vpack.c.b16 %v3863, %v3861
      %v3870 = vpack.c.b16 %v3864, %v3862
      %v3871 = vpack.c.b16 %v3867, %v3865
      %v3872 = vpack.c.b16 %v3868, %v3866
      %v3876 = vsel %vm2322, %v3870, 0
      %v3879 = vsel %vm2322, %v3872, 0
      %3881 = vmatprep.subr.bf16.mxu0 0
      %3882 = vmatpush1.bf16.msra.mxu0 %v2291
      %3883 = vmatprep.subr.bf16.mxu0 0
      %3884 = vmatpush1.bf16.msra.mxu0 %v2292
      %3885 = vmatprep.subr.bf16.mxu0 0
      %3886 = vmatpush1.bf16.msra.mxu0 %v2293
      %3887 = vmatprep.subr.bf16.mxu0 0
      %3888 = vmatpush1.bf16.msra.mxu0 %v2294
      %3889 = vmatprep.subr.bf16.mxu0 0
      %3890 = vmatpush1.bf16.msra.mxu0 %v2295
      %3891 = vmatprep.subr.bf16.mxu0 0
      %3892 = vmatpush1.bf16.msra.mxu0 %v2296
      %3893 = vmatprep.subr.bf16.mxu0 0
      %3894 = vmatpush1.bf16.msra.mxu0 %v2297
      %3895 = vmatprep.subr.bf16.mxu0 0
      %3896 = vmatpush1.bf16.msra.mxu0 %v2298
      %3897 = vmatprep.subr.bf16.mxu0 0
      %3898 = vmatpush1.bf16.msra.mxu0 %v2299
      %3899 = vmatprep.subr.bf16.mxu0 0
      %3900 = vmatpush1.bf16.msra.mxu0 0
      %3901 = vmatprep.subr.bf16.mxu0 0
      %3902 = vmatpush1.bf16.msra.mxu0 0
      %3903 = vmatprep.subr.bf16.mxu0 0
      %3904 = vmatpush1.bf16.msra.mxu0 0
      %3905 = vmatprep.subr.bf16.mxu0 0
      %3906 = vmatpush1.bf16.msra.mxu0 0
      %3907 = vmatprep.subr.bf16.mxu0 0
      %3908 = vmatpush1.bf16.msra.mxu0 0
      %3909 = vmatprep.subr.bf16.mxu0 0
      %3910 = vmatpush1.bf16.msra.mxu0 0
      %3911 = vmatprep.subr.bf16.mxu0 0
      %3912 = vmatpush1.bf16.msra.mxu0 0
      %3913 = vmatprep.mubr.bf16.mxu0 %v3876
      %3914 = vmatmul.mubr.bf16.gmra.mrb[0].mxu0 %v3869
      %v3915 = vpop.f32.mrb[0].mxu0
      %v3916 = vadd.f32 0.0, %v3915
      %v3917 = vpop.f32.mrb[0].mxu0
      %v3918 = vpop.f32.mrb[0].mxu0
      %v3919 = vadd.f32 0.0, %v3918
      %v3920 = vpop.f32.mrb[0].mxu0
      %3921 = vmatprep.mubr.bf16.mxu0 %v3879
      %3922 = vmatmul.mubr.bf16.gmra.mrb[0].mxu0 %v3871
      %v3923 = vpop.f32.mrb[0].mxu0
      %v3924 = vadd.f32 0.0, %v3923
      %v3925 = vpop.f32.mrb[0].mxu0
      %v3926 = vpop.f32.mrb[0].mxu0
      %v3927 = vadd.f32 0.0, %v3926
      %v3928 = vpop.f32.mrb[0].mxu0
      %3929 = vdwg.mxu0
      %v3930 = vpack.c.bf16 %v3919, %v3916
      %v3931 = vpack.c.bf16 %v3927, %v3924
      %s3932 = scalar_lea.vmem %s5, 160
      %v3933 = vld [vmem:[%s3932] sm:$0xf]
      %v3934 = vld [vmem:[%s3932 + $0x4] sm:$0xf]
      %v3935 = vld [vmem:[%s3932 + $0x8] sm:$0xf]
      %v3936 = vld [vmem:[%s3932 + $0xc] sm:$0xf]
      %v3941 = vunpack.c.l.b16 %v3933
      %v3942 = vunpack.c.l.b16 %v3934
      %v3943 = vunpack.c.l.b16 %v3935
      %v3944 = vunpack.c.l.b16 %v3936
      %v3945 = vpack.c.b16 %v3942, %v3941
      %v3946 = vpack.c.b16 %v3944, %v3943
      %v3950 = vsel %vm2481, %v3930, 0
      %v3953 = vsel %vm2481, %v3931, 0
      %3955 = vmatprep.subr.bf16.mxu0 0
      %3956 = vmatpush1.bf16.msra.mxu0 %v3945
      %3957 = vmatprep.subr.bf16.mxu0 0
      %3958 = vmatpush1.bf16.msra.mxu0 %v3946
      %3959 = vmatprep.subr.bf16.mxu0 0
      %3960 = vmatpush1.bf16.msra.mxu0 0
      %3961 = vmatprep.subr.bf16.mxu0 0
      %3962 = vmatpush1.bf16.msra.mxu0 0
      %3963 = vmatprep.subr.bf16.mxu0 0
      %3964 = vmatpush1.bf16.msra.mxu0 0
      %3965 = vmatprep.subr.bf16.mxu0 0
      %3966 = vmatpush1.bf16.msra.mxu0 0
      %3967 = vmatprep.subr.bf16.mxu0 0
      %3968 = vmatpush1.bf16.msra.mxu0 0
      %3969 = vmatprep.subr.bf16.mxu0 0
      %3970 = vmatpush1.bf16.msra.mxu0 0
      %3971 = vmatprep.subr.bf16.mxu0 0
      %3972 = vmatpush1.bf16.msra.mxu0 0
      %3973 = vmatprep.subr.bf16.mxu0 0
      %3974 = vmatpush1.bf16.msra.mxu0 0
      %3975 = vmatprep.subr.bf16.mxu0 0
      %3976 = vmatpush1.bf16.msra.mxu0 0
      %3977 = vmatprep.subr.bf16.mxu0 0
      %3978 = vmatpush1.bf16.msra.mxu0 0
      %3979 = vmatprep.subr.bf16.mxu0 0
      %3980 = vmatpush1.bf16.msra.mxu0 0
      %3981 = vmatprep.subr.bf16.mxu0 0
      %3982 = vmatpush1.bf16.msra.mxu0 0
      %3983 = vmatprep.subr.bf16.mxu0 0
      %3984 = vmatpush1.bf16.msra.mxu0 0
      %3985 = vmatprep.subr.bf16.mxu0 0
      %3986 = vmatpush1.bf16.msra.mxu0 0
      %3987 = vmatprep.mubr.bf16.mxu0 0
      %3988 = vmatmul.mubr.bf16.gmra.mrb[0].mxu0 %v3950
      %v3989 = vpop.f32.mrb[0].mxu0
      %v3990 = vadd.f32 0.0, %v3989
      %v3991 = vpop.f32.mrb[0].mxu0
      %v3992 = vpop.f32.mrb[0].mxu0
      %v3993 = vadd.f32 0.0, %v3992
      %v3994 = vpop.f32.mrb[0].mxu0
      %3995 = vmatprep.mubr.bf16.mxu0 0
      %3996 = vmatmul.mubr.bf16.gmra.mrb[0].mxu0 %v3953
      %v3997 = vpop.f32.mrb[0].mxu0
      %v3998 = vadd.f32 0.0, %v3997
      %v3999 = vpop.f32.mrb[0].mxu0
      %v4000 = vpop.f32.mrb[0].mxu0
      %v4001 = vadd.f32 0.0, %v4000
      %v4002 = vpop.f32.mrb[0].mxu0
      %4003 = vdwg.mxu0
      %v4004 = vadd.f32 %v3848, %v3990
      %v4005 = vadd.f32 %v3849, %v3993
      %v4006 = vadd.f32 %v3850, %v3998
      %v4007 = vadd.f32 %v3851, %v4001
      %s4008 = scalar_lea.vmem %s4, 352
      %v4009 = vld [vmem:[%s4008] sm:$0xff]
      %v4010 = vld [vmem:[%s4008 + $0x8] sm:$0xff]
      %v4011 = vld [vmem:[%s4008 + $0x10] sm:$0xff]
      %v4012 = vld [vmem:[%s4008 + $0x18] sm:$0x11]
      %v4017 = vunpack.c.l.b16 %v4009
      %v4018 = vunpack.c.h.b16 %v4009
      %v4019 = vunpack.c.l.b16 %v4010
      %v4020 = vunpack.c.h.b16 %v4010
      %v4021 = vunpack.c.l.b16 %v4011
      %v4022 = vunpack.c.h.b16 %v4011
      %v4023 = vunpack.c.l.b16 %v4012
      %v4024 = vunpack.c.h.b16 %v4012
      %v4025 = vpack.c.b16 %v4019, %v4017
      %v4026 = vpack.c.b16 %v4020, %v4018
      %v4027 = vpack.c.b16 %v4023, %v4021
      %v4028 = vpack.c.b16 %v4024, %v4022
      %v4032 = vsel %vm2322, %v4026, 0
      %v4035 = vsel %vm2322, %v4028, 0
      %4037 = vmatprep.subr.bf16.mxu0 0
      %4038 = vmatpush1.bf16.msra.mxu0 %v2291
      %4039 = vmatprep.subr.bf16.mxu0 0
      %4040 = vmatpush1.bf16.msra.mxu0 %v2292
      %4041 = vmatprep.subr.bf16.mxu0 0
      %4042 = vmatpush1.bf16.msra.mxu0 %v2293
      %4043 = vmatprep.subr.bf16.mxu0 0
      %4044 = vmatpush1.bf16.msra.mxu0 %v2294
      %4045 = vmatprep.subr.bf16.mxu0 0
      %4046 = vmatpush1.bf16.msra.mxu0 %v2295
      %4047 = vmatprep.subr.bf16.mxu0 0
      %4048 = vmatpush1.bf16.msra.mxu0 %v2296
      %4049 = vmatprep.subr.bf16.mxu0 0
      %4050 = vmatpush1.bf16.msra.mxu0 %v2297
      %4051 = vmatprep.subr.bf16.mxu0 0
      %4052 = vmatpush1.bf16.msra.mxu0 %v2298
      %4053 = vmatprep.subr.bf16.mxu0 0
      %4054 = vmatpush1.bf16.msra.mxu0 %v2299
      %4055 = vmatprep.subr.bf16.mxu0 0
      %4056 = vmatpush1.bf16.msra.mxu0 0
      %4057 = vmatprep.subr.bf16.mxu0 0
      %4058 = vmatpush1.bf16.msra.mxu0 0
      %4059 = vmatprep.subr.bf16.mxu0 0
      %4060 = vmatpush1.bf16.msra.mxu0 0
      %4061 = vmatprep.subr.bf16.mxu0 0
      %4062 = vmatpush1.bf16.msra.mxu0 0
      %4063 = vmatprep.subr.bf16.mxu0 0
      %4064 = vmatpush1.bf16.msra.mxu0 0
      %4065 = vmatprep.subr.bf16.mxu0 0
      %4066 = vmatpush1.bf16.msra.mxu0 0
      %4067 = vmatprep.subr.bf16.mxu0 0
      %4068 = vmatpush1.bf16.msra.mxu0 0
      %4069 = vmatprep.mubr.bf16.mxu0 %v4032
      %4070 = vmatmul.mubr.bf16.gmra.mrb[0].mxu0 %v4025
      %v4071 = vpop.f32.mrb[0].mxu0
      %v4072 = vadd.f32 0.0, %v4071
      %v4073 = vpop.f32.mrb[0].mxu0
      %v4074 = vpop.f32.mrb[0].mxu0
      %v4075 = vadd.f32 0.0, %v4074
      %v4076 = vpop.f32.mrb[0].mxu0
      %4077 = vmatprep.mubr.bf16.mxu0 %v4035
      %4078 = vmatmul.mubr.bf16.gmra.mrb[0].mxu0 %v4027
      %v4079 = vpop.f32.mrb[0].mxu0
      %v4080 = vadd.f32 0.0, %v4079
      %v4081 = vpop.f32.mrb[0].mxu0
      %v4082 = vpop.f32.mrb[0].mxu0
      %v4083 = vadd.f32 0.0, %v4082
      %v4084 = vpop.f32.mrb[0].mxu0
      %4085 = vdwg.mxu0
      %v4086 = vpack.c.bf16 %v4075, %v4072
      %v4087 = vpack.c.bf16 %v4083, %v4080
      %s4088 = scalar_lea.vmem %s5, 176
      %v4089 = vld [vmem:[%s4088] sm:$0xf]
      %v4090 = vld [vmem:[%s4088 + $0x4] sm:$0xf]
      %v4091 = vld [vmem:[%s4088 + $0x8] sm:$0xf]
      %v4092 = vld [vmem:[%s4088 + $0xc] sm:$0xf]
      %v4097 = vunpack.c.l.b16 %v4089
      %v4098 = vunpack.c.l.b16 %v4090
      %v4099 = vunpack.c.l.b16 %v4091
      %v4100 = vunpack.c.l.b16 %v4092
      %v4101 = vpack.c.b16 %v4098, %v4097
      %v4102 = vpack.c.b16 %v4100, %v4099
      %v4106 = vsel %vm2481, %v4086, 0
      %v4109 = vsel %vm2481, %v4087, 0
      %4111 = vmatprep.subr.bf16.mxu0 0
      %4112 = vmatpush1.bf16.msra.mxu0 %v4101
      %4113 = vmatprep.subr.bf16.mxu0 0
      %4114 = vmatpush1.bf16.msra.mxu0 %v4102
      %4115 = vmatprep.subr.bf16.mxu0 0
      %4116 = vmatpush1.bf16.msra.mxu0 0
      %4117 = vmatprep.subr.bf16.mxu0 0
      %4118 = vmatpush1.bf16.msra.mxu0 0
      %4119 = vmatprep.subr.bf16.mxu0 0
      %4120 = vmatpush1.bf16.msra.mxu0 0
      %4121 = vmatprep.subr.bf16.mxu0 0
      %4122 = vmatpush1.bf16.msra.mxu0 0
      %4123 = vmatprep.subr.bf16.mxu0 0
      %4124 = vmatpush1.bf16.msra.mxu0 0
      %4125 = vmatprep.subr.bf16.mxu0 0
      %4126 = vmatpush1.bf16.msra.mxu0 0
      %4127 = vmatprep.subr.bf16.mxu0 0
      %4128 = vmatpush1.bf16.msra.mxu0 0
      %4129 = vmatprep.subr.bf16.mxu0 0
      %4130 = vmatpush1.bf16.msra.mxu0 0
      %4131 = vmatprep.subr.bf16.mxu0 0
      %4132 = vmatpush1.bf16.msra.mxu0 0
      %4133 = vmatprep.subr.bf16.mxu0 0
      %4134 = vmatpush1.bf16.msra.mxu0 0
      %4135 = vmatprep.subr.bf16.mxu0 0
      %4136 = vmatpush1.bf16.msra.mxu0 0
      %4137 = vmatprep.subr.bf16.mxu0 0
      %4138 = vmatpush1.bf16.msra.mxu0 0
      %4139 = vmatprep.subr.bf16.mxu0 0
      %4140 = vmatpush1.bf16.msra.mxu0 0
      %4141 = vmatprep.subr.bf16.mxu0 0
      %4142 = vmatpush1.bf16.msra.mxu0 0
      %4143 = vmatprep.mubr.bf16.mxu0 0
      %4144 = vmatmul.mubr.bf16.gmra.mrb[0].mxu0 %v4106
      %v4145 = vpop.f32.mrb[0].mxu0
      %v4146 = vadd.f32 0.0, %v4145
      %v4147 = vpop.f32.mrb[0].mxu0
      %v4148 = vpop.f32.mrb[0].mxu0
      %v4149 = vadd.f32 0.0, %v4148
      %v4150 = vpop.f32.mrb[0].mxu0
      %4151 = vmatprep.mubr.bf16.mxu0 0
      %4152 = vmatmul.mubr.bf16.gmra.mrb[0].mxu0 %v4109
      %v4153 = vpop.f32.mrb[0].mxu0
      %v4154 = vadd.f32 0.0, %v4153
      %v4155 = vpop.f32.mrb[0].mxu0
      %v4156 = vpop.f32.mrb[0].mxu0
      %v4157 = vadd.f32 0.0, %v4156
      %v4158 = vpop.f32.mrb[0].mxu0
      %4159 = vdwg.mxu0
      %v4160 = vadd.f32 %v4004, %v4146
      %v4161 = vadd.f32 %v4005, %v4149
      %v4162 = vadd.f32 %v4006, %v4154
      %v4163 = vadd.f32 %v4007, %v4157
      %s4164 = scalar_lea.vmem %s4, 384
      %v4165 = vld [vmem:[%s4164] sm:$0xff]
      %v4166 = vld [vmem:[%s4164 + $0x8] sm:$0xff]
      %v4167 = vld [vmem:[%s4164 + $0x10] sm:$0xff]
      %v4168 = vld [vmem:[%s4164 + $0x18] sm:$0x11]
      %v4173 = vunpack.c.l.b16 %v4165
      %v4174 = vunpack.c.h.b16 %v4165
      %v4175 = vunpack.c.l.b16 %v4166
      %v4176 = vunpack.c.h.b16 %v4166
      %v4177 = vunpack.c.l.b16 %v4167
      %v4178 = vunpack.c.h.b16 %v4167
      %v4179 = vunpack.c.l.b16 %v4168
      %v4180 = vunpack.c.h.b16 %v4168
      %v4181 = vpack.c.b16 %v4175, %v4173
      %v4182 = vpack.c.b16 %v4176, %v4174
      %v4183 = vpack.c.b16 %v4179, %v4177
      %v4184 = vpack.c.b16 %v4180, %v4178
      %v4188 = vsel %vm2322, %v4182, 0
      %v4191 = vsel %vm2322, %v4184, 0
      %4193 = vmatprep.subr.bf16.mxu0 0
      %4194 = vmatpush1.bf16.msra.mxu0 %v2291
      %4195 = vmatprep.subr.bf16.mxu0 0
      %4196 = vmatpush1.bf16.msra.mxu0 %v2292
      %4197 = vmatprep.subr.bf16.mxu0 0
      %4198 = vmatpush1.bf16.msra.mxu0 %v2293
      %4199 = vmatprep.subr.bf16.mxu0 0
      %4200 = vmatpush1.bf16.msra.mxu0 %v2294
      %4201 = vmatprep.subr.bf16.mxu0 0
      %4202 = vmatpush1.bf16.msra.mxu0 %v2295
      %4203 = vmatprep.subr.bf16.mxu0 0
      %4204 = vmatpush1.bf16.msra.mxu0 %v2296
      %4205 = vmatprep.subr.bf16.mxu0 0
      %4206 = vmatpush1.bf16.msra.mxu0 %v2297
      %4207 = vmatprep.subr.bf16.mxu0 0
      %4208 = vmatpush1.bf16.msra.mxu0 %v2298
      %4209 = vmatprep.subr.bf16.mxu0 0
      %4210 = vmatpush1.bf16.msra.mxu0 %v2299
      %4211 = vmatprep.subr.bf16.mxu0 0
      %4212 = vmatpush1.bf16.msra.mxu0 0
      %4213 = vmatprep.subr.bf16.mxu0 0
      %4214 = vmatpush1.bf16.msra.mxu0 0
      %4215 = vmatprep.subr.bf16.mxu0 0
      %4216 = vmatpush1.bf16.msra.mxu0 0
      %4217 = vmatprep.subr.bf16.mxu0 0
      %4218 = vmatpush1.bf16.msra.mxu0 0
      %4219 = vmatprep.subr.bf16.mxu0 0
      %4220 = vmatpush1.bf16.msra.mxu0 0
      %4221 = vmatprep.subr.bf16.mxu0 0
      %4222 = vmatpush1.bf16.msra.mxu0 0
      %4223 = vmatprep.subr.bf16.mxu0 0
      %4224 = vmatpush1.bf16.msra.mxu0 0
      %4225 = vmatprep.mubr.bf16.mxu0 %v4188
      %4226 = vmatmul.mubr.bf16.gmra.mrb[0].mxu0 %v4181
      %v4227 = vpop.f32.mrb[0].mxu0
      %v4228 = vadd.f32 0.0, %v4227
      %v4229 = vpop.f32.mrb[0].mxu0
      %v4230 = vpop.f32.mrb[0].mxu0
      %v4231 = vadd.f32 0.0, %v4230
      %v4232 = vpop.f32.mrb[0].mxu0
      %4233 = vmatprep.mubr.bf16.mxu0 %v4191
      %4234 = vmatmul.mubr.bf16.gmra.mrb[0].mxu0 %v4183
      %v4235 = vpop.f32.mrb[0].mxu0
      %v4236 = vadd.f32 0.0, %v4235
      %v4237 = vpop.f32.mrb[0].mxu0
      %v4238 = vpop.f32.mrb[0].mxu0
      %v4239 = vadd.f32 0.0, %v4238
      %v4240 = vpop.f32.mrb[0].mxu0
      %4241 = vdwg.mxu0
      %v4242 = vpack.c.bf16 %v4231, %v4228
      %v4243 = vpack.c.bf16 %v4239, %v4236
      %s4244 = scalar_lea.vmem %s5, 192
      %v4245 = vld [vmem:[%s4244] sm:$0xf]
      %v4246 = vld [vmem:[%s4244 + $0x4] sm:$0xf]
      %v4247 = vld [vmem:[%s4244 + $0x8] sm:$0xf]
      %v4248 = vld [vmem:[%s4244 + $0xc] sm:$0xf]
      %v4253 = vunpack.c.l.b16 %v4245
      %v4254 = vunpack.c.l.b16 %v4246
      %v4255 = vunpack.c.l.b16 %v4247
      %v4256 = vunpack.c.l.b16 %v4248
      %v4257 = vpack.c.b16 %v4254, %v4253
      %v4258 = vpack.c.b16 %v4256, %v4255
      %v4262 = vsel %vm2481, %v4242, 0
      %v4265 = vsel %vm2481, %v4243, 0
      %4267 = vmatprep.subr.bf16.mxu0 0
      %4268 = vmatpush1.bf16.msra.mxu0 %v4257
      %4269 = vmatprep.subr.bf16.mxu0 0
      %4270 = vmatpush1.bf16.msra.mxu0 %v4258
      %4271 = vmatprep.subr.bf16.mxu0 0
      %4272 = vmatpush1.bf16.msra.mxu0 0
      %4273 = vmatprep.subr.bf16.mxu0 0
      %4274 = vmatpush1.bf16.msra.mxu0 0
      %4275 = vmatprep.subr.bf16.mxu0 0
      %4276 = vmatpush1.bf16.msra.mxu0 0
      %4277 = vmatprep.subr.bf16.mxu0 0
      %4278 = vmatpush1.bf16.msra.mxu0 0
      %4279 = vmatprep.subr.bf16.mxu0 0
      %4280 = vmatpush1.bf16.msra.mxu0 0
      %4281 = vmatprep.subr.bf16.mxu0 0
      %4282 = vmatpush1.bf16.msra.mxu0 0
      %4283 = vmatprep.subr.bf16.mxu0 0
      %4284 = vmatpush1.bf16.msra.mxu0 0
      %4285 = vmatprep.subr.bf16.mxu0 0
      %4286 = vmatpush1.bf16.msra.mxu0 0
      %4287 = vmatprep.subr.bf16.mxu0 0
      %4288 = vmatpush1.bf16.msra.mxu0 0
      %4289 = vmatprep.subr.bf16.mxu0 0
      %4290 = vmatpush1.bf16.msra.mxu0 0
      %4291 = vmatprep.subr.bf16.mxu0 0
      %4292 = vmatpush1.bf16.msra.mxu0 0
      %4293 = vmatprep.subr.bf16.mxu0 0
      %4294 = vmatpush1.bf16.msra.mxu0 0
      %4295 = vmatprep.subr.bf16.mxu0 0
      %4296 = vmatpush1.bf16.msra.mxu0 0
      %4297 = vmatprep.subr.bf16.mxu0 0
      %4298 = vmatpush1.bf16.msra.mxu0 0
      %4299 = vmatprep.mubr.bf16.mxu0 0
      %4300 = vmatmul.mubr.bf16.gmra.mrb[0].mxu0 %v4262
      %v4301 = vpop.f32.mrb[0].mxu0
      %v4302 = vadd.f32 0.0, %v4301
      %v4303 = vpop.f32.mrb[0].mxu0
      %v4304 = vpop.f32.mrb[0].mxu0
      %v4305 = vadd.f32 0.0, %v4304
      %v4306 = vpop.f32.mrb[0].mxu0
      %4307 = vmatprep.mubr.bf16.mxu0 0
      %4308 = vmatmul.mubr.bf16.gmra.mrb[0].mxu0 %v4265
      %v4309 = vpop.f32.mrb[0].mxu0
      %v4310 = vadd.f32 0.0, %v4309
      %v4311 = vpop.f32.mrb[0].mxu0
      %v4312 = vpop.f32.mrb[0].mxu0
      %v4313 = vadd.f32 0.0, %v4312
      %v4314 = vpop.f32.mrb[0].mxu0
      %4315 = vdwg.mxu0
      %v4316 = vadd.f32 %v4160, %v4302
      %v4317 = vadd.f32 %v4161, %v4305
      %v4318 = vadd.f32 %v4162, %v4310
      %v4319 = vadd.f32 %v4163, %v4313
      %s4320 = scalar_lea.vmem %s4, 416
      %v4321 = vld [vmem:[%s4320] sm:$0xff]
      %v4322 = vld [vmem:[%s4320 + $0x8] sm:$0xff]
      %v4323 = vld [vmem:[%s4320 + $0x10] sm:$0xff]
      %v4324 = vld [vmem:[%s4320 + $0x18] sm:$0x11]
      %v4329 = vunpack.c.l.b16 %v4321
      %v4330 = vunpack.c.h.b16 %v4321
      %v4331 = vunpack.c.l.b16 %v4322
      %v4332 = vunpack.c.h.b16 %v4322
      %v4333 = vunpack.c.l.b16 %v4323
      %v4334 = vunpack.c.h.b16 %v4323
      %v4335 = vunpack.c.l.b16 %v4324
      %v4336 = vunpack.c.h.b16 %v4324
      %v4337 = vpack.c.b16 %v4331, %v4329
      %v4338 = vpack.c.b16 %v4332, %v4330
      %v4339 = vpack.c.b16 %v4335, %v4333
      %v4340 = vpack.c.b16 %v4336, %v4334
      %v4344 = vsel %vm2322, %v4338, 0
      %v4347 = vsel %vm2322, %v4340, 0
      %4349 = vmatprep.subr.bf16.mxu0 0
      %4350 = vmatpush1.bf16.msra.mxu0 %v2291
      %4351 = vmatprep.subr.bf16.mxu0 0
      %4352 = vmatpush1.bf16.msra.mxu0 %v2292
      %4353 = vmatprep.subr.bf16.mxu0 0
      %4354 = vmatpush1.bf16.msra.mxu0 %v2293
      %4355 = vmatprep.subr.bf16.mxu0 0
      %4356 = vmatpush1.bf16.msra.mxu0 %v2294
      %4357 = vmatprep.subr.bf16.mxu0 0
      %4358 = vmatpush1.bf16.msra.mxu0 %v2295
      %4359 = vmatprep.subr.bf16.mxu0 0
      %4360 = vmatpush1.bf16.msra.mxu0 %v2296
      %4361 = vmatprep.subr.bf16.mxu0 0
      %4362 = vmatpush1.bf16.msra.mxu0 %v2297
      %4363 = vmatprep.subr.bf16.mxu0 0
      %4364 = vmatpush1.bf16.msra.mxu0 %v2298
      %4365 = vmatprep.subr.bf16.mxu0 0
      %4366 = vmatpush1.bf16.msra.mxu0 %v2299
      %4367 = vmatprep.subr.bf16.mxu0 0
      %4368 = vmatpush1.bf16.msra.mxu0 0
      %4369 = vmatprep.subr.bf16.mxu0 0
      %4370 = vmatpush1.bf16.msra.mxu0 0
      %4371 = vmatprep.subr.bf16.mxu0 0
      %4372 = vmatpush1.bf16.msra.mxu0 0
      %4373 = vmatprep.subr.bf16.mxu0 0
      %4374 = vmatpush1.bf16.msra.mxu0 0
      %4375 = vmatprep.subr.bf16.mxu0 0
      %4376 = vmatpush1.bf16.msra.mxu0 0
      %4377 = vmatprep.subr.bf16.mxu0 0
      %4378 = vmatpush1.bf16.msra.mxu0 0
      %4379 = vmatprep.subr.bf16.mxu0 0
      %4380 = vmatpush1.bf16.msra.mxu0 0
      %4381 = vmatprep.mubr.bf16.mxu0 %v4344
      %4382 = vmatmul.mubr.bf16.gmra.mrb[0].mxu0 %v4337
      %v4383 = vpop.f32.mrb[0].mxu0
      %v4384 = vadd.f32 0.0, %v4383
      %v4385 = vpop.f32.mrb[0].mxu0
      %v4386 = vpop.f32.mrb[0].mxu0
      %v4387 = vadd.f32 0.0, %v4386
      %v4388 = vpop.f32.mrb[0].mxu0
      %4389 = vmatprep.mubr.bf16.mxu0 %v4347
      %4390 = vmatmul.mubr.bf16.gmra.mrb[0].mxu0 %v4339
      %v4391 = vpop.f32.mrb[0].mxu0
      %v4392 = vadd.f32 0.0, %v4391
      %v4393 = vpop.f32.mrb[0].mxu0
      %v4394 = vpop.f32.mrb[0].mxu0
      %v4395 = vadd.f32 0.0, %v4394
      %v4396 = vpop.f32.mrb[0].mxu0
      %4397 = vdwg.mxu0
      %v4398 = vpack.c.bf16 %v4387, %v4384
      %v4399 = vpack.c.bf16 %v4395, %v4392
      %s4400 = scalar_lea.vmem %s5, 208
      %v4401 = vld [vmem:[%s4400] sm:$0xf]
      %v4402 = vld [vmem:[%s4400 + $0x4] sm:$0xf]
      %v4403 = vld [vmem:[%s4400 + $0x8] sm:$0xf]
      %v4404 = vld [vmem:[%s4400 + $0xc] sm:$0xf]
      %v4409 = vunpack.c.l.b16 %v4401
      %v4410 = vunpack.c.l.b16 %v4402
      %v4411 = vunpack.c.l.b16 %v4403
      %v4412 = vunpack.c.l.b16 %v4404
      %v4413 = vpack.c.b16 %v4410, %v4409
      %v4414 = vpack.c.b16 %v4412, %v4411
      %v4418 = vsel %vm2481, %v4398, 0
      %v4421 = vsel %vm2481, %v4399, 0
      %4423 = vmatprep.subr.bf16.mxu0 0
      %4424 = vmatpush1.bf16.msra.mxu0 %v4413
      %4425 = vmatprep.subr.bf16.mxu0 0
      %4426 = vmatpush1.bf16.msra.mxu0 %v4414
      %4427 = vmatprep.subr.bf16.mxu0 0
      %4428 = vmatpush1.bf16.msra.mxu0 0
      %4429 = vmatprep.subr.bf16.mxu0 0
      %4430 = vmatpush1.bf16.msra.mxu0 0
      %4431 = vmatprep.subr.bf16.mxu0 0
      %4432 = vmatpush1.bf16.msra.mxu0 0
      %4433 = vmatprep.subr.bf16.mxu0 0
      %4434 = vmatpush1.bf16.msra.mxu0 0
      %4435 = vmatprep.subr.bf16.mxu0 0
      %4436 = vmatpush1.bf16.msra.mxu0 0
      %4437 = vmatprep.subr.bf16.mxu0 0
      %4438 = vmatpush1.bf16.msra.mxu0 0
      %4439 = vmatprep.subr.bf16.mxu0 0
      %4440 = vmatpush1.bf16.msra.mxu0 0
      %4441 = vmatprep.subr.bf16.mxu0 0
      %4442 = vmatpush1.bf16.msra.mxu0 0
      %4443 = vmatprep.subr.bf16.mxu0 0
      %4444 = vmatpush1.bf16.msra.mxu0 0
      %4445 = vmatprep.subr.bf16.mxu0 0
      %4446 = vmatpush1.bf16.msra.mxu0 0
      %4447 = vmatprep.subr.bf16.mxu0 0
      %4448 = vmatpush1.bf16.msra.mxu0 0
      %4449 = vmatprep.subr.bf16.mxu0 0
      %4450 = vmatpush1.bf16.msra.mxu0 0
      %4451 = vmatprep.subr.bf16.mxu0 0
      %4452 = vmatpush1.bf16.msra.mxu0 0
      %4453 = vmatprep.subr.bf16.mxu0 0
      %4454 = vmatpush1.bf16.msra.mxu0 0
      %4455 = vmatprep.mubr.bf16.mxu0 0
      %4456 = vmatmul.mubr.bf16.gmra.mrb[0].mxu0 %v4418
      %v4457 = vpop.f32.mrb[0].mxu0
      %v4458 = vadd.f32 0.0, %v4457
      %v4459 = vpop.f32.mrb[0].mxu0
      %v4460 = vpop.f32.mrb[0].mxu0
      %v4461 = vadd.f32 0.0, %v4460
      %v4462 = vpop.f32.mrb[0].mxu0
      %4463 = vmatprep.mubr.bf16.mxu0 0
      %4464 = vmatmul.mubr.bf16.gmra.mrb[0].mxu0 %v4421
      %v4465 = vpop.f32.mrb[0].mxu0
      %v4466 = vadd.f32 0.0, %v4465
      %v4467 = vpop.f32.mrb[0].mxu0
      %v4468 = vpop.f32.mrb[0].mxu0
      %v4469 = vadd.f32 0.0, %v4468
      %v4470 = vpop.f32.mrb[0].mxu0
      %4471 = vdwg.mxu0
      %v4472 = vadd.f32 %v4316, %v4458
      %v4473 = vadd.f32 %v4317, %v4461
      %v4474 = vadd.f32 %v4318, %v4466
      %v4475 = vadd.f32 %v4319, %v4469
      %s4476 = scalar_lea.vmem %s4, 448
      %v4477 = vld [vmem:[%s4476] sm:$0xff]
      %v4478 = vld [vmem:[%s4476 + $0x8] sm:$0xff]
      %v4479 = vld [vmem:[%s4476 + $0x10] sm:$0xff]
      %v4480 = vld [vmem:[%s4476 + $0x18] sm:$0x11]
      %v4485 = vunpack.c.l.b16 %v4477
      %v4486 = vunpack.c.h.b16 %v4477
      %v4487 = vunpack.c.l.b16 %v4478
      %v4488 = vunpack.c.h.b16 %v4478
      %v4489 = vunpack.c.l.b16 %v4479
      %v4490 = vunpack.c.h.b16 %v4479
      %v4491 = vunpack.c.l.b16 %v4480
      %v4492 = vunpack.c.h.b16 %v4480
      %v4493 = vpack.c.b16 %v4487, %v4485
      %v4494 = vpack.c.b16 %v4488, %v4486
      %v4495 = vpack.c.b16 %v4491, %v4489
      %v4496 = vpack.c.b16 %v4492, %v4490
      %v4500 = vsel %vm2322, %v4494, 0
      %v4503 = vsel %vm2322, %v4496, 0
      %4505 = vmatprep.subr.bf16.mxu0 0
      %4506 = vmatpush1.bf16.msra.mxu0 %v2291
      %4507 = vmatprep.subr.bf16.mxu0 0
      %4508 = vmatpush1.bf16.msra.mxu0 %v2292
      %4509 = vmatprep.subr.bf16.mxu0 0
      %4510 = vmatpush1.bf16.msra.mxu0 %v2293
      %4511 = vmatprep.subr.bf16.mxu0 0
      %4512 = vmatpush1.bf16.msra.mxu0 %v2294
      %4513 = vmatprep.subr.bf16.mxu0 0
      %4514 = vmatpush1.bf16.msra.mxu0 %v2295
      %4515 = vmatprep.subr.bf16.mxu0 0
      %4516 = vmatpush1.bf16.msra.mxu0 %v2296
      %4517 = vmatprep.subr.bf16.mxu0 0
      %4518 = vmatpush1.bf16.msra.mxu0 %v2297
      %4519 = vmatprep.subr.bf16.mxu0 0
      %4520 = vmatpush1.bf16.msra.mxu0 %v2298
      %4521 = vmatprep.subr.bf16.mxu0 0
      %4522 = vmatpush1.bf16.msra.mxu0 %v2299
      %4523 = vmatprep.subr.bf16.mxu0 0
      %4524 = vmatpush1.bf16.msra.mxu0 0
      %4525 = vmatprep.subr.bf16.mxu0 0
      %4526 = vmatpush1.bf16.msra.mxu0 0
      %4527 = vmatprep.subr.bf16.mxu0 0
      %4528 = vmatpush1.bf16.msra.mxu0 0
      %4529 = vmatprep.subr.bf16.mxu0 0
      %4530 = vmatpush1.bf16.msra.mxu0 0
      %4531 = vmatprep.subr.bf16.mxu0 0
      %4532 = vmatpush1.bf16.msra.mxu0 0
      %4533 = vmatprep.subr.bf16.mxu0 0
      %4534 = vmatpush1.bf16.msra.mxu0 0
      %4535 = vmatprep.subr.bf16.mxu0 0
      %4536 = vmatpush1.bf16.msra.mxu0 0
      %4537 = vmatprep.mubr.bf16.mxu0 %v4500
      %4538 = vmatmul.mubr.bf16.gmra.mrb[0].mxu0 %v4493
      %v4539 = vpop.f32.mrb[0].mxu0
      %v4540 = vadd.f32 0.0, %v4539
      %v4541 = vpop.f32.mrb[0].mxu0
      %v4542 = vpop.f32.mrb[0].mxu0
      %v4543 = vadd.f32 0.0, %v4542
      %v4544 = vpop.f32.mrb[0].mxu0
      %4545 = vmatprep.mubr.bf16.mxu0 %v4503
      %4546 = vmatmul.mubr.bf16.gmra.mrb[0].mxu0 %v4495
      %v4547 = vpop.f32.mrb[0].mxu0
      %v4548 = vadd.f32 0.0, %v4547
      %v4549 = vpop.f32.mrb[0].mxu0
      %v4550 = vpop.f32.mrb[0].mxu0
      %v4551 = vadd.f32 0.0, %v4550
      %v4552 = vpop.f32.mrb[0].mxu0
      %4553 = vdwg.mxu0
      %v4554 = vpack.c.bf16 %v4543, %v4540
      %v4555 = vpack.c.bf16 %v4551, %v4548
      %s4556 = scalar_lea.vmem %s5, 224
      %v4557 = vld [vmem:[%s4556] sm:$0xf]
      %v4558 = vld [vmem:[%s4556 + $0x4] sm:$0xf]
      %v4559 = vld [vmem:[%s4556 + $0x8] sm:$0xf]
      %v4560 = vld [vmem:[%s4556 + $0xc] sm:$0xf]
      %v4565 = vunpack.c.l.b16 %v4557
      %v4566 = vunpack.c.l.b16 %v4558
      %v4567 = vunpack.c.l.b16 %v4559
      %v4568 = vunpack.c.l.b16 %v4560
      %v4569 = vpack.c.b16 %v4566, %v4565
      %v4570 = vpack.c.b16 %v4568, %v4567
      %v4574 = vsel %vm2481, %v4554, 0
      %v4577 = vsel %vm2481, %v4555, 0
      %4579 = vmatprep.subr.bf16.mxu0 0
      %4580 = vmatpush1.bf16.msra.mxu0 %v4569
      %4581 = vmatprep.subr.bf16.mxu0 0
      %4582 = vmatpush1.bf16.msra.mxu0 %v4570
      %4583 = vmatprep.subr.bf16.mxu0 0
      %4584 = vmatpush1.bf16.msra.mxu0 0
      %4585 = vmatprep.subr.bf16.mxu0 0
      %4586 = vmatpush1.bf16.msra.mxu0 0
      %4587 = vmatprep.subr.bf16.mxu0 0
      %4588 = vmatpush1.bf16.msra.mxu0 0
      %4589 = vmatprep.subr.bf16.mxu0 0
      %4590 = vmatpush1.bf16.msra.mxu0 0
      %4591 = vmatprep.subr.bf16.mxu0 0
      %4592 = vmatpush1.bf16.msra.mxu0 0
      %4593 = vmatprep.subr.bf16.mxu0 0
      %4594 = vmatpush1.bf16.msra.mxu0 0
      %4595 = vmatprep.subr.bf16.mxu0 0
      %4596 = vmatpush1.bf16.msra.mxu0 0
      %4597 = vmatprep.subr.bf16.mxu0 0
      %4598 = vmatpush1.bf16.msra.mxu0 0
      %4599 = vmatprep.subr.bf16.mxu0 0
      %4600 = vmatpush1.bf16.msra.mxu0 0
      %4601 = vmatprep.subr.bf16.mxu0 0
      %4602 = vmatpush1.bf16.msra.mxu0 0
      %4603 = vmatprep.subr.bf16.mxu0 0
      %4604 = vmatpush1.bf16.msra.mxu0 0
      %4605 = vmatprep.subr.bf16.mxu0 0
      %4606 = vmatpush1.bf16.msra.mxu0 0
      %4607 = vmatprep.subr.bf16.mxu0 0
      %4608 = vmatpush1.bf16.msra.mxu0 0
      %4609 = vmatprep.subr.bf16.mxu0 0
      %4610 = vmatpush1.bf16.msra.mxu0 0
      %4611 = vmatprep.mubr.bf16.mxu0 0
      %4612 = vmatmul.mubr.bf16.gmra.mrb[0].mxu0 %v4574
      %v4613 = vpop.f32.mrb[0].mxu0
      %v4614 = vadd.f32 0.0, %v4613
      %v4615 = vpop.f32.mrb[0].mxu0
      %v4616 = vpop.f32.mrb[0].mxu0
      %v4617 = vadd.f32 0.0, %v4616
      %v4618 = vpop.f32.mrb[0].mxu0
      %4619 = vmatprep.mubr.bf16.mxu0 0
      %4620 = vmatmul.mubr.bf16.gmra.mrb[0].mxu0 %v4577
      %v4621 = vpop.f32.mrb[0].mxu0
      %v4622 = vadd.f32 0.0, %v4621
      %v4623 = vpop.f32.mrb[0].mxu0
      %v4624 = vpop.f32.mrb[0].mxu0
      %v4625 = vadd.f32 0.0, %v4624
      %v4626 = vpop.f32.mrb[0].mxu0
      %4627 = vdwg.mxu0
      %v4628 = vadd.f32 %v4472, %v4614
      %v4629 = vadd.f32 %v4473, %v4617
      %v4630 = vadd.f32 %v4474, %v4622
      %v4631 = vadd.f32 %v4475, %v4625
      %s4632 = scalar_lea.vmem %s4, 480
      %v4633 = vld [vmem:[%s4632] sm:$0xff]
      %v4634 = vld [vmem:[%s4632 + $0x8] sm:$0xff]
      %v4635 = vld [vmem:[%s4632 + $0x10] sm:$0xff]
      %v4636 = vld [vmem:[%s4632 + $0x18] sm:$0x11]
      %v4641 = vunpack.c.l.b16 %v4633
      %v4642 = vunpack.c.h.b16 %v4633
      %v4643 = vunpack.c.l.b16 %v4634
      %v4644 = vunpack.c.h.b16 %v4634
      %v4645 = vunpack.c.l.b16 %v4635
      %v4646 = vunpack.c.h.b16 %v4635
      %v4647 = vunpack.c.l.b16 %v4636
      %v4648 = vunpack.c.h.b16 %v4636
      %v4649 = vpack.c.b16 %v4643, %v4641
      %v4650 = vpack.c.b16 %v4644, %v4642
      %v4651 = vpack.c.b16 %v4647, %v4645
      %v4652 = vpack.c.b16 %v4648, %v4646
      %v4656 = vsel %vm2322, %v4650, 0
      %v4659 = vsel %vm2322, %v4652, 0
      %4661 = vmatprep.subr.bf16.mxu0 0
      %4662 = vmatpush1.bf16.msra.mxu0 %v2291
      %4663 = vmatprep.subr.bf16.mxu0 0
      %4664 = vmatpush1.bf16.msra.mxu0 %v2292
      %4665 = vmatprep.subr.bf16.mxu0 0
      %4666 = vmatpush1.bf16.msra.mxu0 %v2293
      %4667 = vmatprep.subr.bf16.mxu0 0
      %4668 = vmatpush1.bf16.msra.mxu0 %v2294
      %4669 = vmatprep.subr.bf16.mxu0 0
      %4670 = vmatpush1.bf16.msra.mxu0 %v2295
      %4671 = vmatprep.subr.bf16.mxu0 0
      %4672 = vmatpush1.bf16.msra.mxu0 %v2296
      %4673 = vmatprep.subr.bf16.mxu0 0
      %4674 = vmatpush1.bf16.msra.mxu0 %v2297
      %4675 = vmatprep.subr.bf16.mxu0 0
      %4676 = vmatpush1.bf16.msra.mxu0 %v2298
      %4677 = vmatprep.subr.bf16.mxu0 0
      %4678 = vmatpush1.bf16.msra.mxu0 %v2299
      %4679 = vmatprep.subr.bf16.mxu0 0
      %4680 = vmatpush1.bf16.msra.mxu0 0
      %4681 = vmatprep.subr.bf16.mxu0 0
      %4682 = vmatpush1.bf16.msra.mxu0 0
      %4683 = vmatprep.subr.bf16.mxu0 0
      %4684 = vmatpush1.bf16.msra.mxu0 0
      %4685 = vmatprep.subr.bf16.mxu0 0
      %4686 = vmatpush1.bf16.msra.mxu0 0
      %4687 = vmatprep.subr.bf16.mxu0 0
      %4688 = vmatpush1.bf16.msra.mxu0 0
      %4689 = vmatprep.subr.bf16.mxu0 0
      %4690 = vmatpush1.bf16.msra.mxu0 0
      %4691 = vmatprep.subr.bf16.mxu0 0
      %4692 = vmatpush1.bf16.msra.mxu0 0
      %4693 = vmatprep.mubr.bf16.mxu0 %v4656
      %4694 = vmatmul.mubr.bf16.gmra.mrb[0].mxu0 %v4649
      %v4695 = vpop.f32.mrb[0].mxu0
      %v4696 = vadd.f32 0.0, %v4695
      %v4697 = vpop.f32.mrb[0].mxu0
      %v4698 = vpop.f32.mrb[0].mxu0
      %v4699 = vadd.f32 0.0, %v4698
      %v4700 = vpop.f32.mrb[0].mxu0
      %4701 = vmatprep.mubr.bf16.mxu0 %v4659
      %4702 = vmatmul.mubr.bf16.gmra.mrb[0].mxu0 %v4651
      %v4703 = vpop.f32.mrb[0].mxu0
      %v4704 = vadd.f32 0.0, %v4703
      %v4705 = vpop.f32.mrb[0].mxu0
      %v4706 = vpop.f32.mrb[0].mxu0
      %v4707 = vadd.f32 0.0, %v4706
      %v4708 = vpop.f32.mrb[0].mxu0
      %4709 = vdwg.mxu0
      %v4710 = vpack.c.bf16 %v4699, %v4696
      %v4711 = vpack.c.bf16 %v4707, %v4704
      %s4712 = scalar_lea.vmem %s5, 240
      %v4713 = vld [vmem:[%s4712] sm:$0xf]
      %v4714 = vld [vmem:[%s4712 + $0x4] sm:$0xf]
      %v4715 = vld [vmem:[%s4712 + $0x8] sm:$0xf]
      %v4716 = vld [vmem:[%s4712 + $0xc] sm:$0xf]
      %v4721 = vunpack.c.l.b16 %v4713
      %v4722 = vunpack.c.l.b16 %v4714
      %v4723 = vunpack.c.l.b16 %v4715
      %v4724 = vunpack.c.l.b16 %v4716
      %v4725 = vpack.c.b16 %v4722, %v4721
      %v4726 = vpack.c.b16 %v4724, %v4723
      %v4730 = vsel %vm2481, %v4710, 0
      %v4733 = vsel %vm2481, %v4711, 0
      %4735 = vmatprep.subr.bf16.mxu0 0
      %4736 = vmatpush1.bf16.msra.mxu0 %v4725
      %4737 = vmatprep.subr.bf16.mxu0 0
      %4738 = vmatpush1.bf16.msra.mxu0 %v4726
      %4739 = vmatprep.subr.bf16.mxu0 0
      %4740 = vmatpush1.bf16.msra.mxu0 0
      %4741 = vmatprep.subr.bf16.mxu0 0
      %4742 = vmatpush1.bf16.msra.mxu0 0
      %4743 = vmatprep.subr.bf16.mxu0 0
      %4744 = vmatpush1.bf16.msra.mxu0 0
      %4745 = vmatprep.subr.bf16.mxu0 0
      %4746 = vmatpush1.bf16.msra.mxu0 0
      %4747 = vmatprep.subr.bf16.mxu0 0
      %4748 = vmatpush1.bf16.msra.mxu0 0
      %4749 = vmatprep.subr.bf16.mxu0 0
      %4750 = vmatpush1.bf16.msra.mxu0 0
      %4751 = vmatprep.subr.bf16.mxu0 0
      %4752 = vmatpush1.bf16.msra.mxu0 0
      %4753 = vmatprep.subr.bf16.mxu0 0
      %4754 = vmatpush1.bf16.msra.mxu0 0
      %4755 = vmatprep.subr.bf16.mxu0 0
      %4756 = vmatpush1.bf16.msra.mxu0 0
      %4757 = vmatprep.subr.bf16.mxu0 0
      %4758 = vmatpush1.bf16.msra.mxu0 0
      %4759 = vmatprep.subr.bf16.mxu0 0
      %4760 = vmatpush1.bf16.msra.mxu0 0
      %4761 = vmatprep.subr.bf16.mxu0 0
      %4762 = vmatpush1.bf16.msra.mxu0 0
      %4763 = vmatprep.subr.bf16.mxu0 0
      %4764 = vmatpush1.bf16.msra.mxu0 0
      %4765 = vmatprep.subr.bf16.mxu0 0
      %4766 = vmatpush1.bf16.msra.mxu0 0
      %4767 = vmatprep.mubr.bf16.mxu0 0
      %4768 = vmatmul.mubr.bf16.gmra.mrb[0].mxu0 %v4730
      %v4769 = vpop.f32.mrb[0].mxu0
      %v4770 = vadd.f32 0.0, %v4769
      %v4771 = vpop.f32.mrb[0].mxu0
      %v4772 = vpop.f32.mrb[0].mxu0
      %v4773 = vadd.f32 0.0, %v4772
      %v4774 = vpop.f32.mrb[0].mxu0
      %4775 = vmatprep.mubr.bf16.mxu0 0
      %4776 = vmatmul.mubr.bf16.gmra.mrb[0].mxu0 %v4733
      %v4777 = vpop.f32.mrb[0].mxu0
      %v4778 = vadd.f32 0.0, %v4777
      %v4779 = vpop.f32.mrb[0].mxu0
      %v4780 = vpop.f32.mrb[0].mxu0
      %v4781 = vadd.f32 0.0, %v4780
      %v4782 = vpop.f32.mrb[0].mxu0
      %4783 = vdwg.mxu0
      %v4784 = vadd.f32 %v4628, %v4770
      %v4785 = vadd.f32 %v4629, %v4773
      %v4786 = vadd.f32 %v4630, %v4778
      %v4787 = vadd.f32 %v4631, %v4781
      %v4788 = vld [vmem:[%s6] sm:$0x1]
      %v4790 = vlaneseq
      %v4791 = vshrl.u32 %v4790, 7
      %v4792 = vsub.s32 0, %v4791
      %v4793 = vrot.slane %v4788, %v4792
      %v4795 = vadd.f32 %v4784, %v4793
      %v4796 = vadd.f32 %v4785, %v4793
      %v4797 = vadd.f32 %v4786, %v4793
      %v4798 = vadd.f32 %v4787, %v4793
      %v4799 = vmax.f32 %v4795, 0.0
      %v4800 = vmax.f32 %v4796, 0.0
      %v4801 = vmax.f32 %v4797, 0.0
      %v4802 = vmax.f32 %v4798, 0.0
      %v4803 = vpack.c.bf16 %v4800, %v4799
      %v4804 = vpack.c.bf16 %v4802, %v4801
      %v4805 = vld [vmem:[%s7] sm:$0xf]
      %v4806 = vld [vmem:[%s7 + $0x4] sm:$0x1]
      %v4809 = vunpack.c.l.b16 %v4805
      %v4810 = vunpack.c.l.b16 %v4806
      %v4811 = vpack.c.b16 %v4810, %v4809
      %vm4812 = vcmask 203776
      %v4814 = vsel %vm4812, %v4811, 0
      %v4817 = vand.u32 %v4804, %v711
      %4819 = vmatprep.subr.bf16.mxu0 0
      %4820 = vmatpush1.bf16.msra.mxu0 %v4803
      %4821 = vmatprep.subr.bf16.mxu0 0
      %4822 = vmatpush1.bf16.msra.mxu0 %v4817
      %4823 = vmatprep.subr.bf16.mxu0 0
      %4824 = vmatpush1.bf16.msra.mxu0 0
      %4825 = vmatprep.subr.bf16.mxu0 0
      %4826 = vmatpush1.bf16.msra.mxu0 0
      %4827 = vmatprep.subr.bf16.mxu0 0
      %4828 = vmatpush1.bf16.msra.mxu0 0
      %4829 = vmatprep.subr.bf16.mxu0 0
      %4830 = vmatpush1.bf16.msra.mxu0 0
      %4831 = vmatprep.subr.bf16.mxu0 0
      %4832 = vmatpush1.bf16.msra.mxu0 0
      %4833 = vmatprep.subr.bf16.mxu0 0
      %4834 = vmatpush1.bf16.msra.mxu0 0
      %4835 = vmatprep.subr.bf16.mxu0 0
      %4836 = vmatpush1.bf16.msra.mxu0 0
      %4837 = vmatprep.subr.bf16.mxu0 0
      %4838 = vmatpush1.bf16.msra.mxu0 0
      %4839 = vmatprep.subr.bf16.mxu0 0
      %4840 = vmatpush1.bf16.msra.mxu0 0
      %4841 = vmatprep.subr.bf16.mxu0 0
      %4842 = vmatpush1.bf16.msra.mxu0 0
      %4843 = vmatprep.subr.bf16.mxu0 0
      %4844 = vmatpush1.bf16.msra.mxu0 0
      %4845 = vmatprep.subr.bf16.mxu0 0
      %4846 = vmatpush1.bf16.msra.mxu0 0
      %4847 = vmatprep.subr.bf16.mxu0 0
      %4848 = vmatpush1.bf16.msra.mxu0 0
      %4849 = vmatprep.subr.bf16.mxu0 0
      %4850 = vmatpush1.bf16.msra.mxu0 0
      %4851 = vmatprep.mubr.bf16.mxu0 0
      %4852 = vmatmul.mubr.bf16.gmra.mrb[0].mxu0 %v4814
      %v4853 = vpop.f32.mrb[0].mxu0
      %v4854 = vadd.f32 0.0, %v4853
      %v4855 = vpop.f32.mrb[0].mxu0
      %v4856 = vpop.f32.mrb[0].mxu0
      %v4857 = vadd.f32 0.0, %v4856
      %v4858 = vpop.f32.mrb[0].mxu0
      %4859 = vdwg.mxu0
      %v4860 = vpack.c.bf16 %v4857, %v4854
      %v4861 = vld [vmem:[%s8] sm:$0xf]
      %v4862 = vld [vmem:[%s8 + $0x4] sm:$0xf]
      %v4863 = vld [vmem:[%s8 + $0x8] sm:$0xf]
      %v4864 = vld [vmem:[%s8 + $0xc] sm:$0xf]
      %v4865 = vld [vmem:[%s8 + $0x10] sm:$0xf]
      %v4866 = vld [vmem:[%s8 + $0x14] sm:$0xf]
      %v4867 = vld [vmem:[%s8 + $0x18] sm:$0xf]
      %v4868 = vld [vmem:[%s8 + $0x1c] sm:$0xf]
      %s4869 = scalar_lea.vmem %s7, 8
      %v4870 = vld [vmem:[%s4869] sm:$0xf]
      %v4871 = vld [vmem:[%s4869 + $0x4] sm:$0x1]
      %v4874 = vunpack.c.l.b16 %v4870
      %v4875 = vunpack.c.l.b16 %v4871
      %v4876 = vpack.c.b16 %v4875, %v4874
      %v4878 = vsel %vm4812, %v4876, 0
      %4880 = vmatprep.subr.bf16.mxu0 0
      %4881 = vmatpush1.bf16.msra.mxu0 %v4803
      %4882 = vmatprep.subr.bf16.mxu0 0
      %4883 = vmatpush1.bf16.msra.mxu0 %v4817
      %4884 = vmatprep.subr.bf16.mxu0 0
      %4885 = vmatpush1.bf16.msra.mxu0 0
      %4886 = vmatprep.subr.bf16.mxu0 0
      %4887 = vmatpush1.bf16.msra.mxu0 0
      %4888 = vmatprep.subr.bf16.mxu0 0
      %4889 = vmatpush1.bf16.msra.mxu0 0
      %4890 = vmatprep.subr.bf16.mxu0 0
      %4891 = vmatpush1.bf16.msra.mxu0 0
      %4892 = vmatprep.subr.bf16.mxu0 0
      %4893 = vmatpush1.bf16.msra.mxu0 0
      %4894 = vmatprep.subr.bf16.mxu0 0
      %4895 = vmatpush1.bf16.msra.mxu0 0
      %4896 = vmatprep.subr.bf16.mxu0 0
      %4897 = vmatpush1.bf16.msra.mxu0 0
      %4898 = vmatprep.subr.bf16.mxu0 0
      %4899 = vmatpush1.bf16.msra.mxu0 0
      %4900 = vmatprep.subr.bf16.mxu0 0
      %4901 = vmatpush1.bf16.msra.mxu0 0
      %4902 = vmatprep.subr.bf16.mxu0 0
      %4903 = vmatpush1.bf16.msra.mxu0 0
      %4904 = vmatprep.subr.bf16.mxu0 0
      %4905 = vmatpush1.bf16.msra.mxu0 0
      %4906 = vmatprep.subr.bf16.mxu0 0
      %4907 = vmatpush1.bf16.msra.mxu0 0
      %4908 = vmatprep.subr.bf16.mxu0 0
      %4909 = vmatpush1.bf16.msra.mxu0 0
      %4910 = vmatprep.subr.bf16.mxu0 0
      %4911 = vmatpush1.bf16.msra.mxu0 0
      %4912 = vmatprep.mubr.bf16.mxu0 0
      %4913 = vmatmul.mubr.bf16.gmra.mrb[0].mxu0 %v4878
      %v4914 = vpop.f32.mrb[0].mxu0
      %v4915 = vadd.f32 0.0, %v4914
      %v4916 = vpop.f32.mrb[0].mxu0
      %v4917 = vpop.f32.mrb[0].mxu0
      %v4918 = vadd.f32 0.0, %v4917
      %v4919 = vpop.f32.mrb[0].mxu0
      %4920 = vdwg.mxu0
      %v4921 = vpack.c.bf16 %v4918, %v4915
      %s4922 = scalar_lea.vmem %s8, 32
      %v4923 = vld [vmem:[%s4922] sm:$0xf]
      %v4924 = vld [vmem:[%s4922 + $0x4] sm:$0xf]
      %v4925 = vld [vmem:[%s4922 + $0x8] sm:$0xf]
      %v4926 = vld [vmem:[%s4922 + $0xc] sm:$0xf]
      %v4927 = vld [vmem:[%s4922 + $0x10] sm:$0xf]
      %v4928 = vld [vmem:[%s4922 + $0x14] sm:$0xf]
      %v4929 = vld [vmem:[%s4922 + $0x18] sm:$0xf]
      %v4930 = vld [vmem:[%s4922 + $0x1c] sm:$0xf]
      %v4939 = vunpack.c.l.b16 %v4923
      %v4940 = vunpack.c.l.b16 %v4924
      %v4941 = vunpack.c.l.b16 %v4925
      %v4942 = vunpack.c.l.b16 %v4926
      %v4943 = vunpack.c.l.b16 %v4927
      %v4944 = vunpack.c.l.b16 %v4928
      %v4945 = vunpack.c.l.b16 %v4929
      %v4946 = vunpack.c.l.b16 %v4930
      %v4947 = vpack.c.b16 %v4940, %v4939
      %v4948 = vpack.c.b16 %v4942, %v4941
      %v4949 = vpack.c.b16 %v4944, %v4943
      %v4950 = vpack.c.b16 %v4946, %v4945
      %v4956 = vsel %vm1111, %v4921, 0
      %4958 = vmatprep.subr.bf16.mxu0 0
      %4959 = vmatpush1.bf16.msra.mxu0 %v4947
      %4960 = vmatprep.subr.bf16.mxu0 0
      %4961 = vmatpush1.bf16.msra.mxu0 %v4948
      %4962 = vmatprep.subr.bf16.mxu0 0
      %4963 = vmatpush1.bf16.msra.mxu0 %v4949
      %4964 = vmatprep.subr.bf16.mxu0 0
      %4965 = vmatpush1.bf16.msra.mxu0 %v4950
      %4966 = vmatprep.subr.bf16.mxu0 0
      %4967 = vmatpush1.bf16.msra.mxu0 0
      %4968 = vmatprep.subr.bf16.mxu0 0
      %4969 = vmatpush1.bf16.msra.mxu0 0
      %4970 = vmatprep.subr.bf16.mxu0 0
      %4971 = vmatpush1.bf16.msra.mxu0 0
      %4972 = vmatprep.subr.bf16.mxu0 0
      %4973 = vmatpush1.bf16.msra.mxu0 0
      %4974 = vmatprep.subr.bf16.mxu0 0
      %4975 = vmatpush1.bf16.msra.mxu0 0
      %4976 = vmatprep.subr.bf16.mxu0 0
      %4977 = vmatpush1.bf16.msra.mxu0 0
      %4978 = vmatprep.subr.bf16.mxu0 0
      %4979 = vmatpush1.bf16.msra.mxu0 0
      %4980 = vmatprep.subr.bf16.mxu0 0
      %4981 = vmatpush1.bf16.msra.mxu0 0
      %4982 = vmatprep.subr.bf16.mxu0 0
      %4983 = vmatpush1.bf16.msra.mxu0 0
      %4984 = vmatprep.subr.bf16.mxu0 0
      %4985 = vmatpush1.bf16.msra.mxu0 0
      %4986 = vmatprep.subr.bf16.mxu0 0
      %4987 = vmatpush1.bf16.msra.mxu0 0
      %4988 = vmatprep.subr.bf16.mxu0 0
      %4989 = vmatpush1.bf16.msra.mxu0 0
      %4990 = vmatprep.mubr.bf16.mxu0 0
      %4991 = vmatmul.mubr.bf16.gmra.mrb[0].mxu0 %v4956
      %v4992 = vpop.f32.mrb[0].mxu0
      %v4993 = vadd.f32 0.0, %v4992
      %v4994 = vpop.f32.mrb[0].mxu0
      %v4995 = vpop.f32.mrb[0].mxu0
      %v4996 = vadd.f32 0.0, %v4995
      %v4997 = vpop.f32.mrb[0].mxu0
      %4998 = vdwg.mxu0
      %v5007 = vunpack.c.l.b16 %v4861
      %v5008 = vunpack.c.l.b16 %v4862
      %v5009 = vunpack.c.l.b16 %v4863
      %v5010 = vunpack.c.l.b16 %v4864
      %v5011 = vunpack.c.l.b16 %v4865
      %v5012 = vunpack.c.l.b16 %v4866
      %v5013 = vunpack.c.l.b16 %v4867
      %v5014 = vunpack.c.l.b16 %v4868
      %v5015 = vpack.c.b16 %v5008, %v5007
      %v5016 = vpack.c.b16 %v5010, %v5009
      %v5017 = vpack.c.b16 %v5012, %v5011
      %v5018 = vpack.c.b16 %v5014, %v5013
      %v5024 = vsel %vm1111, %v4860, 0
      %5026 = vmatprep.subr.bf16.mxu0 0
      %5027 = vmatpush1.bf16.msra.mxu0 %v5015
      %5028 = vmatprep.subr.bf16.mxu0 0
      %5029 = vmatpush1.bf16.msra.mxu0 %v5016
      %5030 = vmatprep.subr.bf16.mxu0 0
      %5031 = vmatpush1.bf16.msra.mxu0 %v5017
      %5032 = vmatprep.subr.bf16.mxu0 0
      %5033 = vmatpush1.bf16.msra.mxu0 %v5018
      %5034 = vmatprep.subr.bf16.mxu0 0
      %5035 = vmatpush1.bf16.msra.mxu0 0
      %5036 = vmatprep.subr.bf16.mxu0 0
      %5037 = vmatpush1.bf16.msra.mxu0 0
      %5038 = vmatprep.subr.bf16.mxu0 0
      %5039 = vmatpush1.bf16.msra.mxu0 0
      %5040 = vmatprep.subr.bf16.mxu0 0
      %5041 = vmatpush1.bf16.msra.mxu0 0
      %5042 = vmatprep.subr.bf16.mxu0 0
      %5043 = vmatpush1.bf16.msra.mxu0 0
      %5044 = vmatprep.subr.bf16.mxu0 0
      %5045 = vmatpush1.bf16.msra.mxu0 0
      %5046 = vmatprep.subr.bf16.mxu0 0
      %5047 = vmatpush1.bf16.msra.mxu0 0
      %5048 = vmatprep.subr.bf16.mxu0 0
      %5049 = vmatpush1.bf16.msra.mxu0 0
      %5050 = vmatprep.subr.bf16.mxu0 0
      %5051 = vmatpush1.bf16.msra.mxu0 0
      %5052 = vmatprep.subr.bf16.mxu0 0
      %5053 = vmatpush1.bf16.msra.mxu0 0
      %5054 = vmatprep.subr.bf16.mxu0 0
      %5055 = vmatpush1.bf16.msra.mxu0 0
      %5056 = vmatprep.subr.bf16.mxu0 0
      %5057 = vmatpush1.bf16.msra.mxu0 0
      %5058 = vmatprep.mubr.bf16.mxu0 0
      %5059 = vmatmul.mubr.bf16.gmra.mrb[0].mxu0 %v5024
      %v5060 = vpop.f32.mrb[0].mxu0
      %v5061 = vadd.f32 %v4993, %v5060
      %v5062 = vpop.f32.mrb[0].mxu0
      %v5063 = vpop.f32.mrb[0].mxu0
      %v5064 = vadd.f32 %v4996, %v5063
      %v5065 = vpop.f32.mrb[0].mxu0
      %5066 = vdwg.mxu0
      %s5067 = scalar_lea.vmem %s7, 16
      %v5068 = vld [vmem:[%s5067] sm:$0xf]
      %v5069 = vld [vmem:[%s5067 + $0x4] sm:$0x1]
      %v5072 = vunpack.c.l.b16 %v5068
      %v5073 = vunpack.c.l.b16 %v5069
      %v5074 = vpack.c.b16 %v5073, %v5072
      %v5076 = vsel %vm4812, %v5074, 0
      %5078 = vmatprep.subr.bf16.mxu0 0
      %5079 = vmatpush1.bf16.msra.mxu0 %v4803
      %5080 = vmatprep.subr.bf16.mxu0 0
      %5081 = vmatpush1.bf16.msra.mxu0 %v4817
      %5082 = vmatprep.subr.bf16.mxu0 0
      %5083 = vmatpush1.bf16.msra.mxu0 0
      %5084 = vmatprep.subr.bf16.mxu0 0
      %5085 = vmatpush1.bf16.msra.mxu0 0
      %5086 = vmatprep.subr.bf16.mxu0 0
      %5087 = vmatpush1.bf16.msra.mxu0 0
      %5088 = vmatprep.subr.bf16.mxu0 0
      %5089 = vmatpush1.bf16.msra.mxu0 0
      %5090 = vmatprep.subr.bf16.mxu0 0
      %5091 = vmatpush1.bf16.msra.mxu0 0
      %5092 = vmatprep.subr.bf16.mxu0 0
      %5093 = vmatpush1.bf16.msra.mxu0 0
      %5094 = vmatprep.subr.bf16.mxu0 0
      %5095 = vmatpush1.bf16.msra.mxu0 0
      %5096 = vmatprep.subr.bf16.mxu0 0
      %5097 = vmatpush1.bf16.msra.mxu0 0
      %5098 = vmatprep.subr.bf16.mxu0 0
      %5099 = vmatpush1.bf16.msra.mxu0 0
      %5100 = vmatprep.subr.bf16.mxu0 0
      %5101 = vmatpush1.bf16.msra.mxu0 0
      %5102 = vmatprep.subr.bf16.mxu0 0
      %5103 = vmatpush1.bf16.msra.mxu0 0
      %5104 = vmatprep.subr.bf16.mxu0 0
      %5105 = vmatpush1.bf16.msra.mxu0 0
      %5106 = vmatprep.subr.bf16.mxu0 0
      %5107 = vmatpush1.bf16.msra.mxu0 0
      %5108 = vmatprep.subr.bf16.mxu0 0
      %5109 = vmatpush1.bf16.msra.mxu0 0
      %5110 = vmatprep.mubr.bf16.mxu0 0
      %5111 = vmatmul.mubr.bf16.gmra.mrb[0].mxu0 %v5076
      %v5112 = vpop.f32.mrb[0].mxu0
      %v5113 = vadd.f32 0.0, %v5112
      %v5114 = vpop.f32.mrb[0].mxu0
      %v5115 = vpop.f32.mrb[0].mxu0
      %v5116 = vadd.f32 0.0, %v5115
      %v5117 = vpop.f32.mrb[0].mxu0
      %5118 = vdwg.mxu0
      %v5119 = vpack.c.bf16 %v5116, %v5113
      %s5120 = scalar_lea.vmem %s8, 64
      %v5121 = vld [vmem:[%s5120] sm:$0xf]
      %v5122 = vld [vmem:[%s5120 + $0x4] sm:$0xf]
      %v5123 = vld [vmem:[%s5120 + $0x8] sm:$0xf]
      %v5124 = vld [vmem:[%s5120 + $0xc] sm:$0xf]
      %v5125 = vld [vmem:[%s5120 + $0x10] sm:$0xf]
      %v5126 = vld [vmem:[%s5120 + $0x14] sm:$0xf]
      %v5127 = vld [vmem:[%s5120 + $0x18] sm:$0xf]
      %v5128 = vld [vmem:[%s5120 + $0x1c] sm:$0xf]
      %v5137 = vunpack.c.l.b16 %v5121
      %v5138 = vunpack.c.l.b16 %v5122
      %v5139 = vunpack.c.l.b16 %v5123
      %v5140 = vunpack.c.l.b16 %v5124
      %v5141 = vunpack.c.l.b16 %v5125
      %v5142 = vunpack.c.l.b16 %v5126
      %v5143 = vunpack.c.l.b16 %v5127
      %v5144 = vunpack.c.l.b16 %v5128
      %v5145 = vpack.c.b16 %v5138, %v5137
      %v5146 = vpack.c.b16 %v5140, %v5139
      %v5147 = vpack.c.b16 %v5142, %v5141
      %v5148 = vpack.c.b16 %v5144, %v5143
      %v5154 = vsel %vm1111, %v5119, 0
      %5156 = vmatprep.subr.bf16.mxu0 0
      %5157 = vmatpush1.bf16.msra.mxu0 %v5145
      %5158 = vmatprep.subr.bf16.mxu0 0
      %5159 = vmatpush1.bf16.msra.mxu0 %v5146
      %5160 = vmatprep.subr.bf16.mxu0 0
      %5161 = vmatpush1.bf16.msra.mxu0 %v5147
      %5162 = vmatprep.subr.bf16.mxu0 0
      %5163 = vmatpush1.bf16.msra.mxu0 %v5148
      %5164 = vmatprep.subr.bf16.mxu0 0
      %5165 = vmatpush1.bf16.msra.mxu0 0
      %5166 = vmatprep.subr.bf16.mxu0 0
      %5167 = vmatpush1.bf16.msra.mxu0 0
      %5168 = vmatprep.subr.bf16.mxu0 0
      %5169 = vmatpush1.bf16.msra.mxu0 0
      %5170 = vmatprep.subr.bf16.mxu0 0
      %5171 = vmatpush1.bf16.msra.mxu0 0
      %5172 = vmatprep.subr.bf16.mxu0 0
      %5173 = vmatpush1.bf16.msra.mxu0 0
      %5174 = vmatprep.subr.bf16.mxu0 0
      %5175 = vmatpush1.bf16.msra.mxu0 0
      %5176 = vmatprep.subr.bf16.mxu0 0
      %5177 = vmatpush1.bf16.msra.mxu0 0
      %5178 = vmatprep.subr.bf16.mxu0 0
      %5179 = vmatpush1.bf16.msra.mxu0 0
      %5180 = vmatprep.subr.bf16.mxu0 0
      %5181 = vmatpush1.bf16.msra.mxu0 0
      %5182 = vmatprep.subr.bf16.mxu0 0
      %5183 = vmatpush1.bf16.msra.mxu0 0
      %5184 = vmatprep.subr.bf16.mxu0 0
      %5185 = vmatpush1.bf16.msra.mxu0 0
      %5186 = vmatprep.subr.bf16.mxu0 0
      %5187 = vmatpush1.bf16.msra.mxu0 0
      %5188 = vmatprep.mubr.bf16.mxu0 0
      %5189 = vmatmul.mubr.bf16.gmra.mrb[0].mxu0 %v5154
      %v5190 = vpop.f32.mrb[0].mxu0
      %v5191 = vadd.f32 0.0, %v5190
      %v5192 = vpop.f32.mrb[0].mxu0
      %v5193 = vpop.f32.mrb[0].mxu0
      %v5194 = vadd.f32 0.0, %v5193
      %v5195 = vpop.f32.mrb[0].mxu0
      %5196 = vdwg.mxu0
      %v5197 = vadd.f32 %v5061, %v5191
      %v5198 = vadd.f32 %v5064, %v5194
      %s5199 = scalar_lea.vmem %s7, 24
      %v5200 = vld [vmem:[%s5199] sm:$0xf]
      %v5201 = vld [vmem:[%s5199 + $0x4] sm:$0x1]
      %v5204 = vunpack.c.l.b16 %v5200
      %v5205 = vunpack.c.l.b16 %v5201
      %v5206 = vpack.c.b16 %v5205, %v5204
      %v5208 = vsel %vm4812, %v5206, 0
      %5210 = vmatprep.subr.bf16.mxu0 0
      %5211 = vmatpush1.bf16.msra.mxu0 %v4803
      %5212 = vmatprep.subr.bf16.mxu0 0
      %5213 = vmatpush1.bf16.msra.mxu0 %v4817
      %5214 = vmatprep.subr.bf16.mxu0 0
      %5215 = vmatpush1.bf16.msra.mxu0 0
      %5216 = vmatprep.subr.bf16.mxu0 0
      %5217 = vmatpush1.bf16.msra.mxu0 0
      %5218 = vmatprep.subr.bf16.mxu0 0
      %5219 = vmatpush1.bf16.msra.mxu0 0
      %5220 = vmatprep.subr.bf16.mxu0 0
      %5221 = vmatpush1.bf16.msra.mxu0 0
      %5222 = vmatprep.subr.bf16.mxu0 0
      %5223 = vmatpush1.bf16.msra.mxu0 0
      %5224 = vmatprep.subr.bf16.mxu0 0
      %5225 = vmatpush1.bf16.msra.mxu0 0
      %5226 = vmatprep.subr.bf16.mxu0 0
      %5227 = vmatpush1.bf16.msra.mxu0 0
      %5228 = vmatprep.subr.bf16.mxu0 0
      %5229 = vmatpush1.bf16.msra.mxu0 0
      %5230 = vmatprep.subr.bf16.mxu0 0
      %5231 = vmatpush1.bf16.msra.mxu0 0
      %5232 = vmatprep.subr.bf16.mxu0 0
      %5233 = vmatpush1.bf16.msra.mxu0 0
      %5234 = vmatprep.subr.bf16.mxu0 0
      %5235 = vmatpush1.bf16.msra.mxu0 0
      %5236 = vmatprep.subr.bf16.mxu0 0
      %5237 = vmatpush1.bf16.msra.mxu0 0
      %5238 = vmatprep.subr.bf16.mxu0 0
      %5239 = vmatpush1.bf16.msra.mxu0 0
      %5240 = vmatprep.subr.bf16.mxu0 0
      %5241 = vmatpush1.bf16.msra.mxu0 0
      %5242 = vmatprep.mubr.bf16.mxu0 0
      %5243 = vmatmul.mubr.bf16.gmra.mrb[0].mxu0 %v5208
      %v5244 = vpop.f32.mrb[0].mxu0
      %v5245 = vadd.f32 0.0, %v5244
      %v5246 = vpop.f32.mrb[0].mxu0
      %v5247 = vpop.f32.mrb[0].mxu0
      %v5248 = vadd.f32 0.0, %v5247
      %v5249 = vpop.f32.mrb[0].mxu0
      %5250 = vdwg.mxu0
      %v5251 = vpack.c.bf16 %v5248, %v5245
      %s5252 = scalar_lea.vmem %s8, 96
      %v5253 = vld [vmem:[%s5252] sm:$0xf]
      %v5254 = vld [vmem:[%s5252 + $0x4] sm:$0xf]
      %v5255 = vld [vmem:[%s5252 + $0x8] sm:$0xf]
      %v5256 = vld [vmem:[%s5252 + $0xc] sm:$0xf]
      %v5257 = vld [vmem:[%s5252 + $0x10] sm:$0xf]
      %v5258 = vld [vmem:[%s5252 + $0x14] sm:$0xf]
      %v5259 = vld [vmem:[%s5252 + $0x18] sm:$0xf]
      %v5260 = vld [vmem:[%s5252 + $0x1c] sm:$0xf]
      %v5269 = vunpack.c.l.b16 %v5253
      %v5270 = vunpack.c.l.b16 %v5254
      %v5271 = vunpack.c.l.b16 %v5255
      %v5272 = vunpack.c.l.b16 %v5256
      %v5273 = vunpack.c.l.b16 %v5257
      %v5274 = vunpack.c.l.b16 %v5258
      %v5275 = vunpack.c.l.b16 %v5259
      %v5276 = vunpack.c.l.b16 %v5260
      %v5277 = vpack.c.b16 %v5270, %v5269
      %v5278 = vpack.c.b16 %v5272, %v5271
      %v5279 = vpack.c.b16 %v5274, %v5273
      %v5280 = vpack.c.b16 %v5276, %v5275
      %v5286 = vsel %vm1111, %v5251, 0
      %5288 = vmatprep.subr.bf16.mxu0 0
      %5289 = vmatpush1.bf16.msra.mxu0 %v5277
      %5290 = vmatprep.subr.bf16.mxu0 0
      %5291 = vmatpush1.bf16.msra.mxu0 %v5278
      %5292 = vmatprep.subr.bf16.mxu0 0
      %5293 = vmatpush1.bf16.msra.mxu0 %v5279
      %5294 = vmatprep.subr.bf16.mxu0 0
      %5295 = vmatpush1.bf16.msra.mxu0 %v5280
      %5296 = vmatprep.subr.bf16.mxu0 0
      %5297 = vmatpush1.bf16.msra.mxu0 0
      %5298 = vmatprep.subr.bf16.mxu0 0
      %5299 = vmatpush1.bf16.msra.mxu0 0
      %5300 = vmatprep.subr.bf16.mxu0 0
      %5301 = vmatpush1.bf16.msra.mxu0 0
      %5302 = vmatprep.subr.bf16.mxu0 0
      %5303 = vmatpush1.bf16.msra.mxu0 0
      %5304 = vmatprep.subr.bf16.mxu0 0
      %5305 = vmatpush1.bf16.msra.mxu0 0
      %5306 = vmatprep.subr.bf16.mxu0 0
      %5307 = vmatpush1.bf16.msra.mxu0 0
      %5308 = vmatprep.subr.bf16.mxu0 0
      %5309 = vmatpush1.bf16.msra.mxu0 0
      %5310 = vmatprep.subr.bf16.mxu0 0
      %5311 = vmatpush1.bf16.msra.mxu0 0
      %5312 = vmatprep.subr.bf16.mxu0 0
      %5313 = vmatpush1.bf16.msra.mxu0 0
      %5314 = vmatprep.subr.bf16.mxu0 0
      %5315 = vmatpush1.bf16.msra.mxu0 0
      %5316 = vmatprep.subr.bf16.mxu0 0
      %5317 = vmatpush1.bf16.msra.mxu0 0
      %5318 = vmatprep.subr.bf16.mxu0 0
      %5319 = vmatpush1.bf16.msra.mxu0 0
      %5320 = vmatprep.mubr.bf16.mxu0 0
      %5321 = vmatmul.mubr.bf16.gmra.mrb[0].mxu0 %v5286
      %v5322 = vpop.f32.mrb[0].mxu0
      %v5323 = vadd.f32 0.0, %v5322
      %v5324 = vpop.f32.mrb[0].mxu0
      %v5325 = vpop.f32.mrb[0].mxu0
      %v5326 = vadd.f32 0.0, %v5325
      %v5327 = vpop.f32.mrb[0].mxu0
      %5328 = vdwg.mxu0
      %v5329 = vadd.f32 %v5197, %v5323
      %v5330 = vadd.f32 %v5198, %v5326
      %s5331 = scalar_lea.vmem %s7, 32
      %v5332 = vld [vmem:[%s5331] sm:$0xf]
      %v5333 = vld [vmem:[%s5331 + $0x4] sm:$0x1]
      %v5336 = vunpack.c.l.b16 %v5332
      %v5337 = vunpack.c.l.b16 %v5333
      %v5338 = vpack.c.b16 %v5337, %v5336
      %v5340 = vsel %vm4812, %v5338, 0
      %5342 = vmatprep.subr.bf16.mxu0 0
      %5343 = vmatpush1.bf16.msra.mxu0 %v4803
      %5344 = vmatprep.subr.bf16.mxu0 0
      %5345 = vmatpush1.bf16.msra.mxu0 %v4817
      %5346 = vmatprep.subr.bf16.mxu0 0
      %5347 = vmatpush1.bf16.msra.mxu0 0
      %5348 = vmatprep.subr.bf16.mxu0 0
      %5349 = vmatpush1.bf16.msra.mxu0 0
      %5350 = vmatprep.subr.bf16.mxu0 0
      %5351 = vmatpush1.bf16.msra.mxu0 0
      %5352 = vmatprep.subr.bf16.mxu0 0
      %5353 = vmatpush1.bf16.msra.mxu0 0
      %5354 = vmatprep.subr.bf16.mxu0 0
      %5355 = vmatpush1.bf16.msra.mxu0 0
      %5356 = vmatprep.subr.bf16.mxu0 0
      %5357 = vmatpush1.bf16.msra.mxu0 0
      %5358 = vmatprep.subr.bf16.mxu0 0
      %5359 = vmatpush1.bf16.msra.mxu0 0
      %5360 = vmatprep.subr.bf16.mxu0 0
      %5361 = vmatpush1.bf16.msra.mxu0 0
      %5362 = vmatprep.subr.bf16.mxu0 0
      %5363 = vmatpush1.bf16.msra.mxu0 0
      %5364 = vmatprep.subr.bf16.mxu0 0
      %5365 = vmatpush1.bf16.msra.mxu0 0
      %5366 = vmatprep.subr.bf16.mxu0 0
      %5367 = vmatpush1.bf16.msra.mxu0 0
      %5368 = vmatprep.subr.bf16.mxu0 0
      %5369 = vmatpush1.bf16.msra.mxu0 0
      %5370 = vmatprep.subr.bf16.mxu0 0
      %5371 = vmatpush1.bf16.msra.mxu0 0
      %5372 = vmatprep.subr.bf16.mxu0 0
      %5373 = vmatpush1.bf16.msra.mxu0 0
      %5374 = vmatprep.mubr.bf16.mxu0 0
      %5375 = vmatmul.mubr.bf16.gmra.mrb[0].mxu0 %v5340
      %v5376 = vpop.f32.mrb[0].mxu0
      %v5377 = vadd.f32 0.0, %v5376
      %v5378 = vpop.f32.mrb[0].mxu0
      %v5379 = vpop.f32.mrb[0].mxu0
      %v5380 = vadd.f32 0.0, %v5379
      %v5381 = vpop.f32.mrb[0].mxu0
      %5382 = vdwg.mxu0
      %v5383 = vpack.c.bf16 %v5380, %v5377
      %s5384 = scalar_lea.vmem %s8, 128
      %v5385 = vld [vmem:[%s5384] sm:$0xf]
      %v5386 = vld [vmem:[%s5384 + $0x4] sm:$0xf]
      %v5387 = vld [vmem:[%s5384 + $0x8] sm:$0xf]
      %v5388 = vld [vmem:[%s5384 + $0xc] sm:$0xf]
      %v5389 = vld [vmem:[%s5384 + $0x10] sm:$0xf]
      %v5390 = vld [vmem:[%s5384 + $0x14] sm:$0xf]
      %v5391 = vld [vmem:[%s5384 + $0x18] sm:$0xf]
      %v5392 = vld [vmem:[%s5384 + $0x1c] sm:$0xf]
      %v5401 = vunpack.c.l.b16 %v5385
      %v5402 = vunpack.c.l.b16 %v5386
      %v5403 = vunpack.c.l.b16 %v5387
      %v5404 = vunpack.c.l.b16 %v5388
      %v5405 = vunpack.c.l.b16 %v5389
      %v5406 = vunpack.c.l.b16 %v5390
      %v5407 = vunpack.c.l.b16 %v5391
      %v5408 = vunpack.c.l.b16 %v5392
      %v5409 = vpack.c.b16 %v5402, %v5401
      %v5410 = vpack.c.b16 %v5404, %v5403
      %v5411 = vpack.c.b16 %v5406, %v5405
      %v5412 = vpack.c.b16 %v5408, %v5407
      %v5418 = vsel %vm1111, %v5383, 0
      %5420 = vmatprep.subr.bf16.mxu0 0
      %5421 = vmatpush1.bf16.msra.mxu0 %v5409
      %5422 = vmatprep.subr.bf16.mxu0 0
      %5423 = vmatpush1.bf16.msra.mxu0 %v5410
      %5424 = vmatprep.subr.bf16.mxu0 0
      %5425 = vmatpush1.bf16.msra.mxu0 %v5411
      %5426 = vmatprep.subr.bf16.mxu0 0
      %5427 = vmatpush1.bf16.msra.mxu0 %v5412
      %5428 = vmatprep.subr.bf16.mxu0 0
      %5429 = vmatpush1.bf16.msra.mxu0 0
      %5430 = vmatprep.subr.bf16.mxu0 0
      %5431 = vmatpush1.bf16.msra.mxu0 0
      %5432 = vmatprep.subr.bf16.mxu0 0
      %5433 = vmatpush1.bf16.msra.mxu0 0
      %5434 = vmatprep.subr.bf16.mxu0 0
      %5435 = vmatpush1.bf16.msra.mxu0 0
      %5436 = vmatprep.subr.bf16.mxu0 0
      %5437 = vmatpush1.bf16.msra.mxu0 0
      %5438 = vmatprep.subr.bf16.mxu0 0
      %5439 = vmatpush1.bf16.msra.mxu0 0
      %5440 = vmatprep.subr.bf16.mxu0 0
      %5441 = vmatpush1.bf16.msra.mxu0 0
      %5442 = vmatprep.subr.bf16.mxu0 0
      %5443 = vmatpush1.bf16.msra.mxu0 0
      %5444 = vmatprep.subr.bf16.mxu0 0
      %5445 = vmatpush1.bf16.msra.mxu0 0
      %5446 = vmatprep.subr.bf16.mxu0 0
      %5447 = vmatpush1.bf16.msra.mxu0 0
      %5448 = vmatprep.subr.bf16.mxu0 0
      %5449 = vmatpush1.bf16.msra.mxu0 0
      %5450 = vmatprep.subr.bf16.mxu0 0
      %5451 = vmatpush1.bf16.msra.mxu0 0
      %5452 = vmatprep.mubr.bf16.mxu0 0
      %5453 = vmatmul.mubr.bf16.gmra.mrb[0].mxu0 %v5418
      %v5454 = vpop.f32.mrb[0].mxu0
      %v5455 = vadd.f32 0.0, %v5454
      %v5456 = vpop.f32.mrb[0].mxu0
      %v5457 = vpop.f32.mrb[0].mxu0
      %v5458 = vadd.f32 0.0, %v5457
      %v5459 = vpop.f32.mrb[0].mxu0
      %5460 = vdwg.mxu0
      %v5461 = vadd.f32 %v5329, %v5455
      %v5462 = vadd.f32 %v5330, %v5458
      %s5463 = scalar_lea.vmem %s7, 40
      %v5464 = vld [vmem:[%s5463] sm:$0xf]
      %v5465 = vld [vmem:[%s5463 + $0x4] sm:$0x1]
      %v5468 = vunpack.c.l.b16 %v5464
      %v5469 = vunpack.c.l.b16 %v5465
      %v5470 = vpack.c.b16 %v5469, %v5468
      %v5472 = vsel %vm4812, %v5470, 0
      %5474 = vmatprep.subr.bf16.mxu0 0
      %5475 = vmatpush1.bf16.msra.mxu0 %v4803
      %5476 = vmatprep.subr.bf16.mxu0 0
      %5477 = vmatpush1.bf16.msra.mxu0 %v4817
      %5478 = vmatprep.subr.bf16.mxu0 0
      %5479 = vmatpush1.bf16.msra.mxu0 0
      %5480 = vmatprep.subr.bf16.mxu0 0
      %5481 = vmatpush1.bf16.msra.mxu0 0
      %5482 = vmatprep.subr.bf16.mxu0 0
      %5483 = vmatpush1.bf16.msra.mxu0 0
      %5484 = vmatprep.subr.bf16.mxu0 0
      %5485 = vmatpush1.bf16.msra.mxu0 0
      %5486 = vmatprep.subr.bf16.mxu0 0
      %5487 = vmatpush1.bf16.msra.mxu0 0
      %5488 = vmatprep.subr.bf16.mxu0 0
      %5489 = vmatpush1.bf16.msra.mxu0 0
      %5490 = vmatprep.subr.bf16.mxu0 0
      %5491 = vmatpush1.bf16.msra.mxu0 0
      %5492 = vmatprep.subr.bf16.mxu0 0
      %5493 = vmatpush1.bf16.msra.mxu0 0
      %5494 = vmatprep.subr.bf16.mxu0 0
      %5495 = vmatpush1.bf16.msra.mxu0 0
      %5496 = vmatprep.subr.bf16.mxu0 0
      %5497 = vmatpush1.bf16.msra.mxu0 0
      %5498 = vmatprep.subr.bf16.mxu0 0
      %5499 = vmatpush1.bf16.msra.mxu0 0
      %5500 = vmatprep.subr.bf16.mxu0 0
      %5501 = vmatpush1.bf16.msra.mxu0 0
      %5502 = vmatprep.subr.bf16.mxu0 0
      %5503 = vmatpush1.bf16.msra.mxu0 0
      %5504 = vmatprep.subr.bf16.mxu0 0
      %5505 = vmatpush1.bf16.msra.mxu0 0
      %5506 = vmatprep.mubr.bf16.mxu0 0
      %5507 = vmatmul.mubr.bf16.gmra.mrb[0].mxu0 %v5472
      %v5508 = vpop.f32.mrb[0].mxu0
      %v5509 = vadd.f32 0.0, %v5508
      %v5510 = vpop.f32.mrb[0].mxu0
      %v5511 = vpop.f32.mrb[0].mxu0
      %v5512 = vadd.f32 0.0, %v5511
      %v5513 = vpop.f32.mrb[0].mxu0
      %5514 = vdwg.mxu0
      %v5515 = vpack.c.bf16 %v5512, %v5509
      %s5516 = scalar_lea.vmem %s8, 160
      %v5517 = vld [vmem:[%s5516] sm:$0xf]
      %v5518 = vld [vmem:[%s5516 + $0x4] sm:$0xf]
      %v5519 = vld [vmem:[%s5516 + $0x8] sm:$0xf]
      %v5520 = vld [vmem:[%s5516 + $0xc] sm:$0xf]
      %v5521 = vld [vmem:[%s5516 + $0x10] sm:$0xf]
      %v5522 = vld [vmem:[%s5516 + $0x14] sm:$0xf]
      %v5523 = vld [vmem:[%s5516 + $0x18] sm:$0xf]
      %v5524 = vld [vmem:[%s5516 + $0x1c] sm:$0xf]
      %v5533 = vunpack.c.l.b16 %v5517
      %v5534 = vunpack.c.l.b16 %v5518
      %v5535 = vunpack.c.l.b16 %v5519
      %v5536 = vunpack.c.l.b16 %v5520
      %v5537 = vunpack.c.l.b16 %v5521
      %v5538 = vunpack.c.l.b16 %v5522
      %v5539 = vunpack.c.l.b16 %v5523
      %v5540 = vunpack.c.l.b16 %v5524
      %v5541 = vpack.c.b16 %v5534, %v5533
      %v5542 = vpack.c.b16 %v5536, %v5535
      %v5543 = vpack.c.b16 %v5538, %v5537
      %v5544 = vpack.c.b16 %v5540, %v5539
      %v5550 = vsel %vm1111, %v5515, 0
      %5552 = vmatprep.subr.bf16.mxu0 0
      %5553 = vmatpush1.bf16.msra.mxu0 %v5541
      %5554 = vmatprep.subr.bf16.mxu0 0
      %5555 = vmatpush1.bf16.msra.mxu0 %v5542
      %5556 = vmatprep.subr.bf16.mxu0 0
      %5557 = vmatpush1.bf16.msra.mxu0 %v5543
      %5558 = vmatprep.subr.bf16.mxu0 0
      %5559 = vmatpush1.bf16.msra.mxu0 %v5544
      %5560 = vmatprep.subr.bf16.mxu0 0
      %5561 = vmatpush1.bf16.msra.mxu0 0
      %5562 = vmatprep.subr.bf16.mxu0 0
      %5563 = vmatpush1.bf16.msra.mxu0 0
      %5564 = vmatprep.subr.bf16.mxu0 0
      %5565 = vmatpush1.bf16.msra.mxu0 0
      %5566 = vmatprep.subr.bf16.mxu0 0
      %5567 = vmatpush1.bf16.msra.mxu0 0
      %5568 = vmatprep.subr.bf16.mxu0 0
      %5569 = vmatpush1.bf16.msra.mxu0 0
      %5570 = vmatprep.subr.bf16.mxu0 0
      %5571 = vmatpush1.bf16.msra.mxu0 0
      %5572 = vmatprep.subr.bf16.mxu0 0
      %5573 = vmatpush1.bf16.msra.mxu0 0
      %5574 = vmatprep.subr.bf16.mxu0 0
      %5575 = vmatpush1.bf16.msra.mxu0 0
      %5576 = vmatprep.subr.bf16.mxu0 0
      %5577 = vmatpush1.bf16.msra.mxu0 0
      %5578 = vmatprep.subr.bf16.mxu0 0
      %5579 = vmatpush1.bf16.msra.mxu0 0
      %5580 = vmatprep.subr.bf16.mxu0 0
      %5581 = vmatpush1.bf16.msra.mxu0 0
      %5582 = vmatprep.subr.bf16.mxu0 0
      %5583 = vmatpush1.bf16.msra.mxu0 0
      %5584 = vmatprep.mubr.bf16.mxu0 0
      %5585 = vmatmul.mubr.bf16.gmra.mrb[0].mxu0 %v5550
      %v5586 = vpop.f32.mrb[0].mxu0
      %v5587 = vadd.f32 0.0, %v5586
      %v5588 = vpop.f32.mrb[0].mxu0
      %v5589 = vpop.f32.mrb[0].mxu0
      %v5590 = vadd.f32 0.0, %v5589
      %v5591 = vpop.f32.mrb[0].mxu0
      %5592 = vdwg.mxu0
      %v5593 = vadd.f32 %v5461, %v5587
      %v5594 = vadd.f32 %v5462, %v5590
      %s5595 = scalar_lea.vmem %s7, 48
      %v5596 = vld [vmem:[%s5595] sm:$0xf]
      %v5597 = vld [vmem:[%s5595 + $0x4] sm:$0x1]
      %v5600 = vunpack.c.l.b16 %v5596
      %v5601 = vunpack.c.l.b16 %v5597
      %v5602 = vpack.c.b16 %v5601, %v5600
      %v5604 = vsel %vm4812, %v5602, 0
      %5606 = vmatprep.subr.bf16.mxu0 0
      %5607 = vmatpush1.bf16.msra.mxu0 %v4803
      %5608 = vmatprep.subr.bf16.mxu0 0
      %5609 = vmatpush1.bf16.msra.mxu0 %v4817
      %5610 = vmatprep.subr.bf16.mxu0 0
      %5611 = vmatpush1.bf16.msra.mxu0 0
      %5612 = vmatprep.subr.bf16.mxu0 0
      %5613 = vmatpush1.bf16.msra.mxu0 0
      %5614 = vmatprep.subr.bf16.mxu0 0
      %5615 = vmatpush1.bf16.msra.mxu0 0
      %5616 = vmatprep.subr.bf16.mxu0 0
      %5617 = vmatpush1.bf16.msra.mxu0 0
      %5618 = vmatprep.subr.bf16.mxu0 0
      %5619 = vmatpush1.bf16.msra.mxu0 0
      %5620 = vmatprep.subr.bf16.mxu0 0
      %5621 = vmatpush1.bf16.msra.mxu0 0
      %5622 = vmatprep.subr.bf16.mxu0 0
      %5623 = vmatpush1.bf16.msra.mxu0 0
      %5624 = vmatprep.subr.bf16.mxu0 0
      %5625 = vmatpush1.bf16.msra.mxu0 0
      %5626 = vmatprep.subr.bf16.mxu0 0
      %5627 = vmatpush1.bf16.msra.mxu0 0
      %5628 = vmatprep.subr.bf16.mxu0 0
      %5629 = vmatpush1.bf16.msra.mxu0 0
      %5630 = vmatprep.subr.bf16.mxu0 0
      %5631 = vmatpush1.bf16.msra.mxu0 0
      %5632 = vmatprep.subr.bf16.mxu0 0
      %5633 = vmatpush1.bf16.msra.mxu0 0
      %5634 = vmatprep.subr.bf16.mxu0 0
      %5635 = vmatpush1.bf16.msra.mxu0 0
      %5636 = vmatprep.subr.bf16.mxu0 0
      %5637 = vmatpush1.bf16.msra.mxu0 0
      %5638 = vmatprep.mubr.bf16.mxu0 0
      %5639 = vmatmul.mubr.bf16.gmra.mrb[0].mxu0 %v5604
      %v5640 = vpop.f32.mrb[0].mxu0
      %v5641 = vadd.f32 0.0, %v5640
      %v5642 = vpop.f32.mrb[0].mxu0
      %v5643 = vpop.f32.mrb[0].mxu0
      %v5644 = vadd.f32 0.0, %v5643
      %v5645 = vpop.f32.mrb[0].mxu0
      %5646 = vdwg.mxu0
      %v5647 = vpack.c.bf16 %v5644, %v5641
      %s5648 = scalar_lea.vmem %s8, 192
      %v5649 = vld [vmem:[%s5648] sm:$0xf]
      %v5650 = vld [vmem:[%s5648 + $0x4] sm:$0xf]
      %v5651 = vld [vmem:[%s5648 + $0x8] sm:$0xf]
      %v5652 = vld [vmem:[%s5648 + $0xc] sm:$0xf]
      %v5653 = vld [vmem:[%s5648 + $0x10] sm:$0xf]
      %v5654 = vld [vmem:[%s5648 + $0x14] sm:$0xf]
      %v5655 = vld [vmem:[%s5648 + $0x18] sm:$0xf]
      %v5656 = vld [vmem:[%s5648 + $0x1c] sm:$0xf]
      %v5665 = vunpack.c.l.b16 %v5649
      %v5666 = vunpack.c.l.b16 %v5650
      %v5667 = vunpack.c.l.b16 %v5651
      %v5668 = vunpack.c.l.b16 %v5652
      %v5669 = vunpack.c.l.b16 %v5653
      %v5670 = vunpack.c.l.b16 %v5654
      %v5671 = vunpack.c.l.b16 %v5655
      %v5672 = vunpack.c.l.b16 %v5656
      %v5673 = vpack.c.b16 %v5666, %v5665
      %v5674 = vpack.c.b16 %v5668, %v5667
      %v5675 = vpack.c.b16 %v5670, %v5669
      %v5676 = vpack.c.b16 %v5672, %v5671
      %v5682 = vsel %vm1111, %v5647, 0
      %5684 = vmatprep.subr.bf16.mxu0 0
      %5685 = vmatpush1.bf16.msra.mxu0 %v5673
      %5686 = vmatprep.subr.bf16.mxu0 0
      %5687 = vmatpush1.bf16.msra.mxu0 %v5674
      %5688 = vmatprep.subr.bf16.mxu0 0
      %5689 = vmatpush1.bf16.msra.mxu0 %v5675
      %5690 = vmatprep.subr.bf16.mxu0 0
      %5691 = vmatpush1.bf16.msra.mxu0 %v5676
      %5692 = vmatprep.subr.bf16.mxu0 0
      %5693 = vmatpush1.bf16.msra.mxu0 0
      %5694 = vmatprep.subr.bf16.mxu0 0
      %5695 = vmatpush1.bf16.msra.mxu0 0
      %5696 = vmatprep.subr.bf16.mxu0 0
      %5697 = vmatpush1.bf16.msra.mxu0 0
      %5698 = vmatprep.subr.bf16.mxu0 0
      %5699 = vmatpush1.bf16.msra.mxu0 0
      %5700 = vmatprep.subr.bf16.mxu0 0
      %5701 = vmatpush1.bf16.msra.mxu0 0
      %5702 = vmatprep.subr.bf16.mxu0 0
      %5703 = vmatpush1.bf16.msra.mxu0 0
      %5704 = vmatprep.subr.bf16.mxu0 0
      %5705 = vmatpush1.bf16.msra.mxu0 0
      %5706 = vmatprep.subr.bf16.mxu0 0
      %5707 = vmatpush1.bf16.msra.mxu0 0
      %5708 = vmatprep.subr.bf16.mxu0 0
      %5709 = vmatpush1.bf16.msra.mxu0 0
      %5710 = vmatprep.subr.bf16.mxu0 0
      %5711 = vmatpush1.bf16.msra.mxu0 0
      %5712 = vmatprep.subr.bf16.mxu0 0
      %5713 = vmatpush1.bf16.msra.mxu0 0
      %5714 = vmatprep.subr.bf16.mxu0 0
      %5715 = vmatpush1.bf16.msra.mxu0 0
      %5716 = vmatprep.mubr.bf16.mxu0 0
      %5717 = vmatmul.mubr.bf16.gmra.mrb[0].mxu0 %v5682
      %v5718 = vpop.f32.mrb[0].mxu0
      %v5719 = vadd.f32 0.0, %v5718
      %v5720 = vpop.f32.mrb[0].mxu0
      %v5721 = vpop.f32.mrb[0].mxu0
      %v5722 = vadd.f32 0.0, %v5721
      %v5723 = vpop.f32.mrb[0].mxu0
      %5724 = vdwg.mxu0
      %v5725 = vadd.f32 %v5593, %v5719
      %v5726 = vadd.f32 %v5594, %v5722
      %s5727 = scalar_lea.vmem %s7, 56
      %v5728 = vld [vmem:[%s5727] sm:$0xf]
      %v5729 = vld [vmem:[%s5727 + $0x4] sm:$0x1]
      %v5732 = vunpack.c.l.b16 %v5728
      %v5733 = vunpack.c.l.b16 %v5729
      %v5734 = vpack.c.b16 %v5733, %v5732
      %v5736 = vsel %vm4812, %v5734, 0
      %5738 = vmatprep.subr.bf16.mxu0 0
      %5739 = vmatpush1.bf16.msra.mxu0 %v4803
      %5740 = vmatprep.subr.bf16.mxu0 0
      %5741 = vmatpush1.bf16.msra.mxu0 %v4817
      %5742 = vmatprep.subr.bf16.mxu0 0
      %5743 = vmatpush1.bf16.msra.mxu0 0
      %5744 = vmatprep.subr.bf16.mxu0 0
      %5745 = vmatpush1.bf16.msra.mxu0 0
      %5746 = vmatprep.subr.bf16.mxu0 0
      %5747 = vmatpush1.bf16.msra.mxu0 0
      %5748 = vmatprep.subr.bf16.mxu0 0
      %5749 = vmatpush1.bf16.msra.mxu0 0
      %5750 = vmatprep.subr.bf16.mxu0 0
      %5751 = vmatpush1.bf16.msra.mxu0 0
      %5752 = vmatprep.subr.bf16.mxu0 0
      %5753 = vmatpush1.bf16.msra.mxu0 0
      %5754 = vmatprep.subr.bf16.mxu0 0
      %5755 = vmatpush1.bf16.msra.mxu0 0
      %5756 = vmatprep.subr.bf16.mxu0 0
      %5757 = vmatpush1.bf16.msra.mxu0 0
      %5758 = vmatprep.subr.bf16.mxu0 0
      %5759 = vmatpush1.bf16.msra.mxu0 0
      %5760 = vmatprep.subr.bf16.mxu0 0
      %5761 = vmatpush1.bf16.msra.mxu0 0
      %5762 = vmatprep.subr.bf16.mxu0 0
      %5763 = vmatpush1.bf16.msra.mxu0 0
      %5764 = vmatprep.subr.bf16.mxu0 0
      %5765 = vmatpush1.bf16.msra.mxu0 0
      %5766 = vmatprep.subr.bf16.mxu0 0
      %5767 = vmatpush1.bf16.msra.mxu0 0
      %5768 = vmatprep.subr.bf16.mxu0 0
      %5769 = vmatpush1.bf16.msra.mxu0 0
      %5770 = vmatprep.mubr.bf16.mxu0 0
      %5771 = vmatmul.mubr.bf16.gmra.mrb[0].mxu0 %v5736
      %v5772 = vpop.f32.mrb[0].mxu0
      %v5773 = vadd.f32 0.0, %v5772
      %v5774 = vpop.f32.mrb[0].mxu0
      %v5775 = vpop.f32.mrb[0].mxu0
      %v5776 = vadd.f32 0.0, %v5775
      %v5777 = vpop.f32.mrb[0].mxu0
      %5778 = vdwg.mxu0
      %v5779 = vpack.c.bf16 %v5776, %v5773
      %s5780 = scalar_lea.vmem %s8, 224
      %v5781 = vld [vmem:[%s5780] sm:$0xf]
      %v5782 = vld [vmem:[%s5780 + $0x4] sm:$0xf]
      %v5783 = vld [vmem:[%s5780 + $0x8] sm:$0xf]
      %v5784 = vld [vmem:[%s5780 + $0xc] sm:$0xf]
      %v5785 = vld [vmem:[%s5780 + $0x10] sm:$0xf]
      %v5786 = vld [vmem:[%s5780 + $0x14] sm:$0xf]
      %v5787 = vld [vmem:[%s5780 + $0x18] sm:$0xf]
      %v5788 = vld [vmem:[%s5780 + $0x1c] sm:$0xf]
      %v5797 = vunpack.c.l.b16 %v5781
      %v5798 = vunpack.c.l.b16 %v5782
      %v5799 = vunpack.c.l.b16 %v5783
      %v5800 = vunpack.c.l.b16 %v5784
      %v5801 = vunpack.c.l.b16 %v5785
      %v5802 = vunpack.c.l.b16 %v5786
      %v5803 = vunpack.c.l.b16 %v5787
      %v5804 = vunpack.c.l.b16 %v5788
      %v5805 = vpack.c.b16 %v5798, %v5797
      %v5806 = vpack.c.b16 %v5800, %v5799
      %v5807 = vpack.c.b16 %v5802, %v5801
      %v5808 = vpack.c.b16 %v5804, %v5803
      %v5814 = vsel %vm1111, %v5779, 0
      %5816 = vmatprep.subr.bf16.mxu0 0
      %5817 = vmatpush1.bf16.msra.mxu0 %v5805
      %5818 = vmatprep.subr.bf16.mxu0 0
      %5819 = vmatpush1.bf16.msra.mxu0 %v5806
      %5820 = vmatprep.subr.bf16.mxu0 0
      %5821 = vmatpush1.bf16.msra.mxu0 %v5807
      %5822 = vmatprep.subr.bf16.mxu0 0
      %5823 = vmatpush1.bf16.msra.mxu0 %v5808
      %5824 = vmatprep.subr.bf16.mxu0 0
      %5825 = vmatpush1.bf16.msra.mxu0 0
      %5826 = vmatprep.subr.bf16.mxu0 0
      %5827 = vmatpush1.bf16.msra.mxu0 0
      %5828 = vmatprep.subr.bf16.mxu0 0
      %5829 = vmatpush1.bf16.msra.mxu0 0
      %5830 = vmatprep.subr.bf16.mxu0 0
      %5831 = vmatpush1.bf16.msra.mxu0 0
      %5832 = vmatprep.subr.bf16.mxu0 0
      %5833 = vmatpush1.bf16.msra.mxu0 0
      %5834 = vmatprep.subr.bf16.mxu0 0
      %5835 = vmatpush1.bf16.msra.mxu0 0
      %5836 = vmatprep.subr.bf16.mxu0 0
      %5837 = vmatpush1.bf16.msra.mxu0 0
      %5838 = vmatprep.subr.bf16.mxu0 0
      %5839 = vmatpush1.bf16.msra.mxu0 0
      %5840 = vmatprep.subr.bf16.mxu0 0
      %5841 = vmatpush1.bf16.msra.mxu0 0
      %5842 = vmatprep.subr.bf16.mxu0 0
      %5843 = vmatpush1.bf16.msra.mxu0 0
      %5844 = vmatprep.subr.bf16.mxu0 0
      %5845 = vmatpush1.bf16.msra.mxu0 0
      %5846 = vmatprep.subr.bf16.mxu0 0
      %5847 = vmatpush1.bf16.msra.mxu0 0
      %5848 = vmatprep.mubr.bf16.mxu0 0
      %5849 = vmatmul.mubr.bf16.gmra.mrb[0].mxu0 %v5814
      %v5850 = vpop.f32.mrb[0].mxu0
      %v5851 = vadd.f32 0.0, %v5850
      %v5852 = vpop.f32.mrb[0].mxu0
      %v5853 = vpop.f32.mrb[0].mxu0
      %v5854 = vadd.f32 0.0, %v5853
      %v5855 = vpop.f32.mrb[0].mxu0
      %5856 = vdwg.mxu0
      %v5857 = vadd.f32 %v5725, %v5851
      %v5858 = vadd.f32 %v5726, %v5854
      %s5859 = scalar_lea.vmem %s7, 64
      %v5860 = vld [vmem:[%s5859] sm:$0xf]
      %v5861 = vld [vmem:[%s5859 + $0x4] sm:$0x1]
      %v5864 = vunpack.c.l.b16 %v5860
      %v5865 = vunpack.c.l.b16 %v5861
      %v5866 = vpack.c.b16 %v5865, %v5864
      %v5868 = vsel %vm4812, %v5866, 0
      %5870 = vmatprep.subr.bf16.mxu0 0
      %5871 = vmatpush1.bf16.msra.mxu0 %v4803
      %5872 = vmatprep.subr.bf16.mxu0 0
      %5873 = vmatpush1.bf16.msra.mxu0 %v4817
      %5874 = vmatprep.subr.bf16.mxu0 0
      %5875 = vmatpush1.bf16.msra.mxu0 0
      %5876 = vmatprep.subr.bf16.mxu0 0
      %5877 = vmatpush1.bf16.msra.mxu0 0
      %5878 = vmatprep.subr.bf16.mxu0 0
      %5879 = vmatpush1.bf16.msra.mxu0 0
      %5880 = vmatprep.subr.bf16.mxu0 0
      %5881 = vmatpush1.bf16.msra.mxu0 0
      %5882 = vmatprep.subr.bf16.mxu0 0
      %5883 = vmatpush1.bf16.msra.mxu0 0
      %5884 = vmatprep.subr.bf16.mxu0 0
      %5885 = vmatpush1.bf16.msra.mxu0 0
      %5886 = vmatprep.subr.bf16.mxu0 0
      %5887 = vmatpush1.bf16.msra.mxu0 0
      %5888 = vmatprep.subr.bf16.mxu0 0
      %5889 = vmatpush1.bf16.msra.mxu0 0
      %5890 = vmatprep.subr.bf16.mxu0 0
      %5891 = vmatpush1.bf16.msra.mxu0 0
      %5892 = vmatprep.subr.bf16.mxu0 0
      %5893 = vmatpush1.bf16.msra.mxu0 0
      %5894 = vmatprep.subr.bf16.mxu0 0
      %5895 = vmatpush1.bf16.msra.mxu0 0
      %5896 = vmatprep.subr.bf16.mxu0 0
      %5897 = vmatpush1.bf16.msra.mxu0 0
      %5898 = vmatprep.subr.bf16.mxu0 0
      %5899 = vmatpush1.bf16.msra.mxu0 0
      %5900 = vmatprep.subr.bf16.mxu0 0
      %5901 = vmatpush1.bf16.msra.mxu0 0
      %5902 = vmatprep.mubr.bf16.mxu0 0
      %5903 = vmatmul.mubr.bf16.gmra.mrb[0].mxu0 %v5868
      %v5904 = vpop.f32.mrb[0].mxu0
      %v5905 = vadd.f32 0.0, %v5904
      %v5906 = vpop.f32.mrb[0].mxu0
      %v5907 = vpop.f32.mrb[0].mxu0
      %v5908 = vadd.f32 0.0, %v5907
      %v5909 = vpop.f32.mrb[0].mxu0
      %5910 = vdwg.mxu0
      %v5911 = vpack.c.bf16 %v5908, %v5905
      %s5912 = scalar_lea.vmem %s8, 256
      %v5913 = vld [vmem:[%s5912] sm:$0xf]
      %v5914 = vld [vmem:[%s5912 + $0x4] sm:$0xf]
      %v5915 = vld [vmem:[%s5912 + $0x8] sm:$0xf]
      %v5916 = vld [vmem:[%s5912 + $0xc] sm:$0xf]
      %v5917 = vld [vmem:[%s5912 + $0x10] sm:$0xf]
      %v5918 = vld [vmem:[%s5912 + $0x14] sm:$0xf]
      %v5919 = vld [vmem:[%s5912 + $0x18] sm:$0xf]
      %v5920 = vld [vmem:[%s5912 + $0x1c] sm:$0xf]
      %v5929 = vunpack.c.l.b16 %v5913
      %v5930 = vunpack.c.l.b16 %v5914
      %v5931 = vunpack.c.l.b16 %v5915
      %v5932 = vunpack.c.l.b16 %v5916
      %v5933 = vunpack.c.l.b16 %v5917
      %v5934 = vunpack.c.l.b16 %v5918
      %v5935 = vunpack.c.l.b16 %v5919
      %v5936 = vunpack.c.l.b16 %v5920
      %v5937 = vpack.c.b16 %v5930, %v5929
      %v5938 = vpack.c.b16 %v5932, %v5931
      %v5939 = vpack.c.b16 %v5934, %v5933
      %v5940 = vpack.c.b16 %v5936, %v5935
      %v5946 = vsel %vm1111, %v5911, 0
      %5948 = vmatprep.subr.bf16.mxu0 0
      %5949 = vmatpush1.bf16.msra.mxu0 %v5937
      %5950 = vmatprep.subr.bf16.mxu0 0
      %5951 = vmatpush1.bf16.msra.mxu0 %v5938
      %5952 = vmatprep.subr.bf16.mxu0 0
      %5953 = vmatpush1.bf16.msra.mxu0 %v5939
      %5954 = vmatprep.subr.bf16.mxu0 0
      %5955 = vmatpush1.bf16.msra.mxu0 %v5940
      %5956 = vmatprep.subr.bf16.mxu0 0
      %5957 = vmatpush1.bf16.msra.mxu0 0
      %5958 = vmatprep.subr.bf16.mxu0 0
      %5959 = vmatpush1.bf16.msra.mxu0 0
      %5960 = vmatprep.subr.bf16.mxu0 0
      %5961 = vmatpush1.bf16.msra.mxu0 0
      %5962 = vmatprep.subr.bf16.mxu0 0
      %5963 = vmatpush1.bf16.msra.mxu0 0
      %5964 = vmatprep.subr.bf16.mxu0 0
      %5965 = vmatpush1.bf16.msra.mxu0 0
      %5966 = vmatprep.subr.bf16.mxu0 0
      %5967 = vmatpush1.bf16.msra.mxu0 0
      %5968 = vmatprep.subr.bf16.mxu0 0
      %5969 = vmatpush1.bf16.msra.mxu0 0
      %5970 = vmatprep.subr.bf16.mxu0 0
      %5971 = vmatpush1.bf16.msra.mxu0 0
      %5972 = vmatprep.subr.bf16.mxu0 0
      %5973 = vmatpush1.bf16.msra.mxu0 0
      %5974 = vmatprep.subr.bf16.mxu0 0
      %5975 = vmatpush1.bf16.msra.mxu0 0
      %5976 = vmatprep.subr.bf16.mxu0 0
      %5977 = vmatpush1.bf16.msra.mxu0 0
      %5978 = vmatprep.subr.bf16.mxu0 0
      %5979 = vmatpush1.bf16.msra.mxu0 0
      %5980 = vmatprep.mubr.bf16.mxu0 0
      %5981 = vmatmul.mubr.bf16.gmra.mrb[0].mxu0 %v5946
      %v5982 = vpop.f32.mrb[0].mxu0
      %v5983 = vadd.f32 0.0, %v5982
      %v5984 = vpop.f32.mrb[0].mxu0
      %v5985 = vpop.f32.mrb[0].mxu0
      %v5986 = vadd.f32 0.0, %v5985
      %v5987 = vpop.f32.mrb[0].mxu0
      %5988 = vdwg.mxu0
      %v5989 = vadd.f32 %v5857, %v5983
      %v5990 = vadd.f32 %v5858, %v5986
      %v5991 = vld [vmem:[%s9] sm:$0x1]
      %v5993 = vlaneseq
      %v5994 = vshrl.u32 %v5993, 7
      %v5995 = vsub.s32 0, %v5994
      %v5996 = vrot.slane %v5991, %v5995
      %v5998 = vadd.f32 %v5989, %v5996
      %v5999 = vadd.f32 %v5990, %v5996
      %v6000 = vmax.f32 %v5998, 0.0
      %v6001 = vmax.f32 %v5999, 0.0
      %v6002 = vpack.c.bf16 %v6001, %v6000
      %v6003 = vld [vmem:[%s10] sm:$0x1]
      %vm6004 = vcmask 72704
      %v6006 = vsel %vm6004, %v6003, 0
      %v6009 = vand.u32 %v6002, %v711
      %6011 = vmatprep.subr.bf16.mxu0 0
      %6012 = vmatpush1.bf16.msra.mxu0 %v6009
      %6013 = vmatprep.subr.bf16.mxu0 0
      %6014 = vmatpush1.bf16.msra.mxu0 0
      %6015 = vmatprep.subr.bf16.mxu0 0
      %6016 = vmatpush1.bf16.msra.mxu0 0
      %6017 = vmatprep.subr.bf16.mxu0 0
      %6018 = vmatpush1.bf16.msra.mxu0 0
      %6019 = vmatprep.subr.bf16.mxu0 0
      %6020 = vmatpush1.bf16.msra.mxu0 0
      %6021 = vmatprep.subr.bf16.mxu0 0
      %6022 = vmatpush1.bf16.msra.mxu0 0
      %6023 = vmatprep.subr.bf16.mxu0 0
      %6024 = vmatpush1.bf16.msra.mxu0 0
      %6025 = vmatprep.subr.bf16.mxu0 0
      %6026 = vmatpush1.bf16.msra.mxu0 0
      %6027 = vmatprep.subr.bf16.mxu0 0
      %6028 = vmatpush1.bf16.msra.mxu0 0
      %6029 = vmatprep.subr.bf16.mxu0 0
      %6030 = vmatpush1.bf16.msra.mxu0 0
      %6031 = vmatprep.subr.bf16.mxu0 0
      %6032 = vmatpush1.bf16.msra.mxu0 0
      %6033 = vmatprep.subr.bf16.mxu0 0
      %6034 = vmatpush1.bf16.msra.mxu0 0
      %6035 = vmatprep.subr.bf16.mxu0 0
      %6036 = vmatpush1.bf16.msra.mxu0 0
      %6037 = vmatprep.subr.bf16.mxu0 0
      %6038 = vmatpush1.bf16.msra.mxu0 0
      %6039 = vmatprep.subr.bf16.mxu0 0
      %6040 = vmatpush1.bf16.msra.mxu0 0
      %6041 = vmatprep.subr.bf16.mxu0 0
      %6042 = vmatpush1.bf16.msra.mxu0 0
      %6043 = vmatprep.mubr.bf16.mxu0 0
      %6044 = vmatmul.mubr.bf16.gmra.mrb[0].mxu0 %v6006
      %v6045 = vpop.f32.mrb[0].mxu0
      %v6046 = vadd.f32 0.0, %v6045
      %v6047 = vpop.f32.mrb[0].mxu0
      %v6048 = vpop.f32.mrb[0].mxu0
      %v6049 = vpop.f32.mrb[0].mxu0
      %6050 = vdwg.mxu0
      %v6051 = vpack.c.bf16 %v6046, %v6046
      %v6052 = vld [vmem:[%s11] sm:$0xff]
      %v6053 = vld [vmem:[%s11 + $0x8] sm:$0xff]
      %v6054 = vld [vmem:[%s11 + $0x10] sm:$0xff]
      %v6055 = vld [vmem:[%s11 + $0x18] sm:$0xff]
      %v6056 = vld [vmem:[%s11 + $0x20] sm:$0xff]
      %v6057 = vld [vmem:[%s11 + $0x28] sm:$0xff]
      %v6058 = vld [vmem:[%s11 + $0x30] sm:$0xff]
      %v6059 = vld [vmem:[%s11 + $0x38] sm:$0xff]
      %v6060 = vld [vmem:[%s11 + $0x40] sm:$0xff]
      %v6061 = vld [vmem:[%s11 + $0x48] sm:$0xff]
      %v6062 = vld [vmem:[%s11 + $0x50] sm:$0xff]
      %v6063 = vld [vmem:[%s11 + $0x58] sm:$0xff]
      %v6064 = vld [vmem:[%s11 + $0x60] sm:$0xff]
      %v6065 = vld [vmem:[%s11 + $0x68] sm:$0xff]
      %v6066 = vld [vmem:[%s11 + $0x70] sm:$0xff]
      %v6067 = vld [vmem:[%s11 + $0x78] sm:$0xff]
      %s6068 = scalar_lea.vmem %s10, 1
      %v6069 = vld [vmem:[%s6068] sm:$0x1]
      %v6071 = vsel %vm6004, %v6069, 0
      %6073 = vmatprep.subr.bf16.mxu0 0
      %6074 = vmatpush1.bf16.msra.mxu0 %v6009
      %6075 = vmatprep.subr.bf16.mxu0 0
      %6076 = vmatpush1.bf16.msra.mxu0 0
      %6077 = vmatprep.subr.bf16.mxu0 0
      %6078 = vmatpush1.bf16.msra.mxu0 0
      %6079 = vmatprep.subr.bf16.mxu0 0
      %6080 = vmatpush1.bf16.msra.mxu0 0
      %6081 = vmatprep.subr.bf16.mxu0 0
      %6082 = vmatpush1.bf16.msra.mxu0 0
      %6083 = vmatprep.subr.bf16.mxu0 0
      %6084 = vmatpush1.bf16.msra.mxu0 0
      %6085 = vmatprep.subr.bf16.mxu0 0
      %6086 = vmatpush1.bf16.msra.mxu0 0
      %6087 = vmatprep.subr.bf16.mxu0 0
      %6088 = vmatpush1.bf16.msra.mxu0 0
      %6089 = vmatprep.subr.bf16.mxu0 0
      %6090 = vmatpush1.bf16.msra.mxu0 0
      %6091 = vmatprep.subr.bf16.mxu0 0
      %6092 = vmatpush1.bf16.msra.mxu0 0
      %6093 = vmatprep.subr.bf16.mxu0 0
      %6094 = vmatpush1.bf16.msra.mxu0 0
      %6095 = vmatprep.subr.bf16.mxu0 0
      %6096 = vmatpush1.bf16.msra.mxu0 0
      %6097 = vmatprep.subr.bf16.mxu0 0
      %6098 = vmatpush1.bf16.msra.mxu0 0
      %6099 = vmatprep.subr.bf16.mxu0 0
      %6100 = vmatpush1.bf16.msra.mxu0 0
      %6101 = vmatprep.subr.bf16.mxu0 0
      %6102 = vmatpush1.bf16.msra.mxu0 0
      %6103 = vmatprep.subr.bf16.mxu0 0
      %6104 = vmatpush1.bf16.msra.mxu0 0
      %6105 = vmatprep.mubr.bf16.mxu0 0
      %6106 = vmatmul.mubr.bf16.gmra.mrb[0].mxu0 %v6071
      %v6107 = vpop.f32.mrb[0].mxu0
      %v6108 = vadd.f32 0.0, %v6107
      %v6109 = vpop.f32.mrb[0].mxu0
      %v6110 = vpop.f32.mrb[0].mxu0
      %v6111 = vpop.f32.mrb[0].mxu0
      %6112 = vdwg.mxu0
      %v6113 = vpack.c.bf16 %v6108, %v6108
      %s6114 = scalar_lea.vmem %s11, 128
      %v6115 = vld [vmem:[%s6114] sm:$0xff]
      %v6116 = vld [vmem:[%s6114 + $0x8] sm:$0xff]
      %v6117 = vld [vmem:[%s6114 + $0x10] sm:$0xff]
      %v6118 = vld [vmem:[%s6114 + $0x18] sm:$0xff]
      %v6119 = vld [vmem:[%s6114 + $0x20] sm:$0xff]
      %v6120 = vld [vmem:[%s6114 + $0x28] sm:$0xff]
      %v6121 = vld [vmem:[%s6114 + $0x30] sm:$0xff]
      %v6122 = vld [vmem:[%s6114 + $0x38] sm:$0xff]
      %v6123 = vld [vmem:[%s6114 + $0x40] sm:$0xff]
      %v6124 = vld [vmem:[%s6114 + $0x48] sm:$0xff]
      %v6125 = vld [vmem:[%s6114 + $0x50] sm:$0xff]
      %v6126 = vld [vmem:[%s6114 + $0x58] sm:$0xff]
      %v6127 = vld [vmem:[%s6114 + $0x60] sm:$0xff]
      %v6128 = vld [vmem:[%s6114 + $0x68] sm:$0xff]
      %v6129 = vld [vmem:[%s6114 + $0x70] sm:$0xff]
      %v6130 = vld [vmem:[%s6114 + $0x78] sm:$0xff]
      %v6147 = vunpack.c.l.b16 %v6115
      %v6148 = vunpack.c.h.b16 %v6115
      %v6149 = vunpack.c.l.b16 %v6116
      %v6150 = vunpack.c.h.b16 %v6116
      %v6151 = vunpack.c.l.b16 %v6117
      %v6152 = vunpack.c.h.b16 %v6117
      %v6153 = vunpack.c.l.b16 %v6118
      %v6154 = vunpack.c.h.b16 %v6118
      %v6155 = vunpack.c.l.b16 %v6119
      %v6156 = vunpack.c.h.b16 %v6119
      %v6157 = vunpack.c.l.b16 %v6120
      %v6158 = vunpack.c.h.b16 %v6120
      %v6159 = vunpack.c.l.b16 %v6121
      %v6160 = vunpack.c.h.b16 %v6121
      %v6161 = vunpack.c.l.b16 %v6122
      %v6162 = vunpack.c.h.b16 %v6122
      %v6163 = vunpack.c.l.b16 %v6123
      %v6164 = vunpack.c.h.b16 %v6123
      %v6165 = vunpack.c.l.b16 %v6124
      %v6166 = vunpack.c.h.b16 %v6124
      %v6167 = vunpack.c.l.b16 %v6125
      %v6168 = vunpack.c.h.b16 %v6125
      %v6169 = vunpack.c.l.b16 %v6126
      %v6170 = vunpack.c.h.b16 %v6126
      %v6171 = vunpack.c.l.b16 %v6127
      %v6172 = vunpack.c.h.b16 %v6127
      %v6173 = vunpack.c.l.b16 %v6128
      %v6174 = vunpack.c.h.b16 %v6128
      %v6175 = vunpack.c.l.b16 %v6129
      %v6176 = vunpack.c.h.b16 %v6129
      %v6177 = vunpack.c.l.b16 %v6130
      %v6178 = vunpack.c.h.b16 %v6130
      %v6179 = vpack.c.b16 %v6151, %v6147
      %v6180 = vpack.c.b16 %v6152, %v6148
      %v6181 = vpack.c.b16 %v6153, %v6149
      %v6182 = vpack.c.b16 %v6154, %v6150
      %v6183 = vpack.c.b16 %v6159, %v6155
      %v6184 = vpack.c.b16 %v6160, %v6156
      %v6185 = vpack.c.b16 %v6161, %v6157
      %v6186 = vpack.c.b16 %v6162, %v6158
      %v6187 = vpack.c.b16 %v6167, %v6163
      %v6188 = vpack.c.b16 %v6168, %v6164
      %v6189 = vpack.c.b16 %v6169, %v6165
      %v6190 = vpack.c.b16 %v6170, %v6166
      %v6191 = vpack.c.b16 %v6175, %v6171
      %v6192 = vpack.c.b16 %v6176, %v6172
      %v6193 = vpack.c.b16 %v6177, %v6173
      %v6194 = vpack.c.b16 %v6178, %v6174
      %v6212 = vsel %vm1111, %v6113, 0
      %6214 = vmatprep.subr.bf16.mxu0 %v6180
      %6215 = vmatpush1.bf16.msra.mxu0 %v6179
      %6216 = vmatprep.subr.bf16.mxu0 %v6184
      %6217 = vmatpush1.bf16.msra.mxu0 %v6183
      %6218 = vmatprep.subr.bf16.mxu0 %v6188
      %6219 = vmatpush1.bf16.msra.mxu0 %v6187
      %6220 = vmatprep.subr.bf16.mxu0 %v6192
      %6221 = vmatpush1.bf16.msra.mxu0 %v6191
      %6222 = vmatprep.subr.bf16.mxu0 0
      %6223 = vmatpush1.bf16.msra.mxu0 0
      %6224 = vmatprep.subr.bf16.mxu0 0
      %6225 = vmatpush1.bf16.msra.mxu0 0
      %6226 = vmatprep.subr.bf16.mxu0 0
      %6227 = vmatpush1.bf16.msra.mxu0 0
      %6228 = vmatprep.subr.bf16.mxu0 0
      %6229 = vmatpush1.bf16.msra.mxu0 0
      %6230 = vmatprep.subr.bf16.mxu0 0
      %6231 = vmatpush1.bf16.msra.mxu0 0
      %6232 = vmatprep.subr.bf16.mxu0 0
      %6233 = vmatpush1.bf16.msra.mxu0 0
      %6234 = vmatprep.subr.bf16.mxu0 0
      %6235 = vmatpush1.bf16.msra.mxu0 0
      %6236 = vmatprep.subr.bf16.mxu0 0
      %6237 = vmatpush1.bf16.msra.mxu0 0
      %6238 = vmatprep.subr.bf16.mxu0 0
      %6239 = vmatpush1.bf16.msra.mxu0 0
      %6240 = vmatprep.subr.bf16.mxu0 0
      %6241 = vmatpush1.bf16.msra.mxu0 0
      %6242 = vmatprep.subr.bf16.mxu0 0
      %6243 = vmatpush1.bf16.msra.mxu0 0
      %6244 = vmatprep.subr.bf16.mxu0 0
      %6245 = vmatpush1.bf16.msra.mxu0 0
      %6246 = vmatprep.mubr.bf16.mxu0 0
      %6247 = vmatmul.mubr.bf16.gmra.mrb[0].mxu0 %v6212
      %v6248 = vpop.f32.mrb[0].mxu0
      %v6249 = vadd.f32 0.0, %v6248
      %v6250 = vpop.f32.mrb[0].mxu0
      %v6251 = vadd.f32 0.0, %v6250
      %v6252 = vpop.f32.mrb[0].mxu0
      %v6253 = vpop.f32.mrb[0].mxu0
      %6254 = vdwg.mxu0
      %6255 = vmatprep.subr.bf16.mxu0 %v6182
      %6256 = vmatpush1.bf16.msra.mxu0 %v6181
      %6257 = vmatprep.subr.bf16.mxu0 %v6186
      %6258 = vmatpush1.bf16.msra.mxu0 %v6185
      %6259 = vmatprep.subr.bf16.mxu0 %v6190
      %6260 = vmatpush1.bf16.msra.mxu0 %v6189
      %6261 = vmatprep.subr.bf16.mxu0 %v6194
      %6262 = vmatpush1.bf16.msra.mxu0 %v6193
      %6263 = vmatprep.subr.bf16.mxu0 0
      %6264 = vmatpush1.bf16.msra.mxu0 0
      %6265 = vmatprep.subr.bf16.mxu0 0
      %6266 = vmatpush1.bf16.msra.mxu0 0
      %6267 = vmatprep.subr.bf16.mxu0 0
      %6268 = vmatpush1.bf16.msra.mxu0 0
      %6269 = vmatprep.subr.bf16.mxu0 0
      %6270 = vmatpush1.bf16.msra.mxu0 0
      %6271 = vmatprep.subr.bf16.mxu0 0
      %6272 = vmatpush1.bf16.msra.mxu0 0
      %6273 = vmatprep.subr.bf16.mxu0 0
      %6274 = vmatpush1.bf16.msra.mxu0 0
      %6275 = vmatprep.subr.bf16.mxu0 0
      %6276 = vmatpush1.bf16.msra.mxu0 0
      %6277 = vmatprep.subr.bf16.mxu0 0
      %6278 = vmatpush1.bf16.msra.mxu0 0
      %6279 = vmatprep.subr.bf16.mxu0 0
      %6280 = vmatpush1.bf16.msra.mxu0 0
      %6281 = vmatprep.subr.bf16.mxu0 0
      %6282 = vmatpush1.bf16.msra.mxu0 0
      %6283 = vmatprep.subr.bf16.mxu0 0
      %6284 = vmatpush1.bf16.msra.mxu0 0
      %6285 = vmatprep.subr.bf16.mxu0 0
      %6286 = vmatpush1.bf16.msra.mxu0 0
      %6287 = vmatprep.mubr.bf16.mxu0 0
      %6288 = vmatmul.mubr.bf16.gmra.mrb[0].mxu0 %v6212
      %v6289 = vpop.f32.mrb[0].mxu0
      %v6290 = vadd.f32 0.0, %v6289
      %v6291 = vpop.f32.mrb[0].mxu0
      %v6292 = vadd.f32 0.0, %v6291
      %v6293 = vpop.f32.mrb[0].mxu0
      %v6294 = vpop.f32.mrb[0].mxu0
      %6295 = vdwg.mxu0
      %v6312 = vunpack.c.l.b16 %v6052
      %v6313 = vunpack.c.h.b16 %v6052
      %v6314 = vunpack.c.l.b16 %v6053
      %v6315 = vunpack.c.h.b16 %v6053
      %v6316 = vunpack.c.l.b16 %v6054
      %v6317 = vunpack.c.h.b16 %v6054
      %v6318 = vunpack.c.l.b16 %v6055
      %v6319 = vunpack.c.h.b16 %v6055
      %v6320 = vunpack.c.l.b16 %v6056
      %v6321 = vunpack.c.h.b16 %v6056
      %v6322 = vunpack.c.l.b16 %v6057
      %v6323 = vunpack.c.h.b16 %v6057
      %v6324 = vunpack.c.l.b16 %v6058
      %v6325 = vunpack.c.h.b16 %v6058
      %v6326 = vunpack.c.l.b16 %v6059
      %v6327 = vunpack.c.h.b16 %v6059
      %v6328 = vunpack.c.l.b16 %v6060
      %v6329 = vunpack.c.h.b16 %v6060
      %v6330 = vunpack.c.l.b16 %v6061
      %v6331 = vunpack.c.h.b16 %v6061
      %v6332 = vunpack.c.l.b16 %v6062
      %v6333 = vunpack.c.h.b16 %v6062
      %v6334 = vunpack.c.l.b16 %v6063
      %v6335 = vunpack.c.h.b16 %v6063
      %v6336 = vunpack.c.l.b16 %v6064
      %v6337 = vunpack.c.h.b16 %v6064
      %v6338 = vunpack.c.l.b16 %v6065
      %v6339 = vunpack.c.h.b16 %v6065
      %v6340 = vunpack.c.l.b16 %v6066
      %v6341 = vunpack.c.h.b16 %v6066
      %v6342 = vunpack.c.l.b16 %v6067
      %v6343 = vunpack.c.h.b16 %v6067
      %v6344 = vpack.c.b16 %v6316, %v6312
      %v6345 = vpack.c.b16 %v6317, %v6313
      %v6346 = vpack.c.b16 %v6318, %v6314
      %v6347 = vpack.c.b16 %v6319, %v6315
      %v6348 = vpack.c.b16 %v6324, %v6320
      %v6349 = vpack.c.b16 %v6325, %v6321
      %v6350 = vpack.c.b16 %v6326, %v6322
      %v6351 = vpack.c.b16 %v6327, %v6323
      %v6352 = vpack.c.b16 %v6332, %v6328
      %v6353 = vpack.c.b16 %v6333, %v6329
      %v6354 = vpack.c.b16 %v6334, %v6330
      %v6355 = vpack.c.b16 %v6335, %v6331
      %v6356 = vpack.c.b16 %v6340, %v6336
      %v6357 = vpack.c.b16 %v6341, %v6337
      %v6358 = vpack.c.b16 %v6342, %v6338
      %v6359 = vpack.c.b16 %v6343, %v6339
      %v6377 = vsel %vm1111, %v6051, 0
      %6379 = vmatprep.subr.bf16.mxu0 %v6345
      %6380 = vmatpush1.bf16.msra.mxu0 %v6344
      %6381 = vmatprep.subr.bf16.mxu0 %v6349
      %6382 = vmatpush1.bf16.msra.mxu0 %v6348
      %6383 = vmatprep.subr.bf16.mxu0 %v6353
      %6384 = vmatpush1.bf16.msra.mxu0 %v6352
      %6385 = vmatprep.subr.bf16.mxu0 %v6357
      %6386 = vmatpush1.bf16.msra.mxu0 %v6356
      %6387 = vmatprep.subr.bf16.mxu0 0
      %6388 = vmatpush1.bf16.msra.mxu0 0
      %6389 = vmatprep.subr.bf16.mxu0 0
      %6390 = vmatpush1.bf16.msra.mxu0 0
      %6391 = vmatprep.subr.bf16.mxu0 0
      %6392 = vmatpush1.bf16.msra.mxu0 0
      %6393 = vmatprep.subr.bf16.mxu0 0
      %6394 = vmatpush1.bf16.msra.mxu0 0
      %6395 = vmatprep.subr.bf16.mxu0 0
      %6396 = vmatpush1.bf16.msra.mxu0 0
      %6397 = vmatprep.subr.bf16.mxu0 0
      %6398 = vmatpush1.bf16.msra.mxu0 0
      %6399 = vmatprep.subr.bf16.mxu0 0
      %6400 = vmatpush1.bf16.msra.mxu0 0
      %6401 = vmatprep.subr.bf16.mxu0 0
      %6402 = vmatpush1.bf16.msra.mxu0 0
      %6403 = vmatprep.subr.bf16.mxu0 0
      %6404 = vmatpush1.bf16.msra.mxu0 0
      %6405 = vmatprep.subr.bf16.mxu0 0
      %6406 = vmatpush1.bf16.msra.mxu0 0
      %6407 = vmatprep.subr.bf16.mxu0 0
      %6408 = vmatpush1.bf16.msra.mxu0 0
      %6409 = vmatprep.subr.bf16.mxu0 0
      %6410 = vmatpush1.bf16.msra.mxu0 0
      %6411 = vmatprep.mubr.bf16.mxu0 0
      %6412 = vmatmul.mubr.bf16.gmra.mrb[0].mxu0 %v6377
      %v6413 = vpop.f32.mrb[0].mxu0
      %v6414 = vadd.f32 %v6249, %v6413
      %v6415 = vpop.f32.mrb[0].mxu0
      %v6416 = vadd.f32 %v6251, %v6415
      %v6417 = vpop.f32.mrb[0].mxu0
      %v6418 = vpop.f32.mrb[0].mxu0
      %6419 = vdwg.mxu0
      %6420 = vmatprep.subr.bf16.mxu0 %v6347
      %6421 = vmatpush1.bf16.msra.mxu0 %v6346
      %6422 = vmatprep.subr.bf16.mxu0 %v6351
      %6423 = vmatpush1.bf16.msra.mxu0 %v6350
      %6424 = vmatprep.subr.bf16.mxu0 %v6355
      %6425 = vmatpush1.bf16.msra.mxu0 %v6354
      %6426 = vmatprep.subr.bf16.mxu0 %v6359
      %6427 = vmatpush1.bf16.msra.mxu0 %v6358
      %6428 = vmatprep.subr.bf16.mxu0 0
      %6429 = vmatpush1.bf16.msra.mxu0 0
      %6430 = vmatprep.subr.bf16.mxu0 0
      %6431 = vmatpush1.bf16.msra.mxu0 0
      %6432 = vmatprep.subr.bf16.mxu0 0
      %6433 = vmatpush1.bf16.msra.mxu0 0
      %6434 = vmatprep.subr.bf16.mxu0 0
      %6435 = vmatpush1.bf16.msra.mxu0 0
      %6436 = vmatprep.subr.bf16.mxu0 0
      %6437 = vmatpush1.bf16.msra.mxu0 0
      %6438 = vmatprep.subr.bf16.mxu0 0
      %6439 = vmatpush1.bf16.msra.mxu0 0
      %6440 = vmatprep.subr.bf16.mxu0 0
      %6441 = vmatpush1.bf16.msra.mxu0 0
      %6442 = vmatprep.subr.bf16.mxu0 0
      %6443 = vmatpush1.bf16.msra.mxu0 0
      %6444 = vmatprep.subr.bf16.mxu0 0
      %6445 = vmatpush1.bf16.msra.mxu0 0
      %6446 = vmatprep.subr.bf16.mxu0 0
      %6447 = vmatpush1.bf16.msra.mxu0 0
      %6448 = vmatprep.subr.bf16.mxu0 0
      %6449 = vmatpush1.bf16.msra.mxu0 0
      %6450 = vmatprep.subr.bf16.mxu0 0
      %6451 = vmatpush1.bf16.msra.mxu0 0
      %6452 = vmatprep.mubr.bf16.mxu0 0
      %6453 = vmatmul.mubr.bf16.gmra.mrb[0].mxu0 %v6377
      %v6454 = vpop.f32.mrb[0].mxu0
      %v6455 = vadd.f32 %v6290, %v6454
      %v6456 = vpop.f32.mrb[0].mxu0
      %v6457 = vadd.f32 %v6292, %v6456
      %v6458 = vpop.f32.mrb[0].mxu0
      %v6459 = vpop.f32.mrb[0].mxu0
      %6460 = vdwg.mxu0
      %s6461 = scalar_lea.vmem %s10, 2
      %v6462 = vld [vmem:[%s6461] sm:$0x1]
      %v6464 = vsel %vm6004, %v6462, 0
      %6466 = vmatprep.subr.bf16.mxu0 0
      %6467 = vmatpush1.bf16.msra.mxu0 %v6009
      %6468 = vmatprep.subr.bf16.mxu0 0
      %6469 = vmatpush1.bf16.msra.mxu0 0
      %6470 = vmatprep.subr.bf16.mxu0 0
      %6471 = vmatpush1.bf16.msra.mxu0 0
      %6472 = vmatprep.subr.bf16.mxu0 0
      %6473 = vmatpush1.bf16.msra.mxu0 0
      %6474 = vmatprep.subr.bf16.mxu0 0
      %6475 = vmatpush1.bf16.msra.mxu0 0
      %6476 = vmatprep.subr.bf16.mxu0 0
      %6477 = vmatpush1.bf16.msra.mxu0 0
      %6478 = vmatprep.subr.bf16.mxu0 0
      %6479 = vmatpush1.bf16.msra.mxu0 0
      %6480 = vmatprep.subr.bf16.mxu0 0
      %6481 = vmatpush1.bf16.msra.mxu0 0
      %6482 = vmatprep.subr.bf16.mxu0 0
      %6483 = vmatpush1.bf16.msra.mxu0 0
      %6484 = vmatprep.subr.bf16.mxu0 0
      %6485 = vmatpush1.bf16.msra.mxu0 0
      %6486 = vmatprep.subr.bf16.mxu0 0
      %6487 = vmatpush1.bf16.msra.mxu0 0
      %6488 = vmatprep.subr.bf16.mxu0 0
      %6489 = vmatpush1.bf16.msra.mxu0 0
      %6490 = vmatprep.subr.bf16.mxu0 0
      %6491 = vmatpush1.bf16.msra.mxu0 0
      %6492 = vmatprep.subr.bf16.mxu0 0
      %6493 = vmatpush1.bf16.msra.mxu0 0
      %6494 = vmatprep.subr.bf16.mxu0 0
      %6495 = vmatpush1.bf16.msra.mxu0 0
      %6496 = vmatprep.subr.bf16.mxu0 0
      %6497 = vmatpush1.bf16.msra.mxu0 0
      %6498 = vmatprep.mubr.bf16.mxu0 0
      %6499 = vmatmul.mubr.bf16.gmra.mrb[0].mxu0 %v6464
      %v6500 = vpop.f32.mrb[0].mxu0
      %v6501 = vadd.f32 0.0, %v6500
      %v6502 = vpop.f32.mrb[0].mxu0
      %v6503 = vpop.f32.mrb[0].mxu0
      %v6504 = vpop.f32.mrb[0].mxu0
      %6505 = vdwg.mxu0
      %v6506 = vpack.c.bf16 %v6501, %v6501
      %s6507 = scalar_lea.vmem %s11, 256
      %v6508 = vld [vmem:[%s6507] sm:$0xff]
      %v6509 = vld [vmem:[%s6507 + $0x8] sm:$0xff]
      %v6510 = vld [vmem:[%s6507 + $0x10] sm:$0xff]
      %v6511 = vld [vmem:[%s6507 + $0x18] sm:$0xff]
      %v6512 = vld [vmem:[%s6507 + $0x20] sm:$0xff]
      %v6513 = vld [vmem:[%s6507 + $0x28] sm:$0xff]
      %v6514 = vld [vmem:[%s6507 + $0x30] sm:$0xff]
      %v6515 = vld [vmem:[%s6507 + $0x38] sm:$0xff]
      %v6516 = vld [vmem:[%s6507 + $0x40] sm:$0xff]
      %v6517 = vld [vmem:[%s6507 + $0x48] sm:$0xff]
      %v6518 = vld [vmem:[%s6507 + $0x50] sm:$0xff]
      %v6519 = vld [vmem:[%s6507 + $0x58] sm:$0xff]
      %v6520 = vld [vmem:[%s6507 + $0x60] sm:$0xff]
      %v6521 = vld [vmem:[%s6507 + $0x68] sm:$0xff]
      %v6522 = vld [vmem:[%s6507 + $0x70] sm:$0xff]
      %v6523 = vld [vmem:[%s6507 + $0x78] sm:$0xff]
      %v6540 = vunpack.c.l.b16 %v6508
      %v6541 = vunpack.c.h.b16 %v6508
      %v6542 = vunpack.c.l.b16 %v6509
      %v6543 = vunpack.c.h.b16 %v6509
      %v6544 = vunpack.c.l.b16 %v6510
      %v6545 = vunpack.c.h.b16 %v6510
      %v6546 = vunpack.c.l.b16 %v6511
      %v6547 = vunpack.c.h.b16 %v6511
      %v6548 = vunpack.c.l.b16 %v6512
      %v6549 = vunpack.c.h.b16 %v6512
      %v6550 = vunpack.c.l.b16 %v6513
      %v6551 = vunpack.c.h.b16 %v6513
      %v6552 = vunpack.c.l.b16 %v6514
      %v6553 = vunpack.c.h.b16 %v6514
      %v6554 = vunpack.c.l.b16 %v6515
      %v6555 = vunpack.c.h.b16 %v6515
      %v6556 = vunpack.c.l.b16 %v6516
      %v6557 = vunpack.c.h.b16 %v6516
      %v6558 = vunpack.c.l.b16 %v6517
      %v6559 = vunpack.c.h.b16 %v6517
      %v6560 = vunpack.c.l.b16 %v6518
      %v6561 = vunpack.c.h.b16 %v6518
      %v6562 = vunpack.c.l.b16 %v6519
      %v6563 = vunpack.c.h.b16 %v6519
      %v6564 = vunpack.c.l.b16 %v6520
      %v6565 = vunpack.c.h.b16 %v6520
      %v6566 = vunpack.c.l.b16 %v6521
      %v6567 = vunpack.c.h.b16 %v6521
      %v6568 = vunpack.c.l.b16 %v6522
      %v6569 = vunpack.c.h.b16 %v6522
      %v6570 = vunpack.c.l.b16 %v6523
      %v6571 = vunpack.c.h.b16 %v6523
      %v6572 = vpack.c.b16 %v6544, %v6540
      %v6573 = vpack.c.b16 %v6545, %v6541
      %v6574 = vpack.c.b16 %v6546, %v6542
      %v6575 = vpack.c.b16 %v6547, %v6543
      %v6576 = vpack.c.b16 %v6552, %v6548
      %v6577 = vpack.c.b16 %v6553, %v6549
      %v6578 = vpack.c.b16 %v6554, %v6550
      %v6579 = vpack.c.b16 %v6555, %v6551
      %v6580 = vpack.c.b16 %v6560, %v6556
      %v6581 = vpack.c.b16 %v6561, %v6557
      %v6582 = vpack.c.b16 %v6562, %v6558
      %v6583 = vpack.c.b16 %v6563, %v6559
      %v6584 = vpack.c.b16 %v6568, %v6564
      %v6585 = vpack.c.b16 %v6569, %v6565
      %v6586 = vpack.c.b16 %v6570, %v6566
      %v6587 = vpack.c.b16 %v6571, %v6567
      %v6605 = vsel %vm1111, %v6506, 0
      %6607 = vmatprep.subr.bf16.mxu0 %v6573
      %6608 = vmatpush1.bf16.msra.mxu0 %v6572
      %6609 = vmatprep.subr.bf16.mxu0 %v6577
      %6610 = vmatpush1.bf16.msra.mxu0 %v6576
      %6611 = vmatprep.subr.bf16.mxu0 %v6581
      %6612 = vmatpush1.bf16.msra.mxu0 %v6580
      %6613 = vmatprep.subr.bf16.mxu0 %v6585
      %6614 = vmatpush1.bf16.msra.mxu0 %v6584
      %6615 = vmatprep.subr.bf16.mxu0 0
      %6616 = vmatpush1.bf16.msra.mxu0 0
      %6617 = vmatprep.subr.bf16.mxu0 0
      %6618 = vmatpush1.bf16.msra.mxu0 0
      %6619 = vmatprep.subr.bf16.mxu0 0
      %6620 = vmatpush1.bf16.msra.mxu0 0
      %6621 = vmatprep.subr.bf16.mxu0 0
      %6622 = vmatpush1.bf16.msra.mxu0 0
      %6623 = vmatprep.subr.bf16.mxu0 0
      %6624 = vmatpush1.bf16.msra.mxu0 0
      %6625 = vmatprep.subr.bf16.mxu0 0
      %6626 = vmatpush1.bf16.msra.mxu0 0
      %6627 = vmatprep.subr.bf16.mxu0 0
      %6628 = vmatpush1.bf16.msra.mxu0 0
      %6629 = vmatprep.subr.bf16.mxu0 0
      %6630 = vmatpush1.bf16.msra.mxu0 0
      %6631 = vmatprep.subr.bf16.mxu0 0
      %6632 = vmatpush1.bf16.msra.mxu0 0
      %6633 = vmatprep.subr.bf16.mxu0 0
      %6634 = vmatpush1.bf16.msra.mxu0 0
      %6635 = vmatprep.subr.bf16.mxu0 0
      %6636 = vmatpush1.bf16.msra.mxu0 0
      %6637 = vmatprep.subr.bf16.mxu0 0
      %6638 = vmatpush1.bf16.msra.mxu0 0
      %6639 = vmatprep.mubr.bf16.mxu0 0
      %6640 = vmatmul.mubr.bf16.gmra.mrb[0].mxu0 %v6605
      %v6641 = vpop.f32.mrb[0].mxu0
      %v6642 = vadd.f32 0.0, %v6641
      %v6643 = vpop.f32.mrb[0].mxu0
      %v6644 = vadd.f32 0.0, %v6643
      %v6645 = vpop.f32.mrb[0].mxu0
      %v6646 = vpop.f32.mrb[0].mxu0
      %6647 = vdwg.mxu0
      %6648 = vmatprep.subr.bf16.mxu0 %v6575
      %6649 = vmatpush1.bf16.msra.mxu0 %v6574
      %6650 = vmatprep.subr.bf16.mxu0 %v6579
      %6651 = vmatpush1.bf16.msra.mxu0 %v6578
      %6652 = vmatprep.subr.bf16.mxu0 %v6583
      %6653 = vmatpush1.bf16.msra.mxu0 %v6582
      %6654 = vmatprep.subr.bf16.mxu0 %v6587
      %6655 = vmatpush1.bf16.msra.mxu0 %v6586
      %6656 = vmatprep.subr.bf16.mxu0 0
      %6657 = vmatpush1.bf16.msra.mxu0 0
      %6658 = vmatprep.subr.bf16.mxu0 0
      %6659 = vmatpush1.bf16.msra.mxu0 0
      %6660 = vmatprep.subr.bf16.mxu0 0
      %6661 = vmatpush1.bf16.msra.mxu0 0
      %6662 = vmatprep.subr.bf16.mxu0 0
      %6663 = vmatpush1.bf16.msra.mxu0 0
      %6664 = vmatprep.subr.bf16.mxu0 0
      %6665 = vmatpush1.bf16.msra.mxu0 0
      %6666 = vmatprep.subr.bf16.mxu0 0
      %6667 = vmatpush1.bf16.msra.mxu0 0
      %6668 = vmatprep.subr.bf16.mxu0 0
      %6669 = vmatpush1.bf16.msra.mxu0 0
      %6670 = vmatprep.subr.bf16.mxu0 0
      %6671 = vmatpush1.bf16.msra.mxu0 0
      %6672 = vmatprep.subr.bf16.mxu0 0
      %6673 = vmatpush1.bf16.msra.mxu0 0
      %6674 = vmatprep.subr.bf16.mxu0 0
      %6675 = vmatpush1.bf16.msra.mxu0 0
      %6676 = vmatprep.subr.bf16.mxu0 0
      %6677 = vmatpush1.bf16.msra.mxu0 0
      %6678 = vmatprep.subr.bf16.mxu0 0
      %6679 = vmatpush1.bf16.msra.mxu0 0
      %6680 = vmatprep.mubr.bf16.mxu0 0
      %6681 = vmatmul.mubr.bf16.gmra.mrb[0].mxu0 %v6605
      %v6682 = vpop.f32.mrb[0].mxu0
      %v6683 = vadd.f32 0.0, %v6682
      %v6684 = vpop.f32.mrb[0].mxu0
      %v6685 = vadd.f32 0.0, %v6684
      %v6686 = vpop.f32.mrb[0].mxu0
      %v6687 = vpop.f32.mrb[0].mxu0
      %6688 = vdwg.mxu0
      %v6689 = vadd.f32 %v6414, %v6642
      %v6690 = vadd.f32 %v6416, %v6644
      %v6691 = vadd.f32 %v6455, %v6683
      %v6692 = vadd.f32 %v6457, %v6685
      %s6693 = scalar_lea.vmem %s10, 3
      %v6694 = vld [vmem:[%s6693] sm:$0x1]
      %v6696 = vsel %vm6004, %v6694, 0
      %6698 = vmatprep.subr.bf16.mxu0 0
      %6699 = vmatpush1.bf16.msra.mxu0 %v6009
      %6700 = vmatprep.subr.bf16.mxu0 0
      %6701 = vmatpush1.bf16.msra.mxu0 0
      %6702 = vmatprep.subr.bf16.mxu0 0
      %6703 = vmatpush1.bf16.msra.mxu0 0
      %6704 = vmatprep.subr.bf16.mxu0 0
      %6705 = vmatpush1.bf16.msra.mxu0 0
      %6706 = vmatprep.subr.bf16.mxu0 0
      %6707 = vmatpush1.bf16.msra.mxu0 0
      %6708 = vmatprep.subr.bf16.mxu0 0
      %6709 = vmatpush1.bf16.msra.mxu0 0
      %6710 = vmatprep.subr.bf16.mxu0 0
      %6711 = vmatpush1.bf16.msra.mxu0 0
      %6712 = vmatprep.subr.bf16.mxu0 0
      %6713 = vmatpush1.bf16.msra.mxu0 0
      %6714 = vmatprep.subr.bf16.mxu0 0
      %6715 = vmatpush1.bf16.msra.mxu0 0
      %6716 = vmatprep.subr.bf16.mxu0 0
      %6717 = vmatpush1.bf16.msra.mxu0 0
      %6718 = vmatprep.subr.bf16.mxu0 0
      %6719 = vmatpush1.bf16.msra.mxu0 0
      %6720 = vmatprep.subr.bf16.mxu0 0
      %6721 = vmatpush1.bf16.msra.mxu0 0
      %6722 = vmatprep.subr.bf16.mxu0 0
      %6723 = vmatpush1.bf16.msra.mxu0 0
      %6724 = vmatprep.subr.bf16.mxu0 0
      %6725 = vmatpush1.bf16.msra.mxu0 0
      %6726 = vmatprep.subr.bf16.mxu0 0
      %6727 = vmatpush1.bf16.msra.mxu0 0
      %6728 = vmatprep.subr.bf16.mxu0 0
      %6729 = vmatpush1.bf16.msra.mxu0 0
      %6730 = vmatprep.mubr.bf16.mxu0 0
      %6731 = vmatmul.mubr.bf16.gmra.mrb[0].mxu0 %v6696
      %v6732 = vpop.f32.mrb[0].mxu0
      %v6733 = vadd.f32 0.0, %v6732
      %v6734 = vpop.f32.mrb[0].mxu0
      %v6735 = vpop.f32.mrb[0].mxu0
      %v6736 = vpop.f32.mrb[0].mxu0
      %6737 = vdwg.mxu0
      %v6738 = vpack.c.bf16 %v6733, %v6733
      %s6739 = scalar_lea.vmem %s11, 384
      %v6740 = vld [vmem:[%s6739] sm:$0xff]
      %v6741 = vld [vmem:[%s6739 + $0x8] sm:$0xff]
      %v6742 = vld [vmem:[%s6739 + $0x10] sm:$0xff]
      %v6743 = vld [vmem:[%s6739 + $0x18] sm:$0xff]
      %v6744 = vld [vmem:[%s6739 + $0x20] sm:$0xff]
      %v6745 = vld [vmem:[%s6739 + $0x28] sm:$0xff]
      %v6746 = vld [vmem:[%s6739 + $0x30] sm:$0xff]
      %v6747 = vld [vmem:[%s6739 + $0x38] sm:$0xff]
      %v6748 = vld [vmem:[%s6739 + $0x40] sm:$0xff]
      %v6749 = vld [vmem:[%s6739 + $0x48] sm:$0xff]
      %v6750 = vld [vmem:[%s6739 + $0x50] sm:$0xff]
      %v6751 = vld [vmem:[%s6739 + $0x58] sm:$0xff]
      %v6752 = vld [vmem:[%s6739 + $0x60] sm:$0xff]
      %v6753 = vld [vmem:[%s6739 + $0x68] sm:$0xff]
      %v6754 = vld [vmem:[%s6739 + $0x70] sm:$0xff]
      %v6755 = vld [vmem:[%s6739 + $0x78] sm:$0xff]
      %v6772 = vunpack.c.l.b16 %v6740
      %v6773 = vunpack.c.h.b16 %v6740
      %v6774 = vunpack.c.l.b16 %v6741
      %v6775 = vunpack.c.h.b16 %v6741
      %v6776 = vunpack.c.l.b16 %v6742
      %v6777 = vunpack.c.h.b16 %v6742
      %v6778 = vunpack.c.l.b16 %v6743
      %v6779 = vunpack.c.h.b16 %v6743
      %v6780 = vunpack.c.l.b16 %v6744
      %v6781 = vunpack.c.h.b16 %v6744
      %v6782 = vunpack.c.l.b16 %v6745
      %v6783 = vunpack.c.h.b16 %v6745
      %v6784 = vunpack.c.l.b16 %v6746
      %v6785 = vunpack.c.h.b16 %v6746
      %v6786 = vunpack.c.l.b16 %v6747
      %v6787 = vunpack.c.h.b16 %v6747
      %v6788 = vunpack.c.l.b16 %v6748
      %v6789 = vunpack.c.h.b16 %v6748
      %v6790 = vunpack.c.l.b16 %v6749
      %v6791 = vunpack.c.h.b16 %v6749
      %v6792 = vunpack.c.l.b16 %v6750
      %v6793 = vunpack.c.h.b16 %v6750
      %v6794 = vunpack.c.l.b16 %v6751
      %v6795 = vunpack.c.h.b16 %v6751
      %v6796 = vunpack.c.l.b16 %v6752
      %v6797 = vunpack.c.h.b16 %v6752
      %v6798 = vunpack.c.l.b16 %v6753
      %v6799 = vunpack.c.h.b16 %v6753
      %v6800 = vunpack.c.l.b16 %v6754
      %v6801 = vunpack.c.h.b16 %v6754
      %v6802 = vunpack.c.l.b16 %v6755
      %v6803 = vunpack.c.h.b16 %v6755
      %v6804 = vpack.c.b16 %v6776, %v6772
      %v6805 = vpack.c.b16 %v6777, %v6773
      %v6806 = vpack.c.b16 %v6778, %v6774
      %v6807 = vpack.c.b16 %v6779, %v6775
      %v6808 = vpack.c.b16 %v6784, %v6780
      %v6809 = vpack.c.b16 %v6785, %v6781
      %v6810 = vpack.c.b16 %v6786, %v6782
      %v6811 = vpack.c.b16 %v6787, %v6783
      %v6812 = vpack.c.b16 %v6792, %v6788
      %v6813 = vpack.c.b16 %v6793, %v6789
      %v6814 = vpack.c.b16 %v6794, %v6790
      %v6815 = vpack.c.b16 %v6795, %v6791
      %v6816 = vpack.c.b16 %v6800, %v6796
      %v6817 = vpack.c.b16 %v6801, %v6797
      %v6818 = vpack.c.b16 %v6802, %v6798
      %v6819 = vpack.c.b16 %v6803, %v6799
      %v6837 = vsel %vm1111, %v6738, 0
      %6839 = vmatprep.subr.bf16.mxu0 %v6805
      %6840 = vmatpush1.bf16.msra.mxu0 %v6804
      %6841 = vmatprep.subr.bf16.mxu0 %v6809
      %6842 = vmatpush1.bf16.msra.mxu0 %v6808
      %6843 = vmatprep.subr.bf16.mxu0 %v6813
      %6844 = vmatpush1.bf16.msra.mxu0 %v6812
      %6845 = vmatprep.subr.bf16.mxu0 %v6817
      %6846 = vmatpush1.bf16.msra.mxu0 %v6816
      %6847 = vmatprep.subr.bf16.mxu0 0
      %6848 = vmatpush1.bf16.msra.mxu0 0
      %6849 = vmatprep.subr.bf16.mxu0 0
      %6850 = vmatpush1.bf16.msra.mxu0 0
      %6851 = vmatprep.subr.bf16.mxu0 0
      %6852 = vmatpush1.bf16.msra.mxu0 0
      %6853 = vmatprep.subr.bf16.mxu0 0
      %6854 = vmatpush1.bf16.msra.mxu0 0
      %6855 = vmatprep.subr.bf16.mxu0 0
      %6856 = vmatpush1.bf16.msra.mxu0 0
      %6857 = vmatprep.subr.bf16.mxu0 0
      %6858 = vmatpush1.bf16.msra.mxu0 0
      %6859 = vmatprep.subr.bf16.mxu0 0
      %6860 = vmatpush1.bf16.msra.mxu0 0
      %6861 = vmatprep.subr.bf16.mxu0 0
      %6862 = vmatpush1.bf16.msra.mxu0 0
      %6863 = vmatprep.subr.bf16.mxu0 0
      %6864 = vmatpush1.bf16.msra.mxu0 0
      %6865 = vmatprep.subr.bf16.mxu0 0
      %6866 = vmatpush1.bf16.msra.mxu0 0
      %6867 = vmatprep.subr.bf16.mxu0 0
      %6868 = vmatpush1.bf16.msra.mxu0 0
      %6869 = vmatprep.subr.bf16.mxu0 0
      %6870 = vmatpush1.bf16.msra.mxu0 0
      %6871 = vmatprep.mubr.bf16.mxu0 0
      %6872 = vmatmul.mubr.bf16.gmra.mrb[0].mxu0 %v6837
      %v6873 = vpop.f32.mrb[0].mxu0
      %v6874 = vadd.f32 0.0, %v6873
      %v6875 = vpop.f32.mrb[0].mxu0
      %v6876 = vadd.f32 0.0, %v6875
      %v6877 = vpop.f32.mrb[0].mxu0
      %v6878 = vpop.f32.mrb[0].mxu0
      %6879 = vdwg.mxu0
      %6880 = vmatprep.subr.bf16.mxu0 %v6807
      %6881 = vmatpush1.bf16.msra.mxu0 %v6806
      %6882 = vmatprep.subr.bf16.mxu0 %v6811
      %6883 = vmatpush1.bf16.msra.mxu0 %v6810
      %6884 = vmatprep.subr.bf16.mxu0 %v6815
      %6885 = vmatpush1.bf16.msra.mxu0 %v6814
      %6886 = vmatprep.subr.bf16.mxu0 %v6819
      %6887 = vmatpush1.bf16.msra.mxu0 %v6818
      %6888 = vmatprep.subr.bf16.mxu0 0
      %6889 = vmatpush1.bf16.msra.mxu0 0
      %6890 = vmatprep.subr.bf16.mxu0 0
      %6891 = vmatpush1.bf16.msra.mxu0 0
      %6892 = vmatprep.subr.bf16.mxu0 0
      %6893 = vmatpush1.bf16.msra.mxu0 0
      %6894 = vmatprep.subr.bf16.mxu0 0
      %6895 = vmatpush1.bf16.msra.mxu0 0
      %6896 = vmatprep.subr.bf16.mxu0 0
      %6897 = vmatpush1.bf16.msra.mxu0 0
      %6898 = vmatprep.subr.bf16.mxu0 0
      %6899 = vmatpush1.bf16.msra.mxu0 0
      %6900 = vmatprep.subr.bf16.mxu0 0
      %6901 = vmatpush1.bf16.msra.mxu0 0
      %6902 = vmatprep.subr.bf16.mxu0 0
      %6903 = vmatpush1.bf16.msra.mxu0 0
      %6904 = vmatprep.subr.bf16.mxu0 0
      %6905 = vmatpush1.bf16.msra.mxu0 0
      %6906 = vmatprep.subr.bf16.mxu0 0
      %6907 = vmatpush1.bf16.msra.mxu0 0
      %6908 = vmatprep.subr.bf16.mxu0 0
      %6909 = vmatpush1.bf16.msra.mxu0 0
      %6910 = vmatprep.subr.bf16.mxu0 0
      %6911 = vmatpush1.bf16.msra.mxu0 0
      %6912 = vmatprep.mubr.bf16.mxu0 0
      %6913 = vmatmul.mubr.bf16.gmra.mrb[0].mxu0 %v6837
      %v6914 = vpop.f32.mrb[0].mxu0
      %v6915 = vadd.f32 0.0, %v6914
      %v6916 = vpop.f32.mrb[0].mxu0
      %v6917 = vadd.f32 0.0, %v6916
      %v6918 = vpop.f32.mrb[0].mxu0
      %v6919 = vpop.f32.mrb[0].mxu0
      %6920 = vdwg.mxu0
      %v6921 = vadd.f32 %v6689, %v6874
      %v6922 = vadd.f32 %v6690, %v6876
      %v6923 = vadd.f32 %v6691, %v6915
      %v6924 = vadd.f32 %v6692, %v6917
      %s6925 = scalar_lea.vmem %s10, 4
      %v6926 = vld [vmem:[%s6925] sm:$0x1]
      %v6928 = vsel %vm6004, %v6926, 0
      %6930 = vmatprep.subr.bf16.mxu0 0
      %6931 = vmatpush1.bf16.msra.mxu0 %v6009
      %6932 = vmatprep.subr.bf16.mxu0 0
      %6933 = vmatpush1.bf16.msra.mxu0 0
      %6934 = vmatprep.subr.bf16.mxu0 0
      %6935 = vmatpush1.bf16.msra.mxu0 0
      %6936 = vmatprep.subr.bf16.mxu0 0
      %6937 = vmatpush1.bf16.msra.mxu0 0
      %6938 = vmatprep.subr.bf16.mxu0 0
      %6939 = vmatpush1.bf16.msra.mxu0 0
      %6940 = vmatprep.subr.bf16.mxu0 0
      %6941 = vmatpush1.bf16.msra.mxu0 0
      %6942 = vmatprep.subr.bf16.mxu0 0
      %6943 = vmatpush1.bf16.msra.mxu0 0
      %6944 = vmatprep.subr.bf16.mxu0 0
      %6945 = vmatpush1.bf16.msra.mxu0 0
      %6946 = vmatprep.subr.bf16.mxu0 0
      %6947 = vmatpush1.bf16.msra.mxu0 0
      %6948 = vmatprep.subr.bf16.mxu0 0
      %6949 = vmatpush1.bf16.msra.mxu0 0
      %6950 = vmatprep.subr.bf16.mxu0 0
      %6951 = vmatpush1.bf16.msra.mxu0 0
      %6952 = vmatprep.subr.bf16.mxu0 0
      %6953 = vmatpush1.bf16.msra.mxu0 0
      %6954 = vmatprep.subr.bf16.mxu0 0
      %6955 = vmatpush1.bf16.msra.mxu0 0
      %6956 = vmatprep.subr.bf16.mxu0 0
      %6957 = vmatpush1.bf16.msra.mxu0 0
      %6958 = vmatprep.subr.bf16.mxu0 0
      %6959 = vmatpush1.bf16.msra.mxu0 0
      %6960 = vmatprep.subr.bf16.mxu0 0
      %6961 = vmatpush1.bf16.msra.mxu0 0
      %6962 = vmatprep.mubr.bf16.mxu0 0
      %6963 = vmatmul.mubr.bf16.gmra.mrb[0].mxu0 %v6928
      %v6964 = vpop.f32.mrb[0].mxu0
      %v6965 = vadd.f32 0.0, %v6964
      %v6966 = vpop.f32.mrb[0].mxu0
      %v6967 = vpop.f32.mrb[0].mxu0
      %v6968 = vpop.f32.mrb[0].mxu0
      %6969 = vdwg.mxu0
      %v6970 = vpack.c.bf16 %v6965, %v6965
      %s6971 = scalar_lea.vmem %s11, 512
      %v6972 = vld [vmem:[%s6971] sm:$0xff]
      %v6973 = vld [vmem:[%s6971 + $0x8] sm:$0xff]
      %v6974 = vld [vmem:[%s6971 + $0x10] sm:$0xff]
      %v6975 = vld [vmem:[%s6971 + $0x18] sm:$0xff]
      %v6976 = vld [vmem:[%s6971 + $0x20] sm:$0xff]
      %v6977 = vld [vmem:[%s6971 + $0x28] sm:$0xff]
      %v6978 = vld [vmem:[%s6971 + $0x30] sm:$0xff]
      %v6979 = vld [vmem:[%s6971 + $0x38] sm:$0xff]
      %v6980 = vld [vmem:[%s6971 + $0x40] sm:$0xff]
      %v6981 = vld [vmem:[%s6971 + $0x48] sm:$0xff]
      %v6982 = vld [vmem:[%s6971 + $0x50] sm:$0xff]
      %v6983 = vld [vmem:[%s6971 + $0x58] sm:$0xff]
      %v6984 = vld [vmem:[%s6971 + $0x60] sm:$0xff]
      %v6985 = vld [vmem:[%s6971 + $0x68] sm:$0xff]
      %v6986 = vld [vmem:[%s6971 + $0x70] sm:$0xff]
      %v6987 = vld [vmem:[%s6971 + $0x78] sm:$0xff]
      %v7004 = vunpack.c.l.b16 %v6972
      %v7005 = vunpack.c.h.b16 %v6972
      %v7006 = vunpack.c.l.b16 %v6973
      %v7007 = vunpack.c.h.b16 %v6973
      %v7008 = vunpack.c.l.b16 %v6974
      %v7009 = vunpack.c.h.b16 %v6974
      %v7010 = vunpack.c.l.b16 %v6975
      %v7011 = vunpack.c.h.b16 %v6975
      %v7012 = vunpack.c.l.b16 %v6976
      %v7013 = vunpack.c.h.b16 %v6976
      %v7014 = vunpack.c.l.b16 %v6977
      %v7015 = vunpack.c.h.b16 %v6977
      %v7016 = vunpack.c.l.b16 %v6978
      %v7017 = vunpack.c.h.b16 %v6978
      %v7018 = vunpack.c.l.b16 %v6979
      %v7019 = vunpack.c.h.b16 %v6979
      %v7020 = vunpack.c.l.b16 %v6980
      %v7021 = vunpack.c.h.b16 %v6980
      %v7022 = vunpack.c.l.b16 %v6981
      %v7023 = vunpack.c.h.b16 %v6981
      %v7024 = vunpack.c.l.b16 %v6982
      %v7025 = vunpack.c.h.b16 %v6982
      %v7026 = vunpack.c.l.b16 %v6983
      %v7027 = vunpack.c.h.b16 %v6983
      %v7028 = vunpack.c.l.b16 %v6984
      %v7029 = vunpack.c.h.b16 %v6984
      %v7030 = vunpack.c.l.b16 %v6985
      %v7031 = vunpack.c.h.b16 %v6985
      %v7032 = vunpack.c.l.b16 %v6986
      %v7033 = vunpack.c.h.b16 %v6986
      %v7034 = vunpack.c.l.b16 %v6987
      %v7035 = vunpack.c.h.b16 %v6987
      %v7036 = vpack.c.b16 %v7008, %v7004
      %v7037 = vpack.c.b16 %v7009, %v7005
      %v7038 = vpack.c.b16 %v7010, %v7006
      %v7039 = vpack.c.b16 %v7011, %v7007
      %v7040 = vpack.c.b16 %v7016, %v7012
      %v7041 = vpack.c.b16 %v7017, %v7013
      %v7042 = vpack.c.b16 %v7018, %v7014
      %v7043 = vpack.c.b16 %v7019, %v7015
      %v7044 = vpack.c.b16 %v7024, %v7020
      %v7045 = vpack.c.b16 %v7025, %v7021
      %v7046 = vpack.c.b16 %v7026, %v7022
      %v7047 = vpack.c.b16 %v7027, %v7023
      %v7048 = vpack.c.b16 %v7032, %v7028
      %v7049 = vpack.c.b16 %v7033, %v7029
      %v7050 = vpack.c.b16 %v7034, %v7030
      %v7051 = vpack.c.b16 %v7035, %v7031
      %v7069 = vsel %vm1111, %v6970, 0
      %7071 = vmatprep.subr.bf16.mxu0 %v7037
      %7072 = vmatpush1.bf16.msra.mxu0 %v7036
      %7073 = vmatprep.subr.bf16.mxu0 %v7041
      %7074 = vmatpush1.bf16.msra.mxu0 %v7040
      %7075 = vmatprep.subr.bf16.mxu0 %v7045
      %7076 = vmatpush1.bf16.msra.mxu0 %v7044
      %7077 = vmatprep.subr.bf16.mxu0 %v7049
      %7078 = vmatpush1.bf16.msra.mxu0 %v7048
      %7079 = vmatprep.subr.bf16.mxu0 0
      %7080 = vmatpush1.bf16.msra.mxu0 0
      %7081 = vmatprep.subr.bf16.mxu0 0
      %7082 = vmatpush1.bf16.msra.mxu0 0
      %7083 = vmatprep.subr.bf16.mxu0 0
      %7084 = vmatpush1.bf16.msra.mxu0 0
      %7085 = vmatprep.subr.bf16.mxu0 0
      %7086 = vmatpush1.bf16.msra.mxu0 0
      %7087 = vmatprep.subr.bf16.mxu0 0
      %7088 = vmatpush1.bf16.msra.mxu0 0
      %7089 = vmatprep.subr.bf16.mxu0 0
      %7090 = vmatpush1.bf16.msra.mxu0 0
      %7091 = vmatprep.subr.bf16.mxu0 0
      %7092 = vmatpush1.bf16.msra.mxu0 0
      %7093 = vmatprep.subr.bf16.mxu0 0
      %7094 = vmatpush1.bf16.msra.mxu0 0
      %7095 = vmatprep.subr.bf16.mxu0 0
      %7096 = vmatpush1.bf16.msra.mxu0 0
      %7097 = vmatprep.subr.bf16.mxu0 0
      %7098 = vmatpush1.bf16.msra.mxu0 0
      %7099 = vmatprep.subr.bf16.mxu0 0
      %7100 = vmatpush1.bf16.msra.mxu0 0
      %7101 = vmatprep.subr.bf16.mxu0 0
      %7102 = vmatpush1.bf16.msra.mxu0 0
      %7103 = vmatprep.mubr.bf16.mxu0 0
      %7104 = vmatmul.mubr.bf16.gmra.mrb[0].mxu0 %v7069
      %v7105 = vpop.f32.mrb[0].mxu0
      %v7106 = vadd.f32 0.0, %v7105
      %v7107 = vpop.f32.mrb[0].mxu0
      %v7108 = vadd.f32 0.0, %v7107
      %v7109 = vpop.f32.mrb[0].mxu0
      %v7110 = vpop.f32.mrb[0].mxu0
      %7111 = vdwg.mxu0
      %7112 = vmatprep.subr.bf16.mxu0 %v7039
      %7113 = vmatpush1.bf16.msra.mxu0 %v7038
      %7114 = vmatprep.subr.bf16.mxu0 %v7043
      %7115 = vmatpush1.bf16.msra.mxu0 %v7042
      %7116 = vmatprep.subr.bf16.mxu0 %v7047
      %7117 = vmatpush1.bf16.msra.mxu0 %v7046
      %7118 = vmatprep.subr.bf16.mxu0 %v7051
      %7119 = vmatpush1.bf16.msra.mxu0 %v7050
      %7120 = vmatprep.subr.bf16.mxu0 0
      %7121 = vmatpush1.bf16.msra.mxu0 0
      %7122 = vmatprep.subr.bf16.mxu0 0
      %7123 = vmatpush1.bf16.msra.mxu0 0
      %7124 = vmatprep.subr.bf16.mxu0 0
      %7125 = vmatpush1.bf16.msra.mxu0 0
      %7126 = vmatprep.subr.bf16.mxu0 0
      %7127 = vmatpush1.bf16.msra.mxu0 0
      %7128 = vmatprep.subr.bf16.mxu0 0
      %7129 = vmatpush1.bf16.msra.mxu0 0
      %7130 = vmatprep.subr.bf16.mxu0 0
      %7131 = vmatpush1.bf16.msra.mxu0 0
      %7132 = vmatprep.subr.bf16.mxu0 0
      %7133 = vmatpush1.bf16.msra.mxu0 0
      %7134 = vmatprep.subr.bf16.mxu0 0
      %7135 = vmatpush1.bf16.msra.mxu0 0
      %7136 = vmatprep.subr.bf16.mxu0 0
      %7137 = vmatpush1.bf16.msra.mxu0 0
      %7138 = vmatprep.subr.bf16.mxu0 0
      %7139 = vmatpush1.bf16.msra.mxu0 0
      %7140 = vmatprep.subr.bf16.mxu0 0
      %7141 = vmatpush1.bf16.msra.mxu0 0
      %7142 = vmatprep.subr.bf16.mxu0 0
      %7143 = vmatpush1.bf16.msra.mxu0 0
      %7144 = vmatprep.mubr.bf16.mxu0 0
      %7145 = vmatmul.mubr.bf16.gmra.mrb[0].mxu0 %v7069
      %v7146 = vpop.f32.mrb[0].mxu0
      %v7147 = vadd.f32 0.0, %v7146
      %v7148 = vpop.f32.mrb[0].mxu0
      %v7149 = vadd.f32 0.0, %v7148
      %v7150 = vpop.f32.mrb[0].mxu0
      %v7151 = vpop.f32.mrb[0].mxu0
      %7152 = vdwg.mxu0
      %v7153 = vadd.f32 %v6921, %v7106
      %v7154 = vadd.f32 %v6922, %v7108
      %v7155 = vadd.f32 %v6923, %v7147
      %v7156 = vadd.f32 %v6924, %v7149
      %s7157 = scalar_lea.vmem %s10, 5
      %v7158 = vld [vmem:[%s7157] sm:$0x1]
      %v7160 = vsel %vm6004, %v7158, 0
      %7162 = vmatprep.subr.bf16.mxu0 0
      %7163 = vmatpush1.bf16.msra.mxu0 %v6009
      %7164 = vmatprep.subr.bf16.mxu0 0
      %7165 = vmatpush1.bf16.msra.mxu0 0
      %7166 = vmatprep.subr.bf16.mxu0 0
      %7167 = vmatpush1.bf16.msra.mxu0 0
      %7168 = vmatprep.subr.bf16.mxu0 0
      %7169 = vmatpush1.bf16.msra.mxu0 0
      %7170 = vmatprep.subr.bf16.mxu0 0
      %7171 = vmatpush1.bf16.msra.mxu0 0
      %7172 = vmatprep.subr.bf16.mxu0 0
      %7173 = vmatpush1.bf16.msra.mxu0 0
      %7174 = vmatprep.subr.bf16.mxu0 0
      %7175 = vmatpush1.bf16.msra.mxu0 0
      %7176 = vmatprep.subr.bf16.mxu0 0
      %7177 = vmatpush1.bf16.msra.mxu0 0
      %7178 = vmatprep.subr.bf16.mxu0 0
      %7179 = vmatpush1.bf16.msra.mxu0 0
      %7180 = vmatprep.subr.bf16.mxu0 0
      %7181 = vmatpush1.bf16.msra.mxu0 0
      %7182 = vmatprep.subr.bf16.mxu0 0
      %7183 = vmatpush1.bf16.msra.mxu0 0
      %7184 = vmatprep.subr.bf16.mxu0 0
      %7185 = vmatpush1.bf16.msra.mxu0 0
      %7186 = vmatprep.subr.bf16.mxu0 0
      %7187 = vmatpush1.bf16.msra.mxu0 0
      %7188 = vmatprep.subr.bf16.mxu0 0
      %7189 = vmatpush1.bf16.msra.mxu0 0
      %7190 = vmatprep.subr.bf16.mxu0 0
      %7191 = vmatpush1.bf16.msra.mxu0 0
      %7192 = vmatprep.subr.bf16.mxu0 0
      %7193 = vmatpush1.bf16.msra.mxu0 0
      %7194 = vmatprep.mubr.bf16.mxu0 0
      %7195 = vmatmul.mubr.bf16.gmra.mrb[0].mxu0 %v7160
      %v7196 = vpop.f32.mrb[0].mxu0
      %v7197 = vadd.f32 0.0, %v7196
      %v7198 = vpop.f32.mrb[0].mxu0
      %v7199 = vpop.f32.mrb[0].mxu0
      %v7200 = vpop.f32.mrb[0].mxu0
      %7201 = vdwg.mxu0
      %v7202 = vpack.c.bf16 %v7197, %v7197
      %s7203 = scalar_lea.vmem %s11, 640
      %v7204 = vld [vmem:[%s7203] sm:$0xff]
      %v7205 = vld [vmem:[%s7203 + $0x8] sm:$0xff]
      %v7206 = vld [vmem:[%s7203 + $0x10] sm:$0xff]
      %v7207 = vld [vmem:[%s7203 + $0x18] sm:$0xff]
      %v7208 = vld [vmem:[%s7203 + $0x20] sm:$0xff]
      %v7209 = vld [vmem:[%s7203 + $0x28] sm:$0xff]
      %v7210 = vld [vmem:[%s7203 + $0x30] sm:$0xff]
      %v7211 = vld [vmem:[%s7203 + $0x38] sm:$0xff]
      %v7212 = vld [vmem:[%s7203 + $0x40] sm:$0xff]
      %v7213 = vld [vmem:[%s7203 + $0x48] sm:$0xff]
      %v7214 = vld [vmem:[%s7203 + $0x50] sm:$0xff]
      %v7215 = vld [vmem:[%s7203 + $0x58] sm:$0xff]
      %v7216 = vld [vmem:[%s7203 + $0x60] sm:$0xff]
      %v7217 = vld [vmem:[%s7203 + $0x68] sm:$0xff]
      %v7218 = vld [vmem:[%s7203 + $0x70] sm:$0xff]
      %v7219 = vld [vmem:[%s7203 + $0x78] sm:$0xff]
      %v7236 = vunpack.c.l.b16 %v7204
      %v7237 = vunpack.c.h.b16 %v7204
      %v7238 = vunpack.c.l.b16 %v7205
      %v7239 = vunpack.c.h.b16 %v7205
      %v7240 = vunpack.c.l.b16 %v7206
      %v7241 = vunpack.c.h.b16 %v7206
      %v7242 = vunpack.c.l.b16 %v7207
      %v7243 = vunpack.c.h.b16 %v7207
      %v7244 = vunpack.c.l.b16 %v7208
      %v7245 = vunpack.c.h.b16 %v7208
      %v7246 = vunpack.c.l.b16 %v7209
      %v7247 = vunpack.c.h.b16 %v7209
      %v7248 = vunpack.c.l.b16 %v7210
      %v7249 = vunpack.c.h.b16 %v7210
      %v7250 = vunpack.c.l.b16 %v7211
      %v7251 = vunpack.c.h.b16 %v7211
      %v7252 = vunpack.c.l.b16 %v7212
      %v7253 = vunpack.c.h.b16 %v7212
      %v7254 = vunpack.c.l.b16 %v7213
      %v7255 = vunpack.c.h.b16 %v7213
      %v7256 = vunpack.c.l.b16 %v7214
      %v7257 = vunpack.c.h.b16 %v7214
      %v7258 = vunpack.c.l.b16 %v7215
      %v7259 = vunpack.c.h.b16 %v7215
      %v7260 = vunpack.c.l.b16 %v7216
      %v7261 = vunpack.c.h.b16 %v7216
      %v7262 = vunpack.c.l.b16 %v7217
      %v7263 = vunpack.c.h.b16 %v7217
      %v7264 = vunpack.c.l.b16 %v7218
      %v7265 = vunpack.c.h.b16 %v7218
      %v7266 = vunpack.c.l.b16 %v7219
      %v7267 = vunpack.c.h.b16 %v7219
      %v7268 = vpack.c.b16 %v7240, %v7236
      %v7269 = vpack.c.b16 %v7241, %v7237
      %v7270 = vpack.c.b16 %v7242, %v7238
      %v7271 = vpack.c.b16 %v7243, %v7239
      %v7272 = vpack.c.b16 %v7248, %v7244
      %v7273 = vpack.c.b16 %v7249, %v7245
      %v7274 = vpack.c.b16 %v7250, %v7246
      %v7275 = vpack.c.b16 %v7251, %v7247
      %v7276 = vpack.c.b16 %v7256, %v7252
      %v7277 = vpack.c.b16 %v7257, %v7253
      %v7278 = vpack.c.b16 %v7258, %v7254
      %v7279 = vpack.c.b16 %v7259, %v7255
      %v7280 = vpack.c.b16 %v7264, %v7260
      %v7281 = vpack.c.b16 %v7265, %v7261
      %v7282 = vpack.c.b16 %v7266, %v7262
      %v7283 = vpack.c.b16 %v7267, %v7263
      %v7301 = vsel %vm1111, %v7202, 0
      %7303 = vmatprep.subr.bf16.mxu0 %v7269
      %7304 = vmatpush1.bf16.msra.mxu0 %v7268
      %7305 = vmatprep.subr.bf16.mxu0 %v7273
      %7306 = vmatpush1.bf16.msra.mxu0 %v7272
      %7307 = vmatprep.subr.bf16.mxu0 %v7277
      %7308 = vmatpush1.bf16.msra.mxu0 %v7276
      %7309 = vmatprep.subr.bf16.mxu0 %v7281
      %7310 = vmatpush1.bf16.msra.mxu0 %v7280
      %7311 = vmatprep.subr.bf16.mxu0 0
      %7312 = vmatpush1.bf16.msra.mxu0 0
      %7313 = vmatprep.subr.bf16.mxu0 0
      %7314 = vmatpush1.bf16.msra.mxu0 0
      %7315 = vmatprep.subr.bf16.mxu0 0
      %7316 = vmatpush1.bf16.msra.mxu0 0
      %7317 = vmatprep.subr.bf16.mxu0 0
      %7318 = vmatpush1.bf16.msra.mxu0 0
      %7319 = vmatprep.subr.bf16.mxu0 0
      %7320 = vmatpush1.bf16.msra.mxu0 0
      %7321 = vmatprep.subr.bf16.mxu0 0
      %7322 = vmatpush1.bf16.msra.mxu0 0
      %7323 = vmatprep.subr.bf16.mxu0 0
      %7324 = vmatpush1.bf16.msra.mxu0 0
      %7325 = vmatprep.subr.bf16.mxu0 0
      %7326 = vmatpush1.bf16.msra.mxu0 0
      %7327 = vmatprep.subr.bf16.mxu0 0
      %7328 = vmatpush1.bf16.msra.mxu0 0
      %7329 = vmatprep.subr.bf16.mxu0 0
      %7330 = vmatpush1.bf16.msra.mxu0 0
      %7331 = vmatprep.subr.bf16.mxu0 0
      %7332 = vmatpush1.bf16.msra.mxu0 0
      %7333 = vmatprep.subr.bf16.mxu0 0
      %7334 = vmatpush1.bf16.msra.mxu0 0
      %7335 = vmatprep.mubr.bf16.mxu0 0
      %7336 = vmatmul.mubr.bf16.gmra.mrb[0].mxu0 %v7301
      %v7337 = vpop.f32.mrb[0].mxu0
      %v7338 = vadd.f32 0.0, %v7337
      %v7339 = vpop.f32.mrb[0].mxu0
      %v7340 = vadd.f32 0.0, %v7339
      %v7341 = vpop.f32.mrb[0].mxu0
      %v7342 = vpop.f32.mrb[0].mxu0
      %7343 = vdwg.mxu0
      %7344 = vmatprep.subr.bf16.mxu0 %v7271
      %7345 = vmatpush1.bf16.msra.mxu0 %v7270
      %7346 = vmatprep.subr.bf16.mxu0 %v7275
      %7347 = vmatpush1.bf16.msra.mxu0 %v7274
      %7348 = vmatprep.subr.bf16.mxu0 %v7279
      %7349 = vmatpush1.bf16.msra.mxu0 %v7278
      %7350 = vmatprep.subr.bf16.mxu0 %v7283
      %7351 = vmatpush1.bf16.msra.mxu0 %v7282
      %7352 = vmatprep.subr.bf16.mxu0 0
      %7353 = vmatpush1.bf16.msra.mxu0 0
      %7354 = vmatprep.subr.bf16.mxu0 0
      %7355 = vmatpush1.bf16.msra.mxu0 0
      %7356 = vmatprep.subr.bf16.mxu0 0
      %7357 = vmatpush1.bf16.msra.mxu0 0
      %7358 = vmatprep.subr.bf16.mxu0 0
      %7359 = vmatpush1.bf16.msra.mxu0 0
      %7360 = vmatprep.subr.bf16.mxu0 0
      %7361 = vmatpush1.bf16.msra.mxu0 0
      %7362 = vmatprep.subr.bf16.mxu0 0
      %7363 = vmatpush1.bf16.msra.mxu0 0
      %7364 = vmatprep.subr.bf16.mxu0 0
      %7365 = vmatpush1.bf16.msra.mxu0 0
      %7366 = vmatprep.subr.bf16.mxu0 0
      %7367 = vmatpush1.bf16.msra.mxu0 0
      %7368 = vmatprep.subr.bf16.mxu0 0
      %7369 = vmatpush1.bf16.msra.mxu0 0
      %7370 = vmatprep.subr.bf16.mxu0 0
      %7371 = vmatpush1.bf16.msra.mxu0 0
      %7372 = vmatprep.subr.bf16.mxu0 0
      %7373 = vmatpush1.bf16.msra.mxu0 0
      %7374 = vmatprep.subr.bf16.mxu0 0
      %7375 = vmatpush1.bf16.msra.mxu0 0
      %7376 = vmatprep.mubr.bf16.mxu0 0
      %7377 = vmatmul.mubr.bf16.gmra.mrb[0].mxu0 %v7301
      %v7378 = vpop.f32.mrb[0].mxu0
      %v7379 = vadd.f32 0.0, %v7378
      %v7380 = vpop.f32.mrb[0].mxu0
      %v7381 = vadd.f32 0.0, %v7380
      %v7382 = vpop.f32.mrb[0].mxu0
      %v7383 = vpop.f32.mrb[0].mxu0
      %7384 = vdwg.mxu0
      %v7385 = vadd.f32 %v7153, %v7338
      %v7386 = vadd.f32 %v7154, %v7340
      %v7387 = vadd.f32 %v7155, %v7379
      %v7388 = vadd.f32 %v7156, %v7381
      %s7389 = scalar_lea.vmem %s10, 6
      %v7390 = vld [vmem:[%s7389] sm:$0x1]
      %v7392 = vsel %vm6004, %v7390, 0
      %7394 = vmatprep.subr.bf16.mxu0 0
      %7395 = vmatpush1.bf16.msra.mxu0 %v6009
      %7396 = vmatprep.subr.bf16.mxu0 0
      %7397 = vmatpush1.bf16.msra.mxu0 0
      %7398 = vmatprep.subr.bf16.mxu0 0
      %7399 = vmatpush1.bf16.msra.mxu0 0
      %7400 = vmatprep.subr.bf16.mxu0 0
      %7401 = vmatpush1.bf16.msra.mxu0 0
      %7402 = vmatprep.subr.bf16.mxu0 0
      %7403 = vmatpush1.bf16.msra.mxu0 0
      %7404 = vmatprep.subr.bf16.mxu0 0
      %7405 = vmatpush1.bf16.msra.mxu0 0
      %7406 = vmatprep.subr.bf16.mxu0 0
      %7407 = vmatpush1.bf16.msra.mxu0 0
      %7408 = vmatprep.subr.bf16.mxu0 0
      %7409 = vmatpush1.bf16.msra.mxu0 0
      %7410 = vmatprep.subr.bf16.mxu0 0
      %7411 = vmatpush1.bf16.msra.mxu0 0
      %7412 = vmatprep.subr.bf16.mxu0 0
      %7413 = vmatpush1.bf16.msra.mxu0 0
      %7414 = vmatprep.subr.bf16.mxu0 0
      %7415 = vmatpush1.bf16.msra.mxu0 0
      %7416 = vmatprep.subr.bf16.mxu0 0
      %7417 = vmatpush1.bf16.msra.mxu0 0
      %7418 = vmatprep.subr.bf16.mxu0 0
      %7419 = vmatpush1.bf16.msra.mxu0 0
      %7420 = vmatprep.subr.bf16.mxu0 0
      %7421 = vmatpush1.bf16.msra.mxu0 0
      %7422 = vmatprep.subr.bf16.mxu0 0
      %7423 = vmatpush1.bf16.msra.mxu0 0
      %7424 = vmatprep.subr.bf16.mxu0 0
      %7425 = vmatpush1.bf16.msra.mxu0 0
      %7426 = vmatprep.mubr.bf16.mxu0 0
      %7427 = vmatmul.mubr.bf16.gmra.mrb[0].mxu0 %v7392
      %v7428 = vpop.f32.mrb[0].mxu0
      %v7429 = vadd.f32 0.0, %v7428
      %v7430 = vpop.f32.mrb[0].mxu0
      %v7431 = vpop.f32.mrb[0].mxu0
      %v7432 = vpop.f32.mrb[0].mxu0
      %7433 = vdwg.mxu0
      %v7434 = vpack.c.bf16 %v7429, %v7429
      %s7435 = scalar_lea.vmem %s11, 768
      %v7436 = vld [vmem:[%s7435] sm:$0xff]
      %v7437 = vld [vmem:[%s7435 + $0x8] sm:$0xff]
      %v7438 = vld [vmem:[%s7435 + $0x10] sm:$0xff]
      %v7439 = vld [vmem:[%s7435 + $0x18] sm:$0xff]
      %v7440 = vld [vmem:[%s7435 + $0x20] sm:$0xff]
      %v7441 = vld [vmem:[%s7435 + $0x28] sm:$0xff]
      %v7442 = vld [vmem:[%s7435 + $0x30] sm:$0xff]
      %v7443 = vld [vmem:[%s7435 + $0x38] sm:$0xff]
      %v7444 = vld [vmem:[%s7435 + $0x40] sm:$0xff]
      %v7445 = vld [vmem:[%s7435 + $0x48] sm:$0xff]
      %v7446 = vld [vmem:[%s7435 + $0x50] sm:$0xff]
      %v7447 = vld [vmem:[%s7435 + $0x58] sm:$0xff]
      %v7448 = vld [vmem:[%s7435 + $0x60] sm:$0xff]
      %v7449 = vld [vmem:[%s7435 + $0x68] sm:$0xff]
      %v7450 = vld [vmem:[%s7435 + $0x70] sm:$0xff]
      %v7451 = vld [vmem:[%s7435 + $0x78] sm:$0xff]
      %v7468 = vunpack.c.l.b16 %v7436
      %v7469 = vunpack.c.h.b16 %v7436
      %v7470 = vunpack.c.l.b16 %v7437
      %v7471 = vunpack.c.h.b16 %v7437
      %v7472 = vunpack.c.l.b16 %v7438
      %v7473 = vunpack.c.h.b16 %v7438
      %v7474 = vunpack.c.l.b16 %v7439
      %v7475 = vunpack.c.h.b16 %v7439
      %v7476 = vunpack.c.l.b16 %v7440
      %v7477 = vunpack.c.h.b16 %v7440
      %v7478 = vunpack.c.l.b16 %v7441
      %v7479 = vunpack.c.h.b16 %v7441
      %v7480 = vunpack.c.l.b16 %v7442
      %v7481 = vunpack.c.h.b16 %v7442
      %v7482 = vunpack.c.l.b16 %v7443
      %v7483 = vunpack.c.h.b16 %v7443
      %v7484 = vunpack.c.l.b16 %v7444
      %v7485 = vunpack.c.h.b16 %v7444
      %v7486 = vunpack.c.l.b16 %v7445
      %v7487 = vunpack.c.h.b16 %v7445
      %v7488 = vunpack.c.l.b16 %v7446
      %v7489 = vunpack.c.h.b16 %v7446
      %v7490 = vunpack.c.l.b16 %v7447
      %v7491 = vunpack.c.h.b16 %v7447
      %v7492 = vunpack.c.l.b16 %v7448
      %v7493 = vunpack.c.h.b16 %v7448
      %v7494 = vunpack.c.l.b16 %v7449
      %v7495 = vunpack.c.h.b16 %v7449
      %v7496 = vunpack.c.l.b16 %v7450
      %v7497 = vunpack.c.h.b16 %v7450
      %v7498 = vunpack.c.l.b16 %v7451
      %v7499 = vunpack.c.h.b16 %v7451
      %v7500 = vpack.c.b16 %v7472, %v7468
      %v7501 = vpack.c.b16 %v7473, %v7469
      %v7502 = vpack.c.b16 %v7474, %v7470
      %v7503 = vpack.c.b16 %v7475, %v7471
      %v7504 = vpack.c.b16 %v7480, %v7476
      %v7505 = vpack.c.b16 %v7481, %v7477
      %v7506 = vpack.c.b16 %v7482, %v7478
      %v7507 = vpack.c.b16 %v7483, %v7479
      %v7508 = vpack.c.b16 %v7488, %v7484
      %v7509 = vpack.c.b16 %v7489, %v7485
      %v7510 = vpack.c.b16 %v7490, %v7486
      %v7511 = vpack.c.b16 %v7491, %v7487
      %v7512 = vpack.c.b16 %v7496, %v7492
      %v7513 = vpack.c.b16 %v7497, %v7493
      %v7514 = vpack.c.b16 %v7498, %v7494
      %v7515 = vpack.c.b16 %v7499, %v7495
      %v7533 = vsel %vm1111, %v7434, 0
      %7535 = vmatprep.subr.bf16.mxu0 %v7501
      %7536 = vmatpush1.bf16.msra.mxu0 %v7500
      %7537 = vmatprep.subr.bf16.mxu0 %v7505
      %7538 = vmatpush1.bf16.msra.mxu0 %v7504
      %7539 = vmatprep.subr.bf16.mxu0 %v7509
      %7540 = vmatpush1.bf16.msra.mxu0 %v7508
      %7541 = vmatprep.subr.bf16.mxu0 %v7513
      %7542 = vmatpush1.bf16.msra.mxu0 %v7512
      %7543 = vmatprep.subr.bf16.mxu0 0
      %7544 = vmatpush1.bf16.msra.mxu0 0
      %7545 = vmatprep.subr.bf16.mxu0 0
      %7546 = vmatpush1.bf16.msra.mxu0 0
      %7547 = vmatprep.subr.bf16.mxu0 0
      %7548 = vmatpush1.bf16.msra.mxu0 0
      %7549 = vmatprep.subr.bf16.mxu0 0
      %7550 = vmatpush1.bf16.msra.mxu0 0
      %7551 = vmatprep.subr.bf16.mxu0 0
      %7552 = vmatpush1.bf16.msra.mxu0 0
      %7553 = vmatprep.subr.bf16.mxu0 0
      %7554 = vmatpush1.bf16.msra.mxu0 0
      %7555 = vmatprep.subr.bf16.mxu0 0
      %7556 = vmatpush1.bf16.msra.mxu0 0
      %7557 = vmatprep.subr.bf16.mxu0 0
      %7558 = vmatpush1.bf16.msra.mxu0 0
      %7559 = vmatprep.subr.bf16.mxu0 0
      %7560 = vmatpush1.bf16.msra.mxu0 0
      %7561 = vmatprep.subr.bf16.mxu0 0
      %7562 = vmatpush1.bf16.msra.mxu0 0
      %7563 = vmatprep.subr.bf16.mxu0 0
      %7564 = vmatpush1.bf16.msra.mxu0 0
      %7565 = vmatprep.subr.bf16.mxu0 0
      %7566 = vmatpush1.bf16.msra.mxu0 0
      %7567 = vmatprep.mubr.bf16.mxu0 0
      %7568 = vmatmul.mubr.bf16.gmra.mrb[0].mxu0 %v7533
      %v7569 = vpop.f32.mrb[0].mxu0
      %v7570 = vadd.f32 0.0, %v7569
      %v7571 = vpop.f32.mrb[0].mxu0
      %v7572 = vadd.f32 0.0, %v7571
      %v7573 = vpop.f32.mrb[0].mxu0
      %v7574 = vpop.f32.mrb[0].mxu0
      %7575 = vdwg.mxu0
      %7576 = vmatprep.subr.bf16.mxu0 %v7503
      %7577 = vmatpush1.bf16.msra.mxu0 %v7502
      %7578 = vmatprep.subr.bf16.mxu0 %v7507
      %7579 = vmatpush1.bf16.msra.mxu0 %v7506
      %7580 = vmatprep.subr.bf16.mxu0 %v7511
      %7581 = vmatpush1.bf16.msra.mxu0 %v7510
      %7582 = vmatprep.subr.bf16.mxu0 %v7515
      %7583 = vmatpush1.bf16.msra.mxu0 %v7514
      %7584 = vmatprep.subr.bf16.mxu0 0
      %7585 = vmatpush1.bf16.msra.mxu0 0
      %7586 = vmatprep.subr.bf16.mxu0 0
      %7587 = vmatpush1.bf16.msra.mxu0 0
      %7588 = vmatprep.subr.bf16.mxu0 0
      %7589 = vmatpush1.bf16.msra.mxu0 0
      %7590 = vmatprep.subr.bf16.mxu0 0
      %7591 = vmatpush1.bf16.msra.mxu0 0
      %7592 = vmatprep.subr.bf16.mxu0 0
      %7593 = vmatpush1.bf16.msra.mxu0 0
      %7594 = vmatprep.subr.bf16.mxu0 0
      %7595 = vmatpush1.bf16.msra.mxu0 0
      %7596 = vmatprep.subr.bf16.mxu0 0
      %7597 = vmatpush1.bf16.msra.mxu0 0
      %7598 = vmatprep.subr.bf16.mxu0 0
      %7599 = vmatpush1.bf16.msra.mxu0 0
      %7600 = vmatprep.subr.bf16.mxu0 0
      %7601 = vmatpush1.bf16.msra.mxu0 0
      %7602 = vmatprep.subr.bf16.mxu0 0
      %7603 = vmatpush1.bf16.msra.mxu0 0
      %7604 = vmatprep.subr.bf16.mxu0 0
      %7605 = vmatpush1.bf16.msra.mxu0 0
      %7606 = vmatprep.subr.bf16.mxu0 0
      %7607 = vmatpush1.bf16.msra.mxu0 0
      %7608 = vmatprep.mubr.bf16.mxu0 0
      %7609 = vmatmul.mubr.bf16.gmra.mrb[0].mxu0 %v7533
      %v7610 = vpop.f32.mrb[0].mxu0
      %v7611 = vadd.f32 0.0, %v7610
      %v7612 = vpop.f32.mrb[0].mxu0
      %v7613 = vadd.f32 0.0, %v7612
      %v7614 = vpop.f32.mrb[0].mxu0
      %v7615 = vpop.f32.mrb[0].mxu0
      %7616 = vdwg.mxu0
      %v7617 = vadd.f32 %v7385, %v7570
      %v7618 = vadd.f32 %v7386, %v7572
      %v7619 = vadd.f32 %v7387, %v7611
      %v7620 = vadd.f32 %v7388, %v7613
      %s7621 = scalar_lea.vmem %s10, 7
      %v7622 = vld [vmem:[%s7621] sm:$0x1]
      %v7624 = vsel %vm6004, %v7622, 0
      %7626 = vmatprep.subr.bf16.mxu0 0
      %7627 = vmatpush1.bf16.msra.mxu0 %v6009
      %7628 = vmatprep.subr.bf16.mxu0 0
      %7629 = vmatpush1.bf16.msra.mxu0 0
      %7630 = vmatprep.subr.bf16.mxu0 0
      %7631 = vmatpush1.bf16.msra.mxu0 0
      %7632 = vmatprep.subr.bf16.mxu0 0
      %7633 = vmatpush1.bf16.msra.mxu0 0
      %7634 = vmatprep.subr.bf16.mxu0 0
      %7635 = vmatpush1.bf16.msra.mxu0 0
      %7636 = vmatprep.subr.bf16.mxu0 0
      %7637 = vmatpush1.bf16.msra.mxu0 0
      %7638 = vmatprep.subr.bf16.mxu0 0
      %7639 = vmatpush1.bf16.msra.mxu0 0
      %7640 = vmatprep.subr.bf16.mxu0 0
      %7641 = vmatpush1.bf16.msra.mxu0 0
      %7642 = vmatprep.subr.bf16.mxu0 0
      %7643 = vmatpush1.bf16.msra.mxu0 0
      %7644 = vmatprep.subr.bf16.mxu0 0
      %7645 = vmatpush1.bf16.msra.mxu0 0
      %7646 = vmatprep.subr.bf16.mxu0 0
      %7647 = vmatpush1.bf16.msra.mxu0 0
      %7648 = vmatprep.subr.bf16.mxu0 0
      %7649 = vmatpush1.bf16.msra.mxu0 0
      %7650 = vmatprep.subr.bf16.mxu0 0
      %7651 = vmatpush1.bf16.msra.mxu0 0
      %7652 = vmatprep.subr.bf16.mxu0 0
      %7653 = vmatpush1.bf16.msra.mxu0 0
      %7654 = vmatprep.subr.bf16.mxu0 0
      %7655 = vmatpush1.bf16.msra.mxu0 0
      %7656 = vmatprep.subr.bf16.mxu0 0
      %7657 = vmatpush1.bf16.msra.mxu0 0
      %7658 = vmatprep.mubr.bf16.mxu0 0
      %7659 = vmatmul.mubr.bf16.gmra.mrb[0].mxu0 %v7624
      %v7660 = vpop.f32.mrb[0].mxu0
      %v7661 = vadd.f32 0.0, %v7660
      %v7662 = vpop.f32.mrb[0].mxu0
      %v7663 = vpop.f32.mrb[0].mxu0
      %v7664 = vpop.f32.mrb[0].mxu0
      %7665 = vdwg.mxu0
      %v7666 = vpack.c.bf16 %v7661, %v7661
      %s7667 = scalar_lea.vmem %s11, 896
      %v7668 = vld [vmem:[%s7667] sm:$0xff]
      %v7669 = vld [vmem:[%s7667 + $0x8] sm:$0xff]
      %v7670 = vld [vmem:[%s7667 + $0x10] sm:$0xff]
      %v7671 = vld [vmem:[%s7667 + $0x18] sm:$0xff]
      %v7672 = vld [vmem:[%s7667 + $0x20] sm:$0xff]
      %v7673 = vld [vmem:[%s7667 + $0x28] sm:$0xff]
      %v7674 = vld [vmem:[%s7667 + $0x30] sm:$0xff]
      %v7675 = vld [vmem:[%s7667 + $0x38] sm:$0xff]
      %v7676 = vld [vmem:[%s7667 + $0x40] sm:$0xff]
      %v7677 = vld [vmem:[%s7667 + $0x48] sm:$0xff]
      %v7678 = vld [vmem:[%s7667 + $0x50] sm:$0xff]
      %v7679 = vld [vmem:[%s7667 + $0x58] sm:$0xff]
      %v7680 = vld [vmem:[%s7667 + $0x60] sm:$0xff]
      %v7681 = vld [vmem:[%s7667 + $0x68] sm:$0xff]
      %v7682 = vld [vmem:[%s7667 + $0x70] sm:$0xff]
      %v7683 = vld [vmem:[%s7667 + $0x78] sm:$0xff]
      %v7700 = vunpack.c.l.b16 %v7668
      %v7701 = vunpack.c.h.b16 %v7668
      %v7702 = vunpack.c.l.b16 %v7669
      %v7703 = vunpack.c.h.b16 %v7669
      %v7704 = vunpack.c.l.b16 %v7670
      %v7705 = vunpack.c.h.b16 %v7670
      %v7706 = vunpack.c.l.b16 %v7671
      %v7707 = vunpack.c.h.b16 %v7671
      %v7708 = vunpack.c.l.b16 %v7672
      %v7709 = vunpack.c.h.b16 %v7672
      %v7710 = vunpack.c.l.b16 %v7673
      %v7711 = vunpack.c.h.b16 %v7673
      %v7712 = vunpack.c.l.b16 %v7674
      %v7713 = vunpack.c.h.b16 %v7674
      %v7714 = vunpack.c.l.b16 %v7675
      %v7715 = vunpack.c.h.b16 %v7675
      %v7716 = vunpack.c.l.b16 %v7676
      %v7717 = vunpack.c.h.b16 %v7676
      %v7718 = vunpack.c.l.b16 %v7677
      %v7719 = vunpack.c.h.b16 %v7677
      %v7720 = vunpack.c.l.b16 %v7678
      %v7721 = vunpack.c.h.b16 %v7678
      %v7722 = vunpack.c.l.b16 %v7679
      %v7723 = vunpack.c.h.b16 %v7679
      %v7724 = vunpack.c.l.b16 %v7680
      %v7725 = vunpack.c.h.b16 %v7680
      %v7726 = vunpack.c.l.b16 %v7681
      %v7727 = vunpack.c.h.b16 %v7681
      %v7728 = vunpack.c.l.b16 %v7682
      %v7729 = vunpack.c.h.b16 %v7682
      %v7730 = vunpack.c.l.b16 %v7683
      %v7731 = vunpack.c.h.b16 %v7683
      %v7732 = vpack.c.b16 %v7704, %v7700
      %v7733 = vpack.c.b16 %v7705, %v7701
      %v7734 = vpack.c.b16 %v7706, %v7702
      %v7735 = vpack.c.b16 %v7707, %v7703
      %v7736 = vpack.c.b16 %v7712, %v7708
      %v7737 = vpack.c.b16 %v7713, %v7709
      %v7738 = vpack.c.b16 %v7714, %v7710
      %v7739 = vpack.c.b16 %v7715, %v7711
      %v7740 = vpack.c.b16 %v7720, %v7716
      %v7741 = vpack.c.b16 %v7721, %v7717
      %v7742 = vpack.c.b16 %v7722, %v7718
      %v7743 = vpack.c.b16 %v7723, %v7719
      %v7744 = vpack.c.b16 %v7728, %v7724
      %v7745 = vpack.c.b16 %v7729, %v7725
      %v7746 = vpack.c.b16 %v7730, %v7726
      %v7747 = vpack.c.b16 %v7731, %v7727
      %v7765 = vsel %vm1111, %v7666, 0
      %7767 = vmatprep.subr.bf16.mxu0 %v7733
      %7768 = vmatpush1.bf16.msra.mxu0 %v7732
      %7769 = vmatprep.subr.bf16.mxu0 %v7737
      %7770 = vmatpush1.bf16.msra.mxu0 %v7736
      %7771 = vmatprep.subr.bf16.mxu0 %v7741
      %7772 = vmatpush1.bf16.msra.mxu0 %v7740
      %7773 = vmatprep.subr.bf16.mxu0 %v7745
      %7774 = vmatpush1.bf16.msra.mxu0 %v7744
      %7775 = vmatprep.subr.bf16.mxu0 0
      %7776 = vmatpush1.bf16.msra.mxu0 0
      %7777 = vmatprep.subr.bf16.mxu0 0
      %7778 = vmatpush1.bf16.msra.mxu0 0
      %7779 = vmatprep.subr.bf16.mxu0 0
      %7780 = vmatpush1.bf16.msra.mxu0 0
      %7781 = vmatprep.subr.bf16.mxu0 0
      %7782 = vmatpush1.bf16.msra.mxu0 0
      %7783 = vmatprep.subr.bf16.mxu0 0
      %7784 = vmatpush1.bf16.msra.mxu0 0
      %7785 = vmatprep.subr.bf16.mxu0 0
      %7786 = vmatpush1.bf16.msra.mxu0 0
      %7787 = vmatprep.subr.bf16.mxu0 0
      %7788 = vmatpush1.bf16.msra.mxu0 0
      %7789 = vmatprep.subr.bf16.mxu0 0
      %7790 = vmatpush1.bf16.msra.mxu0 0
      %7791 = vmatprep.subr.bf16.mxu0 0
      %7792 = vmatpush1.bf16.msra.mxu0 0
      %7793 = vmatprep.subr.bf16.mxu0 0
      %7794 = vmatpush1.bf16.msra.mxu0 0
      %7795 = vmatprep.subr.bf16.mxu0 0
      %7796 = vmatpush1.bf16.msra.mxu0 0
      %7797 = vmatprep.subr.bf16.mxu0 0
      %7798 = vmatpush1.bf16.msra.mxu0 0
      %7799 = vmatprep.mubr.bf16.mxu0 0
      %7800 = vmatmul.mubr.bf16.gmra.mrb[0].mxu0 %v7765
      %v7801 = vpop.f32.mrb[0].mxu0
      %v7802 = vadd.f32 0.0, %v7801
      %v7803 = vpop.f32.mrb[0].mxu0
      %v7804 = vadd.f32 0.0, %v7803
      %v7805 = vpop.f32.mrb[0].mxu0
      %v7806 = vpop.f32.mrb[0].mxu0
      %7807 = vdwg.mxu0
      %7808 = vmatprep.subr.bf16.mxu0 %v7735
      %7809 = vmatpush1.bf16.msra.mxu0 %v7734
      %7810 = vmatprep.subr.bf16.mxu0 %v7739
      %7811 = vmatpush1.bf16.msra.mxu0 %v7738
      %7812 = vmatprep.subr.bf16.mxu0 %v7743
      %7813 = vmatpush1.bf16.msra.mxu0 %v7742
      %7814 = vmatprep.subr.bf16.mxu0 %v7747
      %7815 = vmatpush1.bf16.msra.mxu0 %v7746
      %7816 = vmatprep.subr.bf16.mxu0 0
      %7817 = vmatpush1.bf16.msra.mxu0 0
      %7818 = vmatprep.subr.bf16.mxu0 0
      %7819 = vmatpush1.bf16.msra.mxu0 0
      %7820 = vmatprep.subr.bf16.mxu0 0
      %7821 = vmatpush1.bf16.msra.mxu0 0
      %7822 = vmatprep.subr.bf16.mxu0 0
      %7823 = vmatpush1.bf16.msra.mxu0 0
      %7824 = vmatprep.subr.bf16.mxu0 0
      %7825 = vmatpush1.bf16.msra.mxu0 0
      %7826 = vmatprep.subr.bf16.mxu0 0
      %7827 = vmatpush1.bf16.msra.mxu0 0
      %7828 = vmatprep.subr.bf16.mxu0 0
      %7829 = vmatpush1.bf16.msra.mxu0 0
      %7830 = vmatprep.subr.bf16.mxu0 0
      %7831 = vmatpush1.bf16.msra.mxu0 0
      %7832 = vmatprep.subr.bf16.mxu0 0
      %7833 = vmatpush1.bf16.msra.mxu0 0
      %7834 = vmatprep.subr.bf16.mxu0 0
      %7835 = vmatpush1.bf16.msra.mxu0 0
      %7836 = vmatprep.subr.bf16.mxu0 0
      %7837 = vmatpush1.bf16.msra.mxu0 0
      %7838 = vmatprep.subr.bf16.mxu0 0
      %7839 = vmatpush1.bf16.msra.mxu0 0
      %7840 = vmatprep.mubr.bf16.mxu0 0
      %7841 = vmatmul.mubr.bf16.gmra.mrb[0].mxu0 %v7765
      %v7842 = vpop.f32.mrb[0].mxu0
      %v7843 = vadd.f32 0.0, %v7842
      %v7844 = vpop.f32.mrb[0].mxu0
      %v7845 = vadd.f32 0.0, %v7844
      %v7846 = vpop.f32.mrb[0].mxu0
      %v7847 = vpop.f32.mrb[0].mxu0
      %7848 = vdwg.mxu0
      %v7849 = vadd.f32 %v7617, %v7802
      %v7850 = vadd.f32 %v7618, %v7804
      %v7851 = vadd.f32 %v7619, %v7843
      %v7852 = vadd.f32 %v7620, %v7845
      %s7853 = scalar_lea.vmem %s10, 8
      %v7854 = vld [vmem:[%s7853] sm:$0x1]
      %v7856 = vsel %vm6004, %v7854, 0
      %7858 = vmatprep.subr.bf16.mxu0 0
      %7859 = vmatpush1.bf16.msra.mxu0 %v6009
      %7860 = vmatprep.subr.bf16.mxu0 0
      %7861 = vmatpush1.bf16.msra.mxu0 0
      %7862 = vmatprep.subr.bf16.mxu0 0
      %7863 = vmatpush1.bf16.msra.mxu0 0
      %7864 = vmatprep.subr.bf16.mxu0 0
      %7865 = vmatpush1.bf16.msra.mxu0 0
      %7866 = vmatprep.subr.bf16.mxu0 0
      %7867 = vmatpush1.bf16.msra.mxu0 0
      %7868 = vmatprep.subr.bf16.mxu0 0
      %7869 = vmatpush1.bf16.msra.mxu0 0
      %7870 = vmatprep.subr.bf16.mxu0 0
      %7871 = vmatpush1.bf16.msra.mxu0 0
      %7872 = vmatprep.subr.bf16.mxu0 0
      %7873 = vmatpush1.bf16.msra.mxu0 0
      %7874 = vmatprep.subr.bf16.mxu0 0
      %7875 = vmatpush1.bf16.msra.mxu0 0
      %7876 = vmatprep.subr.bf16.mxu0 0
      %7877 = vmatpush1.bf16.msra.mxu0 0
      %7878 = vmatprep.subr.bf16.mxu0 0
      %7879 = vmatpush1.bf16.msra.mxu0 0
      %7880 = vmatprep.subr.bf16.mxu0 0
      %7881 = vmatpush1.bf16.msra.mxu0 0
      %7882 = vmatprep.subr.bf16.mxu0 0
      %7883 = vmatpush1.bf16.msra.mxu0 0
      %7884 = vmatprep.subr.bf16.mxu0 0
      %7885 = vmatpush1.bf16.msra.mxu0 0
      %7886 = vmatprep.subr.bf16.mxu0 0
      %7887 = vmatpush1.bf16.msra.mxu0 0
      %7888 = vmatprep.subr.bf16.mxu0 0
      %7889 = vmatpush1.bf16.msra.mxu0 0
      %7890 = vmatprep.mubr.bf16.mxu0 0
      %7891 = vmatmul.mubr.bf16.gmra.mrb[0].mxu0 %v7856
      %v7892 = vpop.f32.mrb[0].mxu0
      %v7893 = vadd.f32 0.0, %v7892
      %v7894 = vpop.f32.mrb[0].mxu0
      %v7895 = vpop.f32.mrb[0].mxu0
      %v7896 = vpop.f32.mrb[0].mxu0
      %7897 = vdwg.mxu0
      %v7898 = vpack.c.bf16 %v7893, %v7893
      %s7899 = scalar_lea.vmem %s11, 1024
      %v7900 = vld [vmem:[%s7899] sm:$0xff]
      %v7901 = vld [vmem:[%s7899 + $0x8] sm:$0xff]
      %v7902 = vld [vmem:[%s7899 + $0x10] sm:$0xff]
      %v7903 = vld [vmem:[%s7899 + $0x18] sm:$0xff]
      %v7904 = vld [vmem:[%s7899 + $0x20] sm:$0xff]
      %v7905 = vld [vmem:[%s7899 + $0x28] sm:$0xff]
      %v7906 = vld [vmem:[%s7899 + $0x30] sm:$0xff]
      %v7907 = vld [vmem:[%s7899 + $0x38] sm:$0xff]
      %v7908 = vld [vmem:[%s7899 + $0x40] sm:$0xff]
      %v7909 = vld [vmem:[%s7899 + $0x48] sm:$0xff]
      %v7910 = vld [vmem:[%s7899 + $0x50] sm:$0xff]
      %v7911 = vld [vmem:[%s7899 + $0x58] sm:$0xff]
      %v7912 = vld [vmem:[%s7899 + $0x60] sm:$0xff]
      %v7913 = vld [vmem:[%s7899 + $0x68] sm:$0xff]
      %v7914 = vld [vmem:[%s7899 + $0x70] sm:$0xff]
      %v7915 = vld [vmem:[%s7899 + $0x78] sm:$0xff]
      %v7932 = vunpack.c.l.b16 %v7900
      %v7933 = vunpack.c.h.b16 %v7900
      %v7934 = vunpack.c.l.b16 %v7901
      %v7935 = vunpack.c.h.b16 %v7901
      %v7936 = vunpack.c.l.b16 %v7902
      %v7937 = vunpack.c.h.b16 %v7902
      %v7938 = vunpack.c.l.b16 %v7903
      %v7939 = vunpack.c.h.b16 %v7903
      %v7940 = vunpack.c.l.b16 %v7904
      %v7941 = vunpack.c.h.b16 %v7904
      %v7942 = vunpack.c.l.b16 %v7905
      %v7943 = vunpack.c.h.b16 %v7905
      %v7944 = vunpack.c.l.b16 %v7906
      %v7945 = vunpack.c.h.b16 %v7906
      %v7946 = vunpack.c.l.b16 %v7907
      %v7947 = vunpack.c.h.b16 %v7907
      %v7948 = vunpack.c.l.b16 %v7908
      %v7949 = vunpack.c.h.b16 %v7908
      %v7950 = vunpack.c.l.b16 %v7909
      %v7951 = vunpack.c.h.b16 %v7909
      %v7952 = vunpack.c.l.b16 %v7910
      %v7953 = vunpack.c.h.b16 %v7910
      %v7954 = vunpack.c.l.b16 %v7911
      %v7955 = vunpack.c.h.b16 %v7911
      %v7956 = vunpack.c.l.b16 %v7912
      %v7957 = vunpack.c.h.b16 %v7912
      %v7958 = vunpack.c.l.b16 %v7913
      %v7959 = vunpack.c.h.b16 %v7913
      %v7960 = vunpack.c.l.b16 %v7914
      %v7961 = vunpack.c.h.b16 %v7914
      %v7962 = vunpack.c.l.b16 %v7915
      %v7963 = vunpack.c.h.b16 %v7915
      %v7964 = vpack.c.b16 %v7936, %v7932
      %v7965 = vpack.c.b16 %v7937, %v7933
      %v7966 = vpack.c.b16 %v7938, %v7934
      %v7967 = vpack.c.b16 %v7939, %v7935
      %v7968 = vpack.c.b16 %v7944, %v7940
      %v7969 = vpack.c.b16 %v7945, %v7941
      %v7970 = vpack.c.b16 %v7946, %v7942
      %v7971 = vpack.c.b16 %v7947, %v7943
      %v7972 = vpack.c.b16 %v7952, %v7948
      %v7973 = vpack.c.b16 %v7953, %v7949
      %v7974 = vpack.c.b16 %v7954, %v7950
      %v7975 = vpack.c.b16 %v7955, %v7951
      %v7976 = vpack.c.b16 %v7960, %v7956
      %v7977 = vpack.c.b16 %v7961, %v7957
      %v7978 = vpack.c.b16 %v7962, %v7958
      %v7979 = vpack.c.b16 %v7963, %v7959
      %v7997 = vsel %vm1111, %v7898, 0
      %7999 = vmatprep.subr.bf16.mxu0 %v7965
      %8000 = vmatpush1.bf16.msra.mxu0 %v7964
      %8001 = vmatprep.subr.bf16.mxu0 %v7969
      %8002 = vmatpush1.bf16.msra.mxu0 %v7968
      %8003 = vmatprep.subr.bf16.mxu0 %v7973
      %8004 = vmatpush1.bf16.msra.mxu0 %v7972
      %8005 = vmatprep.subr.bf16.mxu0 %v7977
      %8006 = vmatpush1.bf16.msra.mxu0 %v7976
      %8007 = vmatprep.subr.bf16.mxu0 0
      %8008 = vmatpush1.bf16.msra.mxu0 0
      %8009 = vmatprep.subr.bf16.mxu0 0
      %8010 = vmatpush1.bf16.msra.mxu0 0
      %8011 = vmatprep.subr.bf16.mxu0 0
      %8012 = vmatpush1.bf16.msra.mxu0 0
      %8013 = vmatprep.subr.bf16.mxu0 0
      %8014 = vmatpush1.bf16.msra.mxu0 0
      %8015 = vmatprep.subr.bf16.mxu0 0
      %8016 = vmatpush1.bf16.msra.mxu0 0
      %8017 = vmatprep.subr.bf16.mxu0 0
      %8018 = vmatpush1.bf16.msra.mxu0 0
      %8019 = vmatprep.subr.bf16.mxu0 0
      %8020 = vmatpush1.bf16.msra.mxu0 0
      %8021 = vmatprep.subr.bf16.mxu0 0
      %8022 = vmatpush1.bf16.msra.mxu0 0
      %8023 = vmatprep.subr.bf16.mxu0 0
      %8024 = vmatpush1.bf16.msra.mxu0 0
      %8025 = vmatprep.subr.bf16.mxu0 0
      %8026 = vmatpush1.bf16.msra.mxu0 0
      %8027 = vmatprep.subr.bf16.mxu0 0
      %8028 = vmatpush1.bf16.msra.mxu0 0
      %8029 = vmatprep.subr.bf16.mxu0 0
      %8030 = vmatpush1.bf16.msra.mxu0 0
      %8031 = vmatprep.mubr.bf16.mxu0 0
      %8032 = vmatmul.mubr.bf16.gmra.mrb[0].mxu0 %v7997
      %v8033 = vpop.f32.mrb[0].mxu0
      %v8034 = vadd.f32 0.0, %v8033
      %v8035 = vpop.f32.mrb[0].mxu0
      %v8036 = vadd.f32 0.0, %v8035
      %v8037 = vpop.f32.mrb[0].mxu0
      %v8038 = vpop.f32.mrb[0].mxu0
      %8039 = vdwg.mxu0
      %8040 = vmatprep.subr.bf16.mxu0 %v7967
      %8041 = vmatpush1.bf16.msra.mxu0 %v7966
      %8042 = vmatprep.subr.bf16.mxu0 %v7971
      %8043 = vmatpush1.bf16.msra.mxu0 %v7970
      %8044 = vmatprep.subr.bf16.mxu0 %v7975
      %8045 = vmatpush1.bf16.msra.mxu0 %v7974
      %8046 = vmatprep.subr.bf16.mxu0 %v7979
      %8047 = vmatpush1.bf16.msra.mxu0 %v7978
      %8048 = vmatprep.subr.bf16.mxu0 0
      %8049 = vmatpush1.bf16.msra.mxu0 0
      %8050 = vmatprep.subr.bf16.mxu0 0
      %8051 = vmatpush1.bf16.msra.mxu0 0
      %8052 = vmatprep.subr.bf16.mxu0 0
      %8053 = vmatpush1.bf16.msra.mxu0 0
      %8054 = vmatprep.subr.bf16.mxu0 0
      %8055 = vmatpush1.bf16.msra.mxu0 0
      %8056 = vmatprep.subr.bf16.mxu0 0
      %8057 = vmatpush1.bf16.msra.mxu0 0
      %8058 = vmatprep.subr.bf16.mxu0 0
      %8059 = vmatpush1.bf16.msra.mxu0 0
      %8060 = vmatprep.subr.bf16.mxu0 0
      %8061 = vmatpush1.bf16.msra.mxu0 0
      %8062 = vmatprep.subr.bf16.mxu0 0
      %8063 = vmatpush1.bf16.msra.mxu0 0
      %8064 = vmatprep.subr.bf16.mxu0 0
      %8065 = vmatpush1.bf16.msra.mxu0 0
      %8066 = vmatprep.subr.bf16.mxu0 0
      %8067 = vmatpush1.bf16.msra.mxu0 0
      %8068 = vmatprep.subr.bf16.mxu0 0
      %8069 = vmatpush1.bf16.msra.mxu0 0
      %8070 = vmatprep.subr.bf16.mxu0 0
      %8071 = vmatpush1.bf16.msra.mxu0 0
      %8072 = vmatprep.mubr.bf16.mxu0 0
      %8073 = vmatmul.mubr.bf16.gmra.mrb[0].mxu0 %v7997
      %v8074 = vpop.f32.mrb[0].mxu0
      %v8075 = vadd.f32 0.0, %v8074
      %v8076 = vpop.f32.mrb[0].mxu0
      %v8077 = vadd.f32 0.0, %v8076
      %v8078 = vpop.f32.mrb[0].mxu0
      %v8079 = vpop.f32.mrb[0].mxu0
      %8080 = vdwg.mxu0
      %v8081 = vadd.f32 %v7849, %v8034
      %v8082 = vadd.f32 %v7850, %v8036
      %v8083 = vadd.f32 %v7851, %v8075
      %v8084 = vadd.f32 %v7852, %v8077
      %v8085 = vld [vmem:[%s12] sm:$0xf]
      %v8087 = vlaneseq
      %v8088 = vshrl.u32 %v8087, 7
      %v8089 = vsub.s32 0, %v8088
      %v8090 = vrot.slane %v8085, %v8089
      %v8091 = vlaneseq
      %v8092 = vshrl.u32 %v8091, 7
      %v8093 = vsub.s32 1, %v8092
      %v8094 = vrot.slane %v8085, %v8093
      %v8095 = vlaneseq
      %v8096 = vshrl.u32 %v8095, 7
      %v8097 = vsub.s32 2, %v8096
      %v8098 = vrot.slane %v8085, %v8097
      %v8099 = vlaneseq
      %v8100 = vshrl.u32 %v8099, 7
      %v8101 = vsub.s32 3, %v8100
      %v8102 = vrot.slane %v8085, %v8101
      %v8107 = vadd.f32 %v8081, %v8090
      %v8108 = vadd.f32 %v8082, %v8094
      %v8109 = vadd.f32 %v8083, %v8098
      %v8110 = vadd.f32 %v8084, %v8102
      %v8111 = vmax.f32 %v8107, 0.0
      %v8112 = vmax.f32 %v8108, 0.0
      %v8113 = vmax.f32 %v8109, 0.0
      %v8114 = vmax.f32 %v8110, 0.0
      %v8115 = vpack.c.bf16 %v8111, %v8111
      %v8116 = vpack.c.bf16 %v8112, %v8112
      %v8117 = vpack.c.bf16 %v8113, %v8113
      %v8118 = vpack.c.bf16 %v8114, %v8114
      %v8119 = vld [vmem:[%s13] sm:$0xf]
      %v8120 = vld [vmem:[%s13 + $0x4] sm:$0xf]
      %v8121 = vld [vmem:[%s13 + $0x8] sm:$0xf]
      %v8122 = vld [vmem:[%s13 + $0xc] sm:$0xf]
      %v8123 = vld [vmem:[%s13 + $0x10] sm:$0xf]
      %v8124 = vld [vmem:[%s13 + $0x14] sm:$0xf]
      %v8125 = vld [vmem:[%s13 + $0x18] sm:$0xf]
      %v8126 = vld [vmem:[%s13 + $0x1c] sm:$0xf]
      %v8127 = vld [vmem:[%s13 + $0x20] sm:$0xf]
      %v8128 = vld [vmem:[%s13 + $0x24] sm:$0xf]
      %v8129 = vld [vmem:[%s13 + $0x28] sm:$0xf]
      %v8130 = vld [vmem:[%s13 + $0x2c] sm:$0xf]
      %v8131 = vld [vmem:[%s13 + $0x30] sm:$0xf]
      %v8132 = vld [vmem:[%s13 + $0x34] sm:$0xf]
      %v8133 = vld [vmem:[%s13 + $0x38] sm:$0xf]
      %v8134 = vld [vmem:[%s13 + $0x3c] sm:$0xf]
      %v8135 = vld [vmem:[%s13 + $0x40] sm:$0xf]
      %v8136 = vld [vmem:[%s13 + $0x44] sm:$0xf]
      %v8137 = vld [vmem:[%s13 + $0x48] sm:$0xf]
      %v8138 = vld [vmem:[%s13 + $0x4c] sm:$0xf]
      %v8139 = vld [vmem:[%s13 + $0x50] sm:$0xf]
      %v8140 = vld [vmem:[%s13 + $0x54] sm:$0xf]
      %v8141 = vld [vmem:[%s13 + $0x58] sm:$0xf]
      %v8142 = vld [vmem:[%s13 + $0x5c] sm:$0xf]
      %v8143 = vld [vmem:[%s13 + $0x60] sm:$0xf]
      %v8144 = vld [vmem:[%s13 + $0x64] sm:$0xf]
      %v8145 = vld [vmem:[%s13 + $0x68] sm:$0xf]
      %v8146 = vld [vmem:[%s13 + $0x6c] sm:$0xf]
      %v8147 = vld [vmem:[%s13 + $0x70] sm:$0xf]
      %v8148 = vld [vmem:[%s13 + $0x74] sm:$0xf]
      %v8149 = vld [vmem:[%s13 + $0x78] sm:$0xf]
      %v8150 = vld [vmem:[%s13 + $0x7c] sm:$0xf]
      %v8151 = vld [vmem:[%s13 + $0x80] sm:$0xf]
      %v8152 = vld [vmem:[%s13 + $0x84] sm:$0xf]
      %v8153 = vld [vmem:[%s13 + $0x88] sm:$0xf]
      %v8154 = vld [vmem:[%s13 + $0x8c] sm:$0xf]
      %v8155 = vld [vmem:[%s13 + $0x90] sm:$0xf]
      %v8156 = vld [vmem:[%s13 + $0x94] sm:$0xf]
      %v8157 = vld [vmem:[%s13 + $0x98] sm:$0xf]
      %v8158 = vld [vmem:[%s13 + $0x9c] sm:$0xf]
      %v8159 = vld [vmem:[%s13 + $0xa0] sm:$0xf]
      %v8160 = vld [vmem:[%s13 + $0xa4] sm:$0xf]
      %v8161 = vld [vmem:[%s13 + $0xa8] sm:$0xf]
      %v8162 = vld [vmem:[%s13 + $0xac] sm:$0xf]
      %v8163 = vld [vmem:[%s13 + $0xb0] sm:$0xf]
      %v8164 = vld [vmem:[%s13 + $0xb4] sm:$0xf]
      %v8165 = vld [vmem:[%s13 + $0xb8] sm:$0xf]
      %v8166 = vld [vmem:[%s13 + $0xbc] sm:$0xf]
      %v8167 = vld [vmem:[%s13 + $0xc0] sm:$0xf]
      %v8168 = vld [vmem:[%s13 + $0xc4] sm:$0xf]
      %v8169 = vld [vmem:[%s13 + $0xc8] sm:$0xf]
      %v8170 = vld [vmem:[%s13 + $0xcc] sm:$0xf]
      %v8171 = vld [vmem:[%s13 + $0xd0] sm:$0xf]
      %v8172 = vld [vmem:[%s13 + $0xd4] sm:$0xf]
      %v8173 = vld [vmem:[%s13 + $0xd8] sm:$0xf]
      %v8174 = vld [vmem:[%s13 + $0xdc] sm:$0xf]
      %v8175 = vld [vmem:[%s13 + $0xe0] sm:$0xf]
      %v8176 = vld [vmem:[%s13 + $0xe4] sm:$0xf]
      %v8177 = vld [vmem:[%s13 + $0xe8] sm:$0xf]
      %v8178 = vld [vmem:[%s13 + $0xec] sm:$0xf]
      %v8179 = vld [vmem:[%s13 + $0xf0] sm:$0xf]
      %v8180 = vld [vmem:[%s13 + $0xf4] sm:$0xf]
      %v8181 = vld [vmem:[%s13 + $0xf8] sm:$0xf]
      %v8182 = vld [vmem:[%s13 + $0xfc] sm:$0xf]
      %v8183 = vld [vmem:[%s14] sm:$0x1]
      %v8248 = vunpack.c.l.b16 %v8119
      %v8249 = vunpack.c.l.b16 %v8120
      %v8250 = vunpack.c.l.b16 %v8121
      %v8251 = vunpack.c.l.b16 %v8122
      %v8252 = vunpack.c.l.b16 %v8123
      %v8253 = vunpack.c.l.b16 %v8124
      %v8254 = vunpack.c.l.b16 %v8125
      %v8255 = vunpack.c.l.b16 %v8126
      %v8256 = vunpack.c.l.b16 %v8127
      %v8257 = vunpack.c.l.b16 %v8128
      %v8258 = vunpack.c.l.b16 %v8129
      %v8259 = vunpack.c.l.b16 %v8130
      %v8260 = vunpack.c.l.b16 %v8131
      %v8261 = vunpack.c.l.b16 %v8132
      %v8262 = vunpack.c.l.b16 %v8133
      %v8263 = vunpack.c.l.b16 %v8134
      %v8264 = vunpack.c.l.b16 %v8135
      %v8265 = vunpack.c.l.b16 %v8136
      %v8266 = vunpack.c.l.b16 %v8137
      %v8267 = vunpack.c.l.b16 %v8138
      %v8268 = vunpack.c.l.b16 %v8139
      %v8269 = vunpack.c.l.b16 %v8140
      %v8270 = vunpack.c.l.b16 %v8141
      %v8271 = vunpack.c.l.b16 %v8142
      %v8272 = vunpack.c.l.b16 %v8143
      %v8273 = vunpack.c.l.b16 %v8144
      %v8274 = vunpack.c.l.b16 %v8145
      %v8275 = vunpack.c.l.b16 %v8146
      %v8276 = vunpack.c.l.b16 %v8147
      %v8277 = vunpack.c.l.b16 %v8148
      %v8278 = vunpack.c.l.b16 %v8149
      %v8279 = vunpack.c.l.b16 %v8150
      %v8280 = vunpack.c.l.b16 %v8151
      %v8281 = vunpack.c.l.b16 %v8152
      %v8282 = vunpack.c.l.b16 %v8153
      %v8283 = vunpack.c.l.b16 %v8154
      %v8284 = vunpack.c.l.b16 %v8155
      %v8285 = vunpack.c.l.b16 %v8156
      %v8286 = vunpack.c.l.b16 %v8157
      %v8287 = vunpack.c.l.b16 %v8158
      %v8288 = vunpack.c.l.b16 %v8159
      %v8289 = vunpack.c.l.b16 %v8160
      %v8290 = vunpack.c.l.b16 %v8161
      %v8291 = vunpack.c.l.b16 %v8162
      %v8292 = vunpack.c.l.b16 %v8163
      %v8293 = vunpack.c.l.b16 %v8164
      %v8294 = vunpack.c.l.b16 %v8165
      %v8295 = vunpack.c.l.b16 %v8166
      %v8296 = vunpack.c.l.b16 %v8167
      %v8297 = vunpack.c.l.b16 %v8168
      %v8298 = vunpack.c.l.b16 %v8169
      %v8299 = vunpack.c.l.b16 %v8170
      %v8300 = vunpack.c.l.b16 %v8171
      %v8301 = vunpack.c.l.b16 %v8172
      %v8302 = vunpack.c.l.b16 %v8173
      %v8303 = vunpack.c.l.b16 %v8174
      %v8304 = vunpack.c.l.b16 %v8175
      %v8305 = vunpack.c.l.b16 %v8176
      %v8306 = vunpack.c.l.b16 %v8177
      %v8307 = vunpack.c.l.b16 %v8178
      %v8308 = vunpack.c.l.b16 %v8179
      %v8309 = vunpack.c.l.b16 %v8180
      %v8310 = vunpack.c.l.b16 %v8181
      %v8311 = vunpack.c.l.b16 %v8182
      %v8312 = vpack.c.b16 %v8249, %v8248
      %v8313 = vpack.c.b16 %v8251, %v8250
      %v8314 = vpack.c.b16 %v8253, %v8252
      %v8315 = vpack.c.b16 %v8255, %v8254
      %v8316 = vpack.c.b16 %v8257, %v8256
      %v8317 = vpack.c.b16 %v8259, %v8258
      %v8318 = vpack.c.b16 %v8261, %v8260
      %v8319 = vpack.c.b16 %v8263, %v8262
      %v8320 = vpack.c.b16 %v8265, %v8264
      %v8321 = vpack.c.b16 %v8267, %v8266
      %v8322 = vpack.c.b16 %v8269, %v8268
      %v8323 = vpack.c.b16 %v8271, %v8270
      %v8324 = vpack.c.b16 %v8273, %v8272
      %v8325 = vpack.c.b16 %v8275, %v8274
      %v8326 = vpack.c.b16 %v8277, %v8276
      %v8327 = vpack.c.b16 %v8279, %v8278
      %v8328 = vpack.c.b16 %v8281, %v8280
      %v8329 = vpack.c.b16 %v8283, %v8282
      %v8330 = vpack.c.b16 %v8285, %v8284
      %v8331 = vpack.c.b16 %v8287, %v8286
      %v8332 = vpack.c.b16 %v8289, %v8288
      %v8333 = vpack.c.b16 %v8291, %v8290
      %v8334 = vpack.c.b16 %v8293, %v8292
      %v8335 = vpack.c.b16 %v8295, %v8294
      %v8336 = vpack.c.b16 %v8297, %v8296
      %v8337 = vpack.c.b16 %v8299, %v8298
      %v8338 = vpack.c.b16 %v8301, %v8300
      %v8339 = vpack.c.b16 %v8303, %v8302
      %v8340 = vpack.c.b16 %v8305, %v8304
      %v8341 = vpack.c.b16 %v8307, %v8306
      %v8342 = vpack.c.b16 %v8309, %v8308
      %v8343 = vpack.c.b16 %v8311, %v8310
      %8376 = vmatprep.subr.bf16.mxu0 0
      %8377 = vmatpush1.bf16.msra.mxu0 %v8312
      %8378 = vmatprep.subr.bf16.mxu0 0
      %8379 = vmatpush1.bf16.msra.mxu0 %v8313
      %8380 = vmatprep.subr.bf16.mxu0 0
      %8381 = vmatpush1.bf16.msra.mxu0 %v8314
      %8382 = vmatprep.subr.bf16.mxu0 0
      %8383 = vmatpush1.bf16.msra.mxu0 %v8315
      %8384 = vmatprep.subr.bf16.mxu0 0
      %8385 = vmatpush1.bf16.msra.mxu0 %v8316
      %8386 = vmatprep.subr.bf16.mxu0 0
      %8387 = vmatpush1.bf16.msra.mxu0 %v8317
      %8388 = vmatprep.subr.bf16.mxu0 0
      %8389 = vmatpush1.bf16.msra.mxu0 %v8318
      %8390 = vmatprep.subr.bf16.mxu0 0
      %8391 = vmatpush1.bf16.msra.mxu0 %v8319
      %8392 = vmatprep.subr.bf16.mxu0 0
      %8393 = vmatpush1.bf16.msra.mxu0 %v8320
      %8394 = vmatprep.subr.bf16.mxu0 0
      %8395 = vmatpush1.bf16.msra.mxu0 %v8321
      %8396 = vmatprep.subr.bf16.mxu0 0
      %8397 = vmatpush1.bf16.msra.mxu0 %v8322
      %8398 = vmatprep.subr.bf16.mxu0 0
      %8399 = vmatpush1.bf16.msra.mxu0 %v8323
      %8400 = vmatprep.subr.bf16.mxu0 0
      %8401 = vmatpush1.bf16.msra.mxu0 %v8324
      %8402 = vmatprep.subr.bf16.mxu0 0
      %8403 = vmatpush1.bf16.msra.mxu0 %v8325
      %8404 = vmatprep.subr.bf16.mxu0 0
      %8405 = vmatpush1.bf16.msra.mxu0 %v8326
      %8406 = vmatprep.subr.bf16.mxu0 0
      %8407 = vmatpush1.bf16.msra.mxu0 %v8327
      %8408 = vmatprep.mubr.bf16.mxu0 %v8116
      %8409 = vmatmul.mubr.bf16.gmra.mrb[0].mxu0 %v8115
      %v8410 = vpop.f32.mrb[0].mxu0
      %v8411 = vadd.f32 %v8183, %v8410
      %v8412 = vpop.f32.mrb[0].mxu0
      %v8413 = vpop.f32.mrb[0].mxu0
      %v8414 = vpop.f32.mrb[0].mxu0
      %8415 = vdwg.mxu0
      %8416 = vmatprep.subr.bf16.mxu0 0
      %8417 = vmatpush1.bf16.msra.mxu0 %v8328
      %8418 = vmatprep.subr.bf16.mxu0 0
      %8419 = vmatpush1.bf16.msra.mxu0 %v8329
      %8420 = vmatprep.subr.bf16.mxu0 0
      %8421 = vmatpush1.bf16.msra.mxu0 %v8330
      %8422 = vmatprep.subr.bf16.mxu0 0
      %8423 = vmatpush1.bf16.msra.mxu0 %v8331
      %8424 = vmatprep.subr.bf16.mxu0 0
      %8425 = vmatpush1.bf16.msra.mxu0 %v8332
      %8426 = vmatprep.subr.bf16.mxu0 0
      %8427 = vmatpush1.bf16.msra.mxu0 %v8333
      %8428 = vmatprep.subr.bf16.mxu0 0
      %8429 = vmatpush1.bf16.msra.mxu0 %v8334
      %8430 = vmatprep.subr.bf16.mxu0 0
      %8431 = vmatpush1.bf16.msra.mxu0 %v8335
      %8432 = vmatprep.subr.bf16.mxu0 0
      %8433 = vmatpush1.bf16.msra.mxu0 %v8336
      %8434 = vmatprep.subr.bf16.mxu0 0
      %8435 = vmatpush1.bf16.msra.mxu0 %v8337
      %8436 = vmatprep.subr.bf16.mxu0 0
      %8437 = vmatpush1.bf16.msra.mxu0 %v8338
      %8438 = vmatprep.subr.bf16.mxu0 0
      %8439 = vmatpush1.bf16.msra.mxu0 %v8339
      %8440 = vmatprep.subr.bf16.mxu0 0
      %8441 = vmatpush1.bf16.msra.mxu0 %v8340
      %8442 = vmatprep.subr.bf16.mxu0 0
      %8443 = vmatpush1.bf16.msra.mxu0 %v8341
      %8444 = vmatprep.subr.bf16.mxu0 0
      %8445 = vmatpush1.bf16.msra.mxu0 %v8342
      %8446 = vmatprep.subr.bf16.mxu0 0
      %8447 = vmatpush1.bf16.msra.mxu0 %v8343
      %8448 = vmatprep.mubr.bf16.mxu0 %v8118
      %8449 = vmatmul.mubr.bf16.gmra.mrb[0].mxu0 %v8117
      %v8450 = vpop.f32.mrb[0].mxu0
      %v8451 = vadd.f32 %v8411, %v8450
      %v8452 = vpop.f32.mrb[0].mxu0
      %v8453 = vpop.f32.mrb[0].mxu0
      %v8454 = vpop.f32.mrb[0].mxu0
      %8455 = vdwg.mxu0
      %v8456 = vlaneseq
      %v8457 = vshrl.u32 %v8456, 7
      %v8458 = vsub.s32 0, %v8457
      %v8459 = vrot.slane %v8451, %v8458
      %8460 = vst [vmem:[%s492] sm:$0xff] %v8459
      %p8461 = scmp.lt.s32.totalorder %s26, 1
      %s8462 = scalar_select %p8461, %s26, 1
      %s8463 = smul.addr %s8462, 8
      %s8464 = scalar_lea.vmem %s15, %s8463
      // Predicated region
      $region81: #{conv2dnet_forward.1} parent=79 // pred_check
        %p8465 = pneg %p364
      $region82: #{conv2dnet_forward.1} parent=79 // pred_check_branch
        %8467 = sbr.rel (%p8465) target = $region84
      $region83: #{conv2dnet_forward.1} parent=79 // pred_region
        _
      $region84: #{conv2dnet_forward.1} parent=79 // pred_fallthru
        _
    $region80: #{conv2dnet_forward.1} parent=5 // pred_fallthru
      _
    %p8468 = scmp.le.s32.totalorder 2, %s21
    // Predicated region
    $region85: #{conv2dnet_forward.1} parent=5 // pred_check
      %p8469 = pneg %p8468
    $region86: #{conv2dnet_forward.1} parent=5 // pred_check_branch
      %8471 = sbr.rel (%p8469) target = $region88
    $region87: #{conv2dnet_forward.1} parent=5 // pred_region
      %s8472 = ssub.s32 %s21, 2
      // Predicated region
      $region89: #{conv2dnet_forward.1} parent=87 // pred_check
        %p8473 = pneg %p370
      $region90: #{conv2dnet_forward.1} parent=87 // pred_check_branch
        %8475 = sbr.rel (%p8473) target = $region92
      $region91: #{conv2dnet_forward.1} parent=87 // pred_region
        %p8476 = scmp.lt.s32.totalorder %s27, 1
        %s8477 = scalar_select %p8476, %s27, 1
        %s8478 = smul.addr %s8477, 8
        %s8479 = scalar_lea.vmem %s15, %s8478
      $region92: #{conv2dnet_forward.1} parent=87 // pred_fallthru
        _
    $region88: #{conv2dnet_forward.1} parent=5 // pred_fallthru
      _
  $region6: #{conv2dnet_forward.1} parent=0 // loop_footer
    %s25 = sadd.s32 1, %s21
  $region7: #{conv2dnet_forward.1} parent=0 // loop_footer_branch
    %20 = sbr.rel target = $region3
  $region8: #{conv2dnet_forward.1} parent=0 // loop_exit
    _

</llo_original>
